<compile_context>
chip_gen: v5e
topology: v5e:2x2
jax: 0.10.0
libtpu: 0.0.40
codegen_flags: <defaults>
</compile_context>

<pallas_src>
import jax
import jax.numpy as jnp
from jax import lax
from jax.experimental import pallas as pl
from jax.experimental.pallas import tpu as pltpu


# ----------------------------- shared math helpers ----------------------------

def _gelu_tanh(x):
    # PyTorch nn.GELU('tanh'): 0.5*x*(1 + tanh(sqrt(2/pi)*(x + 0.044715*x^3)))
    c = 0.7978845608028654
    return 0.5 * x * (1.0 + jnp.tanh(c * (x + 0.044715 * x * x * x)))


# ------------------------------ in-kernel helpers ------------------------------

def _bn_lane_dense(v, gamma, beta, C, inv_m, eps=1e-5):
    """Train-mode BatchNorm on a lane-dense (M, W*C) slab.

    One-pass stats (sum and sum-of-squares together); the cross-W per-channel
    reduction is a cyclic stride-C roll tree on the lane axis (XLU), which also
    broadcasts the per-channel result back to every W position for free.
    Requires W = (lanes / C) to be a power of two.
    """
    s = jnp.sum(v, axis=0, keepdims=True)            # (1, W*C) per-(x, c) sums
    ss = jnp.sum(v * v, axis=0, keepdims=True)
    stats = jnp.concatenate([s, ss], axis=0)          # (2, W*C)
    shift = v.shape[1] // 2
    while shift >= C:                                 # 256,128,64,32 for W*C=512,C=32
        stats = stats + pltpu.roll(stats, shift, axis=1)
        shift //= 2
    mean = stats[0:1, :] * inv_m
    var = stats[1:2, :] * inv_m - mean * mean         # biased variance (train mode)
    return (v - mean) * lax.rsqrt(var + eps) * gamma + beta


def _make_fused_kernel(N, H, W, C, KD, R):
    """Build the fused forward kernel for static dims (closure over Python ints)."""
    PAD = KD // 2
    NH, WC = N * H, W * C
    inv_m = 1.0 / float(N * H * W)

    def kernel(xcol_ref, wbig_ref, dww_ref, dwb_ref, g1_ref, b1_ref,
               pwk_ref, pwb_ref, g2_ref, b2_ref, o_ref, xpad_ref):
        # ---- conv_init: ONE im2col matmul on the MXU; result is already in the
        #      lane-dense (N*H, W*C) layout thanks to the block-diagonal weight. ----
        a = jnp.dot(xcol_ref[...], wbig_ref[...],
                    preferred_element_type=jnp.float32)           # (NH, WC) f32

        # Zero the padded depthwise scratch once; only the interior is rewritten
        # per block, so the halo stays zero ("same"/zero padding).
        xpad_ref[...] = jnp.zeros(xpad_ref.shape, jnp.float32)

        for r in range(R):                                         # mixer blocks, unrolled
            # ---- depthwise KDxKD "same" conv: KD*KD shifted VPU FMAs ----
            xpad_ref[:, PAD:PAD + H, PAD * C:PAD * C + WC] = a.reshape(N, H, WC)
            acc = jnp.zeros((NH, WC), jnp.float32) + dwb_ref[r]    # conv bias
            for dy in range(KD):
                for dx in range(KD):
                    t = dy * KD + dx
                    tap = xpad_ref[:, dy:dy + H, dx * C:dx * C + WC]   # (N, H, WC)
                    acc = acc + tap.reshape(NH, WC) * dww_ref[r, t:t + 1, :]

            h = _bn_lane_dense(_gelu_tanh(acc), g1_ref[r], b1_ref[r], C, inv_m)
            h = h + a                                   # residual around depthwise branch

            # ---- pointwise 1x1 conv: block-diagonal bf16 matmul, f32 accumulation ----
            p = jnp.dot(h.astype(jnp.bfloat16), pwk_ref[r],
                        preferred_element_type=jnp.float32) + pwb_ref[r]
            a = _bn_lane_dense(_gelu_tanh(p), g2_ref[r], b2_ref[r], C, inv_m)

        o_ref[...] = a                                  # (N*H, W*C): full-width stores

    return kernel


# ----------------------------------- wrapper -----------------------------------

def freak_model_forward(x_nchw, params):
    """Pallas forward: conv_init + R ConvMixer blocks fused in one pallas_call.

    Param layout convention (plain arrays, not torch tensors):
      w_init : (Kp, Kp, Cin, C)  HWIO
      dw_w   : (Kd, Kd, C)       per-channel taps,  dw_b: (C,)
      pw_w   : (C_in, C_out)=(C, C),                pw_b: (C,)
      bn*_g / bn*_b : (C,)
    """
    w_init = params["w_init"]
    blocks = params["mixer_blocks"]
    N, Cin, Hin, Win = x_nchw.shape
    Kp = w_init.shape[0]
    C = w_init.shape[3]
    # TODO(synk): reference nn.Conv2d uses its default stride=1 (canonical ConvMixer
    #             patch embedding would use stride=patch_size); we follow the reference.
    Ho, Wo = Hin - Kp + 1, Win - Kp + 1
    R = len(blocks)
    KD = blocks[0]["dw_w"].shape[0]
    PAD = KD // 2
    NH, WC = N * Ho, Wo * C
    KKC = Kp * Kp * Cin

    assert Wo & (Wo - 1) == 0, "Wo must be a power of two for the BN roll-tree"
    assert WC % 128 == 0, "lane-dense layout expects W*C to be a multiple of 128"

    # layout: NCHW -> NHWC once at the boundary; all kernel work is lane-dense.
    x = jnp.transpose(x_nchw, (0, 2, 3, 1)).astype(jnp.float32)

    # im2col slab for conv_init: (N*Ho, Wo*Kp*Kp*Cin). (Weight/activation packing below
    # is cheap XLA preprocessing; in a real model the weight packing is done once.)
    cols = []
    for ky in range(Kp):
        for kx in range(Kp):
            cols.append(x[:, ky:ky + Ho, kx:kx + Wo, :])
    xcol = jnp.concatenate(cols, axis=-1).reshape(NH, Wo * KKC)

    # conv_init weight as block-diagonal (Wo*KKC, Wo*C) so one MXU matmul lands the
    # result directly in the lane-dense layout (no in-kernel relayout).
    wbig = jnp.kron(jnp.eye(Wo, dtype=jnp.float32), w_init.reshape(KKC, C))

    def tile_c(v):                                    # (C,) -> (1, Wo*C) lane-dense
        return jnp.tile(v.astype(jnp.float32), Wo)[None, :]

    dww = jnp.stack([jnp.tile(b["dw_w"].reshape(KD * KD, C).astype(jnp.float32), (1, Wo))
                     for b in blocks])                # (R, KD*KD, WC)
    dwb = jnp.stack([tile_c(b["dw_b"]) for b in blocks])      # (R, 1, WC)
    g1 = jnp.stack([tile_c(b["bn1_g"]) for b in blocks])
    b1 = jnp.stack([tile_c(b["bn1_b"]) for b in blocks])
    pwb = jnp.stack([tile_c(b["pw_b"]) for b in blocks])
    g2 = jnp.stack([tile_c(b["bn2_g"]) for b in blocks])
    b2 = jnp.stack([tile_c(b["bn2_b"]) for b in blocks])
    # pointwise 1x1 conv as a block-diagonal (WC, WC) matmul; bf16 operands, f32 acc.
    pwk = jnp.stack([jnp.kron(jnp.eye(Wo, dtype=jnp.float32), b["pw_w"].astype(jnp.float32))
                     for b in blocks]).astype(jnp.bfloat16)   # (R, WC, WC)

    kernel = _make_fused_kernel(N, Ho, Wo, C, KD, R)
    vmem = pl.BlockSpec(memory_space=pltpu.MemorySpace.VMEM)
    out = pl.pallas_call(
        kernel,
        out_shape=jax.ShapeDtypeStruct((NH, WC), jnp.float32),
        in_specs=[vmem] * 10,
        out_specs=vmem,
        scratch_shapes=[pltpu.VMEM((N, Ho + 2 * PAD, (Wo + 2 * PAD) * C), jnp.float32)],
    )(xcol, wbig, dww, dwb, g1, b1, pwk, pwb, g2, b2)

    # lane-dense (N*Ho, Wo*C) -> NCHW at the boundary (matches the nn.Module layout).
    return jnp.transpose(out.reshape(N, Ho, Wo, C), (0, 3, 1, 2))


# ----------------------- pure-JAX reference (for validation) -------------------

def _reference_forward(x_nchw, params):
    x = jnp.transpose(x_nchw, (0, 2, 3, 1)).astype(jnp.float32)
    x = lax.conv_general_dilated(
        x, params["w_init"], (1, 1), "VALID",
        dimension_numbers=("NHWC", "HWIO", "NHWC"),
        precision=lax.Precision.HIGHEST)
    eps = 1e-5
    for blk in params["mixer_blocks"]:
        dw, dwb = blk["dw_w"], blk["dw_b"]
        K = dw.shape[0]
        p = K // 2
        N, H, W, C = x.shape
        xp = jnp.pad(x, ((0, 0), (p, p), (p, p), (0, 0)))
        y = jnp.zeros_like(x) + dwb
        for ky in range(K):
            for kx in range(K):
                y = y + xp[:, ky:ky + H, kx:kx + W, :] * dw[ky, kx]
        y = _gelu_tanh(y)
        m = jnp.mean(y, axis=(0, 1, 2), keepdims=True)
        v = jnp.mean(y * y, axis=(0, 1, 2), keepdims=True) - m * m
        y = (y - m) * lax.rsqrt(v + eps) * blk["bn1_g"] + blk["bn1_b"]
        x = y + x
        # mirrors the kernel's bf16-operand / f32-accumulation pointwise conv
        q = jnp.einsum("nhwc,cd->nhwd", x.astype(jnp.bfloat16),
                       blk["pw_w"].astype(jnp.bfloat16),
                       preferred_element_type=jnp.float32) + blk["pw_b"]
        q = _gelu_tanh(q)
        m = jnp.mean(q, axis=(0, 1, 2), keepdims=True)
        v = jnp.mean(q * q, axis=(0, 1, 2), keepdims=True) - m * m
        x = (q - m) * lax.rsqrt(v + eps) * blk["bn2_g"] + blk["bn2_b"]
    return jnp.transpose(x, (0, 3, 1, 2))


# ------------------------------------ main -------------------------------------

if __name__ == "__main__":
    # Small shapes consistent with the module:
    #   batch=2, in_channels=3, spatial=19 (-> 16x16 after 4x4 stride-1 valid conv),
    #   embedding_dim_conv=32, conv_kernel_size=5, conv_mixer_repetition=2.
    N, Cin, Hin, Win = 2, 3, 19, 19
    C = 32
    PATCH = 4
    KD = 5
    R = 2

    key = jax.random.PRNGKey(0)
    ks = jax.random.split(key, 2 + R)

    x_nchw = jax.random.normal(ks[0], (N, Cin, Hin, Win), jnp.float32)
    w_init = 0.1 * jax.random.normal(ks[1], (PATCH, PATCH, Cin, C), jnp.float32)

    mixer_blocks = []
    for r in range(R):
        kk = jax.random.split(ks[2 + r], 8)
        mixer_blocks.append(dict(
            dw_w=0.1 * jax.random.normal(kk[0], (KD, KD, C), jnp.float32),
            dw_b=0.1 * jax.random.normal(kk[1], (C,), jnp.float32),
            pw_w=0.1 * jax.random.normal(kk[2], (C, C), jnp.float32),
            pw_b=0.1 * jax.random.normal(kk[3], (C,), jnp.float32),
            bn1_g=1.0 + 0.1 * jax.random.normal(kk[4], (C,), jnp.float32),
            bn1_b=0.1 * jax.random.normal(kk[5], (C,), jnp.float32),
            bn2_g=1.0 + 0.1 * jax.random.normal(kk[6], (C,), jnp.float32),
            bn2_b=0.1 * jax.random.normal(kk[7], (C,), jnp.float32),
        ))
    params = dict(w_init=w_init, mixer_blocks=mixer_blocks)

    out = jax.jit(freak_model_forward)(x_nchw, params)
    jax.block_until_ready(out)
    assert out.shape == (N, C, Hin - PATCH + 1, Win - PATCH + 1)

    ref = jax.jit(_reference_forward)(x_nchw, params)
    jax.block_until_ready(ref)
    diff = float(jnp.max(jnp.abs(out - ref)))
    ref_mag = float(jnp.max(jnp.abs(ref)))
    assert diff <= 2e-2 + 2e-2 * ref_mag, f"kernel vs reference mismatch: {diff}"

    print("KERNEL_OK")
</pallas_src>

<mosaic_0001>
module attributes {stable_mosaic.version = 11 : i64} {
  func.func @kernel(%arg0: memref<32x768xf32, #tpu.memory_space<vmem>>, %arg1: memref<768x512xf32, #tpu.memory_space<vmem>>, %arg2: memref<2x25x512xf32, #tpu.memory_space<vmem>>, %arg3: memref<2x1x512xf32, #tpu.memory_space<vmem>>, %arg4: memref<2x1x512xf32, #tpu.memory_space<vmem>>, %arg5: memref<2x1x512xf32, #tpu.memory_space<vmem>>, %arg6: memref<2x512x512xbf16, #tpu.memory_space<vmem>>, %arg7: memref<2x1x512xf32, #tpu.memory_space<vmem>>, %arg8: memref<2x1x512xf32, #tpu.memory_space<vmem>>, %arg9: memref<2x1x512xf32, #tpu.memory_space<vmem>>, %arg10: memref<32x512xf32, #tpu.memory_space<vmem>>, %arg11: memref<2x20x640xf32, #tpu.memory_space<vmem>>) attributes {dimension_semantics = [], scalar_prefetch = 0 : i64, scratch_operands = 1 : i64, tpu.core_type = #tpu.core_type<tc>} {
    %c0 = arith.constant 0 : index
    %c0_0 = arith.constant 0 : index
    %0 = vector.load %arg0[%c0, %c0_0] : memref<32x768xf32, #tpu.memory_space<vmem>>, vector<32x768xf32>
    %c0_1 = arith.constant 0 : index
    %c0_2 = arith.constant 0 : index
    %1 = vector.load %arg1[%c0_1, %c0_2] : memref<768x512xf32, #tpu.memory_space<vmem>>, vector<768x512xf32>
    %cst = arith.constant dense<0.000000e+00> : vector<32x512xf32>
    %2 = tpu.matmul %0, %1, %cst {dimension_numbers = #tpu.dot_dimension_numbers<[1], [0], [0], [1], [0, 0, 1, 1], [], []>} : vector<32x768xf32>, vector<768x512xf32>, vector<32x512xf32> -> vector<32x512xf32>
    %cst_3 = arith.constant 0.000000e+00 : f32
    %3 = vector.broadcast %cst_3 : f32 to vector<2x20x640xf32>
    %c0_4 = arith.constant 0 : index
    %c0_5 = arith.constant 0 : index
    %c0_6 = arith.constant 0 : index
    %4 = vector.load %arg11[%c0_4, %c0_5, %c0_6] : memref<2x20x640xf32, #tpu.memory_space<vmem>>, vector<2x20x640xf32>
    tpu.vector_store %arg11[%c0_4, %c0_5, %c0_6], %3 {strides = array<i32>} : memref<2x20x640xf32, #tpu.memory_space<vmem>>, vector<2x20x640xf32>,
    %5 = vector.shape_cast %2 : vector<32x512xf32> to vector<2x16x512xf32>
    %c0_7 = arith.constant 0 : index
    %c2 = arith.constant 2 : index
    %c64 = arith.constant 64 : index
    %6 = vector.load %arg11[%c0_7, %c2, %c64] : memref<2x20x640xf32, #tpu.memory_space<vmem>>, vector<2x16x512xf32>
    tpu.vector_store %arg11[%c0_7, %c2, %c64], %5 {strides = array<i32>} : memref<2x20x640xf32, #tpu.memory_space<vmem>>, vector<2x16x512xf32>,
    %cst_8 = arith.constant 0.000000e+00 : f32
    %7 = vector.broadcast %cst_8 : f32 to vector<32x512xf32>
    %c0_9 = arith.constant 0 : index
    %c0_10 = arith.constant 0 : index
    %c0_11 = arith.constant 0 : index
    %8 = vector.load %arg3[%c0_9, %c0_10, %c0_11] : memref<2x1x512xf32, #tpu.memory_space<vmem>>, vector<1x1x512xf32>
    %9 = vector.shape_cast %8 : vector<1x1x512xf32> to vector<1x512xf32>
    %10 = vector.broadcast %9 : vector<1x512xf32> to vector<32x512xf32>
    %11 = arith.addf %7, %10 : vector<32x512xf32>
    %c0_12 = arith.constant 0 : index
    %c0_13 = arith.constant 0 : index
    %c0_14 = arith.constant 0 : index
    %12 = vector.load %arg11[%c0_12, %c0_13, %c0_14] : memref<2x20x640xf32, #tpu.memory_space<vmem>>, vector<2x16x512xf32>
    %13 = vector.shape_cast %12 : vector<2x16x512xf32> to vector<32x512xf32>
    %c0_15 = arith.constant 0 : index
    %c0_16 = arith.constant 0 : index
    %c0_17 = arith.constant 0 : index
    %14 = vector.load %arg2[%c0_15, %c0_16, %c0_17] : memref<2x25x512xf32, #tpu.memory_space<vmem>>, vector<1x1x512xf32>
    %15 = vector.shape_cast %14 : vector<1x1x512xf32> to vector<1x512xf32>
    %16 = vector.broadcast %15 : vector<1x512xf32> to vector<32x512xf32>
    %17 = arith.mulf %13, %16 : vector<32x512xf32>
    %18 = arith.addf %11, %17 : vector<32x512xf32>
    %c0_18 = arith.constant 0 : index
    %c0_19 = arith.constant 0 : index
    %c32 = arith.constant 32 : index
    %19 = vector.load %arg11[%c0_18, %c0_19, %c32] : memref<2x20x640xf32, #tpu.memory_space<vmem>>, vector<2x16x512xf32>
    %20 = vector.shape_cast %19 : vector<2x16x512xf32> to vector<32x512xf32>
    %c0_20 = arith.constant 0 : index
    %c1 = arith.constant 1 : index
    %c0_21 = arith.constant 0 : index
    %21 = vector.load %arg2[%c0_20, %c1, %c0_21] : memref<2x25x512xf32, #tpu.memory_space<vmem>>, vector<1x1x512xf32>
    %22 = vector.shape_cast %21 : vector<1x1x512xf32> to vector<1x512xf32>
    %23 = vector.broadcast %22 : vector<1x512xf32> to vector<32x512xf32>
    %24 = arith.mulf %20, %23 : vector<32x512xf32>
    %25 = arith.addf %18, %24 : vector<32x512xf32>
    %c0_22 = arith.constant 0 : index
    %c0_23 = arith.constant 0 : index
    %c64_24 = arith.constant 64 : index
    %26 = vector.load %arg11[%c0_22, %c0_23, %c64_24] : memref<2x20x640xf32, #tpu.memory_space<vmem>>, vector<2x16x512xf32>
    %27 = vector.shape_cast %26 : vector<2x16x512xf32> to vector<32x512xf32>
    %c0_25 = arith.constant 0 : index
    %c2_26 = arith.constant 2 : index
    %c0_27 = arith.constant 0 : index
    %28 = vector.load %arg2[%c0_25, %c2_26, %c0_27] : memref<2x25x512xf32, #tpu.memory_space<vmem>>, vector<1x1x512xf32>
    %29 = vector.shape_cast %28 : vector<1x1x512xf32> to vector<1x512xf32>
    %30 = vector.broadcast %29 : vector<1x512xf32> to vector<32x512xf32>
    %31 = arith.mulf %27, %30 : vector<32x512xf32>
    %32 = arith.addf %25, %31 : vector<32x512xf32>
    %c0_28 = arith.constant 0 : index
    %c0_29 = arith.constant 0 : index
    %c96 = arith.constant 96 : index
    %33 = vector.load %arg11[%c0_28, %c0_29, %c96] : memref<2x20x640xf32, #tpu.memory_space<vmem>>, vector<2x16x512xf32>
    %34 = vector.shape_cast %33 : vector<2x16x512xf32> to vector<32x512xf32>
    %c0_30 = arith.constant 0 : index
    %c3 = arith.constant 3 : index
    %c0_31 = arith.constant 0 : index
    %35 = vector.load %arg2[%c0_30, %c3, %c0_31] : memref<2x25x512xf32, #tpu.memory_space<vmem>>, vector<1x1x512xf32>
    %36 = vector.shape_cast %35 : vector<1x1x512xf32> to vector<1x512xf32>
    %37 = vector.broadcast %36 : vector<1x512xf32> to vector<32x512xf32>
    %38 = arith.mulf %34, %37 : vector<32x512xf32>
    %39 = arith.addf %32, %38 : vector<32x512xf32>
    %c0_32 = arith.constant 0 : index
    %c0_33 = arith.constant 0 : index
    %c128 = arith.constant 128 : index
    %40 = vector.load %arg11[%c0_32, %c0_33, %c128] : memref<2x20x640xf32, #tpu.memory_space<vmem>>, vector<2x16x512xf32>
    %41 = vector.shape_cast %40 : vector<2x16x512xf32> to vector<32x512xf32>
    %c0_34 = arith.constant 0 : index
    %c4 = arith.constant 4 : index
    %c0_35 = arith.constant 0 : index
    %42 = vector.load %arg2[%c0_34, %c4, %c0_35] : memref<2x25x512xf32, #tpu.memory_space<vmem>>, vector<1x1x512xf32>
    %43 = vector.shape_cast %42 : vector<1x1x512xf32> to vector<1x512xf32>
    %44 = vector.broadcast %43 : vector<1x512xf32> to vector<32x512xf32>
    %45 = arith.mulf %41, %44 : vector<32x512xf32>
    %46 = arith.addf %39, %45 : vector<32x512xf32>
    %c0_36 = arith.constant 0 : index
    %c1_37 = arith.constant 1 : index
    %c0_38 = arith.constant 0 : index
    %47 = vector.load %arg11[%c0_36, %c1_37, %c0_38] : memref<2x20x640xf32, #tpu.memory_space<vmem>>, vector<2x16x512xf32>
    %48 = vector.shape_cast %47 : vector<2x16x512xf32> to vector<32x512xf32>
    %c0_39 = arith.constant 0 : index
    %c5 = arith.constant 5 : index
    %c0_40 = arith.constant 0 : index
    %49 = vector.load %arg2[%c0_39, %c5, %c0_40] : memref<2x25x512xf32, #tpu.memory_space<vmem>>, vector<1x1x512xf32>
    %50 = vector.shape_cast %49 : vector<1x1x512xf32> to vector<1x512xf32>
    %51 = vector.broadcast %50 : vector<1x512xf32> to vector<32x512xf32>
    %52 = arith.mulf %48, %51 : vector<32x512xf32>
    %53 = arith.addf %46, %52 : vector<32x512xf32>
    %c0_41 = arith.constant 0 : index
    %c1_42 = arith.constant 1 : index
    %c32_43 = arith.constant 32 : index
    %54 = vector.load %arg11[%c0_41, %c1_42, %c32_43] : memref<2x20x640xf32, #tpu.memory_space<vmem>>, vector<2x16x512xf32>
    %55 = vector.shape_cast %54 : vector<2x16x512xf32> to vector<32x512xf32>
    %c0_44 = arith.constant 0 : index
    %c6 = arith.constant 6 : index
    %c0_45 = arith.constant 0 : index
    %56 = vector.load %arg2[%c0_44, %c6, %c0_45] : memref<2x25x512xf32, #tpu.memory_space<vmem>>, vector<1x1x512xf32>
    %57 = vector.shape_cast %56 : vector<1x1x512xf32> to vector<1x512xf32>
    %58 = vector.broadcast %57 : vector<1x512xf32> to vector<32x512xf32>
    %59 = arith.mulf %55, %58 : vector<32x512xf32>
    %60 = arith.addf %53, %59 : vector<32x512xf32>
    %c0_46 = arith.constant 0 : index
    %c1_47 = arith.constant 1 : index
    %c64_48 = arith.constant 64 : index
    %61 = vector.load %arg11[%c0_46, %c1_47, %c64_48] : memref<2x20x640xf32, #tpu.memory_space<vmem>>, vector<2x16x512xf32>
    %62 = vector.shape_cast %61 : vector<2x16x512xf32> to vector<32x512xf32>
    %c0_49 = arith.constant 0 : index
    %c7 = arith.constant 7 : index
    %c0_50 = arith.constant 0 : index
    %63 = vector.load %arg2[%c0_49, %c7, %c0_50] : memref<2x25x512xf32, #tpu.memory_space<vmem>>, vector<1x1x512xf32>
    %64 = vector.shape_cast %63 : vector<1x1x512xf32> to vector<1x512xf32>
    %65 = vector.broadcast %64 : vector<1x512xf32> to vector<32x512xf32>
    %66 = arith.mulf %62, %65 : vector<32x512xf32>
    %67 = arith.addf %60, %66 : vector<32x512xf32>
    %c0_51 = arith.constant 0 : index
    %c1_52 = arith.constant 1 : index
    %c96_53 = arith.constant 96 : index
    %68 = vector.load %arg11[%c0_51, %c1_52, %c96_53] : memref<2x20x640xf32, #tpu.memory_space<vmem>>, vector<2x16x512xf32>
    %69 = vector.shape_cast %68 : vector<2x16x512xf32> to vector<32x512xf32>
    %c0_54 = arith.constant 0 : index
    %c8 = arith.constant 8 : index
    %c0_55 = arith.constant 0 : index
    %70 = vector.load %arg2[%c0_54, %c8, %c0_55] : memref<2x25x512xf32, #tpu.memory_space<vmem>>, vector<1x1x512xf32>
    %71 = vector.shape_cast %70 : vector<1x1x512xf32> to vector<1x512xf32>
    %72 = vector.broadcast %71 : vector<1x512xf32> to vector<32x512xf32>
    %73 = arith.mulf %69, %72 : vector<32x512xf32>
    %74 = arith.addf %67, %73 : vector<32x512xf32>
    %c0_56 = arith.constant 0 : index
    %c1_57 = arith.constant 1 : index
    %c128_58 = arith.constant 128 : index
    %75 = vector.load %arg11[%c0_56, %c1_57, %c128_58] : memref<2x20x640xf32, #tpu.memory_space<vmem>>, vector<2x16x512xf32>
    %76 = vector.shape_cast %75 : vector<2x16x512xf32> to vector<32x512xf32>
    %c0_59 = arith.constant 0 : index
    %c9 = arith.constant 9 : index
    %c0_60 = arith.constant 0 : index
    %77 = vector.load %arg2[%c0_59, %c9, %c0_60] : memref<2x25x512xf32, #tpu.memory_space<vmem>>, vector<1x1x512xf32>
    %78 = vector.shape_cast %77 : vector<1x1x512xf32> to vector<1x512xf32>
    %79 = vector.broadcast %78 : vector<1x512xf32> to vector<32x512xf32>
    %80 = arith.mulf %76, %79 : vector<32x512xf32>
    %81 = arith.addf %74, %80 : vector<32x512xf32>
    %c0_61 = arith.constant 0 : index
    %c2_62 = arith.constant 2 : index
    %c0_63 = arith.constant 0 : index
    %82 = vector.load %arg11[%c0_61, %c2_62, %c0_63] : memref<2x20x640xf32, #tpu.memory_space<vmem>>, vector<2x16x512xf32>
    %83 = vector.shape_cast %82 : vector<2x16x512xf32> to vector<32x512xf32>
    %c0_64 = arith.constant 0 : index
    %c10 = arith.constant 10 : index
    %c0_65 = arith.constant 0 : index
    %84 = vector.load %arg2[%c0_64, %c10, %c0_65] : memref<2x25x512xf32, #tpu.memory_space<vmem>>, vector<1x1x512xf32>
    %85 = vector.shape_cast %84 : vector<1x1x512xf32> to vector<1x512xf32>
    %86 = vector.broadcast %85 : vector<1x512xf32> to vector<32x512xf32>
    %87 = arith.mulf %83, %86 : vector<32x512xf32>
    %88 = arith.addf %81, %87 : vector<32x512xf32>
    %c0_66 = arith.constant 0 : index
    %c2_67 = arith.constant 2 : index
    %c32_68 = arith.constant 32 : index
    %89 = vector.load %arg11[%c0_66, %c2_67, %c32_68] : memref<2x20x640xf32, #tpu.memory_space<vmem>>, vector<2x16x512xf32>
    %90 = vector.shape_cast %89 : vector<2x16x512xf32> to vector<32x512xf32>
    %c0_69 = arith.constant 0 : index
    %c11 = arith.constant 11 : index
    %c0_70 = arith.constant 0 : index
    %91 = vector.load %arg2[%c0_69, %c11, %c0_70] : memref<2x25x512xf32, #tpu.memory_space<vmem>>, vector<1x1x512xf32>
    %92 = vector.shape_cast %91 : vector<1x1x512xf32> to vector<1x512xf32>
    %93 = vector.broadcast %92 : vector<1x512xf32> to vector<32x512xf32>
    %94 = arith.mulf %90, %93 : vector<32x512xf32>
    %95 = arith.addf %88, %94 : vector<32x512xf32>
    %c0_71 = arith.constant 0 : index
    %c2_72 = arith.constant 2 : index
    %c64_73 = arith.constant 64 : index
    %96 = vector.load %arg11[%c0_71, %c2_72, %c64_73] : memref<2x20x640xf32, #tpu.memory_space<vmem>>, vector<2x16x512xf32>
    %97 = vector.shape_cast %96 : vector<2x16x512xf32> to vector<32x512xf32>
    %c0_74 = arith.constant 0 : index
    %c12 = arith.constant 12 : index
    %c0_75 = arith.constant 0 : index
    %98 = vector.load %arg2[%c0_74, %c12, %c0_75] : memref<2x25x512xf32, #tpu.memory_space<vmem>>, vector<1x1x512xf32>
    %99 = vector.shape_cast %98 : vector<1x1x512xf32> to vector<1x512xf32>
    %100 = vector.broadcast %99 : vector<1x512xf32> to vector<32x512xf32>
    %101 = arith.mulf %97, %100 : vector<32x512xf32>
    %102 = arith.addf %95, %101 : vector<32x512xf32>
    %c0_76 = arith.constant 0 : index
    %c2_77 = arith.constant 2 : index
    %c96_78 = arith.constant 96 : index
    %103 = vector.load %arg11[%c0_76, %c2_77, %c96_78] : memref<2x20x640xf32, #tpu.memory_space<vmem>>, vector<2x16x512xf32>
    %104 = vector.shape_cast %103 : vector<2x16x512xf32> to vector<32x512xf32>
    %c0_79 = arith.constant 0 : index
    %c13 = arith.constant 13 : index
    %c0_80 = arith.constant 0 : index
    %105 = vector.load %arg2[%c0_79, %c13, %c0_80] : memref<2x25x512xf32, #tpu.memory_space<vmem>>, vector<1x1x512xf32>
    %106 = vector.shape_cast %105 : vector<1x1x512xf32> to vector<1x512xf32>
    %107 = vector.broadcast %106 : vector<1x512xf32> to vector<32x512xf32>
    %108 = arith.mulf %104, %107 : vector<32x512xf32>
    %109 = arith.addf %102, %108 : vector<32x512xf32>
    %c0_81 = arith.constant 0 : index
    %c2_82 = arith.constant 2 : index
    %c128_83 = arith.constant 128 : index
    %110 = vector.load %arg11[%c0_81, %c2_82, %c128_83] : memref<2x20x640xf32, #tpu.memory_space<vmem>>, vector<2x16x512xf32>
    %111 = vector.shape_cast %110 : vector<2x16x512xf32> to vector<32x512xf32>
    %c0_84 = arith.constant 0 : index
    %c14 = arith.constant 14 : index
    %c0_85 = arith.constant 0 : index
    %112 = vector.load %arg2[%c0_84, %c14, %c0_85] : memref<2x25x512xf32, #tpu.memory_space<vmem>>, vector<1x1x512xf32>
    %113 = vector.shape_cast %112 : vector<1x1x512xf32> to vector<1x512xf32>
    %114 = vector.broadcast %113 : vector<1x512xf32> to vector<32x512xf32>
    %115 = arith.mulf %111, %114 : vector<32x512xf32>
    %116 = arith.addf %109, %115 : vector<32x512xf32>
    %c0_86 = arith.constant 0 : index
    %c3_87 = arith.constant 3 : index
    %c0_88 = arith.constant 0 : index
    %117 = vector.load %arg11[%c0_86, %c3_87, %c0_88] : memref<2x20x640xf32, #tpu.memory_space<vmem>>, vector<2x16x512xf32>
    %118 = vector.shape_cast %117 : vector<2x16x512xf32> to vector<32x512xf32>
    %c0_89 = arith.constant 0 : index
    %c15 = arith.constant 15 : index
    %c0_90 = arith.constant 0 : index
    %119 = vector.load %arg2[%c0_89, %c15, %c0_90] : memref<2x25x512xf32, #tpu.memory_space<vmem>>, vector<1x1x512xf32>
    %120 = vector.shape_cast %119 : vector<1x1x512xf32> to vector<1x512xf32>
    %121 = vector.broadcast %120 : vector<1x512xf32> to vector<32x512xf32>
    %122 = arith.mulf %118, %121 : vector<32x512xf32>
    %123 = arith.addf %116, %122 : vector<32x512xf32>
    %c0_91 = arith.constant 0 : index
    %c3_92 = arith.constant 3 : index
    %c32_93 = arith.constant 32 : index
    %124 = vector.load %arg11[%c0_91, %c3_92, %c32_93] : memref<2x20x640xf32, #tpu.memory_space<vmem>>, vector<2x16x512xf32>
    %125 = vector.shape_cast %124 : vector<2x16x512xf32> to vector<32x512xf32>
    %c0_94 = arith.constant 0 : index
    %c16 = arith.constant 16 : index
    %c0_95 = arith.constant 0 : index
    %126 = vector.load %arg2[%c0_94, %c16, %c0_95] : memref<2x25x512xf32, #tpu.memory_space<vmem>>, vector<1x1x512xf32>
    %127 = vector.shape_cast %126 : vector<1x1x512xf32> to vector<1x512xf32>
    %128 = vector.broadcast %127 : vector<1x512xf32> to vector<32x512xf32>
    %129 = arith.mulf %125, %128 : vector<32x512xf32>
    %130 = arith.addf %123, %129 : vector<32x512xf32>
    %c0_96 = arith.constant 0 : index
    %c3_97 = arith.constant 3 : index
    %c64_98 = arith.constant 64 : index
    %131 = vector.load %arg11[%c0_96, %c3_97, %c64_98] : memref<2x20x640xf32, #tpu.memory_space<vmem>>, vector<2x16x512xf32>
    %132 = vector.shape_cast %131 : vector<2x16x512xf32> to vector<32x512xf32>
    %c0_99 = arith.constant 0 : index
    %c17 = arith.constant 17 : index
    %c0_100 = arith.constant 0 : index
    %133 = vector.load %arg2[%c0_99, %c17, %c0_100] : memref<2x25x512xf32, #tpu.memory_space<vmem>>, vector<1x1x512xf32>
    %134 = vector.shape_cast %133 : vector<1x1x512xf32> to vector<1x512xf32>
    %135 = vector.broadcast %134 : vector<1x512xf32> to vector<32x512xf32>
    %136 = arith.mulf %132, %135 : vector<32x512xf32>
    %137 = arith.addf %130, %136 : vector<32x512xf32>
    %c0_101 = arith.constant 0 : index
    %c3_102 = arith.constant 3 : index
    %c96_103 = arith.constant 96 : index
    %138 = vector.load %arg11[%c0_101, %c3_102, %c96_103] : memref<2x20x640xf32, #tpu.memory_space<vmem>>, vector<2x16x512xf32>
    %139 = vector.shape_cast %138 : vector<2x16x512xf32> to vector<32x512xf32>
    %c0_104 = arith.constant 0 : index
    %c18 = arith.constant 18 : index
    %c0_105 = arith.constant 0 : index
    %140 = vector.load %arg2[%c0_104, %c18, %c0_105] : memref<2x25x512xf32, #tpu.memory_space<vmem>>, vector<1x1x512xf32>
    %141 = vector.shape_cast %140 : vector<1x1x512xf32> to vector<1x512xf32>
    %142 = vector.broadcast %141 : vector<1x512xf32> to vector<32x512xf32>
    %143 = arith.mulf %139, %142 : vector<32x512xf32>
    %144 = arith.addf %137, %143 : vector<32x512xf32>
    %c0_106 = arith.constant 0 : index
    %c3_107 = arith.constant 3 : index
    %c128_108 = arith.constant 128 : index
    %145 = vector.load %arg11[%c0_106, %c3_107, %c128_108] : memref<2x20x640xf32, #tpu.memory_space<vmem>>, vector<2x16x512xf32>
    %146 = vector.shape_cast %145 : vector<2x16x512xf32> to vector<32x512xf32>
    %c0_109 = arith.constant 0 : index
    %c19 = arith.constant 19 : index
    %c0_110 = arith.constant 0 : index
    %147 = vector.load %arg2[%c0_109, %c19, %c0_110] : memref<2x25x512xf32, #tpu.memory_space<vmem>>, vector<1x1x512xf32>
    %148 = vector.shape_cast %147 : vector<1x1x512xf32> to vector<1x512xf32>
    %149 = vector.broadcast %148 : vector<1x512xf32> to vector<32x512xf32>
    %150 = arith.mulf %146, %149 : vector<32x512xf32>
    %151 = arith.addf %144, %150 : vector<32x512xf32>
    %c0_111 = arith.constant 0 : index
    %c4_112 = arith.constant 4 : index
    %c0_113 = arith.constant 0 : index
    %152 = vector.load %arg11[%c0_111, %c4_112, %c0_113] : memref<2x20x640xf32, #tpu.memory_space<vmem>>, vector<2x16x512xf32>
    %153 = vector.shape_cast %152 : vector<2x16x512xf32> to vector<32x512xf32>
    %c0_114 = arith.constant 0 : index
    %c20 = arith.constant 20 : index
    %c0_115 = arith.constant 0 : index
    %154 = vector.load %arg2[%c0_114, %c20, %c0_115] : memref<2x25x512xf32, #tpu.memory_space<vmem>>, vector<1x1x512xf32>
    %155 = vector.shape_cast %154 : vector<1x1x512xf32> to vector<1x512xf32>
    %156 = vector.broadcast %155 : vector<1x512xf32> to vector<32x512xf32>
    %157 = arith.mulf %153, %156 : vector<32x512xf32>
    %158 = arith.addf %151, %157 : vector<32x512xf32>
    %c0_116 = arith.constant 0 : index
    %c4_117 = arith.constant 4 : index
    %c32_118 = arith.constant 32 : index
    %159 = vector.load %arg11[%c0_116, %c4_117, %c32_118] : memref<2x20x640xf32, #tpu.memory_space<vmem>>, vector<2x16x512xf32>
    %160 = vector.shape_cast %159 : vector<2x16x512xf32> to vector<32x512xf32>
    %c0_119 = arith.constant 0 : index
    %c21 = arith.constant 21 : index
    %c0_120 = arith.constant 0 : index
    %161 = vector.load %arg2[%c0_119, %c21, %c0_120] : memref<2x25x512xf32, #tpu.memory_space<vmem>>, vector<1x1x512xf32>
    %162 = vector.shape_cast %161 : vector<1x1x512xf32> to vector<1x512xf32>
    %163 = vector.broadcast %162 : vector<1x512xf32> to vector<32x512xf32>
    %164 = arith.mulf %160, %163 : vector<32x512xf32>
    %165 = arith.addf %158, %164 : vector<32x512xf32>
    %c0_121 = arith.constant 0 : index
    %c4_122 = arith.constant 4 : index
    %c64_123 = arith.constant 64 : index
    %166 = vector.load %arg11[%c0_121, %c4_122, %c64_123] : memref<2x20x640xf32, #tpu.memory_space<vmem>>, vector<2x16x512xf32>
    %167 = vector.shape_cast %166 : vector<2x16x512xf32> to vector<32x512xf32>
    %c0_124 = arith.constant 0 : index
    %c22 = arith.constant 22 : index
    %c0_125 = arith.constant 0 : index
    %168 = vector.load %arg2[%c0_124, %c22, %c0_125] : memref<2x25x512xf32, #tpu.memory_space<vmem>>, vector<1x1x512xf32>
    %169 = vector.shape_cast %168 : vector<1x1x512xf32> to vector<1x512xf32>
    %170 = vector.broadcast %169 : vector<1x512xf32> to vector<32x512xf32>
    %171 = arith.mulf %167, %170 : vector<32x512xf32>
    %172 = arith.addf %165, %171 : vector<32x512xf32>
    %c0_126 = arith.constant 0 : index
    %c4_127 = arith.constant 4 : index
    %c96_128 = arith.constant 96 : index
    %173 = vector.load %arg11[%c0_126, %c4_127, %c96_128] : memref<2x20x640xf32, #tpu.memory_space<vmem>>, vector<2x16x512xf32>
    %174 = vector.shape_cast %173 : vector<2x16x512xf32> to vector<32x512xf32>
    %c0_129 = arith.constant 0 : index
    %c23 = arith.constant 23 : index
    %c0_130 = arith.constant 0 : index
    %175 = vector.load %arg2[%c0_129, %c23, %c0_130] : memref<2x25x512xf32, #tpu.memory_space<vmem>>, vector<1x1x512xf32>
    %176 = vector.shape_cast %175 : vector<1x1x512xf32> to vector<1x512xf32>
    %177 = vector.broadcast %176 : vector<1x512xf32> to vector<32x512xf32>
    %178 = arith.mulf %174, %177 : vector<32x512xf32>
    %179 = arith.addf %172, %178 : vector<32x512xf32>
    %c0_131 = arith.constant 0 : index
    %c4_132 = arith.constant 4 : index
    %c128_133 = arith.constant 128 : index
    %180 = vector.load %arg11[%c0_131, %c4_132, %c128_133] : memref<2x20x640xf32, #tpu.memory_space<vmem>>, vector<2x16x512xf32>
    %181 = vector.shape_cast %180 : vector<2x16x512xf32> to vector<32x512xf32>
    %c0_134 = arith.constant 0 : index
    %c24 = arith.constant 24 : index
    %c0_135 = arith.constant 0 : index
    %182 = vector.load %arg2[%c0_134, %c24, %c0_135] : memref<2x25x512xf32, #tpu.memory_space<vmem>>, vector<1x1x512xf32>
    %183 = vector.shape_cast %182 : vector<1x1x512xf32> to vector<1x512xf32>
    %184 = vector.broadcast %183 : vector<1x512xf32> to vector<32x512xf32>
    %185 = arith.mulf %181, %184 : vector<32x512xf32>
    %186 = arith.addf %179, %185 : vector<32x512xf32>
    %cst_136 = arith.constant 5.000000e-01 : f32
    %187 = vector.broadcast %cst_136 : f32 to vector<32x512xf32>
    %188 = arith.mulf %187, %186 : vector<32x512xf32>
    %cst_137 = arith.constant 4.471500e-02 : f32
    %189 = vector.broadcast %cst_137 : f32 to vector<32x512xf32>
    %190 = arith.mulf %189, %186 : vector<32x512xf32>
    %191 = arith.mulf %190, %186 : vector<32x512xf32>
    %192 = arith.mulf %191, %186 : vector<32x512xf32>
    %193 = arith.addf %186, %192 : vector<32x512xf32>
    %cst_138 = arith.constant 0.797884583 : f32
    %194 = vector.broadcast %cst_138 : f32 to vector<32x512xf32>
    %195 = arith.mulf %194, %193 : vector<32x512xf32>
    %196 = math.tanh %195 : vector<32x512xf32>
    %cst_139 = arith.constant 1.000000e+00 : f32
    %197 = vector.broadcast %cst_139 : f32 to vector<32x512xf32>
    %198 = arith.addf %197, %196 : vector<32x512xf32>
    %199 = arith.mulf %188, %198 : vector<32x512xf32>
    %c0_140 = arith.constant 0 : index
    %c0_141 = arith.constant 0 : index
    %c0_142 = arith.constant 0 : index
    %200 = vector.load %arg4[%c0_140, %c0_141, %c0_142] : memref<2x1x512xf32, #tpu.memory_space<vmem>>, vector<1x1x512xf32>
    %201 = vector.shape_cast %200 : vector<1x1x512xf32> to vector<1x512xf32>
    %c0_143 = arith.constant 0 : index
    %c0_144 = arith.constant 0 : index
    %c0_145 = arith.constant 0 : index
    %202 = vector.load %arg5[%c0_143, %c0_144, %c0_145] : memref<2x1x512xf32, #tpu.memory_space<vmem>>, vector<1x1x512xf32>
    %203 = vector.shape_cast %202 : vector<1x1x512xf32> to vector<1x512xf32>
    %cst_146 = arith.constant dense<0.000000e+00> : vector<512xf32>
    %204 = vector.multi_reduction <add>, %199, %cst_146 [0] : vector<32x512xf32> to vector<512xf32>
    %205 = vector.shape_cast %204 : vector<512xf32> to vector<1x512xf32>
    %206 = arith.mulf %199, %199 : vector<32x512xf32>
    %cst_147 = arith.constant dense<0.000000e+00> : vector<512xf32>
    %207 = vector.multi_reduction <add>, %206, %cst_147 [0] : vector<32x512xf32> to vector<512xf32>
    %208 = vector.shape_cast %207 : vector<512xf32> to vector<1x512xf32>
    %209 = tpu.concatenate %205, %208 in 0 : vector<1x512xf32>, vector<1x512xf32> -> vector<2x512xf32>
    %c256_i32 = arith.constant 256 : i32
    %210 = tpu.dynamic_rotate %209 by %c256_i32 dim 1 : vector<2x512xf32>, i32 -> vector<2x512xf32>
    %211 = arith.addf %209, %210 : vector<2x512xf32>
    %c128_i32 = arith.constant 128 : i32
    %212 = tpu.dynamic_rotate %211 by %c128_i32 dim 1 : vector<2x512xf32>, i32 -> vector<2x512xf32>
    %213 = arith.addf %211, %212 : vector<2x512xf32>
    %c64_i32 = arith.constant 64 : i32
    %214 = tpu.dynamic_rotate %213 by %c64_i32 dim 1 : vector<2x512xf32>, i32 -> vector<2x512xf32>
    %215 = arith.addf %213, %214 : vector<2x512xf32>
    %c32_i32 = arith.constant 32 : i32
    %216 = tpu.dynamic_rotate %215 by %c32_i32 dim 1 : vector<2x512xf32>, i32 -> vector<2x512xf32>
    %217 = arith.addf %215, %216 : vector<2x512xf32>
    %218 = vector.extract_strided_slice %217 {offsets = [0, 0], sizes = [1, 512], strides = [1, 1]} : vector<2x512xf32> to vector<1x512xf32>
    %cst_148 = arith.constant 0.001953125 : f32
    %219 = vector.broadcast %cst_148 : f32 to vector<1x512xf32>
    %220 = arith.mulf %218, %219 : vector<1x512xf32>
    %221 = vector.extract_strided_slice %217 {offsets = [1, 0], sizes = [1, 512], strides = [1, 1]} : vector<2x512xf32> to vector<1x512xf32>
    %cst_149 = arith.constant 0.001953125 : f32
    %222 = vector.broadcast %cst_149 : f32 to vector<1x512xf32>
    %223 = arith.mulf %221, %222 : vector<1x512xf32>
    %224 = arith.mulf %220, %220 : vector<1x512xf32>
    %225 = arith.subf %223, %224 : vector<1x512xf32>
    %226 = vector.broadcast %220 : vector<1x512xf32> to vector<32x512xf32>
    %227 = arith.subf %199, %226 : vector<32x512xf32>
    %cst_150 = arith.constant 9.99999974E-6 : f32
    %228 = vector.broadcast %cst_150 : f32 to vector<1x512xf32>
    %229 = arith.addf %225, %228 : vector<1x512xf32>
    %230 = math.rsqrt %229 : vector<1x512xf32>
    %231 = vector.broadcast %230 : vector<1x512xf32> to vector<32x512xf32>
    %232 = arith.mulf %227, %231 : vector<32x512xf32>
    %233 = vector.broadcast %201 : vector<1x512xf32> to vector<32x512xf32>
    %234 = arith.mulf %232, %233 : vector<32x512xf32>
    %235 = vector.broadcast %203 : vector<1x512xf32> to vector<32x512xf32>
    %236 = arith.addf %234, %235 : vector<32x512xf32>
    %237 = arith.addf %236, %2 : vector<32x512xf32>
    %238 = arith.truncf %237 : vector<32x512xf32> to vector<32x512xbf16>
    %c0_151 = arith.constant 0 : index
    %c0_152 = arith.constant 0 : index
    %c0_153 = arith.constant 0 : index
    %239 = vector.load %arg6[%c0_151, %c0_152, %c0_153] : memref<2x512x512xbf16, #tpu.memory_space<vmem>>, vector<1x512x512xbf16>
    %240 = vector.shape_cast %239 : vector<1x512x512xbf16> to vector<512x512xbf16>
    %cst_154 = arith.constant dense<0.000000e+00> : vector<32x512xf32>
    %241 = tpu.matmul %238, %240, %cst_154 {dimension_numbers = #tpu.dot_dimension_numbers<[1], [0], [0], [1], [0, 0, 1, 1], [], []>} : vector<32x512xbf16>, vector<512x512xbf16>, vector<32x512xf32> -> vector<32x512xf32>
    %c0_155 = arith.constant 0 : index
    %c0_156 = arith.constant 0 : index
    %c0_157 = arith.constant 0 : index
    %242 = vector.load %arg7[%c0_155, %c0_156, %c0_157] : memref<2x1x512xf32, #tpu.memory_space<vmem>>, vector<1x1x512xf32>
    %243 = vector.shape_cast %242 : vector<1x1x512xf32> to vector<1x512xf32>
    %244 = vector.broadcast %243 : vector<1x512xf32> to vector<32x512xf32>
    %245 = arith.addf %241, %244 : vector<32x512xf32>
    %cst_158 = arith.constant 5.000000e-01 : f32
    %246 = vector.broadcast %cst_158 : f32 to vector<32x512xf32>
    %247 = arith.mulf %246, %245 : vector<32x512xf32>
    %cst_159 = arith.constant 4.471500e-02 : f32
    %248 = vector.broadcast %cst_159 : f32 to vector<32x512xf32>
    %249 = arith.mulf %248, %245 : vector<32x512xf32>
    %250 = arith.mulf %249, %245 : vector<32x512xf32>
    %251 = arith.mulf %250, %245 : vector<32x512xf32>
    %252 = arith.addf %245, %251 : vector<32x512xf32>
    %cst_160 = arith.constant 0.797884583 : f32
    %253 = vector.broadcast %cst_160 : f32 to vector<32x512xf32>
    %254 = arith.mulf %253, %252 : vector<32x512xf32>
    %255 = math.tanh %254 : vector<32x512xf32>
    %cst_161 = arith.constant 1.000000e+00 : f32
    %256 = vector.broadcast %cst_161 : f32 to vector<32x512xf32>
    %257 = arith.addf %256, %255 : vector<32x512xf32>
    %258 = arith.mulf %247, %257 : vector<32x512xf32>
    %c0_162 = arith.constant 0 : index
    %c0_163 = arith.constant 0 : index
    %c0_164 = arith.constant 0 : index
    %259 = vector.load %arg8[%c0_162, %c0_163, %c0_164] : memref<2x1x512xf32, #tpu.memory_space<vmem>>, vector<1x1x512xf32>
    %260 = vector.shape_cast %259 : vector<1x1x512xf32> to vector<1x512xf32>
    %c0_165 = arith.constant 0 : index
    %c0_166 = arith.constant 0 : index
    %c0_167 = arith.constant 0 : index
    %261 = vector.load %arg9[%c0_165, %c0_166, %c0_167] : memref<2x1x512xf32, #tpu.memory_space<vmem>>, vector<1x1x512xf32>
    %262 = vector.shape_cast %261 : vector<1x1x512xf32> to vector<1x512xf32>
    %cst_168 = arith.constant dense<0.000000e+00> : vector<512xf32>
    %263 = vector.multi_reduction <add>, %258, %cst_168 [0] : vector<32x512xf32> to vector<512xf32>
    %264 = vector.shape_cast %263 : vector<512xf32> to vector<1x512xf32>
    %265 = arith.mulf %258, %258 : vector<32x512xf32>
    %cst_169 = arith.constant dense<0.000000e+00> : vector<512xf32>
    %266 = vector.multi_reduction <add>, %265, %cst_169 [0] : vector<32x512xf32> to vector<512xf32>
    %267 = vector.shape_cast %266 : vector<512xf32> to vector<1x512xf32>
    %268 = tpu.concatenate %264, %267 in 0 : vector<1x512xf32>, vector<1x512xf32> -> vector<2x512xf32>
    %c256_i32_170 = arith.constant 256 : i32
    %269 = tpu.dynamic_rotate %268 by %c256_i32_170 dim 1 : vector<2x512xf32>, i32 -> vector<2x512xf32>
    %270 = arith.addf %268, %269 : vector<2x512xf32>
    %c128_i32_171 = arith.constant 128 : i32
    %271 = tpu.dynamic_rotate %270 by %c128_i32_171 dim 1 : vector<2x512xf32>, i32 -> vector<2x512xf32>
    %272 = arith.addf %270, %271 : vector<2x512xf32>
    %c64_i32_172 = arith.constant 64 : i32
    %273 = tpu.dynamic_rotate %272 by %c64_i32_172 dim 1 : vector<2x512xf32>, i32 -> vector<2x512xf32>
    %274 = arith.addf %272, %273 : vector<2x512xf32>
    %c32_i32_173 = arith.constant 32 : i32
    %275 = tpu.dynamic_rotate %274 by %c32_i32_173 dim 1 : vector<2x512xf32>, i32 -> vector<2x512xf32>
    %276 = arith.addf %274, %275 : vector<2x512xf32>
    %277 = vector.extract_strided_slice %276 {offsets = [0, 0], sizes = [1, 512], strides = [1, 1]} : vector<2x512xf32> to vector<1x512xf32>
    %cst_174 = arith.constant 0.001953125 : f32
    %278 = vector.broadcast %cst_174 : f32 to vector<1x512xf32>
    %279 = arith.mulf %277, %278 : vector<1x512xf32>
    %280 = vector.extract_strided_slice %276 {offsets = [1, 0], sizes = [1, 512], strides = [1, 1]} : vector<2x512xf32> to vector<1x512xf32>
    %cst_175 = arith.constant 0.001953125 : f32
    %281 = vector.broadcast %cst_175 : f32 to vector<1x512xf32>
    %282 = arith.mulf %280, %281 : vector<1x512xf32>
    %283 = arith.mulf %279, %279 : vector<1x512xf32>
    %284 = arith.subf %282, %283 : vector<1x512xf32>
    %285 = vector.broadcast %279 : vector<1x512xf32> to vector<32x512xf32>
    %286 = arith.subf %258, %285 : vector<32x512xf32>
    %cst_176 = arith.constant 9.99999974E-6 : f32
    %287 = vector.broadcast %cst_176 : f32 to vector<1x512xf32>
    %288 = arith.addf %284, %287 : vector<1x512xf32>
    %289 = math.rsqrt %288 : vector<1x512xf32>
    %290 = vector.broadcast %289 : vector<1x512xf32> to vector<32x512xf32>
    %291 = arith.mulf %286, %290 : vector<32x512xf32>
    %292 = vector.broadcast %260 : vector<1x512xf32> to vector<32x512xf32>
    %293 = arith.mulf %291, %292 : vector<32x512xf32>
    %294 = vector.broadcast %262 : vector<1x512xf32> to vector<32x512xf32>
    %295 = arith.addf %293, %294 : vector<32x512xf32>
    %296 = vector.shape_cast %295 : vector<32x512xf32> to vector<2x16x512xf32>
    %c0_177 = arith.constant 0 : index
    %c2_178 = arith.constant 2 : index
    %c64_179 = arith.constant 64 : index
    %297 = vector.load %arg11[%c0_177, %c2_178, %c64_179] : memref<2x20x640xf32, #tpu.memory_space<vmem>>, vector<2x16x512xf32>
    tpu.vector_store %arg11[%c0_177, %c2_178, %c64_179], %296 {strides = array<i32>} : memref<2x20x640xf32, #tpu.memory_space<vmem>>, vector<2x16x512xf32>,
    %cst_180 = arith.constant 0.000000e+00 : f32
    %298 = vector.broadcast %cst_180 : f32 to vector<32x512xf32>
    %c1_181 = arith.constant 1 : index
    %c0_182 = arith.constant 0 : index
    %c0_183 = arith.constant 0 : index
    %299 = vector.load %arg3[%c1_181, %c0_182, %c0_183] : memref<2x1x512xf32, #tpu.memory_space<vmem>>, vector<1x1x512xf32>
    %300 = vector.shape_cast %299 : vector<1x1x512xf32> to vector<1x512xf32>
    %301 = vector.broadcast %300 : vector<1x512xf32> to vector<32x512xf32>
    %302 = arith.addf %298, %301 : vector<32x512xf32>
    %c0_184 = arith.constant 0 : index
    %c0_185 = arith.constant 0 : index
    %c0_186 = arith.constant 0 : index
    %303 = vector.load %arg11[%c0_184, %c0_185, %c0_186] : memref<2x20x640xf32, #tpu.memory_space<vmem>>, vector<2x16x512xf32>
    %304 = vector.shape_cast %303 : vector<2x16x512xf32> to vector<32x512xf32>
    %c1_187 = arith.constant 1 : index
    %c0_188 = arith.constant 0 : index
    %c0_189 = arith.constant 0 : index
    %305 = vector.load %arg2[%c1_187, %c0_188, %c0_189] : memref<2x25x512xf32, #tpu.memory_space<vmem>>, vector<1x1x512xf32>
    %306 = vector.shape_cast %305 : vector<1x1x512xf32> to vector<1x512xf32>
    %307 = vector.broadcast %306 : vector<1x512xf32> to vector<32x512xf32>
    %308 = arith.mulf %304, %307 : vector<32x512xf32>
    %309 = arith.addf %302, %308 : vector<32x512xf32>
    %c0_190 = arith.constant 0 : index
    %c0_191 = arith.constant 0 : index
    %c32_192 = arith.constant 32 : index
    %310 = vector.load %arg11[%c0_190, %c0_191, %c32_192] : memref<2x20x640xf32, #tpu.memory_space<vmem>>, vector<2x16x512xf32>
    %311 = vector.shape_cast %310 : vector<2x16x512xf32> to vector<32x512xf32>
    %c1_193 = arith.constant 1 : index
    %c1_194 = arith.constant 1 : index
    %c0_195 = arith.constant 0 : index
    %312 = vector.load %arg2[%c1_193, %c1_194, %c0_195] : memref<2x25x512xf32, #tpu.memory_space<vmem>>, vector<1x1x512xf32>
    %313 = vector.shape_cast %312 : vector<1x1x512xf32> to vector<1x512xf32>
    %314 = vector.broadcast %313 : vector<1x512xf32> to vector<32x512xf32>
    %315 = arith.mulf %311, %314 : vector<32x512xf32>
    %316 = arith.addf %309, %315 : vector<32x512xf32>
    %c0_196 = arith.constant 0 : index
    %c0_197 = arith.constant 0 : index
    %c64_198 = arith.constant 64 : index
    %317 = vector.load %arg11[%c0_196, %c0_197, %c64_198] : memref<2x20x640xf32, #tpu.memory_space<vmem>>, vector<2x16x512xf32>
    %318 = vector.shape_cast %317 : vector<2x16x512xf32> to vector<32x512xf32>
    %c1_199 = arith.constant 1 : index
    %c2_200 = arith.constant 2 : index
    %c0_201 = arith.constant 0 : index
    %319 = vector.load %arg2[%c1_199, %c2_200, %c0_201] : memref<2x25x512xf32, #tpu.memory_space<vmem>>, vector<1x1x512xf32>
    %320 = vector.shape_cast %319 : vector<1x1x512xf32> to vector<1x512xf32>
    %321 = vector.broadcast %320 : vector<1x512xf32> to vector<32x512xf32>
    %322 = arith.mulf %318, %321 : vector<32x512xf32>
    %323 = arith.addf %316, %322 : vector<32x512xf32>
    %c0_202 = arith.constant 0 : index
    %c0_203 = arith.constant 0 : index
    %c96_204 = arith.constant 96 : index
    %324 = vector.load %arg11[%c0_202, %c0_203, %c96_204] : memref<2x20x640xf32, #tpu.memory_space<vmem>>, vector<2x16x512xf32>
    %325 = vector.shape_cast %324 : vector<2x16x512xf32> to vector<32x512xf32>
    %c1_205 = arith.constant 1 : index
    %c3_206 = arith.constant 3 : index
    %c0_207 = arith.constant 0 : index
    %326 = vector.load %arg2[%c1_205, %c3_206, %c0_207] : memref<2x25x512xf32, #tpu.memory_space<vmem>>, vector<1x1x512xf32>
    %327 = vector.shape_cast %326 : vector<1x1x512xf32> to vector<1x512xf32>
    %328 = vector.broadcast %327 : vector<1x512xf32> to vector<32x512xf32>
    %329 = arith.mulf %325, %328 : vector<32x512xf32>
    %330 = arith.addf %323, %329 : vector<32x512xf32>
    %c0_208 = arith.constant 0 : index
    %c0_209 = arith.constant 0 : index
    %c128_210 = arith.constant 128 : index
    %331 = vector.load %arg11[%c0_208, %c0_209, %c128_210] : memref<2x20x640xf32, #tpu.memory_space<vmem>>, vector<2x16x512xf32>
    %332 = vector.shape_cast %331 : vector<2x16x512xf32> to vector<32x512xf32>
    %c1_211 = arith.constant 1 : index
    %c4_212 = arith.constant 4 : index
    %c0_213 = arith.constant 0 : index
    %333 = vector.load %arg2[%c1_211, %c4_212, %c0_213] : memref<2x25x512xf32, #tpu.memory_space<vmem>>, vector<1x1x512xf32>
    %334 = vector.shape_cast %333 : vector<1x1x512xf32> to vector<1x512xf32>
    %335 = vector.broadcast %334 : vector<1x512xf32> to vector<32x512xf32>
    %336 = arith.mulf %332, %335 : vector<32x512xf32>
    %337 = arith.addf %330, %336 : vector<32x512xf32>
    %c0_214 = arith.constant 0 : index
    %c1_215 = arith.constant 1 : index
    %c0_216 = arith.constant 0 : index
    %338 = vector.load %arg11[%c0_214, %c1_215, %c0_216] : memref<2x20x640xf32, #tpu.memory_space<vmem>>, vector<2x16x512xf32>
    %339 = vector.shape_cast %338 : vector<2x16x512xf32> to vector<32x512xf32>
    %c1_217 = arith.constant 1 : index
    %c5_218 = arith.constant 5 : index
    %c0_219 = arith.constant 0 : index
    %340 = vector.load %arg2[%c1_217, %c5_218, %c0_219] : memref<2x25x512xf32, #tpu.memory_space<vmem>>, vector<1x1x512xf32>
    %341 = vector.shape_cast %340 : vector<1x1x512xf32> to vector<1x512xf32>
    %342 = vector.broadcast %341 : vector<1x512xf32> to vector<32x512xf32>
    %343 = arith.mulf %339, %342 : vector<32x512xf32>
    %344 = arith.addf %337, %343 : vector<32x512xf32>
    %c0_220 = arith.constant 0 : index
    %c1_221 = arith.constant 1 : index
    %c32_222 = arith.constant 32 : index
    %345 = vector.load %arg11[%c0_220, %c1_221, %c32_222] : memref<2x20x640xf32, #tpu.memory_space<vmem>>, vector<2x16x512xf32>
    %346 = vector.shape_cast %345 : vector<2x16x512xf32> to vector<32x512xf32>
    %c1_223 = arith.constant 1 : index
    %c6_224 = arith.constant 6 : index
    %c0_225 = arith.constant 0 : index
    %347 = vector.load %arg2[%c1_223, %c6_224, %c0_225] : memref<2x25x512xf32, #tpu.memory_space<vmem>>, vector<1x1x512xf32>
    %348 = vector.shape_cast %347 : vector<1x1x512xf32> to vector<1x512xf32>
    %349 = vector.broadcast %348 : vector<1x512xf32> to vector<32x512xf32>
    %350 = arith.mulf %346, %349 : vector<32x512xf32>
    %351 = arith.addf %344, %350 : vector<32x512xf32>
    %c0_226 = arith.constant 0 : index
    %c1_227 = arith.constant 1 : index
    %c64_228 = arith.constant 64 : index
    %352 = vector.load %arg11[%c0_226, %c1_227, %c64_228] : memref<2x20x640xf32, #tpu.memory_space<vmem>>, vector<2x16x512xf32>
    %353 = vector.shape_cast %352 : vector<2x16x512xf32> to vector<32x512xf32>
    %c1_229 = arith.constant 1 : index
    %c7_230 = arith.constant 7 : index
    %c0_231 = arith.constant 0 : index
    %354 = vector.load %arg2[%c1_229, %c7_230, %c0_231] : memref<2x25x512xf32, #tpu.memory_space<vmem>>, vector<1x1x512xf32>
    %355 = vector.shape_cast %354 : vector<1x1x512xf32> to vector<1x512xf32>
    %356 = vector.broadcast %355 : vector<1x512xf32> to vector<32x512xf32>
    %357 = arith.mulf %353, %356 : vector<32x512xf32>
    %358 = arith.addf %351, %357 : vector<32x512xf32>
    %c0_232 = arith.constant 0 : index
    %c1_233 = arith.constant 1 : index
    %c96_234 = arith.constant 96 : index
    %359 = vector.load %arg11[%c0_232, %c1_233, %c96_234] : memref<2x20x640xf32, #tpu.memory_space<vmem>>, vector<2x16x512xf32>
    %360 = vector.shape_cast %359 : vector<2x16x512xf32> to vector<32x512xf32>
    %c1_235 = arith.constant 1 : index
    %c8_236 = arith.constant 8 : index
    %c0_237 = arith.constant 0 : index
    %361 = vector.load %arg2[%c1_235, %c8_236, %c0_237] : memref<2x25x512xf32, #tpu.memory_space<vmem>>, vector<1x1x512xf32>
    %362 = vector.shape_cast %361 : vector<1x1x512xf32> to vector<1x512xf32>
    %363 = vector.broadcast %362 : vector<1x512xf32> to vector<32x512xf32>
    %364 = arith.mulf %360, %363 : vector<32x512xf32>
    %365 = arith.addf %358, %364 : vector<32x512xf32>
    %c0_238 = arith.constant 0 : index
    %c1_239 = arith.constant 1 : index
    %c128_240 = arith.constant 128 : index
    %366 = vector.load %arg11[%c0_238, %c1_239, %c128_240] : memref<2x20x640xf32, #tpu.memory_space<vmem>>, vector<2x16x512xf32>
    %367 = vector.shape_cast %366 : vector<2x16x512xf32> to vector<32x512xf32>
    %c1_241 = arith.constant 1 : index
    %c9_242 = arith.constant 9 : index
    %c0_243 = arith.constant 0 : index
    %368 = vector.load %arg2[%c1_241, %c9_242, %c0_243] : memref<2x25x512xf32, #tpu.memory_space<vmem>>, vector<1x1x512xf32>
    %369 = vector.shape_cast %368 : vector<1x1x512xf32> to vector<1x512xf32>
    %370 = vector.broadcast %369 : vector<1x512xf32> to vector<32x512xf32>
    %371 = arith.mulf %367, %370 : vector<32x512xf32>
    %372 = arith.addf %365, %371 : vector<32x512xf32>
    %c0_244 = arith.constant 0 : index
    %c2_245 = arith.constant 2 : index
    %c0_246 = arith.constant 0 : index
    %373 = vector.load %arg11[%c0_244, %c2_245, %c0_246] : memref<2x20x640xf32, #tpu.memory_space<vmem>>, vector<2x16x512xf32>
    %374 = vector.shape_cast %373 : vector<2x16x512xf32> to vector<32x512xf32>
    %c1_247 = arith.constant 1 : index
    %c10_248 = arith.constant 10 : index
    %c0_249 = arith.constant 0 : index
    %375 = vector.load %arg2[%c1_247, %c10_248, %c0_249] : memref<2x25x512xf32, #tpu.memory_space<vmem>>, vector<1x1x512xf32>
    %376 = vector.shape_cast %375 : vector<1x1x512xf32> to vector<1x512xf32>
    %377 = vector.broadcast %376 : vector<1x512xf32> to vector<32x512xf32>
    %378 = arith.mulf %374, %377 : vector<32x512xf32>
    %379 = arith.addf %372, %378 : vector<32x512xf32>
    %c0_250 = arith.constant 0 : index
    %c2_251 = arith.constant 2 : index
    %c32_252 = arith.constant 32 : index
    %380 = vector.load %arg11[%c0_250, %c2_251, %c32_252] : memref<2x20x640xf32, #tpu.memory_space<vmem>>, vector<2x16x512xf32>
    %381 = vector.shape_cast %380 : vector<2x16x512xf32> to vector<32x512xf32>
    %c1_253 = arith.constant 1 : index
    %c11_254 = arith.constant 11 : index
    %c0_255 = arith.constant 0 : index
    %382 = vector.load %arg2[%c1_253, %c11_254, %c0_255] : memref<2x25x512xf32, #tpu.memory_space<vmem>>, vector<1x1x512xf32>
    %383 = vector.shape_cast %382 : vector<1x1x512xf32> to vector<1x512xf32>
    %384 = vector.broadcast %383 : vector<1x512xf32> to vector<32x512xf32>
    %385 = arith.mulf %381, %384 : vector<32x512xf32>
    %386 = arith.addf %379, %385 : vector<32x512xf32>
    %c0_256 = arith.constant 0 : index
    %c2_257 = arith.constant 2 : index
    %c64_258 = arith.constant 64 : index
    %387 = vector.load %arg11[%c0_256, %c2_257, %c64_258] : memref<2x20x640xf32, #tpu.memory_space<vmem>>, vector<2x16x512xf32>
    %388 = vector.shape_cast %387 : vector<2x16x512xf32> to vector<32x512xf32>
    %c1_259 = arith.constant 1 : index
    %c12_260 = arith.constant 12 : index
    %c0_261 = arith.constant 0 : index
    %389 = vector.load %arg2[%c1_259, %c12_260, %c0_261] : memref<2x25x512xf32, #tpu.memory_space<vmem>>, vector<1x1x512xf32>
    %390 = vector.shape_cast %389 : vector<1x1x512xf32> to vector<1x512xf32>
    %391 = vector.broadcast %390 : vector<1x512xf32> to vector<32x512xf32>
    %392 = arith.mulf %388, %391 : vector<32x512xf32>
    %393 = arith.addf %386, %392 : vector<32x512xf32>
    %c0_262 = arith.constant 0 : index
    %c2_263 = arith.constant 2 : index
    %c96_264 = arith.constant 96 : index
    %394 = vector.load %arg11[%c0_262, %c2_263, %c96_264] : memref<2x20x640xf32, #tpu.memory_space<vmem>>, vector<2x16x512xf32>
    %395 = vector.shape_cast %394 : vector<2x16x512xf32> to vector<32x512xf32>
    %c1_265 = arith.constant 1 : index
    %c13_266 = arith.constant 13 : index
    %c0_267 = arith.constant 0 : index
    %396 = vector.load %arg2[%c1_265, %c13_266, %c0_267] : memref<2x25x512xf32, #tpu.memory_space<vmem>>, vector<1x1x512xf32>
    %397 = vector.shape_cast %396 : vector<1x1x512xf32> to vector<1x512xf32>
    %398 = vector.broadcast %397 : vector<1x512xf32> to vector<32x512xf32>
    %399 = arith.mulf %395, %398 : vector<32x512xf32>
    %400 = arith.addf %393, %399 : vector<32x512xf32>
    %c0_268 = arith.constant 0 : index
    %c2_269 = arith.constant 2 : index
    %c128_270 = arith.constant 128 : index
    %401 = vector.load %arg11[%c0_268, %c2_269, %c128_270] : memref<2x20x640xf32, #tpu.memory_space<vmem>>, vector<2x16x512xf32>
    %402 = vector.shape_cast %401 : vector<2x16x512xf32> to vector<32x512xf32>
    %c1_271 = arith.constant 1 : index
    %c14_272 = arith.constant 14 : index
    %c0_273 = arith.constant 0 : index
    %403 = vector.load %arg2[%c1_271, %c14_272, %c0_273] : memref<2x25x512xf32, #tpu.memory_space<vmem>>, vector<1x1x512xf32>
    %404 = vector.shape_cast %403 : vector<1x1x512xf32> to vector<1x512xf32>
    %405 = vector.broadcast %404 : vector<1x512xf32> to vector<32x512xf32>
    %406 = arith.mulf %402, %405 : vector<32x512xf32>
    %407 = arith.addf %400, %406 : vector<32x512xf32>
    %c0_274 = arith.constant 0 : index
    %c3_275 = arith.constant 3 : index
    %c0_276 = arith.constant 0 : index
    %408 = vector.load %arg11[%c0_274, %c3_275, %c0_276] : memref<2x20x640xf32, #tpu.memory_space<vmem>>, vector<2x16x512xf32>
    %409 = vector.shape_cast %408 : vector<2x16x512xf32> to vector<32x512xf32>
    %c1_277 = arith.constant 1 : index
    %c15_278 = arith.constant 15 : index
    %c0_279 = arith.constant 0 : index
    %410 = vector.load %arg2[%c1_277, %c15_278, %c0_279] : memref<2x25x512xf32, #tpu.memory_space<vmem>>, vector<1x1x512xf32>
    %411 = vector.shape_cast %410 : vector<1x1x512xf32> to vector<1x512xf32>
    %412 = vector.broadcast %411 : vector<1x512xf32> to vector<32x512xf32>
    %413 = arith.mulf %409, %412 : vector<32x512xf32>
    %414 = arith.addf %407, %413 : vector<32x512xf32>
    %c0_280 = arith.constant 0 : index
    %c3_281 = arith.constant 3 : index
    %c32_282 = arith.constant 32 : index
    %415 = vector.load %arg11[%c0_280, %c3_281, %c32_282] : memref<2x20x640xf32, #tpu.memory_space<vmem>>, vector<2x16x512xf32>
    %416 = vector.shape_cast %415 : vector<2x16x512xf32> to vector<32x512xf32>
    %c1_283 = arith.constant 1 : index
    %c16_284 = arith.constant 16 : index
    %c0_285 = arith.constant 0 : index
    %417 = vector.load %arg2[%c1_283, %c16_284, %c0_285] : memref<2x25x512xf32, #tpu.memory_space<vmem>>, vector<1x1x512xf32>
    %418 = vector.shape_cast %417 : vector<1x1x512xf32> to vector<1x512xf32>
    %419 = vector.broadcast %418 : vector<1x512xf32> to vector<32x512xf32>
    %420 = arith.mulf %416, %419 : vector<32x512xf32>
    %421 = arith.addf %414, %420 : vector<32x512xf32>
    %c0_286 = arith.constant 0 : index
    %c3_287 = arith.constant 3 : index
    %c64_288 = arith.constant 64 : index
    %422 = vector.load %arg11[%c0_286, %c3_287, %c64_288] : memref<2x20x640xf32, #tpu.memory_space<vmem>>, vector<2x16x512xf32>
    %423 = vector.shape_cast %422 : vector<2x16x512xf32> to vector<32x512xf32>
    %c1_289 = arith.constant 1 : index
    %c17_290 = arith.constant 17 : index
    %c0_291 = arith.constant 0 : index
    %424 = vector.load %arg2[%c1_289, %c17_290, %c0_291] : memref<2x25x512xf32, #tpu.memory_space<vmem>>, vector<1x1x512xf32>
    %425 = vector.shape_cast %424 : vector<1x1x512xf32> to vector<1x512xf32>
    %426 = vector.broadcast %425 : vector<1x512xf32> to vector<32x512xf32>
    %427 = arith.mulf %423, %426 : vector<32x512xf32>
    %428 = arith.addf %421, %427 : vector<32x512xf32>
    %c0_292 = arith.constant 0 : index
    %c3_293 = arith.constant 3 : index
    %c96_294 = arith.constant 96 : index
    %429 = vector.load %arg11[%c0_292, %c3_293, %c96_294] : memref<2x20x640xf32, #tpu.memory_space<vmem>>, vector<2x16x512xf32>
    %430 = vector.shape_cast %429 : vector<2x16x512xf32> to vector<32x512xf32>
    %c1_295 = arith.constant 1 : index
    %c18_296 = arith.constant 18 : index
    %c0_297 = arith.constant 0 : index
    %431 = vector.load %arg2[%c1_295, %c18_296, %c0_297] : memref<2x25x512xf32, #tpu.memory_space<vmem>>, vector<1x1x512xf32>
    %432 = vector.shape_cast %431 : vector<1x1x512xf32> to vector<1x512xf32>
    %433 = vector.broadcast %432 : vector<1x512xf32> to vector<32x512xf32>
    %434 = arith.mulf %430, %433 : vector<32x512xf32>
    %435 = arith.addf %428, %434 : vector<32x512xf32>
    %c0_298 = arith.constant 0 : index
    %c3_299 = arith.constant 3 : index
    %c128_300 = arith.constant 128 : index
    %436 = vector.load %arg11[%c0_298, %c3_299, %c128_300] : memref<2x20x640xf32, #tpu.memory_space<vmem>>, vector<2x16x512xf32>
    %437 = vector.shape_cast %436 : vector<2x16x512xf32> to vector<32x512xf32>
    %c1_301 = arith.constant 1 : index
    %c19_302 = arith.constant 19 : index
    %c0_303 = arith.constant 0 : index
    %438 = vector.load %arg2[%c1_301, %c19_302, %c0_303] : memref<2x25x512xf32, #tpu.memory_space<vmem>>, vector<1x1x512xf32>
    %439 = vector.shape_cast %438 : vector<1x1x512xf32> to vector<1x512xf32>
    %440 = vector.broadcast %439 : vector<1x512xf32> to vector<32x512xf32>
    %441 = arith.mulf %437, %440 : vector<32x512xf32>
    %442 = arith.addf %435, %441 : vector<32x512xf32>
    %c0_304 = arith.constant 0 : index
    %c4_305 = arith.constant 4 : index
    %c0_306 = arith.constant 0 : index
    %443 = vector.load %arg11[%c0_304, %c4_305, %c0_306] : memref<2x20x640xf32, #tpu.memory_space<vmem>>, vector<2x16x512xf32>
    %444 = vector.shape_cast %443 : vector<2x16x512xf32> to vector<32x512xf32>
    %c1_307 = arith.constant 1 : index
    %c20_308 = arith.constant 20 : index
    %c0_309 = arith.constant 0 : index
    %445 = vector.load %arg2[%c1_307, %c20_308, %c0_309] : memref<2x25x512xf32, #tpu.memory_space<vmem>>, vector<1x1x512xf32>
    %446 = vector.shape_cast %445 : vector<1x1x512xf32> to vector<1x512xf32>
    %447 = vector.broadcast %446 : vector<1x512xf32> to vector<32x512xf32>
    %448 = arith.mulf %444, %447 : vector<32x512xf32>
    %449 = arith.addf %442, %448 : vector<32x512xf32>
    %c0_310 = arith.constant 0 : index
    %c4_311 = arith.constant 4 : index
    %c32_312 = arith.constant 32 : index
    %450 = vector.load %arg11[%c0_310, %c4_311, %c32_312] : memref<2x20x640xf32, #tpu.memory_space<vmem>>, vector<2x16x512xf32>
    %451 = vector.shape_cast %450 : vector<2x16x512xf32> to vector<32x512xf32>
    %c1_313 = arith.constant 1 : index
    %c21_314 = arith.constant 21 : index
    %c0_315 = arith.constant 0 : index
    %452 = vector.load %arg2[%c1_313, %c21_314, %c0_315] : memref<2x25x512xf32, #tpu.memory_space<vmem>>, vector<1x1x512xf32>
    %453 = vector.shape_cast %452 : vector<1x1x512xf32> to vector<1x512xf32>
    %454 = vector.broadcast %453 : vector<1x512xf32> to vector<32x512xf32>
    %455 = arith.mulf %451, %454 : vector<32x512xf32>
    %456 = arith.addf %449, %455 : vector<32x512xf32>
    %c0_316 = arith.constant 0 : index
    %c4_317 = arith.constant 4 : index
    %c64_318 = arith.constant 64 : index
    %457 = vector.load %arg11[%c0_316, %c4_317, %c64_318] : memref<2x20x640xf32, #tpu.memory_space<vmem>>, vector<2x16x512xf32>
    %458 = vector.shape_cast %457 : vector<2x16x512xf32> to vector<32x512xf32>
    %c1_319 = arith.constant 1 : index
    %c22_320 = arith.constant 22 : index
    %c0_321 = arith.constant 0 : index
    %459 = vector.load %arg2[%c1_319, %c22_320, %c0_321] : memref<2x25x512xf32, #tpu.memory_space<vmem>>, vector<1x1x512xf32>
    %460 = vector.shape_cast %459 : vector<1x1x512xf32> to vector<1x512xf32>
    %461 = vector.broadcast %460 : vector<1x512xf32> to vector<32x512xf32>
    %462 = arith.mulf %458, %461 : vector<32x512xf32>
    %463 = arith.addf %456, %462 : vector<32x512xf32>
    %c0_322 = arith.constant 0 : index
    %c4_323 = arith.constant 4 : index
    %c96_324 = arith.constant 96 : index
    %464 = vector.load %arg11[%c0_322, %c4_323, %c96_324] : memref<2x20x640xf32, #tpu.memory_space<vmem>>, vector<2x16x512xf32>
    %465 = vector.shape_cast %464 : vector<2x16x512xf32> to vector<32x512xf32>
    %c1_325 = arith.constant 1 : index
    %c23_326 = arith.constant 23 : index
    %c0_327 = arith.constant 0 : index
    %466 = vector.load %arg2[%c1_325, %c23_326, %c0_327] : memref<2x25x512xf32, #tpu.memory_space<vmem>>, vector<1x1x512xf32>
    %467 = vector.shape_cast %466 : vector<1x1x512xf32> to vector<1x512xf32>
    %468 = vector.broadcast %467 : vector<1x512xf32> to vector<32x512xf32>
    %469 = arith.mulf %465, %468 : vector<32x512xf32>
    %470 = arith.addf %463, %469 : vector<32x512xf32>
    %c0_328 = arith.constant 0 : index
    %c4_329 = arith.constant 4 : index
    %c128_330 = arith.constant 128 : index
    %471 = vector.load %arg11[%c0_328, %c4_329, %c128_330] : memref<2x20x640xf32, #tpu.memory_space<vmem>>, vector<2x16x512xf32>
    %472 = vector.shape_cast %471 : vector<2x16x512xf32> to vector<32x512xf32>
    %c1_331 = arith.constant 1 : index
    %c24_332 = arith.constant 24 : index
    %c0_333 = arith.constant 0 : index
    %473 = vector.load %arg2[%c1_331, %c24_332, %c0_333] : memref<2x25x512xf32, #tpu.memory_space<vmem>>, vector<1x1x512xf32>
    %474 = vector.shape_cast %473 : vector<1x1x512xf32> to vector<1x512xf32>
    %475 = vector.broadcast %474 : vector<1x512xf32> to vector<32x512xf32>
    %476 = arith.mulf %472, %475 : vector<32x512xf32>
    %477 = arith.addf %470, %476 : vector<32x512xf32>
    %cst_334 = arith.constant 5.000000e-01 : f32
    %478 = vector.broadcast %cst_334 : f32 to vector<32x512xf32>
    %479 = arith.mulf %478, %477 : vector<32x512xf32>
    %cst_335 = arith.constant 4.471500e-02 : f32
    %480 = vector.broadcast %cst_335 : f32 to vector<32x512xf32>
    %481 = arith.mulf %480, %477 : vector<32x512xf32>
    %482 = arith.mulf %481, %477 : vector<32x512xf32>
    %483 = arith.mulf %482, %477 : vector<32x512xf32>
    %484 = arith.addf %477, %483 : vector<32x512xf32>
    %cst_336 = arith.constant 0.797884583 : f32
    %485 = vector.broadcast %cst_336 : f32 to vector<32x512xf32>
    %486 = arith.mulf %485, %484 : vector<32x512xf32>
    %487 = math.tanh %486 : vector<32x512xf32>
    %cst_337 = arith.constant 1.000000e+00 : f32
    %488 = vector.broadcast %cst_337 : f32 to vector<32x512xf32>
    %489 = arith.addf %488, %487 : vector<32x512xf32>
    %490 = arith.mulf %479, %489 : vector<32x512xf32>
    %c1_338 = arith.constant 1 : index
    %c0_339 = arith.constant 0 : index
    %c0_340 = arith.constant 0 : index
    %491 = vector.load %arg4[%c1_338, %c0_339, %c0_340] : memref<2x1x512xf32, #tpu.memory_space<vmem>>, vector<1x1x512xf32>
    %492 = vector.shape_cast %491 : vector<1x1x512xf32> to vector<1x512xf32>
    %c1_341 = arith.constant 1 : index
    %c0_342 = arith.constant 0 : index
    %c0_343 = arith.constant 0 : index
    %493 = vector.load %arg5[%c1_341, %c0_342, %c0_343] : memref<2x1x512xf32, #tpu.memory_space<vmem>>, vector<1x1x512xf32>
    %494 = vector.shape_cast %493 : vector<1x1x512xf32> to vector<1x512xf32>
    %cst_344 = arith.constant dense<0.000000e+00> : vector<512xf32>
    %495 = vector.multi_reduction <add>, %490, %cst_344 [0] : vector<32x512xf32> to vector<512xf32>
    %496 = vector.shape_cast %495 : vector<512xf32> to vector<1x512xf32>
    %497 = arith.mulf %490, %490 : vector<32x512xf32>
    %cst_345 = arith.constant dense<0.000000e+00> : vector<512xf32>
    %498 = vector.multi_reduction <add>, %497, %cst_345 [0] : vector<32x512xf32> to vector<512xf32>
    %499 = vector.shape_cast %498 : vector<512xf32> to vector<1x512xf32>
    %500 = tpu.concatenate %496, %499 in 0 : vector<1x512xf32>, vector<1x512xf32> -> vector<2x512xf32>
    %c256_i32_346 = arith.constant 256 : i32
    %501 = tpu.dynamic_rotate %500 by %c256_i32_346 dim 1 : vector<2x512xf32>, i32 -> vector<2x512xf32>
    %502 = arith.addf %500, %501 : vector<2x512xf32>
    %c128_i32_347 = arith.constant 128 : i32
    %503 = tpu.dynamic_rotate %502 by %c128_i32_347 dim 1 : vector<2x512xf32>, i32 -> vector<2x512xf32>
    %504 = arith.addf %502, %503 : vector<2x512xf32>
    %c64_i32_348 = arith.constant 64 : i32
    %505 = tpu.dynamic_rotate %504 by %c64_i32_348 dim 1 : vector<2x512xf32>, i32 -> vector<2x512xf32>
    %506 = arith.addf %504, %505 : vector<2x512xf32>
    %c32_i32_349 = arith.constant 32 : i32
    %507 = tpu.dynamic_rotate %506 by %c32_i32_349 dim 1 : vector<2x512xf32>, i32 -> vector<2x512xf32>
    %508 = arith.addf %506, %507 : vector<2x512xf32>
    %509 = vector.extract_strided_slice %508 {offsets = [0, 0], sizes = [1, 512], strides = [1, 1]} : vector<2x512xf32> to vector<1x512xf32>
    %cst_350 = arith.constant 0.001953125 : f32
    %510 = vector.broadcast %cst_350 : f32 to vector<1x512xf32>
    %511 = arith.mulf %509, %510 : vector<1x512xf32>
    %512 = vector.extract_strided_slice %508 {offsets = [1, 0], sizes = [1, 512], strides = [1, 1]} : vector<2x512xf32> to vector<1x512xf32>
    %cst_351 = arith.constant 0.001953125 : f32
    %513 = vector.broadcast %cst_351 : f32 to vector<1x512xf32>
    %514 = arith.mulf %512, %513 : vector<1x512xf32>
    %515 = arith.mulf %511, %511 : vector<1x512xf32>
    %516 = arith.subf %514, %515 : vector<1x512xf32>
    %517 = vector.broadcast %511 : vector<1x512xf32> to vector<32x512xf32>
    %518 = arith.subf %490, %517 : vector<32x512xf32>
    %cst_352 = arith.constant 9.99999974E-6 : f32
    %519 = vector.broadcast %cst_352 : f32 to vector<1x512xf32>
    %520 = arith.addf %516, %519 : vector<1x512xf32>
    %521 = math.rsqrt %520 : vector<1x512xf32>
    %522 = vector.broadcast %521 : vector<1x512xf32> to vector<32x512xf32>
    %523 = arith.mulf %518, %522 : vector<32x512xf32>
    %524 = vector.broadcast %492 : vector<1x512xf32> to vector<32x512xf32>
    %525 = arith.mulf %523, %524 : vector<32x512xf32>
    %526 = vector.broadcast %494 : vector<1x512xf32> to vector<32x512xf32>
    %527 = arith.addf %525, %526 : vector<32x512xf32>
    %528 = arith.addf %527, %295 : vector<32x512xf32>
    %529 = arith.truncf %528 : vector<32x512xf32> to vector<32x512xbf16>
    %c1_353 = arith.constant 1 : index
    %c0_354 = arith.constant 0 : index
    %c0_355 = arith.constant 0 : index
    %530 = vector.load %arg6[%c1_353, %c0_354, %c0_355] : memref<2x512x512xbf16, #tpu.memory_space<vmem>>, vector<1x512x512xbf16>
    %531 = vector.shape_cast %530 : vector<1x512x512xbf16> to vector<512x512xbf16>
    %cst_356 = arith.constant dense<0.000000e+00> : vector<32x512xf32>
    %532 = tpu.matmul %529, %531, %cst_356 {dimension_numbers = #tpu.dot_dimension_numbers<[1], [0], [0], [1], [0, 0, 1, 1], [], []>} : vector<32x512xbf16>, vector<512x512xbf16>, vector<32x512xf32> -> vector<32x512xf32>
    %c1_357 = arith.constant 1 : index
    %c0_358 = arith.constant 0 : index
    %c0_359 = arith.constant 0 : index
    %533 = vector.load %arg7[%c1_357, %c0_358, %c0_359] : memref<2x1x512xf32, #tpu.memory_space<vmem>>, vector<1x1x512xf32>
    %534 = vector.shape_cast %533 : vector<1x1x512xf32> to vector<1x512xf32>
    %535 = vector.broadcast %534 : vector<1x512xf32> to vector<32x512xf32>
    %536 = arith.addf %532, %535 : vector<32x512xf32>
    %cst_360 = arith.constant 5.000000e-01 : f32
    %537 = vector.broadcast %cst_360 : f32 to vector<32x512xf32>
    %538 = arith.mulf %537, %536 : vector<32x512xf32>
    %cst_361 = arith.constant 4.471500e-02 : f32
    %539 = vector.broadcast %cst_361 : f32 to vector<32x512xf32>
    %540 = arith.mulf %539, %536 : vector<32x512xf32>
    %541 = arith.mulf %540, %536 : vector<32x512xf32>
    %542 = arith.mulf %541, %536 : vector<32x512xf32>
    %543 = arith.addf %536, %542 : vector<32x512xf32>
    %cst_362 = arith.constant 0.797884583 : f32
    %544 = vector.broadcast %cst_362 : f32 to vector<32x512xf32>
    %545 = arith.mulf %544, %543 : vector<32x512xf32>
    %546 = math.tanh %545 : vector<32x512xf32>
    %cst_363 = arith.constant 1.000000e+00 : f32
    %547 = vector.broadcast %cst_363 : f32 to vector<32x512xf32>
    %548 = arith.addf %547, %546 : vector<32x512xf32>
    %549 = arith.mulf %538, %548 : vector<32x512xf32>
    %c1_364 = arith.constant 1 : index
    %c0_365 = arith.constant 0 : index
    %c0_366 = arith.constant 0 : index
    %550 = vector.load %arg8[%c1_364, %c0_365, %c0_366] : memref<2x1x512xf32, #tpu.memory_space<vmem>>, vector<1x1x512xf32>
    %551 = vector.shape_cast %550 : vector<1x1x512xf32> to vector<1x512xf32>
    %c1_367 = arith.constant 1 : index
    %c0_368 = arith.constant 0 : index
    %c0_369 = arith.constant 0 : index
    %552 = vector.load %arg9[%c1_367, %c0_368, %c0_369] : memref<2x1x512xf32, #tpu.memory_space<vmem>>, vector<1x1x512xf32>
    %553 = vector.shape_cast %552 : vector<1x1x512xf32> to vector<1x512xf32>
    %cst_370 = arith.constant dense<0.000000e+00> : vector<512xf32>
    %554 = vector.multi_reduction <add>, %549, %cst_370 [0] : vector<32x512xf32> to vector<512xf32>
    %555 = vector.shape_cast %554 : vector<512xf32> to vector<1x512xf32>
    %556 = arith.mulf %549, %549 : vector<32x512xf32>
    %cst_371 = arith.constant dense<0.000000e+00> : vector<512xf32>
    %557 = vector.multi_reduction <add>, %556, %cst_371 [0] : vector<32x512xf32> to vector<512xf32>
    %558 = vector.shape_cast %557 : vector<512xf32> to vector<1x512xf32>
    %559 = tpu.concatenate %555, %558 in 0 : vector<1x512xf32>, vector<1x512xf32> -> vector<2x512xf32>
    %c256_i32_372 = arith.constant 256 : i32
    %560 = tpu.dynamic_rotate %559 by %c256_i32_372 dim 1 : vector<2x512xf32>, i32 -> vector<2x512xf32>
    %561 = arith.addf %559, %560 : vector<2x512xf32>
    %c128_i32_373 = arith.constant 128 : i32
    %562 = tpu.dynamic_rotate %561 by %c128_i32_373 dim 1 : vector<2x512xf32>, i32 -> vector<2x512xf32>
    %563 = arith.addf %561, %562 : vector<2x512xf32>
    %c64_i32_374 = arith.constant 64 : i32
    %564 = tpu.dynamic_rotate %563 by %c64_i32_374 dim 1 : vector<2x512xf32>, i32 -> vector<2x512xf32>
    %565 = arith.addf %563, %564 : vector<2x512xf32>
    %c32_i32_375 = arith.constant 32 : i32
    %566 = tpu.dynamic_rotate %565 by %c32_i32_375 dim 1 : vector<2x512xf32>, i32 -> vector<2x512xf32>
    %567 = arith.addf %565, %566 : vector<2x512xf32>
    %568 = vector.extract_strided_slice %567 {offsets = [0, 0], sizes = [1, 512], strides = [1, 1]} : vector<2x512xf32> to vector<1x512xf32>
    %cst_376 = arith.constant 0.001953125 : f32
    %569 = vector.broadcast %cst_376 : f32 to vector<1x512xf32>
    %570 = arith.mulf %568, %569 : vector<1x512xf32>
    %571 = vector.extract_strided_slice %567 {offsets = [1, 0], sizes = [1, 512], strides = [1, 1]} : vector<2x512xf32> to vector<1x512xf32>
    %cst_377 = arith.constant 0.001953125 : f32
    %572 = vector.broadcast %cst_377 : f32 to vector<1x512xf32>
    %573 = arith.mulf %571, %572 : vector<1x512xf32>
    %574 = arith.mulf %570, %570 : vector<1x512xf32>
    %575 = arith.subf %573, %574 : vector<1x512xf32>
    %576 = vector.broadcast %570 : vector<1x512xf32> to vector<32x512xf32>
    %577 = arith.subf %549, %576 : vector<32x512xf32>
    %cst_378 = arith.constant 9.99999974E-6 : f32
    %578 = vector.broadcast %cst_378 : f32 to vector<1x512xf32>
    %579 = arith.addf %575, %578 : vector<1x512xf32>
    %580 = math.rsqrt %579 : vector<1x512xf32>
    %581 = vector.broadcast %580 : vector<1x512xf32> to vector<32x512xf32>
    %582 = arith.mulf %577, %581 : vector<32x512xf32>
    %583 = vector.broadcast %551 : vector<1x512xf32> to vector<32x512xf32>
    %584 = arith.mulf %582, %583 : vector<32x512xf32>
    %585 = vector.broadcast %553 : vector<1x512xf32> to vector<32x512xf32>
    %586 = arith.addf %584, %585 : vector<32x512xf32>
    %c0_379 = arith.constant 0 : index
    %c0_380 = arith.constant 0 : index
    %587 = vector.load %arg10[%c0_379, %c0_380] : memref<32x512xf32, #tpu.memory_space<vmem>>, vector<32x512xf32>
    tpu.vector_store %arg10[%c0_379, %c0_380], %586 {strides = array<i32>} : memref<32x512xf32, #tpu.memory_space<vmem>>, vector<32x512xf32>,
    return
  }
}

</mosaic_0001>

<llo_original>
// kernel: mul.4
$region0: #{mul.4}
  %s0 = inlined_call_operand.vmem [shape: f32[4,4,3,32], index: 0, kind: input, shape index: {}]
  %s1 = inlined_call_operand.vmem [shape: f32[48,32], index: 1, kind: output, shape index: {}]
  $region1: #{mul.4} parent=0
    #allocation0 [shape = 'u8[65536]{0}', space=vmem, size = 0x10000, scoped, tag = 'scoped mem for input reshape']
    %s3 = ssub.s32 16, 1
    %s4 = scalar_lea.vmem %s0, 60
    %v5 = vld [vmem:[%s4] sm:%s3]
    %s6 = scalar_lea.vmem [#allocation0], 120
    %7 = vst [vmem:[%s6] sm:%s3] %v5
    %s8 = scalar_lea.vmem %s0, 56
    %v9 = vld [vmem:[%s8] sm:%s3]
    %s10 = scalar_lea.vmem [#allocation0], 112
    %11 = vst [vmem:[%s10] sm:%s3] %v9
    %s12 = scalar_lea.vmem %s0, 52
    %v13 = vld [vmem:[%s12] sm:%s3]
    %s14 = scalar_lea.vmem [#allocation0], 104
    %15 = vst [vmem:[%s14] sm:%s3] %v13
    %s16 = scalar_lea.vmem %s0, 48
    %v17 = vld [vmem:[%s16] sm:%s3]
    %s18 = scalar_lea.vmem [#allocation0], 96
    %19 = vst [vmem:[%s18] sm:%s3] %v17
    %s20 = scalar_lea.vmem %s0, 44
    %v21 = vld [vmem:[%s20] sm:%s3]
    %s22 = scalar_lea.vmem [#allocation0], 88
    %23 = vst [vmem:[%s22] sm:%s3] %v21
    %s24 = scalar_lea.vmem %s0, 40
    %v25 = vld [vmem:[%s24] sm:%s3]
    %s26 = scalar_lea.vmem [#allocation0], 80
    %27 = vst [vmem:[%s26] sm:%s3] %v25
    %s28 = scalar_lea.vmem %s0, 36
    %v29 = vld [vmem:[%s28] sm:%s3]
    %s30 = scalar_lea.vmem [#allocation0], 72
    %31 = vst [vmem:[%s30] sm:%s3] %v29
    %s32 = scalar_lea.vmem %s0, 32
    %v33 = vld [vmem:[%s32] sm:%s3]
    %s34 = scalar_lea.vmem [#allocation0], 64
    %35 = vst [vmem:[%s34] sm:%s3] %v33
    %s36 = scalar_lea.vmem %s0, 28
    %v37 = vld [vmem:[%s36] sm:%s3]
    %s38 = scalar_lea.vmem [#allocation0], 56
    %39 = vst [vmem:[%s38] sm:%s3] %v37
    %s40 = scalar_lea.vmem %s0, 24
    %v41 = vld [vmem:[%s40] sm:%s3]
    %s42 = scalar_lea.vmem [#allocation0], 48
    %43 = vst [vmem:[%s42] sm:%s3] %v41
    %s44 = scalar_lea.vmem %s0, 20
    %v45 = vld [vmem:[%s44] sm:%s3]
    %s46 = scalar_lea.vmem [#allocation0], 40
    %47 = vst [vmem:[%s46] sm:%s3] %v45
    %s48 = scalar_lea.vmem %s0, 16
    %v49 = vld [vmem:[%s48] sm:%s3]
    %s50 = scalar_lea.vmem [#allocation0], 32
    %51 = vst [vmem:[%s50] sm:%s3] %v49
    %s52 = scalar_lea.vmem %s0, 12
    %v53 = vld [vmem:[%s52] sm:%s3]
    %s54 = scalar_lea.vmem [#allocation0], 24
    %55 = vst [vmem:[%s54] sm:%s3] %v53
    %s56 = scalar_lea.vmem %s0, 8
    %v57 = vld [vmem:[%s56] sm:%s3]
    %s58 = scalar_lea.vmem [#allocation0], 16
    %59 = vst [vmem:[%s58] sm:%s3] %v57
    %s60 = scalar_lea.vmem %s0, 4
    %v61 = vld [vmem:[%s60] sm:%s3]
    %s62 = scalar_lea.vmem [#allocation0], 8
    %63 = vst [vmem:[%s62] sm:%s3] %v61
    %v64 = vld [vmem:[%s0] sm:%s3]
    %65 = vst [vmem:[#allocation0] sm:%s3] %v64
    %v66 = vld [vmem:[#allocation0] sm:$0x7]
    %vm67 = vcmask 261120
    %68 = vst.msk [vmem:[%s1] sm:$0x7] %vm67, %v66
    %s69 = scalar_lea.vmem [#allocation0], 8
    %v70 = vld [vmem:[%s69] sm:$0x7]
    %vm71 = vcmask 261120
    %s72 = scalar_lea.vmem %s1, 3
    %73 = vst.msk [vmem:[%s72] sm:$0x7] %vm71, %v70
    %s74 = scalar_lea.vmem [#allocation0], 16
    %v75 = vld [vmem:[%s74] sm:$0x7]
    %vm76 = vcmask 261120
    %s77 = scalar_lea.vmem %s1, 6
    %78 = vst.msk [vmem:[%s77] sm:$0x7] %vm76, %v75
    %s79 = scalar_lea.vmem [#allocation0], 24
    %v80 = vld [vmem:[%s79] sm:$0x7]
    %vm81 = vcmask 261120
    %s82 = scalar_lea.vmem %s1, 9
    %83 = vst.msk [vmem:[%s82] sm:$0x7] %vm81, %v80
    %s84 = scalar_lea.vmem [#allocation0], 32
    %v85 = vld [vmem:[%s84] sm:$0x7]
    %vm86 = vcmask 261120
    %s87 = scalar_lea.vmem %s1, 12
    %88 = vst.msk [vmem:[%s87] sm:$0x7] %vm86, %v85
    %s89 = scalar_lea.vmem [#allocation0], 40
    %v90 = vld [vmem:[%s89] sm:$0x7]
    %vm91 = vcmask 261120
    %s92 = scalar_lea.vmem %s1, 15
    %93 = vst.msk [vmem:[%s92] sm:$0x7] %vm91, %v90
    %s94 = scalar_lea.vmem [#allocation0], 48
    %v95 = vld [vmem:[%s94] sm:$0x7]
    %vm96 = vcmask 261120
    %s97 = scalar_lea.vmem %s1, 18
    %98 = vst.msk [vmem:[%s97] sm:$0x7] %vm96, %v95
    %s99 = scalar_lea.vmem [#allocation0], 56
    %v100 = vld [vmem:[%s99] sm:$0x7]
    %vm101 = vcmask 261120
    %s102 = scalar_lea.vmem %s1, 21
    %103 = vst.msk [vmem:[%s102] sm:$0x7] %vm101, %v100
    %s104 = scalar_lea.vmem [#allocation0], 64
    %v105 = vld [vmem:[%s104] sm:$0x7]
    %vm106 = vcmask 261120
    %s107 = scalar_lea.vmem %s1, 24
    %108 = vst.msk [vmem:[%s107] sm:$0x7] %vm106, %v105
    %s109 = scalar_lea.vmem [#allocation0], 72
    %v110 = vld [vmem:[%s109] sm:$0x7]
    %vm111 = vcmask 261120
    %s112 = scalar_lea.vmem %s1, 27
    %113 = vst.msk [vmem:[%s112] sm:$0x7] %vm111, %v110
    %s114 = scalar_lea.vmem [#allocation0], 80
    %v115 = vld [vmem:[%s114] sm:$0x7]
    %vm116 = vcmask 261120
    %s117 = scalar_lea.vmem %s1, 30
    %118 = vst.msk [vmem:[%s117] sm:$0x7] %vm116, %v115
    %s119 = scalar_lea.vmem [#allocation0], 88
    %v120 = vld [vmem:[%s119] sm:$0x7]
    %vm121 = vcmask 261120
    %s122 = scalar_lea.vmem %s1, 33
    %123 = vst.msk [vmem:[%s122] sm:$0x7] %vm121, %v120
    %s124 = scalar_lea.vmem [#allocation0], 96
    %v125 = vld [vmem:[%s124] sm:$0x7]
    %vm126 = vcmask 261120
    %s127 = scalar_lea.vmem %s1, 36
    %128 = vst.msk [vmem:[%s127] sm:$0x7] %vm126, %v125
    %s129 = scalar_lea.vmem [#allocation0], 104
    %v130 = vld [vmem:[%s129] sm:$0x7]
    %vm131 = vcmask 261120
    %s132 = scalar_lea.vmem %s1, 39
    %133 = vst.msk [vmem:[%s132] sm:$0x7] %vm131, %v130
    %s134 = scalar_lea.vmem [#allocation0], 112
    %v135 = vld [vmem:[%s134] sm:$0x7]
    %vm136 = vcmask 261120
    %s137 = scalar_lea.vmem %s1, 42
    %138 = vst.msk [vmem:[%s137] sm:$0x7] %vm136, %v135
    %s139 = scalar_lea.vmem [#allocation0], 120
    %v140 = vld [vmem:[%s139] sm:$0x7]
    %vm141 = vcmask 261120
    %s142 = scalar_lea.vmem %s1, 45
    %143 = vst.msk [vmem:[%s142] sm:$0x7] %vm141, %v140

// kernel: tile.83
$region0: #{tile.83}
  #allocation0 [shape = 's32[1]{0}', space=sflag, size = 0x4, scoped, tag = 'scoped memory for tile.83']
  %s0 = inlined_call_operand.vmem [shape: f32[32], index: 0, kind: input, shape index: {}]
  %s1 = inlined_call_operand.vmem [shape: f32[16,32], index: 1, kind: output, shape index: {}]
  // Predicated region
  $region2: #{tile.83} parent=0 // pred_check
    _
  $region3: #{tile.83} parent=0 // pred_check_branch
    %3 = sbr.rel (0) target = $region5
  $region4: #{tile.83} parent=0 // pred_region
    _
  $region5: #{tile.83} parent=0 // pred_fallthru
    _
  %v4 = vld [vmem:[%s0] ss:$0 sm:$0xff]
  %5 = vst [vmem:[%s1] sm:$0xff] %v4
  %s6 = scalar_lea.vmem %s1, 8
  %7 = vst [vmem:[%s6] sm:$0xff] %v4

// kernel: tile.85
$region0: #{tile.85}
  %s0 = inlined_call_operand.vmem [shape: f32[16,32], index: 0, kind: input, shape index: {}]
  %s1 = inlined_call_operand.vmem [shape: f32[1,1,512], index: 1, kind: output, shape index: {}]
  $region1: #{tile.85} parent=0
    #allocation0 [shape = 'u8[16384]{0}', space=vmem, size = 0x4000, scoped, tag = 'scoped mem for output reshape']
    %v2 = vld [vmem:[%s0] ss:$4 sm:$0xf]
    %vm3 = vcmask 261120
    %4 = vst.msk [vmem:[#allocation0] ss:$8 sm:$0xf] %vm3, %v2
    %s5 = scalar_lea.vmem %s0, 3
    %v6 = vld [vmem:[%s5] ss:$4 sm:$0xf]
    %7 = vrot.lane.b32.xlu0 %v6, 96
    %v8 = vpop.permute.xlu0 %7
    %vm9 = vcmask 1048320
    %10 = vst.msk [vmem:[#allocation0] ss:$8 sm:$0xf] %vm9, %v8
    %s11 = scalar_lea.vmem %s0, 2
    %v12 = vld [vmem:[%s11] ss:$4 sm:$0xf]
    %13 = vrot.lane.b32.xlu0 %v12, 64
    %v14 = vpop.permute.xlu0 %13
    %vm15 = vcmask 785920
    %16 = vst.msk [vmem:[#allocation0] ss:$8 sm:$0xf] %vm15, %v14
    %s17 = scalar_lea.vmem %s0, 1
    %v18 = vld [vmem:[%s17] ss:$4 sm:$0xf]
    %19 = vrot.lane.b32.xlu0 %v18, 32
    %v20 = vpop.permute.xlu0 %19
    %vm21 = vcmask 523520
    %22 = vst.msk [vmem:[#allocation0] ss:$8 sm:$0xf] %vm21, %v20
    %s24 = ssub.s32 2, 1
    %v25 = vld [vmem:[#allocation0] sm:%s24]
    %s27 = ssub.s32 2, 1
    %28 = vst [vmem:[%s1] sm:%s27] %v25
    %s29 = scalar_lea.vmem [#allocation0], 8
    %v30 = vld [vmem:[%s29] sm:%s24]
    %s32 = ssub.s32 2, 1
    %s33 = scalar_lea.vmem %s1, 1
    %34 = vst [vmem:[%s33] sm:%s32] %v30
    %s35 = scalar_lea.vmem [#allocation0], 16
    %v36 = vld [vmem:[%s35] sm:%s24]
    %s38 = ssub.s32 2, 1
    %s39 = scalar_lea.vmem %s1, 2
    %40 = vst [vmem:[%s39] sm:%s38] %v36
    %s41 = scalar_lea.vmem [#allocation0], 24
    %v42 = vld [vmem:[%s41] sm:%s24]
    %s44 = ssub.s32 2, 1
    %s45 = scalar_lea.vmem %s1, 3
    %46 = vst [vmem:[%s45] sm:%s44] %v42

// kernel: freak_model_forward.1
$region0: #{freak_model_forward.1}
  #allocation0 [shape = 'u32[]', space=smem, size = 0x4, offset = 0x4, fixed_abs, tag = 'smem constant byte address 0x4 - core index']
  #allocation1 [shape = 'u32[72,128]{1,0:T(1,128)}', space=vmem, size = 0x9000, scoped, tag = 'internal scratch']
  #allocation2 [shape = 'f32[2,20,640]{2,1,0:T(8,128)}', space=vmem, size = 0x1e000, scoped, tag = 'scratch operand']
  %s0 = inlined_call_operand.vmem [shape: f32[32,768], index: 0, kind: input, shape index: {}]
  %s1 = inlined_call_operand.vmem [shape: f32[768,512], index: 1, kind: input, shape index: {}]
  %s2 = inlined_call_operand.vmem [shape: f32[2,25,512], index: 2, kind: input, shape index: {}]
  %s3 = inlined_call_operand.vmem [shape: f32[2,1,512], index: 3, kind: input, shape index: {}]
  %s4 = inlined_call_operand.vmem [shape: f32[2,1,512], index: 4, kind: input, shape index: {}]
  %s5 = inlined_call_operand.vmem [shape: f32[2,1,512], index: 5, kind: input, shape index: {}]
  %s6 = inlined_call_operand.vmem [shape: bf16[2,512,512], index: 6, kind: input, shape index: {}]
  %s7 = inlined_call_operand.vmem [shape: f32[2,1,512], index: 7, kind: input, shape index: {}]
  %s8 = inlined_call_operand.vmem [shape: f32[2,1,512], index: 8, kind: input, shape index: {}]
  %s9 = inlined_call_operand.vmem [shape: f32[2,1,512], index: 9, kind: input, shape index: {}]
  %s10 = inlined_call_operand.vmem [shape: f32[32,512], index: 10, kind: output, shape index: {}]
  %s11 = sld [smem:[#allocation0]]
  $region50: #{freak_model_forward.1} parent=0
    _
  %s13 = ssub.s32 1, %s11
  %s14 = scalar_select 0, %s13, %s11
  // Predicated region
  $region2: #{freak_model_forward.1} parent=0 // pred_check
    _
  $region3: #{freak_model_forward.1} parent=0 // pred_check_branch
    %16 = sbr.rel (0) target = $region5
  $region4: #{freak_model_forward.1} parent=0 // pred_region
    _
  $region5: #{freak_model_forward.1} parent=0 // pred_fallthru
    _
  // Predicated region
  $region6: #{freak_model_forward.1} parent=0 // pred_check
    _
  $region7: #{freak_model_forward.1} parent=0 // pred_check_branch
    %18 = sbr.rel (0) target = $region9
  $region8: #{freak_model_forward.1} parent=0 // pred_region
    _
  $region9: #{freak_model_forward.1} parent=0 // pred_fallthru
    _
  // Predicated region
  $region10: #{freak_model_forward.1} parent=0 // pred_check
    _
  $region11: #{freak_model_forward.1} parent=0 // pred_check_branch
    %20 = sbr.rel (0) target = $region13
  $region12: #{freak_model_forward.1} parent=0 // pred_region
    _
  $region13: #{freak_model_forward.1} parent=0 // pred_fallthru
    _
  // Predicated region
  $region14: #{freak_model_forward.1} parent=0 // pred_check
    _
  $region15: #{freak_model_forward.1} parent=0 // pred_check_branch
    %22 = sbr.rel (0) target = $region17
  $region16: #{freak_model_forward.1} parent=0 // pred_region
    _
  $region17: #{freak_model_forward.1} parent=0 // pred_fallthru
    _
  // Predicated region
  $region18: #{freak_model_forward.1} parent=0 // pred_check
    _
  $region19: #{freak_model_forward.1} parent=0 // pred_check_branch
    %24 = sbr.rel (0) target = $region21
  $region20: #{freak_model_forward.1} parent=0 // pred_region
    _
  $region21: #{freak_model_forward.1} parent=0 // pred_fallthru
    _
  // Predicated region
  $region22: #{freak_model_forward.1} parent=0 // pred_check
    _
  $region23: #{freak_model_forward.1} parent=0 // pred_check_branch
    %26 = sbr.rel (0) target = $region25
  $region24: #{freak_model_forward.1} parent=0 // pred_region
    _
  $region25: #{freak_model_forward.1} parent=0 // pred_fallthru
    _
  // Predicated region
  $region26: #{freak_model_forward.1} parent=0 // pred_check
    _
  $region27: #{freak_model_forward.1} parent=0 // pred_check_branch
    %28 = sbr.rel (0) target = $region29
  $region28: #{freak_model_forward.1} parent=0 // pred_region
    _
  $region29: #{freak_model_forward.1} parent=0 // pred_fallthru
    _
  // Predicated region
  $region30: #{freak_model_forward.1} parent=0 // pred_check
    _
  $region31: #{freak_model_forward.1} parent=0 // pred_check_branch
    %30 = sbr.rel (0) target = $region33
  $region32: #{freak_model_forward.1} parent=0 // pred_region
    _
  $region33: #{freak_model_forward.1} parent=0 // pred_fallthru
    _
  // Predicated region
  $region34: #{freak_model_forward.1} parent=0 // pred_check
    _
  $region35: #{freak_model_forward.1} parent=0 // pred_check_branch
    %32 = sbr.rel (0) target = $region37
  $region36: #{freak_model_forward.1} parent=0 // pred_region
    _
  $region37: #{freak_model_forward.1} parent=0 // pred_fallthru
    _
  // Predicated region
  $region38: #{freak_model_forward.1} parent=0 // pred_check
    _
  $region39: #{freak_model_forward.1} parent=0 // pred_check_branch
    %34 = sbr.rel (0) target = $region41
  $region40: #{freak_model_forward.1} parent=0 // pred_region
    _
  $region41: #{freak_model_forward.1} parent=0 // pred_fallthru
    _
  %v35 = vld [vmem:[%s0] sm:$0xff]
  %v36 = vld [vmem:[%s0 + $0x8] sm:$0xff]
  %v37 = vld [vmem:[%s0 + $0x10] sm:$0xff]
  %v38 = vld [vmem:[%s0 + $0x18] sm:$0xff]
  %v39 = vld [vmem:[%s0 + $0x20] sm:$0xff]
  %v40 = vld [vmem:[%s0 + $0x28] sm:$0xff]
  %v41 = vld [vmem:[%s0 + $0x30] sm:$0xff]
  %v42 = vld [vmem:[%s0 + $0x38] sm:$0xff]
  %v43 = vld [vmem:[%s0 + $0x40] sm:$0xff]
  %v44 = vld [vmem:[%s0 + $0x48] sm:$0xff]
  %v45 = vld [vmem:[%s0 + $0x50] sm:$0xff]
  %v46 = vld [vmem:[%s0 + $0x58] sm:$0xff]
  %v47 = vld [vmem:[%s0 + $0x60] sm:$0xff]
  %v48 = vld [vmem:[%s0 + $0x68] sm:$0xff]
  %v49 = vld [vmem:[%s0 + $0x70] sm:$0xff]
  %v50 = vld [vmem:[%s0 + $0x78] sm:$0xff]
  %v51 = vld [vmem:[%s0 + $0x80] sm:$0xff]
  %v52 = vld [vmem:[%s0 + $0x88] sm:$0xff]
  %v53 = vld [vmem:[%s0 + $0x90] sm:$0xff]
  %v54 = vld [vmem:[%s0 + $0x98] sm:$0xff]
  %v55 = vld [vmem:[%s0 + $0xa0] sm:$0xff]
  %v56 = vld [vmem:[%s0 + $0xa8] sm:$0xff]
  %v57 = vld [vmem:[%s0 + $0xb0] sm:$0xff]
  %v58 = vld [vmem:[%s0 + $0xb8] sm:$0xff]
  %v59 = vld [vmem:[%s1] sm:$0xff]
  %v60 = vld [vmem:[%s1 + $0x8] sm:$0xff]
  %v61 = vld [vmem:[%s1 + $0x10] sm:$0xff]
  %v62 = vld [vmem:[%s1 + $0x18] sm:$0xff]
  %v63 = vld [vmem:[%s1 + $0x20] sm:$0xff]
  %v64 = vld [vmem:[%s1 + $0x28] sm:$0xff]
  %v65 = vld [vmem:[%s1 + $0x30] sm:$0xff]
  %v66 = vld [vmem:[%s1 + $0x38] sm:$0xff]
  %v67 = vld [vmem:[%s1 + $0x40] sm:$0xff]
  %v68 = vld [vmem:[%s1 + $0x48] sm:$0xff]
  %v69 = vld [vmem:[%s1 + $0x50] sm:$0xff]
  %v70 = vld [vmem:[%s1 + $0x58] sm:$0xff]
  %v71 = vld [vmem:[%s1 + $0x60] sm:$0xff]
  %v72 = vld [vmem:[%s1 + $0x68] sm:$0xff]
  %v73 = vld [vmem:[%s1 + $0x70] sm:$0xff]
  %v74 = vld [vmem:[%s1 + $0x78] sm:$0xff]
  %v75 = vld [vmem:[%s1 + $0x80] sm:$0xff]
  %v76 = vld [vmem:[%s1 + $0x88] sm:$0xff]
  %v77 = vld [vmem:[%s1 + $0x90] sm:$0xff]
  %v78 = vld [vmem:[%s1 + $0x98] sm:$0xff]
  %v79 = vld [vmem:[%s1 + $0xa0] sm:$0xff]
  %v80 = vld [vmem:[%s1 + $0xa8] sm:$0xff]
  %v81 = vld [vmem:[%s1 + $0xb0] sm:$0xff]
  %v82 = vld [vmem:[%s1 + $0xb8] sm:$0xff]
  %v83 = vld [vmem:[%s1 + $0xc0] sm:$0xff]
  %v84 = vld [vmem:[%s1 + $0xc8] sm:$0xff]
  %v85 = vld [vmem:[%s1 + $0xd0] sm:$0xff]
  %v86 = vld [vmem:[%s1 + $0xd8] sm:$0xff]
  %v87 = vld [vmem:[%s1 + $0xe0] sm:$0xff]
  %v88 = vld [vmem:[%s1 + $0xe8] sm:$0xff]
  %v89 = vld [vmem:[%s1 + $0xf0] sm:$0xff]
  %v90 = vld [vmem:[%s1 + $0xf8] sm:$0xff]
  %v91 = vld [vmem:[%s1 + $0x100] sm:$0xff]
  %v92 = vld [vmem:[%s1 + $0x108] sm:$0xff]
  %v93 = vld [vmem:[%s1 + $0x110] sm:$0xff]
  %v94 = vld [vmem:[%s1 + $0x118] sm:$0xff]
  %v95 = vld [vmem:[%s1 + $0x120] sm:$0xff]
  %v96 = vld [vmem:[%s1 + $0x128] sm:$0xff]
  %v97 = vld [vmem:[%s1 + $0x130] sm:$0xff]
  %v98 = vld [vmem:[%s1 + $0x138] sm:$0xff]
  %v99 = vld [vmem:[%s1 + $0x140] sm:$0xff]
  %v100 = vld [vmem:[%s1 + $0x148] sm:$0xff]
  %v101 = vld [vmem:[%s1 + $0x150] sm:$0xff]
  %v102 = vld [vmem:[%s1 + $0x158] sm:$0xff]
  %v103 = vld [vmem:[%s1 + $0x160] sm:$0xff]
  %v104 = vld [vmem:[%s1 + $0x168] sm:$0xff]
  %v105 = vld [vmem:[%s1 + $0x170] sm:$0xff]
  %v106 = vld [vmem:[%s1 + $0x178] sm:$0xff]
  %v107 = vld [vmem:[%s1 + $0x180] sm:$0xff]
  %v108 = vld [vmem:[%s1 + $0x188] sm:$0xff]
  %v109 = vld [vmem:[%s1 + $0x190] sm:$0xff]
  %v110 = vld [vmem:[%s1 + $0x198] sm:$0xff]
  %v111 = vld [vmem:[%s1 + $0x1a0] sm:$0xff]
  %v112 = vld [vmem:[%s1 + $0x1a8] sm:$0xff]
  %v113 = vld [vmem:[%s1 + $0x1b0] sm:$0xff]
  %v114 = vld [vmem:[%s1 + $0x1b8] sm:$0xff]
  %v115 = vld [vmem:[%s1 + $0x1c0] sm:$0xff]
  %v116 = vld [vmem:[%s1 + $0x1c8] sm:$0xff]
  %v117 = vld [vmem:[%s1 + $0x1d0] sm:$0xff]
  %v118 = vld [vmem:[%s1 + $0x1d8] sm:$0xff]
  %v119 = vld [vmem:[%s1 + $0x1e0] sm:$0xff]
  %v120 = vld [vmem:[%s1 + $0x1e8] sm:$0xff]
  %v121 = vld [vmem:[%s1 + $0x1f0] sm:$0xff]
  %v122 = vld [vmem:[%s1 + $0x1f8] sm:$0xff]
  %v123 = vld [vmem:[%s1 + $0x200] sm:$0xff]
  %v124 = vld [vmem:[%s1 + $0x208] sm:$0xff]
  %v125 = vld [vmem:[%s1 + $0x210] sm:$0xff]
  %v126 = vld [vmem:[%s1 + $0x218] sm:$0xff]
  %v127 = vld [vmem:[%s1 + $0x220] sm:$0xff]
  %v128 = vld [vmem:[%s1 + $0x228] sm:$0xff]
  %v129 = vld [vmem:[%s1 + $0x230] sm:$0xff]
  %v130 = vld [vmem:[%s1 + $0x238] sm:$0xff]
  %v131 = vld [vmem:[%s1 + $0x240] sm:$0xff]
  %v132 = vld [vmem:[%s1 + $0x248] sm:$0xff]
  %v133 = vld [vmem:[%s1 + $0x250] sm:$0xff]
  %v134 = vld [vmem:[%s1 + $0x258] sm:$0xff]
  %v135 = vld [vmem:[%s1 + $0x260] sm:$0xff]
  %v136 = vld [vmem:[%s1 + $0x268] sm:$0xff]
  %v137 = vld [vmem:[%s1 + $0x270] sm:$0xff]
  %v138 = vld [vmem:[%s1 + $0x278] sm:$0xff]
  %v139 = vld [vmem:[%s1 + $0x280] sm:$0xff]
  %v140 = vld [vmem:[%s1 + $0x288] sm:$0xff]
  %v141 = vld [vmem:[%s1 + $0x290] sm:$0xff]
  %v142 = vld [vmem:[%s1 + $0x298] sm:$0xff]
  %v143 = vld [vmem:[%s1 + $0x2a0] sm:$0xff]
  %v144 = vld [vmem:[%s1 + $0x2a8] sm:$0xff]
  %v145 = vld [vmem:[%s1 + $0x2b0] sm:$0xff]
  %v146 = vld [vmem:[%s1 + $0x2b8] sm:$0xff]
  %v147 = vld [vmem:[%s1 + $0x2c0] sm:$0xff]
  %v148 = vld [vmem:[%s1 + $0x2c8] sm:$0xff]
  %v149 = vld [vmem:[%s1 + $0x2d0] sm:$0xff]
  %v150 = vld [vmem:[%s1 + $0x2d8] sm:$0xff]
  %v151 = vld [vmem:[%s1 + $0x2e0] sm:$0xff]
  %v152 = vld [vmem:[%s1 + $0x2e8] sm:$0xff]
  %v153 = vld [vmem:[%s1 + $0x2f0] sm:$0xff]
  %v154 = vld [vmem:[%s1 + $0x2f8] sm:$0xff]
  %v155 = vld [vmem:[%s1 + $0x300] sm:$0xff]
  %v156 = vld [vmem:[%s1 + $0x308] sm:$0xff]
  %v157 = vld [vmem:[%s1 + $0x310] sm:$0xff]
  %v158 = vld [vmem:[%s1 + $0x318] sm:$0xff]
  %v159 = vld [vmem:[%s1 + $0x320] sm:$0xff]
  %v160 = vld [vmem:[%s1 + $0x328] sm:$0xff]
  %v161 = vld [vmem:[%s1 + $0x330] sm:$0xff]
  %v162 = vld [vmem:[%s1 + $0x338] sm:$0xff]
  %v163 = vld [vmem:[%s1 + $0x340] sm:$0xff]
  %v164 = vld [vmem:[%s1 + $0x348] sm:$0xff]
  %v165 = vld [vmem:[%s1 + $0x350] sm:$0xff]
  %v166 = vld [vmem:[%s1 + $0x358] sm:$0xff]
  %v167 = vld [vmem:[%s1 + $0x360] sm:$0xff]
  %v168 = vld [vmem:[%s1 + $0x368] sm:$0xff]
  %v169 = vld [vmem:[%s1 + $0x370] sm:$0xff]
  %v170 = vld [vmem:[%s1 + $0x378] sm:$0xff]
  %v171 = vld [vmem:[%s1 + $0x380] sm:$0xff]
  %v172 = vld [vmem:[%s1 + $0x388] sm:$0xff]
  %v173 = vld [vmem:[%s1 + $0x390] sm:$0xff]
  %v174 = vld [vmem:[%s1 + $0x398] sm:$0xff]
  %v175 = vld [vmem:[%s1 + $0x3a0] sm:$0xff]
  %v176 = vld [vmem:[%s1 + $0x3a8] sm:$0xff]
  %v177 = vld [vmem:[%s1 + $0x3b0] sm:$0xff]
  %v178 = vld [vmem:[%s1 + $0x3b8] sm:$0xff]
  %v179 = vld [vmem:[%s1 + $0x3c0] sm:$0xff]
  %v180 = vld [vmem:[%s1 + $0x3c8] sm:$0xff]
  %v181 = vld [vmem:[%s1 + $0x3d0] sm:$0xff]
  %v182 = vld [vmem:[%s1 + $0x3d8] sm:$0xff]
  %v183 = vld [vmem:[%s1 + $0x3e0] sm:$0xff]
  %v184 = vld [vmem:[%s1 + $0x3e8] sm:$0xff]
  %v185 = vld [vmem:[%s1 + $0x3f0] sm:$0xff]
  %v186 = vld [vmem:[%s1 + $0x3f8] sm:$0xff]
  %v187 = vld [vmem:[%s1 + $0x400] sm:$0xff]
  %v188 = vld [vmem:[%s1 + $0x408] sm:$0xff]
  %v189 = vld [vmem:[%s1 + $0x410] sm:$0xff]
  %v190 = vld [vmem:[%s1 + $0x418] sm:$0xff]
  %v191 = vld [vmem:[%s1 + $0x420] sm:$0xff]
  %v192 = vld [vmem:[%s1 + $0x428] sm:$0xff]
  %v193 = vld [vmem:[%s1 + $0x430] sm:$0xff]
  %v194 = vld [vmem:[%s1 + $0x438] sm:$0xff]
  %v195 = vld [vmem:[%s1 + $0x440] sm:$0xff]
  %v196 = vld [vmem:[%s1 + $0x448] sm:$0xff]
  %v197 = vld [vmem:[%s1 + $0x450] sm:$0xff]
  %v198 = vld [vmem:[%s1 + $0x458] sm:$0xff]
  %v199 = vld [vmem:[%s1 + $0x460] sm:$0xff]
  %v200 = vld [vmem:[%s1 + $0x468] sm:$0xff]
  %v201 = vld [vmem:[%s1 + $0x470] sm:$0xff]
  %v202 = vld [vmem:[%s1 + $0x478] sm:$0xff]
  %v203 = vld [vmem:[%s1 + $0x480] sm:$0xff]
  %v204 = vld [vmem:[%s1 + $0x488] sm:$0xff]
  %v205 = vld [vmem:[%s1 + $0x490] sm:$0xff]
  %v206 = vld [vmem:[%s1 + $0x498] sm:$0xff]
  %v207 = vld [vmem:[%s1 + $0x4a0] sm:$0xff]
  %v208 = vld [vmem:[%s1 + $0x4a8] sm:$0xff]
  %v209 = vld [vmem:[%s1 + $0x4b0] sm:$0xff]
  %v210 = vld [vmem:[%s1 + $0x4b8] sm:$0xff]
  %v211 = vld [vmem:[%s1 + $0x4c0] sm:$0xff]
  %v212 = vld [vmem:[%s1 + $0x4c8] sm:$0xff]
  %v213 = vld [vmem:[%s1 + $0x4d0] sm:$0xff]
  %v214 = vld [vmem:[%s1 + $0x4d8] sm:$0xff]
  %v215 = vld [vmem:[%s1 + $0x4e0] sm:$0xff]
  %v216 = vld [vmem:[%s1 + $0x4e8] sm:$0xff]
  %v217 = vld [vmem:[%s1 + $0x4f0] sm:$0xff]
  %v218 = vld [vmem:[%s1 + $0x4f8] sm:$0xff]
  %v219 = vld [vmem:[%s1 + $0x500] sm:$0xff]
  %v220 = vld [vmem:[%s1 + $0x508] sm:$0xff]
  %v221 = vld [vmem:[%s1 + $0x510] sm:$0xff]
  %v222 = vld [vmem:[%s1 + $0x518] sm:$0xff]
  %v223 = vld [vmem:[%s1 + $0x520] sm:$0xff]
  %v224 = vld [vmem:[%s1 + $0x528] sm:$0xff]
  %v225 = vld [vmem:[%s1 + $0x530] sm:$0xff]
  %v226 = vld [vmem:[%s1 + $0x538] sm:$0xff]
  %v227 = vld [vmem:[%s1 + $0x540] sm:$0xff]
  %v228 = vld [vmem:[%s1 + $0x548] sm:$0xff]
  %v229 = vld [vmem:[%s1 + $0x550] sm:$0xff]
  %v230 = vld [vmem:[%s1 + $0x558] sm:$0xff]
  %v231 = vld [vmem:[%s1 + $0x560] sm:$0xff]
  %v232 = vld [vmem:[%s1 + $0x568] sm:$0xff]
  %v233 = vld [vmem:[%s1 + $0x570] sm:$0xff]
  %v234 = vld [vmem:[%s1 + $0x578] sm:$0xff]
  %v235 = vld [vmem:[%s1 + $0x580] sm:$0xff]
  %v236 = vld [vmem:[%s1 + $0x588] sm:$0xff]
  %v237 = vld [vmem:[%s1 + $0x590] sm:$0xff]
  %v238 = vld [vmem:[%s1 + $0x598] sm:$0xff]
  %v239 = vld [vmem:[%s1 + $0x5a0] sm:$0xff]
  %v240 = vld [vmem:[%s1 + $0x5a8] sm:$0xff]
  %v241 = vld [vmem:[%s1 + $0x5b0] sm:$0xff]
  %v242 = vld [vmem:[%s1 + $0x5b8] sm:$0xff]
  %v243 = vld [vmem:[%s1 + $0x5c0] sm:$0xff]
  %v244 = vld [vmem:[%s1 + $0x5c8] sm:$0xff]
  %v245 = vld [vmem:[%s1 + $0x5d0] sm:$0xff]
  %v246 = vld [vmem:[%s1 + $0x5d8] sm:$0xff]
  %v247 = vld [vmem:[%s1 + $0x5e0] sm:$0xff]
  %v248 = vld [vmem:[%s1 + $0x5e8] sm:$0xff]
  %v249 = vld [vmem:[%s1 + $0x5f0] sm:$0xff]
  %v250 = vld [vmem:[%s1 + $0x5f8] sm:$0xff]
  %v251 = vld [vmem:[%s1 + $0x600] sm:$0xff]
  %v252 = vld [vmem:[%s1 + $0x608] sm:$0xff]
  %v253 = vld [vmem:[%s1 + $0x610] sm:$0xff]
  %v254 = vld [vmem:[%s1 + $0x618] sm:$0xff]
  %v255 = vld [vmem:[%s1 + $0x620] sm:$0xff]
  %v256 = vld [vmem:[%s1 + $0x628] sm:$0xff]
  %v257 = vld [vmem:[%s1 + $0x630] sm:$0xff]
  %v258 = vld [vmem:[%s1 + $0x638] sm:$0xff]
  %v259 = vld [vmem:[%s1 + $0x640] sm:$0xff]
  %v260 = vld [vmem:[%s1 + $0x648] sm:$0xff]
  %v261 = vld [vmem:[%s1 + $0x650] sm:$0xff]
  %v262 = vld [vmem:[%s1 + $0x658] sm:$0xff]
  %v263 = vld [vmem:[%s1 + $0x660] sm:$0xff]
  %v264 = vld [vmem:[%s1 + $0x668] sm:$0xff]
  %v265 = vld [vmem:[%s1 + $0x670] sm:$0xff]
  %v266 = vld [vmem:[%s1 + $0x678] sm:$0xff]
  %v267 = vld [vmem:[%s1 + $0x680] sm:$0xff]
  %v268 = vld [vmem:[%s1 + $0x688] sm:$0xff]
  %v269 = vld [vmem:[%s1 + $0x690] sm:$0xff]
  %v270 = vld [vmem:[%s1 + $0x698] sm:$0xff]
  %v271 = vld [vmem:[%s1 + $0x6a0] sm:$0xff]
  %v272 = vld [vmem:[%s1 + $0x6a8] sm:$0xff]
  %v273 = vld [vmem:[%s1 + $0x6b0] sm:$0xff]
  %v274 = vld [vmem:[%s1 + $0x6b8] sm:$0xff]
  %v275 = vld [vmem:[%s1 + $0x6c0] sm:$0xff]
  %v276 = vld [vmem:[%s1 + $0x6c8] sm:$0xff]
  %v277 = vld [vmem:[%s1 + $0x6d0] sm:$0xff]
  %v278 = vld [vmem:[%s1 + $0x6d8] sm:$0xff]
  %v279 = vld [vmem:[%s1 + $0x6e0] sm:$0xff]
  %v280 = vld [vmem:[%s1 + $0x6e8] sm:$0xff]
  %v281 = vld [vmem:[%s1 + $0x6f0] sm:$0xff]
  %v282 = vld [vmem:[%s1 + $0x6f8] sm:$0xff]
  %v283 = vld [vmem:[%s1 + $0x700] sm:$0xff]
  %v284 = vld [vmem:[%s1 + $0x708] sm:$0xff]
  %v285 = vld [vmem:[%s1 + $0x710] sm:$0xff]
  %v286 = vld [vmem:[%s1 + $0x718] sm:$0xff]
  %v287 = vld [vmem:[%s1 + $0x720] sm:$0xff]
  %v288 = vld [vmem:[%s1 + $0x728] sm:$0xff]
  %v289 = vld [vmem:[%s1 + $0x730] sm:$0xff]
  %v290 = vld [vmem:[%s1 + $0x738] sm:$0xff]
  %v291 = vld [vmem:[%s1 + $0x740] sm:$0xff]
  %v292 = vld [vmem:[%s1 + $0x748] sm:$0xff]
  %v293 = vld [vmem:[%s1 + $0x750] sm:$0xff]
  %v294 = vld [vmem:[%s1 + $0x758] sm:$0xff]
  %v295 = vld [vmem:[%s1 + $0x760] sm:$0xff]
  %v296 = vld [vmem:[%s1 + $0x768] sm:$0xff]
  %v297 = vld [vmem:[%s1 + $0x770] sm:$0xff]
  %v298 = vld [vmem:[%s1 + $0x778] sm:$0xff]
  %v299 = vld [vmem:[%s1 + $0x780] sm:$0xff]
  %v300 = vld [vmem:[%s1 + $0x788] sm:$0xff]
  %v301 = vld [vmem:[%s1 + $0x790] sm:$0xff]
  %v302 = vld [vmem:[%s1 + $0x798] sm:$0xff]
  %v303 = vld [vmem:[%s1 + $0x7a0] sm:$0xff]
  %v304 = vld [vmem:[%s1 + $0x7a8] sm:$0xff]
  %v305 = vld [vmem:[%s1 + $0x7b0] sm:$0xff]
  %v306 = vld [vmem:[%s1 + $0x7b8] sm:$0xff]
  %v307 = vld [vmem:[%s1 + $0x7c0] sm:$0xff]
  %v308 = vld [vmem:[%s1 + $0x7c8] sm:$0xff]
  %v309 = vld [vmem:[%s1 + $0x7d0] sm:$0xff]
  %v310 = vld [vmem:[%s1 + $0x7d8] sm:$0xff]
  %v311 = vld [vmem:[%s1 + $0x7e0] sm:$0xff]
  %v312 = vld [vmem:[%s1 + $0x7e8] sm:$0xff]
  %v313 = vld [vmem:[%s1 + $0x7f0] sm:$0xff]
  %v314 = vld [vmem:[%s1 + $0x7f8] sm:$0xff]
  %v315 = vld [vmem:[%s1 + $0x800] sm:$0xff]
  %v316 = vld [vmem:[%s1 + $0x808] sm:$0xff]
  %v317 = vld [vmem:[%s1 + $0x810] sm:$0xff]
  %v318 = vld [vmem:[%s1 + $0x818] sm:$0xff]
  %v319 = vld [vmem:[%s1 + $0x820] sm:$0xff]
  %v320 = vld [vmem:[%s1 + $0x828] sm:$0xff]
  %v321 = vld [vmem:[%s1 + $0x830] sm:$0xff]
  %v322 = vld [vmem:[%s1 + $0x838] sm:$0xff]
  %v323 = vld [vmem:[%s1 + $0x840] sm:$0xff]
  %v324 = vld [vmem:[%s1 + $0x848] sm:$0xff]
  %v325 = vld [vmem:[%s1 + $0x850] sm:$0xff]
  %v326 = vld [vmem:[%s1 + $0x858] sm:$0xff]
  %v327 = vld [vmem:[%s1 + $0x860] sm:$0xff]
  %v328 = vld [vmem:[%s1 + $0x868] sm:$0xff]
  %v329 = vld [vmem:[%s1 + $0x870] sm:$0xff]
  %v330 = vld [vmem:[%s1 + $0x878] sm:$0xff]
  %v331 = vld [vmem:[%s1 + $0x880] sm:$0xff]
  %v332 = vld [vmem:[%s1 + $0x888] sm:$0xff]
  %v333 = vld [vmem:[%s1 + $0x890] sm:$0xff]
  %v334 = vld [vmem:[%s1 + $0x898] sm:$0xff]
  %v335 = vld [vmem:[%s1 + $0x8a0] sm:$0xff]
  %v336 = vld [vmem:[%s1 + $0x8a8] sm:$0xff]
  %v337 = vld [vmem:[%s1 + $0x8b0] sm:$0xff]
  %v338 = vld [vmem:[%s1 + $0x8b8] sm:$0xff]
  %v339 = vld [vmem:[%s1 + $0x8c0] sm:$0xff]
  %v340 = vld [vmem:[%s1 + $0x8c8] sm:$0xff]
  %v341 = vld [vmem:[%s1 + $0x8d0] sm:$0xff]
  %v342 = vld [vmem:[%s1 + $0x8d8] sm:$0xff]
  %v343 = vld [vmem:[%s1 + $0x8e0] sm:$0xff]
  %v344 = vld [vmem:[%s1 + $0x8e8] sm:$0xff]
  %v345 = vld [vmem:[%s1 + $0x8f0] sm:$0xff]
  %v346 = vld [vmem:[%s1 + $0x8f8] sm:$0xff]
  %v347 = vld [vmem:[%s1 + $0x900] sm:$0xff]
  %v348 = vld [vmem:[%s1 + $0x908] sm:$0xff]
  %v349 = vld [vmem:[%s1 + $0x910] sm:$0xff]
  %v350 = vld [vmem:[%s1 + $0x918] sm:$0xff]
  %v351 = vld [vmem:[%s1 + $0x920] sm:$0xff]
  %v352 = vld [vmem:[%s1 + $0x928] sm:$0xff]
  %v353 = vld [vmem:[%s1 + $0x930] sm:$0xff]
  %v354 = vld [vmem:[%s1 + $0x938] sm:$0xff]
  %v355 = vld [vmem:[%s1 + $0x940] sm:$0xff]
  %v356 = vld [vmem:[%s1 + $0x948] sm:$0xff]
  %v357 = vld [vmem:[%s1 + $0x950] sm:$0xff]
  %v358 = vld [vmem:[%s1 + $0x958] sm:$0xff]
  %v359 = vld [vmem:[%s1 + $0x960] sm:$0xff]
  %v360 = vld [vmem:[%s1 + $0x968] sm:$0xff]
  %v361 = vld [vmem:[%s1 + $0x970] sm:$0xff]
  %v362 = vld [vmem:[%s1 + $0x978] sm:$0xff]
  %v363 = vld [vmem:[%s1 + $0x980] sm:$0xff]
  %v364 = vld [vmem:[%s1 + $0x988] sm:$0xff]
  %v365 = vld [vmem:[%s1 + $0x990] sm:$0xff]
  %v366 = vld [vmem:[%s1 + $0x998] sm:$0xff]
  %v367 = vld [vmem:[%s1 + $0x9a0] sm:$0xff]
  %v368 = vld [vmem:[%s1 + $0x9a8] sm:$0xff]
  %v369 = vld [vmem:[%s1 + $0x9b0] sm:$0xff]
  %v370 = vld [vmem:[%s1 + $0x9b8] sm:$0xff]
  %v371 = vld [vmem:[%s1 + $0x9c0] sm:$0xff]
  %v372 = vld [vmem:[%s1 + $0x9c8] sm:$0xff]
  %v373 = vld [vmem:[%s1 + $0x9d0] sm:$0xff]
  %v374 = vld [vmem:[%s1 + $0x9d8] sm:$0xff]
  %v375 = vld [vmem:[%s1 + $0x9e0] sm:$0xff]
  %v376 = vld [vmem:[%s1 + $0x9e8] sm:$0xff]
  %v377 = vld [vmem:[%s1 + $0x9f0] sm:$0xff]
  %v378 = vld [vmem:[%s1 + $0x9f8] sm:$0xff]
  %v379 = vld [vmem:[%s1 + $0xa00] sm:$0xff]
  %v380 = vld [vmem:[%s1 + $0xa08] sm:$0xff]
  %v381 = vld [vmem:[%s1 + $0xa10] sm:$0xff]
  %v382 = vld [vmem:[%s1 + $0xa18] sm:$0xff]
  %v383 = vld [vmem:[%s1 + $0xa20] sm:$0xff]
  %v384 = vld [vmem:[%s1 + $0xa28] sm:$0xff]
  %v385 = vld [vmem:[%s1 + $0xa30] sm:$0xff]
  %v386 = vld [vmem:[%s1 + $0xa38] sm:$0xff]
  %v387 = vld [vmem:[%s1 + $0xa40] sm:$0xff]
  %v388 = vld [vmem:[%s1 + $0xa48] sm:$0xff]
  %v389 = vld [vmem:[%s1 + $0xa50] sm:$0xff]
  %v390 = vld [vmem:[%s1 + $0xa58] sm:$0xff]
  %v391 = vld [vmem:[%s1 + $0xa60] sm:$0xff]
  %v392 = vld [vmem:[%s1 + $0xa68] sm:$0xff]
  %v393 = vld [vmem:[%s1 + $0xa70] sm:$0xff]
  %v394 = vld [vmem:[%s1 + $0xa78] sm:$0xff]
  %v395 = vld [vmem:[%s1 + $0xa80] sm:$0xff]
  %v396 = vld [vmem:[%s1 + $0xa88] sm:$0xff]
  %v397 = vld [vmem:[%s1 + $0xa90] sm:$0xff]
  %v398 = vld [vmem:[%s1 + $0xa98] sm:$0xff]
  %v399 = vld [vmem:[%s1 + $0xaa0] sm:$0xff]
  %v400 = vld [vmem:[%s1 + $0xaa8] sm:$0xff]
  %v401 = vld [vmem:[%s1 + $0xab0] sm:$0xff]
  %v402 = vld [vmem:[%s1 + $0xab8] sm:$0xff]
  %v403 = vld [vmem:[%s1 + $0xac0] sm:$0xff]
  %v404 = vld [vmem:[%s1 + $0xac8] sm:$0xff]
  %v405 = vld [vmem:[%s1 + $0xad0] sm:$0xff]
  %v406 = vld [vmem:[%s1 + $0xad8] sm:$0xff]
  %v407 = vld [vmem:[%s1 + $0xae0] sm:$0xff]
  %v408 = vld [vmem:[%s1 + $0xae8] sm:$0xff]
  %v409 = vld [vmem:[%s1 + $0xaf0] sm:$0xff]
  %v410 = vld [vmem:[%s1 + $0xaf8] sm:$0xff]
  %v411 = vld [vmem:[%s1 + $0xb00] sm:$0xff]
  %v412 = vld [vmem:[%s1 + $0xb08] sm:$0xff]
  %v413 = vld [vmem:[%s1 + $0xb10] sm:$0xff]
  %v414 = vld [vmem:[%s1 + $0xb18] sm:$0xff]
  %v415 = vld [vmem:[%s1 + $0xb20] sm:$0xff]
  %v416 = vld [vmem:[%s1 + $0xb28] sm:$0xff]
  %v417 = vld [vmem:[%s1 + $0xb30] sm:$0xff]
  %v418 = vld [vmem:[%s1 + $0xb38] sm:$0xff]
  %v419 = vld [vmem:[%s1 + $0xb40] sm:$0xff]
  %v420 = vld [vmem:[%s1 + $0xb48] sm:$0xff]
  %v421 = vld [vmem:[%s1 + $0xb50] sm:$0xff]
  %v422 = vld [vmem:[%s1 + $0xb58] sm:$0xff]
  %v423 = vld [vmem:[%s1 + $0xb60] sm:$0xff]
  %v424 = vld [vmem:[%s1 + $0xb68] sm:$0xff]
  %v425 = vld [vmem:[%s1 + $0xb70] sm:$0xff]
  %v426 = vld [vmem:[%s1 + $0xb78] sm:$0xff]
  %v427 = vld [vmem:[%s1 + $0xb80] sm:$0xff]
  %v428 = vld [vmem:[%s1 + $0xb88] sm:$0xff]
  %v429 = vld [vmem:[%s1 + $0xb90] sm:$0xff]
  %v430 = vld [vmem:[%s1 + $0xb98] sm:$0xff]
  %v431 = vld [vmem:[%s1 + $0xba0] sm:$0xff]
  %v432 = vld [vmem:[%s1 + $0xba8] sm:$0xff]
  %v433 = vld [vmem:[%s1 + $0xbb0] sm:$0xff]
  %v434 = vld [vmem:[%s1 + $0xbb8] sm:$0xff]
  %v435 = vld [vmem:[%s1 + $0xbc0] sm:$0xff]
  %v436 = vld [vmem:[%s1 + $0xbc8] sm:$0xff]
  %v437 = vld [vmem:[%s1 + $0xbd0] sm:$0xff]
  %v438 = vld [vmem:[%s1 + $0xbd8] sm:$0xff]
  %v439 = vld [vmem:[%s1 + $0xbe0] sm:$0xff]
  %v440 = vld [vmem:[%s1 + $0xbe8] sm:$0xff]
  %v441 = vld [vmem:[%s1 + $0xbf0] sm:$0xff]
  %v442 = vld [vmem:[%s1 + $0xbf8] sm:$0xff]
  %443 = vmatpush.msra.mxu0 %v119
  %444 = vmatpush.msra.mxu0 %v115
  %445 = vmatpush.msra.mxu0 %v111
  %446 = vmatpush.msra.mxu0 %v107
  %447 = vmatpush.msra.mxu0 %v103
  %448 = vmatpush.msra.mxu0 %v99
  %449 = vmatpush.msra.mxu0 %v95
  %450 = vmatpush.msra.mxu0 %v91
  %451 = vmatpush.msra.mxu0 %v87
  %452 = vmatpush.msra.mxu0 %v83
  %453 = vmatpush.msra.mxu0 %v79
  %454 = vmatpush.msra.mxu0 %v75
  %455 = vmatpush.msra.mxu0 %v71
  %456 = vmatpush.msra.mxu0 %v67
  %457 = vmatpush.msra.mxu0 %v63
  %458 = vmatpush.msra.mxu0 %v59
  %459 = vmatmul.f32.gmra.mxu0 %v35
  %v460 = vpop.f32.mrf.mxu0
  %v461 = vadd.f32 0.0, %v460
  %462 = vmatmul.f32.gmra.mxu0 %v41
  %v463 = vpop.f32.mrf.mxu0
  %v464 = vadd.f32 0.0, %v463
  %465 = vmatmul.f32.gmra.mxu0 %v47
  %v466 = vpop.f32.mrf.mxu0
  %v467 = vadd.f32 0.0, %v466
  %468 = vmatmul.f32.gmra.mxu0 %v53
  %v469 = vpop.f32.mrf.mxu0
  %v470 = vadd.f32 0.0, %v469
  %471 = vdwg.mxu0
  %472 = vmatpush.msra.mxu0 %v183
  %473 = vmatpush.msra.mxu0 %v179
  %474 = vmatpush.msra.mxu0 %v175
  %475 = vmatpush.msra.mxu0 %v171
  %476 = vmatpush.msra.mxu0 %v167
  %477 = vmatpush.msra.mxu0 %v163
  %478 = vmatpush.msra.mxu0 %v159
  %479 = vmatpush.msra.mxu0 %v155
  %480 = vmatpush.msra.mxu0 %v151
  %481 = vmatpush.msra.mxu0 %v147
  %482 = vmatpush.msra.mxu0 %v143
  %483 = vmatpush.msra.mxu0 %v139
  %484 = vmatpush.msra.mxu0 %v135
  %485 = vmatpush.msra.mxu0 %v131
  %486 = vmatpush.msra.mxu0 %v127
  %487 = vmatpush.msra.mxu0 %v123
  %488 = vmatmul.f32.gmra.mxu0 %v36
  %v489 = vpop.f32.mrf.mxu0
  %v490 = vadd.f32 %v461, %v489
  %491 = vmatmul.f32.gmra.mxu0 %v42
  %v492 = vpop.f32.mrf.mxu0
  %v493 = vadd.f32 %v464, %v492
  %494 = vmatmul.f32.gmra.mxu0 %v48
  %v495 = vpop.f32.mrf.mxu0
  %v496 = vadd.f32 %v467, %v495
  %497 = vmatmul.f32.gmra.mxu0 %v54
  %v498 = vpop.f32.mrf.mxu0
  %v499 = vadd.f32 %v470, %v498
  %500 = vdwg.mxu0
  %501 = vmatpush.msra.mxu0 %v247
  %502 = vmatpush.msra.mxu0 %v243
  %503 = vmatpush.msra.mxu0 %v239
  %504 = vmatpush.msra.mxu0 %v235
  %505 = vmatpush.msra.mxu0 %v231
  %506 = vmatpush.msra.mxu0 %v227
  %507 = vmatpush.msra.mxu0 %v223
  %508 = vmatpush.msra.mxu0 %v219
  %509 = vmatpush.msra.mxu0 %v215
  %510 = vmatpush.msra.mxu0 %v211
  %511 = vmatpush.msra.mxu0 %v207
  %512 = vmatpush.msra.mxu0 %v203
  %513 = vmatpush.msra.mxu0 %v199
  %514 = vmatpush.msra.mxu0 %v195
  %515 = vmatpush.msra.mxu0 %v191
  %516 = vmatpush.msra.mxu0 %v187
  %517 = vmatmul.f32.gmra.mxu0 %v37
  %v518 = vpop.f32.mrf.mxu0
  %v519 = vadd.f32 %v490, %v518
  %520 = vmatmul.f32.gmra.mxu0 %v43
  %v521 = vpop.f32.mrf.mxu0
  %v522 = vadd.f32 %v493, %v521
  %523 = vmatmul.f32.gmra.mxu0 %v49
  %v524 = vpop.f32.mrf.mxu0
  %v525 = vadd.f32 %v496, %v524
  %526 = vmatmul.f32.gmra.mxu0 %v55
  %v527 = vpop.f32.mrf.mxu0
  %v528 = vadd.f32 %v499, %v527
  %529 = vdwg.mxu0
  %530 = vmatpush.msra.mxu0 %v311
  %531 = vmatpush.msra.mxu0 %v307
  %532 = vmatpush.msra.mxu0 %v303
  %533 = vmatpush.msra.mxu0 %v299
  %534 = vmatpush.msra.mxu0 %v295
  %535 = vmatpush.msra.mxu0 %v291
  %536 = vmatpush.msra.mxu0 %v287
  %537 = vmatpush.msra.mxu0 %v283
  %538 = vmatpush.msra.mxu0 %v279
  %539 = vmatpush.msra.mxu0 %v275
  %540 = vmatpush.msra.mxu0 %v271
  %541 = vmatpush.msra.mxu0 %v267
  %542 = vmatpush.msra.mxu0 %v263
  %543 = vmatpush.msra.mxu0 %v259
  %544 = vmatpush.msra.mxu0 %v255
  %545 = vmatpush.msra.mxu0 %v251
  %546 = vmatmul.f32.gmra.mxu0 %v38
  %v547 = vpop.f32.mrf.mxu0
  %v548 = vadd.f32 %v519, %v547
  %549 = vmatmul.f32.gmra.mxu0 %v44
  %v550 = vpop.f32.mrf.mxu0
  %v551 = vadd.f32 %v522, %v550
  %552 = vmatmul.f32.gmra.mxu0 %v50
  %v553 = vpop.f32.mrf.mxu0
  %v554 = vadd.f32 %v525, %v553
  %555 = vmatmul.f32.gmra.mxu0 %v56
  %v556 = vpop.f32.mrf.mxu0
  %v557 = vadd.f32 %v528, %v556
  %558 = vdwg.mxu0
  %559 = vmatpush.msra.mxu0 %v375
  %560 = vmatpush.msra.mxu0 %v371
  %561 = vmatpush.msra.mxu0 %v367
  %562 = vmatpush.msra.mxu0 %v363
  %563 = vmatpush.msra.mxu0 %v359
  %564 = vmatpush.msra.mxu0 %v355
  %565 = vmatpush.msra.mxu0 %v351
  %566 = vmatpush.msra.mxu0 %v347
  %567 = vmatpush.msra.mxu0 %v343
  %568 = vmatpush.msra.mxu0 %v339
  %569 = vmatpush.msra.mxu0 %v335
  %570 = vmatpush.msra.mxu0 %v331
  %571 = vmatpush.msra.mxu0 %v327
  %572 = vmatpush.msra.mxu0 %v323
  %573 = vmatpush.msra.mxu0 %v319
  %574 = vmatpush.msra.mxu0 %v315
  %575 = vmatmul.f32.gmra.mxu0 %v39
  %v576 = vpop.f32.mrf.mxu0
  %v577 = vadd.f32 %v548, %v576
  %578 = vmatmul.f32.gmra.mxu0 %v45
  %v579 = vpop.f32.mrf.mxu0
  %v580 = vadd.f32 %v551, %v579
  %581 = vmatmul.f32.gmra.mxu0 %v51
  %v582 = vpop.f32.mrf.mxu0
  %v583 = vadd.f32 %v554, %v582
  %584 = vmatmul.f32.gmra.mxu0 %v57
  %v585 = vpop.f32.mrf.mxu0
  %v586 = vadd.f32 %v557, %v585
  %587 = vdwg.mxu0
  %588 = vmatpush.msra.mxu0 %v439
  %589 = vmatpush.msra.mxu0 %v435
  %590 = vmatpush.msra.mxu0 %v431
  %591 = vmatpush.msra.mxu0 %v427
  %592 = vmatpush.msra.mxu0 %v423
  %593 = vmatpush.msra.mxu0 %v419
  %594 = vmatpush.msra.mxu0 %v415
  %595 = vmatpush.msra.mxu0 %v411
  %596 = vmatpush.msra.mxu0 %v407
  %597 = vmatpush.msra.mxu0 %v403
  %598 = vmatpush.msra.mxu0 %v399
  %599 = vmatpush.msra.mxu0 %v395
  %600 = vmatpush.msra.mxu0 %v391
  %601 = vmatpush.msra.mxu0 %v387
  %602 = vmatpush.msra.mxu0 %v383
  %603 = vmatpush.msra.mxu0 %v379
  %604 = vmatmul.f32.gmra.mxu0 %v40
  %v605 = vpop.f32.mrf.mxu0
  %v606 = vadd.f32 %v577, %v605
  %607 = vmatmul.f32.gmra.mxu0 %v46
  %v608 = vpop.f32.mrf.mxu0
  %v609 = vadd.f32 %v580, %v608
  %610 = vmatmul.f32.gmra.mxu0 %v52
  %v611 = vpop.f32.mrf.mxu0
  %v612 = vadd.f32 %v583, %v611
  %613 = vmatmul.f32.gmra.mxu0 %v58
  %v614 = vpop.f32.mrf.mxu0
  %v615 = vadd.f32 %v586, %v614
  %616 = vdwg.mxu0
  %617 = vmatpush.msra.mxu0 %v120
  %618 = vmatpush.msra.mxu0 %v116
  %619 = vmatpush.msra.mxu0 %v112
  %620 = vmatpush.msra.mxu0 %v108
  %621 = vmatpush.msra.mxu0 %v104
  %622 = vmatpush.msra.mxu0 %v100
  %623 = vmatpush.msra.mxu0 %v96
  %624 = vmatpush.msra.mxu0 %v92
  %625 = vmatpush.msra.mxu0 %v88
  %626 = vmatpush.msra.mxu0 %v84
  %627 = vmatpush.msra.mxu0 %v80
  %628 = vmatpush.msra.mxu0 %v76
  %629 = vmatpush.msra.mxu0 %v72
  %630 = vmatpush.msra.mxu0 %v68
  %631 = vmatpush.msra.mxu0 %v64
  %632 = vmatpush.msra.mxu0 %v60
  %633 = vmatmul.f32.gmra.mxu0 %v35
  %v634 = vpop.f32.mrf.mxu0
  %v635 = vadd.f32 0.0, %v634
  %636 = vmatmul.f32.gmra.mxu0 %v41
  %v637 = vpop.f32.mrf.mxu0
  %v638 = vadd.f32 0.0, %v637
  %639 = vmatmul.f32.gmra.mxu0 %v47
  %v640 = vpop.f32.mrf.mxu0
  %v641 = vadd.f32 0.0, %v640
  %642 = vmatmul.f32.gmra.mxu0 %v53
  %v643 = vpop.f32.mrf.mxu0
  %v644 = vadd.f32 0.0, %v643
  %645 = vdwg.mxu0
  %646 = vmatpush.msra.mxu0 %v184
  %647 = vmatpush.msra.mxu0 %v180
  %648 = vmatpush.msra.mxu0 %v176
  %649 = vmatpush.msra.mxu0 %v172
  %650 = vmatpush.msra.mxu0 %v168
  %651 = vmatpush.msra.mxu0 %v164
  %652 = vmatpush.msra.mxu0 %v160
  %653 = vmatpush.msra.mxu0 %v156
  %654 = vmatpush.msra.mxu0 %v152
  %655 = vmatpush.msra.mxu0 %v148
  %656 = vmatpush.msra.mxu0 %v144
  %657 = vmatpush.msra.mxu0 %v140
  %658 = vmatpush.msra.mxu0 %v136
  %659 = vmatpush.msra.mxu0 %v132
  %660 = vmatpush.msra.mxu0 %v128
  %661 = vmatpush.msra.mxu0 %v124
  %662 = vmatmul.f32.gmra.mxu0 %v36
  %v663 = vpop.f32.mrf.mxu0
  %v664 = vadd.f32 %v635, %v663
  %665 = vmatmul.f32.gmra.mxu0 %v42
  %v666 = vpop.f32.mrf.mxu0
  %v667 = vadd.f32 %v638, %v666
  %668 = vmatmul.f32.gmra.mxu0 %v48
  %v669 = vpop.f32.mrf.mxu0
  %v670 = vadd.f32 %v641, %v669
  %671 = vmatmul.f32.gmra.mxu0 %v54
  %v672 = vpop.f32.mrf.mxu0
  %v673 = vadd.f32 %v644, %v672
  %674 = vdwg.mxu0
  %675 = vmatpush.msra.mxu0 %v248
  %676 = vmatpush.msra.mxu0 %v244
  %677 = vmatpush.msra.mxu0 %v240
  %678 = vmatpush.msra.mxu0 %v236
  %679 = vmatpush.msra.mxu0 %v232
  %680 = vmatpush.msra.mxu0 %v228
  %681 = vmatpush.msra.mxu0 %v224
  %682 = vmatpush.msra.mxu0 %v220
  %683 = vmatpush.msra.mxu0 %v216
  %684 = vmatpush.msra.mxu0 %v212
  %685 = vmatpush.msra.mxu0 %v208
  %686 = vmatpush.msra.mxu0 %v204
  %687 = vmatpush.msra.mxu0 %v200
  %688 = vmatpush.msra.mxu0 %v196
  %689 = vmatpush.msra.mxu0 %v192
  %690 = vmatpush.msra.mxu0 %v188
  %691 = vmatmul.f32.gmra.mxu0 %v37
  %v692 = vpop.f32.mrf.mxu0
  %v693 = vadd.f32 %v664, %v692
  %694 = vmatmul.f32.gmra.mxu0 %v43
  %v695 = vpop.f32.mrf.mxu0
  %v696 = vadd.f32 %v667, %v695
  %697 = vmatmul.f32.gmra.mxu0 %v49
  %v698 = vpop.f32.mrf.mxu0
  %v699 = vadd.f32 %v670, %v698
  %700 = vmatmul.f32.gmra.mxu0 %v55
  %v701 = vpop.f32.mrf.mxu0
  %v702 = vadd.f32 %v673, %v701
  %703 = vdwg.mxu0
  %704 = vmatpush.msra.mxu0 %v312
  %705 = vmatpush.msra.mxu0 %v308
  %706 = vmatpush.msra.mxu0 %v304
  %707 = vmatpush.msra.mxu0 %v300
  %708 = vmatpush.msra.mxu0 %v296
  %709 = vmatpush.msra.mxu0 %v292
  %710 = vmatpush.msra.mxu0 %v288
  %711 = vmatpush.msra.mxu0 %v284
  %712 = vmatpush.msra.mxu0 %v280
  %713 = vmatpush.msra.mxu0 %v276
  %714 = vmatpush.msra.mxu0 %v272
  %715 = vmatpush.msra.mxu0 %v268
  %716 = vmatpush.msra.mxu0 %v264
  %717 = vmatpush.msra.mxu0 %v260
  %718 = vmatpush.msra.mxu0 %v256
  %719 = vmatpush.msra.mxu0 %v252
  %720 = vmatmul.f32.gmra.mxu0 %v38
  %v721 = vpop.f32.mrf.mxu0
  %v722 = vadd.f32 %v693, %v721
  %723 = vmatmul.f32.gmra.mxu0 %v44
  %v724 = vpop.f32.mrf.mxu0
  %v725 = vadd.f32 %v696, %v724
  %726 = vmatmul.f32.gmra.mxu0 %v50
  %v727 = vpop.f32.mrf.mxu0
  %v728 = vadd.f32 %v699, %v727
  %729 = vmatmul.f32.gmra.mxu0 %v56
  %v730 = vpop.f32.mrf.mxu0
  %v731 = vadd.f32 %v702, %v730
  %732 = vdwg.mxu0
  %733 = vmatpush.msra.mxu0 %v376
  %734 = vmatpush.msra.mxu0 %v372
  %735 = vmatpush.msra.mxu0 %v368
  %736 = vmatpush.msra.mxu0 %v364
  %737 = vmatpush.msra.mxu0 %v360
  %738 = vmatpush.msra.mxu0 %v356
  %739 = vmatpush.msra.mxu0 %v352
  %740 = vmatpush.msra.mxu0 %v348
  %741 = vmatpush.msra.mxu0 %v344
  %742 = vmatpush.msra.mxu0 %v340
  %743 = vmatpush.msra.mxu0 %v336
  %744 = vmatpush.msra.mxu0 %v332
  %745 = vmatpush.msra.mxu0 %v328
  %746 = vmatpush.msra.mxu0 %v324
  %747 = vmatpush.msra.mxu0 %v320
  %748 = vmatpush.msra.mxu0 %v316
  %749 = vmatmul.f32.gmra.mxu0 %v39
  %v750 = vpop.f32.mrf.mxu0
  %v751 = vadd.f32 %v722, %v750
  %752 = vmatmul.f32.gmra.mxu0 %v45
  %v753 = vpop.f32.mrf.mxu0
  %v754 = vadd.f32 %v725, %v753
  %755 = vmatmul.f32.gmra.mxu0 %v51
  %v756 = vpop.f32.mrf.mxu0
  %v757 = vadd.f32 %v728, %v756
  %758 = vmatmul.f32.gmra.mxu0 %v57
  %v759 = vpop.f32.mrf.mxu0
  %v760 = vadd.f32 %v731, %v759
  %761 = vdwg.mxu0
  %762 = vmatpush.msra.mxu0 %v440
  %763 = vmatpush.msra.mxu0 %v436
  %764 = vmatpush.msra.mxu0 %v432
  %765 = vmatpush.msra.mxu0 %v428
  %766 = vmatpush.msra.mxu0 %v424
  %767 = vmatpush.msra.mxu0 %v420
  %768 = vmatpush.msra.mxu0 %v416
  %769 = vmatpush.msra.mxu0 %v412
  %770 = vmatpush.msra.mxu0 %v408
  %771 = vmatpush.msra.mxu0 %v404
  %772 = vmatpush.msra.mxu0 %v400
  %773 = vmatpush.msra.mxu0 %v396
  %774 = vmatpush.msra.mxu0 %v392
  %775 = vmatpush.msra.mxu0 %v388
  %776 = vmatpush.msra.mxu0 %v384
  %777 = vmatpush.msra.mxu0 %v380
  %778 = vmatmul.f32.gmra.mxu0 %v40
  %v779 = vpop.f32.mrf.mxu0
  %v780 = vadd.f32 %v751, %v779
  %781 = vmatmul.f32.gmra.mxu0 %v46
  %v782 = vpop.f32.mrf.mxu0
  %v783 = vadd.f32 %v754, %v782
  %784 = vmatmul.f32.gmra.mxu0 %v52
  %v785 = vpop.f32.mrf.mxu0
  %v786 = vadd.f32 %v757, %v785
  %787 = vmatmul.f32.gmra.mxu0 %v58
  %v788 = vpop.f32.mrf.mxu0
  %v789 = vadd.f32 %v760, %v788
  %790 = vdwg.mxu0
  %791 = vmatpush.msra.mxu0 %v121
  %792 = vmatpush.msra.mxu0 %v117
  %793 = vmatpush.msra.mxu0 %v113
  %794 = vmatpush.msra.mxu0 %v109
  %795 = vmatpush.msra.mxu0 %v105
  %796 = vmatpush.msra.mxu0 %v101
  %797 = vmatpush.msra.mxu0 %v97
  %798 = vmatpush.msra.mxu0 %v93
  %799 = vmatpush.msra.mxu0 %v89
  %800 = vmatpush.msra.mxu0 %v85
  %801 = vmatpush.msra.mxu0 %v81
  %802 = vmatpush.msra.mxu0 %v77
  %803 = vmatpush.msra.mxu0 %v73
  %804 = vmatpush.msra.mxu0 %v69
  %805 = vmatpush.msra.mxu0 %v65
  %806 = vmatpush.msra.mxu0 %v61
  %807 = vmatmul.f32.gmra.mxu0 %v35
  %v808 = vpop.f32.mrf.mxu0
  %v809 = vadd.f32 0.0, %v808
  %810 = vmatmul.f32.gmra.mxu0 %v41
  %v811 = vpop.f32.mrf.mxu0
  %v812 = vadd.f32 0.0, %v811
  %813 = vmatmul.f32.gmra.mxu0 %v47
  %v814 = vpop.f32.mrf.mxu0
  %v815 = vadd.f32 0.0, %v814
  %816 = vmatmul.f32.gmra.mxu0 %v53
  %v817 = vpop.f32.mrf.mxu0
  %v818 = vadd.f32 0.0, %v817
  %819 = vdwg.mxu0
  %820 = vmatpush.msra.mxu0 %v185
  %821 = vmatpush.msra.mxu0 %v181
  %822 = vmatpush.msra.mxu0 %v177
  %823 = vmatpush.msra.mxu0 %v173
  %824 = vmatpush.msra.mxu0 %v169
  %825 = vmatpush.msra.mxu0 %v165
  %826 = vmatpush.msra.mxu0 %v161
  %827 = vmatpush.msra.mxu0 %v157
  %828 = vmatpush.msra.mxu0 %v153
  %829 = vmatpush.msra.mxu0 %v149
  %830 = vmatpush.msra.mxu0 %v145
  %831 = vmatpush.msra.mxu0 %v141
  %832 = vmatpush.msra.mxu0 %v137
  %833 = vmatpush.msra.mxu0 %v133
  %834 = vmatpush.msra.mxu0 %v129
  %835 = vmatpush.msra.mxu0 %v125
  %836 = vmatmul.f32.gmra.mxu0 %v36
  %v837 = vpop.f32.mrf.mxu0
  %v838 = vadd.f32 %v809, %v837
  %839 = vmatmul.f32.gmra.mxu0 %v42
  %v840 = vpop.f32.mrf.mxu0
  %v841 = vadd.f32 %v812, %v840
  %842 = vmatmul.f32.gmra.mxu0 %v48
  %v843 = vpop.f32.mrf.mxu0
  %v844 = vadd.f32 %v815, %v843
  %845 = vmatmul.f32.gmra.mxu0 %v54
  %v846 = vpop.f32.mrf.mxu0
  %v847 = vadd.f32 %v818, %v846
  %848 = vdwg.mxu0
  %849 = vmatpush.msra.mxu0 %v249
  %850 = vmatpush.msra.mxu0 %v245
  %851 = vmatpush.msra.mxu0 %v241
  %852 = vmatpush.msra.mxu0 %v237
  %853 = vmatpush.msra.mxu0 %v233
  %854 = vmatpush.msra.mxu0 %v229
  %855 = vmatpush.msra.mxu0 %v225
  %856 = vmatpush.msra.mxu0 %v221
  %857 = vmatpush.msra.mxu0 %v217
  %858 = vmatpush.msra.mxu0 %v213
  %859 = vmatpush.msra.mxu0 %v209
  %860 = vmatpush.msra.mxu0 %v205
  %861 = vmatpush.msra.mxu0 %v201
  %862 = vmatpush.msra.mxu0 %v197
  %863 = vmatpush.msra.mxu0 %v193
  %864 = vmatpush.msra.mxu0 %v189
  %865 = vmatmul.f32.gmra.mxu0 %v37
  %v866 = vpop.f32.mrf.mxu0
  %v867 = vadd.f32 %v838, %v866
  %868 = vmatmul.f32.gmra.mxu0 %v43
  %v869 = vpop.f32.mrf.mxu0
  %v870 = vadd.f32 %v841, %v869
  %871 = vmatmul.f32.gmra.mxu0 %v49
  %v872 = vpop.f32.mrf.mxu0
  %v873 = vadd.f32 %v844, %v872
  %874 = vmatmul.f32.gmra.mxu0 %v55
  %v875 = vpop.f32.mrf.mxu0
  %v876 = vadd.f32 %v847, %v875
  %877 = vdwg.mxu0
  %878 = vmatpush.msra.mxu0 %v313
  %879 = vmatpush.msra.mxu0 %v309
  %880 = vmatpush.msra.mxu0 %v305
  %881 = vmatpush.msra.mxu0 %v301
  %882 = vmatpush.msra.mxu0 %v297
  %883 = vmatpush.msra.mxu0 %v293
  %884 = vmatpush.msra.mxu0 %v289
  %885 = vmatpush.msra.mxu0 %v285
  %886 = vmatpush.msra.mxu0 %v281
  %887 = vmatpush.msra.mxu0 %v277
  %888 = vmatpush.msra.mxu0 %v273
  %889 = vmatpush.msra.mxu0 %v269
  %890 = vmatpush.msra.mxu0 %v265
  %891 = vmatpush.msra.mxu0 %v261
  %892 = vmatpush.msra.mxu0 %v257
  %893 = vmatpush.msra.mxu0 %v253
  %894 = vmatmul.f32.gmra.mxu0 %v38
  %v895 = vpop.f32.mrf.mxu0
  %v896 = vadd.f32 %v867, %v895
  %897 = vmatmul.f32.gmra.mxu0 %v44
  %v898 = vpop.f32.mrf.mxu0
  %v899 = vadd.f32 %v870, %v898
  %900 = vmatmul.f32.gmra.mxu0 %v50
  %v901 = vpop.f32.mrf.mxu0
  %v902 = vadd.f32 %v873, %v901
  %903 = vmatmul.f32.gmra.mxu0 %v56
  %v904 = vpop.f32.mrf.mxu0
  %v905 = vadd.f32 %v876, %v904
  %906 = vdwg.mxu0
  %907 = vmatpush.msra.mxu0 %v377
  %908 = vmatpush.msra.mxu0 %v373
  %909 = vmatpush.msra.mxu0 %v369
  %910 = vmatpush.msra.mxu0 %v365
  %911 = vmatpush.msra.mxu0 %v361
  %912 = vmatpush.msra.mxu0 %v357
  %913 = vmatpush.msra.mxu0 %v353
  %914 = vmatpush.msra.mxu0 %v349
  %915 = vmatpush.msra.mxu0 %v345
  %916 = vmatpush.msra.mxu0 %v341
  %917 = vmatpush.msra.mxu0 %v337
  %918 = vmatpush.msra.mxu0 %v333
  %919 = vmatpush.msra.mxu0 %v329
  %920 = vmatpush.msra.mxu0 %v325
  %921 = vmatpush.msra.mxu0 %v321
  %922 = vmatpush.msra.mxu0 %v317
  %923 = vmatmul.f32.gmra.mxu0 %v39
  %v924 = vpop.f32.mrf.mxu0
  %v925 = vadd.f32 %v896, %v924
  %926 = vmatmul.f32.gmra.mxu0 %v45
  %v927 = vpop.f32.mrf.mxu0
  %v928 = vadd.f32 %v899, %v927
  %929 = vmatmul.f32.gmra.mxu0 %v51
  %v930 = vpop.f32.mrf.mxu0
  %v931 = vadd.f32 %v902, %v930
  %932 = vmatmul.f32.gmra.mxu0 %v57
  %v933 = vpop.f32.mrf.mxu0
  %v934 = vadd.f32 %v905, %v933
  %935 = vdwg.mxu0
  %936 = vmatpush.msra.mxu0 %v441
  %937 = vmatpush.msra.mxu0 %v437
  %938 = vmatpush.msra.mxu0 %v433
  %939 = vmatpush.msra.mxu0 %v429
  %940 = vmatpush.msra.mxu0 %v425
  %941 = vmatpush.msra.mxu0 %v421
  %942 = vmatpush.msra.mxu0 %v417
  %943 = vmatpush.msra.mxu0 %v413
  %944 = vmatpush.msra.mxu0 %v409
  %945 = vmatpush.msra.mxu0 %v405
  %946 = vmatpush.msra.mxu0 %v401
  %947 = vmatpush.msra.mxu0 %v397
  %948 = vmatpush.msra.mxu0 %v393
  %949 = vmatpush.msra.mxu0 %v389
  %950 = vmatpush.msra.mxu0 %v385
  %951 = vmatpush.msra.mxu0 %v381
  %952 = vmatmul.f32.gmra.mxu0 %v40
  %v953 = vpop.f32.mrf.mxu0
  %v954 = vadd.f32 %v925, %v953
  %955 = vmatmul.f32.gmra.mxu0 %v46
  %v956 = vpop.f32.mrf.mxu0
  %v957 = vadd.f32 %v928, %v956
  %958 = vmatmul.f32.gmra.mxu0 %v52
  %v959 = vpop.f32.mrf.mxu0
  %v960 = vadd.f32 %v931, %v959
  %961 = vmatmul.f32.gmra.mxu0 %v58
  %v962 = vpop.f32.mrf.mxu0
  %v963 = vadd.f32 %v934, %v962
  %964 = vdwg.mxu0
  %965 = vmatpush.msra.mxu0 %v122
  %966 = vmatpush.msra.mxu0 %v118
  %967 = vmatpush.msra.mxu0 %v114
  %968 = vmatpush.msra.mxu0 %v110
  %969 = vmatpush.msra.mxu0 %v106
  %970 = vmatpush.msra.mxu0 %v102
  %971 = vmatpush.msra.mxu0 %v98
  %972 = vmatpush.msra.mxu0 %v94
  %973 = vmatpush.msra.mxu0 %v90
  %974 = vmatpush.msra.mxu0 %v86
  %975 = vmatpush.msra.mxu0 %v82
  %976 = vmatpush.msra.mxu0 %v78
  %977 = vmatpush.msra.mxu0 %v74
  %978 = vmatpush.msra.mxu0 %v70
  %979 = vmatpush.msra.mxu0 %v66
  %980 = vmatpush.msra.mxu0 %v62
  %981 = vmatmul.f32.gmra.mxu0 %v35
  %v982 = vpop.f32.mrf.mxu0
  %v983 = vadd.f32 0.0, %v982
  %984 = vmatmul.f32.gmra.mxu0 %v41
  %v985 = vpop.f32.mrf.mxu0
  %v986 = vadd.f32 0.0, %v985
  %987 = vmatmul.f32.gmra.mxu0 %v47
  %v988 = vpop.f32.mrf.mxu0
  %v989 = vadd.f32 0.0, %v988
  %990 = vmatmul.f32.gmra.mxu0 %v53
  %v991 = vpop.f32.mrf.mxu0
  %v992 = vadd.f32 0.0, %v991
  %993 = vdwg.mxu0
  %994 = vmatpush.msra.mxu0 %v186
  %995 = vmatpush.msra.mxu0 %v182
  %996 = vmatpush.msra.mxu0 %v178
  %997 = vmatpush.msra.mxu0 %v174
  %998 = vmatpush.msra.mxu0 %v170
  %999 = vmatpush.msra.mxu0 %v166
  %1000 = vmatpush.msra.mxu0 %v162
  %1001 = vmatpush.msra.mxu0 %v158
  %1002 = vmatpush.msra.mxu0 %v154
  %1003 = vmatpush.msra.mxu0 %v150
  %1004 = vmatpush.msra.mxu0 %v146
  %1005 = vmatpush.msra.mxu0 %v142
  %1006 = vmatpush.msra.mxu0 %v138
  %1007 = vmatpush.msra.mxu0 %v134
  %1008 = vmatpush.msra.mxu0 %v130
  %1009 = vmatpush.msra.mxu0 %v126
  %1010 = vmatmul.f32.gmra.mxu0 %v36
  %v1011 = vpop.f32.mrf.mxu0
  %v1012 = vadd.f32 %v983, %v1011
  %1013 = vmatmul.f32.gmra.mxu0 %v42
  %v1014 = vpop.f32.mrf.mxu0
  %v1015 = vadd.f32 %v986, %v1014
  %1016 = vmatmul.f32.gmra.mxu0 %v48
  %v1017 = vpop.f32.mrf.mxu0
  %v1018 = vadd.f32 %v989, %v1017
  %1019 = vmatmul.f32.gmra.mxu0 %v54
  %v1020 = vpop.f32.mrf.mxu0
  %v1021 = vadd.f32 %v992, %v1020
  %1022 = vdwg.mxu0
  %1023 = vmatpush.msra.mxu0 %v250
  %1024 = vmatpush.msra.mxu0 %v246
  %1025 = vmatpush.msra.mxu0 %v242
  %1026 = vmatpush.msra.mxu0 %v238
  %1027 = vmatpush.msra.mxu0 %v234
  %1028 = vmatpush.msra.mxu0 %v230
  %1029 = vmatpush.msra.mxu0 %v226
  %1030 = vmatpush.msra.mxu0 %v222
  %1031 = vmatpush.msra.mxu0 %v218
  %1032 = vmatpush.msra.mxu0 %v214
  %1033 = vmatpush.msra.mxu0 %v210
  %1034 = vmatpush.msra.mxu0 %v206
  %1035 = vmatpush.msra.mxu0 %v202
  %1036 = vmatpush.msra.mxu0 %v198
  %1037 = vmatpush.msra.mxu0 %v194
  %1038 = vmatpush.msra.mxu0 %v190
  %1039 = vmatmul.f32.gmra.mxu0 %v37
  %v1040 = vpop.f32.mrf.mxu0
  %v1041 = vadd.f32 %v1012, %v1040
  %1042 = vmatmul.f32.gmra.mxu0 %v43
  %v1043 = vpop.f32.mrf.mxu0
  %v1044 = vadd.f32 %v1015, %v1043
  %1045 = vmatmul.f32.gmra.mxu0 %v49
  %v1046 = vpop.f32.mrf.mxu0
  %v1047 = vadd.f32 %v1018, %v1046
  %1048 = vmatmul.f32.gmra.mxu0 %v55
  %v1049 = vpop.f32.mrf.mxu0
  %v1050 = vadd.f32 %v1021, %v1049
  %1051 = vdwg.mxu0
  %1052 = vmatpush.msra.mxu0 %v314
  %1053 = vmatpush.msra.mxu0 %v310
  %1054 = vmatpush.msra.mxu0 %v306
  %1055 = vmatpush.msra.mxu0 %v302
  %1056 = vmatpush.msra.mxu0 %v298
  %1057 = vmatpush.msra.mxu0 %v294
  %1058 = vmatpush.msra.mxu0 %v290
  %1059 = vmatpush.msra.mxu0 %v286
  %1060 = vmatpush.msra.mxu0 %v282
  %1061 = vmatpush.msra.mxu0 %v278
  %1062 = vmatpush.msra.mxu0 %v274
  %1063 = vmatpush.msra.mxu0 %v270
  %1064 = vmatpush.msra.mxu0 %v266
  %1065 = vmatpush.msra.mxu0 %v262
  %1066 = vmatpush.msra.mxu0 %v258
  %1067 = vmatpush.msra.mxu0 %v254
  %1068 = vmatmul.f32.gmra.mxu0 %v38
  %v1069 = vpop.f32.mrf.mxu0
  %v1070 = vadd.f32 %v1041, %v1069
  %1071 = vmatmul.f32.gmra.mxu0 %v44
  %v1072 = vpop.f32.mrf.mxu0
  %v1073 = vadd.f32 %v1044, %v1072
  %1074 = vmatmul.f32.gmra.mxu0 %v50
  %v1075 = vpop.f32.mrf.mxu0
  %v1076 = vadd.f32 %v1047, %v1075
  %1077 = vmatmul.f32.gmra.mxu0 %v56
  %v1078 = vpop.f32.mrf.mxu0
  %v1079 = vadd.f32 %v1050, %v1078
  %1080 = vdwg.mxu0
  %1081 = vmatpush.msra.mxu0 %v378
  %1082 = vmatpush.msra.mxu0 %v374
  %1083 = vmatpush.msra.mxu0 %v370
  %1084 = vmatpush.msra.mxu0 %v366
  %1085 = vmatpush.msra.mxu0 %v362
  %1086 = vmatpush.msra.mxu0 %v358
  %1087 = vmatpush.msra.mxu0 %v354
  %1088 = vmatpush.msra.mxu0 %v350
  %1089 = vmatpush.msra.mxu0 %v346
  %1090 = vmatpush.msra.mxu0 %v342
  %1091 = vmatpush.msra.mxu0 %v338
  %1092 = vmatpush.msra.mxu0 %v334
  %1093 = vmatpush.msra.mxu0 %v330
  %1094 = vmatpush.msra.mxu0 %v326
  %1095 = vmatpush.msra.mxu0 %v322
  %1096 = vmatpush.msra.mxu0 %v318
  %1097 = vmatmul.f32.gmra.mxu0 %v39
  %v1098 = vpop.f32.mrf.mxu0
  %v1099 = vadd.f32 %v1070, %v1098
  %1100 = vmatmul.f32.gmra.mxu0 %v45
  %v1101 = vpop.f32.mrf.mxu0
  %v1102 = vadd.f32 %v1073, %v1101
  %1103 = vmatmul.f32.gmra.mxu0 %v51
  %v1104 = vpop.f32.mrf.mxu0
  %v1105 = vadd.f32 %v1076, %v1104
  %1106 = vmatmul.f32.gmra.mxu0 %v57
  %v1107 = vpop.f32.mrf.mxu0
  %v1108 = vadd.f32 %v1079, %v1107
  %1109 = vdwg.mxu0
  %1110 = vmatpush.msra.mxu0 %v442
  %1111 = vmatpush.msra.mxu0 %v438
  %1112 = vmatpush.msra.mxu0 %v434
  %1113 = vmatpush.msra.mxu0 %v430
  %1114 = vmatpush.msra.mxu0 %v426
  %1115 = vmatpush.msra.mxu0 %v422
  %1116 = vmatpush.msra.mxu0 %v418
  %1117 = vmatpush.msra.mxu0 %v414
  %1118 = vmatpush.msra.mxu0 %v410
  %1119 = vmatpush.msra.mxu0 %v406
  %1120 = vmatpush.msra.mxu0 %v402
  %1121 = vmatpush.msra.mxu0 %v398
  %1122 = vmatpush.msra.mxu0 %v394
  %1123 = vmatpush.msra.mxu0 %v390
  %1124 = vmatpush.msra.mxu0 %v386
  %1125 = vmatpush.msra.mxu0 %v382
  %1126 = vmatmul.f32.gmra.mxu0 %v40
  %v1127 = vpop.f32.mrf.mxu0
  %v1128 = vadd.f32 %v1099, %v1127
  %1129 = vmatmul.f32.gmra.mxu0 %v46
  %v1130 = vpop.f32.mrf.mxu0
  %v1131 = vadd.f32 %v1102, %v1130
  %1132 = vmatmul.f32.gmra.mxu0 %v52
  %v1133 = vpop.f32.mrf.mxu0
  %v1134 = vadd.f32 %v1105, %v1133
  %1135 = vmatmul.f32.gmra.mxu0 %v58
  %v1136 = vpop.f32.mrf.mxu0
  %v1137 = vadd.f32 %v1108, %v1136
  %1138 = vdwg.mxu0
  %1139 = vst [vmem:[#allocation2] sm:$0xff] 0.0
  %1140 = vst [vmem:[#allocation2 + $0x8] sm:$0xff] 0.0
  %1141 = vst [vmem:[#allocation2 + $0x10] sm:$0xff] 0.0
  %1142 = vst [vmem:[#allocation2 + $0x18] sm:$0xff] 0.0
  %1143 = vst [vmem:[#allocation2 + $0x20] sm:$0xff] 0.0
  %1144 = vst [vmem:[#allocation2 + $0x28] sm:$0xff] 0.0
  %1145 = vst [vmem:[#allocation2 + $0x30] sm:$0xff] 0.0
  %1146 = vst [vmem:[#allocation2 + $0x38] sm:$0xff] 0.0
  %1147 = vst [vmem:[#allocation2 + $0x40] sm:$0xff] 0.0
  %1148 = vst [vmem:[#allocation2 + $0x48] sm:$0xff] 0.0
  %1149 = vst [vmem:[#allocation2 + $0x50] sm:$0xf] 0.0
  %1150 = vst [vmem:[#allocation2 + $0x58] sm:$0xf] 0.0
  %1151 = vst [vmem:[#allocation2 + $0x60] sm:$0xf] 0.0
  %1152 = vst [vmem:[#allocation2 + $0x68] sm:$0xf] 0.0
  %1153 = vst [vmem:[#allocation2 + $0x70] sm:$0xf] 0.0
  %1154 = vst [vmem:[#allocation2 + $0x78] sm:$0xff] 0.0
  %1155 = vst [vmem:[#allocation2 + $0x80] sm:$0xff] 0.0
  %1156 = vst [vmem:[#allocation2 + $0x88] sm:$0xff] 0.0
  %1157 = vst [vmem:[#allocation2 + $0x90] sm:$0xff] 0.0
  %1158 = vst [vmem:[#allocation2 + $0x98] sm:$0xff] 0.0
  %1159 = vst [vmem:[#allocation2 + $0xa0] sm:$0xff] 0.0
  %1160 = vst [vmem:[#allocation2 + $0xa8] sm:$0xff] 0.0
  %1161 = vst [vmem:[#allocation2 + $0xb0] sm:$0xff] 0.0
  %1162 = vst [vmem:[#allocation2 + $0xb8] sm:$0xff] 0.0
  %1163 = vst [vmem:[#allocation2 + $0xc0] sm:$0xff] 0.0
  %1164 = vst [vmem:[#allocation2 + $0xc8] sm:$0xf] 0.0
  %1165 = vst [vmem:[#allocation2 + $0xd0] sm:$0xf] 0.0
  %1166 = vst [vmem:[#allocation2 + $0xd8] sm:$0xf] 0.0
  %1167 = vst [vmem:[#allocation2 + $0xe0] sm:$0xf] 0.0
  %1168 = vst [vmem:[#allocation2 + $0xe8] sm:$0xf] 0.0
  %vm1185 = vcmask 1041408
  %v1186 = vrot.slane %v606, 6
  %v1187 = vrot.slane %v780, 6
  %v1188 = vrot.slane %v954, 6
  %v1189 = vrot.slane %v1128, 6
  %v1190 = vrot.slane %v609, 6
  %v1191 = vsel %vm1185, %v1186, %v1190
  %v1192 = vrot.slane %v783, 6
  %v1193 = vsel %vm1185, %v1187, %v1192
  %v1194 = vrot.slane %v957, 6
  %v1195 = vsel %vm1185, %v1188, %v1194
  %v1196 = vrot.slane %v1131, 6
  %v1197 = vsel %vm1185, %v1189, %v1196
  %v1198 = vrot.slane %v612, 6
  %v1199 = vrot.slane %v786, 6
  %v1200 = vrot.slane %v960, 6
  %v1201 = vrot.slane %v1134, 6
  %v1202 = vrot.slane %v615, 6
  %v1203 = vsel %vm1185, %v1198, %v1202
  %v1204 = vrot.slane %v789, 6
  %v1205 = vsel %vm1185, %v1199, %v1204
  %v1206 = vrot.slane %v963, 6
  %v1207 = vsel %vm1185, %v1200, %v1206
  %v1208 = vrot.slane %v1137, 6
  %v1209 = vsel %vm1185, %v1201, %v1208
  %1210 = vrot.lane.b32.xlu0 %v1186, 64
  %v1211 = vpop.permute.xlu0 %1210
  %1212 = vrot.lane.b32.xlu0 %v1187, 64
  %v1213 = vpop.permute.xlu0 %1212
  %1214 = vrot.lane.b32.xlu0 %v1188, 64
  %v1215 = vpop.permute.xlu0 %1214
  %1216 = vrot.lane.b32.xlu0 %v1189, 64
  %v1217 = vpop.permute.xlu0 %1216
  %1218 = vrot.lane.b32.xlu0 %v1191, 64
  %v1219 = vpop.permute.xlu0 %1218
  %1220 = vrot.lane.b32.xlu0 %v1193, 64
  %v1221 = vpop.permute.xlu0 %1220
  %1222 = vrot.lane.b32.xlu0 %v1195, 64
  %v1223 = vpop.permute.xlu0 %1222
  %1224 = vrot.lane.b32.xlu0 %v1197, 64
  %v1225 = vpop.permute.xlu0 %1224
  %1226 = vrot.lane.b32.xlu0 %v1190, 64
  %v1227 = vpop.permute.xlu0 %1226
  %1228 = vrot.lane.b32.xlu0 %v1192, 64
  %v1229 = vpop.permute.xlu0 %1228
  %1230 = vrot.lane.b32.xlu0 %v1194, 64
  %v1231 = vpop.permute.xlu0 %1230
  %1232 = vrot.lane.b32.xlu0 %v1196, 64
  %v1233 = vpop.permute.xlu0 %1232
  %1234 = vrot.lane.b32.xlu0 %v1198, 64
  %v1235 = vpop.permute.xlu0 %1234
  %1236 = vrot.lane.b32.xlu0 %v1199, 64
  %v1237 = vpop.permute.xlu0 %1236
  %1238 = vrot.lane.b32.xlu0 %v1200, 64
  %v1239 = vpop.permute.xlu0 %1238
  %1240 = vrot.lane.b32.xlu0 %v1201, 64
  %v1241 = vpop.permute.xlu0 %1240
  %1242 = vrot.lane.b32.xlu0 %v1203, 64
  %v1243 = vpop.permute.xlu0 %1242
  %1244 = vrot.lane.b32.xlu0 %v1205, 64
  %v1245 = vpop.permute.xlu0 %1244
  %1246 = vrot.lane.b32.xlu0 %v1207, 64
  %v1247 = vpop.permute.xlu0 %1246
  %1248 = vrot.lane.b32.xlu0 %v1209, 64
  %v1249 = vpop.permute.xlu0 %1248
  %1250 = vrot.lane.b32.xlu0 %v1202, 64
  %v1251 = vpop.permute.xlu0 %1250
  %1252 = vrot.lane.b32.xlu0 %v1204, 64
  %v1253 = vpop.permute.xlu0 %1252
  %1254 = vrot.lane.b32.xlu0 %v1206, 64
  %v1255 = vpop.permute.xlu0 %1254
  %1256 = vrot.lane.b32.xlu0 %v1208, 64
  %v1257 = vpop.permute.xlu0 %1256
  %vm1258 = vcmask 523264
  %v1259 = vsel %vm1258, %v1211, %v1213
  %v1260 = vsel %vm1258, %v1213, %v1215
  %v1261 = vsel %vm1258, %v1215, %v1217
  %v1262 = vsel %vm1258, %v1219, %v1221
  %v1263 = vsel %vm1258, %v1221, %v1223
  %v1264 = vsel %vm1258, %v1223, %v1225
  %v1265 = vsel %vm1258, %v1227, %v1229
  %v1266 = vsel %vm1258, %v1229, %v1231
  %v1267 = vsel %vm1258, %v1231, %v1233
  %v1268 = vsel %vm1258, %v1235, %v1237
  %v1269 = vsel %vm1258, %v1237, %v1239
  %v1270 = vsel %vm1258, %v1239, %v1241
  %v1271 = vsel %vm1258, %v1243, %v1245
  %v1272 = vsel %vm1258, %v1245, %v1247
  %v1273 = vsel %vm1258, %v1247, %v1249
  %v1274 = vsel %vm1258, %v1251, %v1253
  %v1275 = vsel %vm1258, %v1253, %v1255
  %v1276 = vsel %vm1258, %v1255, %v1257
  %vm1307 = vcmask 1048066
  %1308 = vst.msk [vmem:[#allocation2] sm:$0xfc] %vm1307, %v1211
  %1309 = vst [vmem:[#allocation2 + $0x8] sm:$0xfc] %v1259
  %1310 = vst [vmem:[#allocation2 + $0x10] sm:$0xfc] %v1260
  %1311 = vst [vmem:[#allocation2 + $0x18] sm:$0xfc] %v1261
  %vm1312 = vcmask 523266
  %1313 = vst.msk [vmem:[#allocation2 + $0x20] sm:$0xfc] %vm1312, %v1217
  %vm1314 = vcmask 1048064
  %1315 = vst.msk [vmem:[#allocation2 + $0x28] sm:$0xff] %vm1314, %v1219
  %1316 = vst [vmem:[#allocation2 + $0x30] sm:$0xff] %v1262
  %1317 = vst [vmem:[#allocation2 + $0x38] sm:$0xff] %v1263
  %1318 = vst [vmem:[#allocation2 + $0x40] sm:$0xff] %v1264
  %1319 = vst.msk [vmem:[#allocation2 + $0x48] sm:$0xff] %vm1258, %v1225
  %vm1320 = vcmask 1041920
  %1321 = vst.msk [vmem:[#allocation2 + $0x50] sm:$0x3] %vm1320, %v1227
  %1322 = vst [vmem:[#allocation2 + $0x58] sm:$0x3] %v1265
  %1323 = vst [vmem:[#allocation2 + $0x60] sm:$0x3] %v1266
  %1324 = vst [vmem:[#allocation2 + $0x68] sm:$0x3] %v1267
  %vm1325 = vcmask 517120
  %1326 = vst.msk [vmem:[#allocation2 + $0x70] sm:$0x3] %vm1325, %v1233
  %1327 = vst.msk [vmem:[#allocation2 + $0x78] sm:$0xfc] %vm1307, %v1235
  %1328 = vst [vmem:[#allocation2 + $0x80] sm:$0xfc] %v1268
  %1329 = vst [vmem:[#allocation2 + $0x88] sm:$0xfc] %v1269
  %1330 = vst [vmem:[#allocation2 + $0x90] sm:$0xfc] %v1270
  %1331 = vst.msk [vmem:[#allocation2 + $0x98] sm:$0xfc] %vm1312, %v1241
  %1332 = vst.msk [vmem:[#allocation2 + $0xa0] sm:$0xff] %vm1314, %v1243
  %1333 = vst [vmem:[#allocation2 + $0xa8] sm:$0xff] %v1271
  %1334 = vst [vmem:[#allocation2 + $0xb0] sm:$0xff] %v1272
  %1335 = vst [vmem:[#allocation2 + $0xb8] sm:$0xff] %v1273
  %1336 = vst.msk [vmem:[#allocation2 + $0xc0] sm:$0xff] %vm1258, %v1249
  %1337 = vst.msk [vmem:[#allocation2 + $0xc8] sm:$0x3] %vm1320, %v1251
  %1338 = vst [vmem:[#allocation2 + $0xd0] sm:$0x3] %v1274
  %1339 = vst [vmem:[#allocation2 + $0xd8] sm:$0x3] %v1275
  %1340 = vst [vmem:[#allocation2 + $0xe0] sm:$0x3] %v1276
  %1341 = vst.msk [vmem:[#allocation2 + $0xe8] sm:$0x3] %vm1325, %v1257
  %v1342 = vld [vmem:[%s3] sm:$0xf]
  %v1344 = vperm.slane %v1342, 0
  %v1345 = vperm.slane %v1342, 1
  %v1346 = vperm.slane %v1342, 2
  %v1347 = vperm.slane %v1342, 3
  %v1352 = vadd.f32 %v1344, 0.0
  %v1353 = vadd.f32 %v1345, 0.0
  %v1354 = vadd.f32 %v1346, 0.0
  %v1355 = vadd.f32 %v1347, 0.0
  %v1356 = vld [vmem:[#allocation2] sm:$0xff]
  %v1357 = vld [vmem:[#allocation2 + $0x8] sm:$0xff]
  %v1358 = vld [vmem:[#allocation2 + $0x10] sm:$0xff]
  %v1359 = vld [vmem:[#allocation2 + $0x18] sm:$0xff]
  %v1360 = vld [vmem:[#allocation2 + $0x28] sm:$0xff]
  %v1361 = vld [vmem:[#allocation2 + $0x30] sm:$0xff]
  %v1362 = vld [vmem:[#allocation2 + $0x38] sm:$0xff]
  %v1363 = vld [vmem:[#allocation2 + $0x40] sm:$0xff]
  %v1364 = vld [vmem:[#allocation2 + $0x78] sm:$0xff]
  %v1365 = vld [vmem:[#allocation2 + $0x80] sm:$0xff]
  %v1366 = vld [vmem:[#allocation2 + $0x88] sm:$0xff]
  %v1367 = vld [vmem:[#allocation2 + $0x90] sm:$0xff]
  %v1368 = vld [vmem:[#allocation2 + $0xa0] sm:$0xff]
  %v1369 = vld [vmem:[#allocation2 + $0xa8] sm:$0xff]
  %v1370 = vld [vmem:[#allocation2 + $0xb0] sm:$0xff]
  %v1371 = vld [vmem:[#allocation2 + $0xb8] sm:$0xff]
  %v1372 = vld [vmem:[%s2] ss:$8 sm:$0xf]
  %v1374 = vperm.slane %v1372, 0
  %v1375 = vperm.slane %v1372, 1
  %v1376 = vperm.slane %v1372, 2
  %v1377 = vperm.slane %v1372, 3
  %v1382 = vmul.f32 %v1356, %v1374
  %v1383 = vmul.f32 %v1357, %v1375
  %v1384 = vmul.f32 %v1358, %v1376
  %v1385 = vmul.f32 %v1359, %v1377
  %v1386 = vmul.f32 %v1360, %v1374
  %v1387 = vmul.f32 %v1361, %v1375
  %v1388 = vmul.f32 %v1362, %v1376
  %v1389 = vmul.f32 %v1363, %v1377
  %v1390 = vmul.f32 %v1364, %v1374
  %v1391 = vmul.f32 %v1365, %v1375
  %v1392 = vmul.f32 %v1366, %v1376
  %v1393 = vmul.f32 %v1367, %v1377
  %v1394 = vmul.f32 %v1368, %v1374
  %v1395 = vmul.f32 %v1369, %v1375
  %v1396 = vmul.f32 %v1370, %v1376
  %v1397 = vmul.f32 %v1371, %v1377
  %v1398 = vadd.f32 %v1352, %v1382
  %v1399 = vadd.f32 %v1353, %v1383
  %v1400 = vadd.f32 %v1354, %v1384
  %v1401 = vadd.f32 %v1355, %v1385
  %v1402 = vadd.f32 %v1352, %v1386
  %v1403 = vadd.f32 %v1353, %v1387
  %v1404 = vadd.f32 %v1354, %v1388
  %v1405 = vadd.f32 %v1355, %v1389
  %v1406 = vadd.f32 %v1352, %v1390
  %v1407 = vadd.f32 %v1353, %v1391
  %v1408 = vadd.f32 %v1354, %v1392
  %v1409 = vadd.f32 %v1355, %v1393
  %v1410 = vadd.f32 %v1352, %v1394
  %v1411 = vadd.f32 %v1353, %v1395
  %v1412 = vadd.f32 %v1354, %v1396
  %v1413 = vadd.f32 %v1355, %v1397
  %v1414 = vld [vmem:[#allocation2 + $0x20] sm:$0xff]
  %v1415 = vld [vmem:[#allocation2 + $0x48] sm:$0xff]
  %v1416 = vld [vmem:[#allocation2 + $0x98] sm:$0xff]
  %v1417 = vld [vmem:[#allocation2 + $0xc0] sm:$0xff]
  %s1418 = scalar_lea.vmem %s2, 1
  %v1419 = vld [vmem:[%s1418] ss:$8 sm:$0xf]
  %v1421 = vperm.slane %v1419, 0
  %v1422 = vperm.slane %v1419, 1
  %v1423 = vperm.slane %v1419, 2
  %v1424 = vperm.slane %v1419, 3
  %1425 = vrot.lane.b32.xlu0 %v1421, 32
  %v1426 = vpop.permute.xlu0 %1425
  %1427 = vrot.lane.b32.xlu0 %v1422, 32
  %v1428 = vpop.permute.xlu0 %1427
  %1429 = vrot.lane.b32.xlu0 %v1423, 32
  %v1430 = vpop.permute.xlu0 %1429
  %1431 = vrot.lane.b32.xlu0 %v1424, 32
  %v1432 = vpop.permute.xlu0 %1431
  %vm1433 = vcmask 261120
  %v1434 = vsel %vm1433, %v1426, %v1428
  %v1435 = vsel %vm1433, %v1428, %v1430
  %v1436 = vsel %vm1433, %v1430, %v1432
  %v1442 = vmul.f32 %v1356, %v1426
  %v1443 = vmul.f32 %v1357, %v1434
  %v1444 = vmul.f32 %v1358, %v1435
  %v1445 = vmul.f32 %v1359, %v1436
  %v1446 = vmul.f32 %v1414, %v1432
  %v1447 = vmul.f32 %v1360, %v1426
  %v1448 = vmul.f32 %v1361, %v1434
  %v1449 = vmul.f32 %v1362, %v1435
  %v1450 = vmul.f32 %v1363, %v1436
  %v1451 = vmul.f32 %v1415, %v1432
  %v1452 = vmul.f32 %v1364, %v1426
  %v1453 = vmul.f32 %v1365, %v1434
  %v1454 = vmul.f32 %v1366, %v1435
  %v1455 = vmul.f32 %v1367, %v1436
  %v1456 = vmul.f32 %v1416, %v1432
  %v1457 = vmul.f32 %v1368, %v1426
  %v1458 = vmul.f32 %v1369, %v1434
  %v1459 = vmul.f32 %v1370, %v1435
  %v1460 = vmul.f32 %v1371, %v1436
  %v1461 = vmul.f32 %v1417, %v1432
  %1482 = vrot.lane.b32.xlu0 %v1442, 96
  %v1483 = vpop.permute.xlu0 %1482
  %1484 = vrot.lane.b32.xlu0 %v1443, 96
  %v1485 = vpop.permute.xlu0 %1484
  %1486 = vrot.lane.b32.xlu0 %v1444, 96
  %v1487 = vpop.permute.xlu0 %1486
  %1488 = vrot.lane.b32.xlu0 %v1445, 96
  %v1489 = vpop.permute.xlu0 %1488
  %1490 = vrot.lane.b32.xlu0 %v1446, 96
  %v1491 = vpop.permute.xlu0 %1490
  %1492 = vrot.lane.b32.xlu0 %v1447, 96
  %v1493 = vpop.permute.xlu0 %1492
  %1494 = vrot.lane.b32.xlu0 %v1448, 96
  %v1495 = vpop.permute.xlu0 %1494
  %1496 = vrot.lane.b32.xlu0 %v1449, 96
  %v1497 = vpop.permute.xlu0 %1496
  %1498 = vrot.lane.b32.xlu0 %v1450, 96
  %v1499 = vpop.permute.xlu0 %1498
  %1500 = vrot.lane.b32.xlu0 %v1451, 96
  %v1501 = vpop.permute.xlu0 %1500
  %1502 = vrot.lane.b32.xlu0 %v1452, 96
  %v1503 = vpop.permute.xlu0 %1502
  %1504 = vrot.lane.b32.xlu0 %v1453, 96
  %v1505 = vpop.permute.xlu0 %1504
  %1506 = vrot.lane.b32.xlu0 %v1454, 96
  %v1507 = vpop.permute.xlu0 %1506
  %1508 = vrot.lane.b32.xlu0 %v1455, 96
  %v1509 = vpop.permute.xlu0 %1508
  %1510 = vrot.lane.b32.xlu0 %v1456, 96
  %v1511 = vpop.permute.xlu0 %1510
  %1512 = vrot.lane.b32.xlu0 %v1457, 96
  %v1513 = vpop.permute.xlu0 %1512
  %1514 = vrot.lane.b32.xlu0 %v1458, 96
  %v1515 = vpop.permute.xlu0 %1514
  %1516 = vrot.lane.b32.xlu0 %v1459, 96
  %v1517 = vpop.permute.xlu0 %1516
  %1518 = vrot.lane.b32.xlu0 %v1460, 96
  %v1519 = vpop.permute.xlu0 %1518
  %1520 = vrot.lane.b32.xlu0 %v1461, 96
  %v1521 = vpop.permute.xlu0 %1520
  %vm1522 = vcmask 785408
  %v1523 = vsel %vm1522, %v1483, %v1485
  %v1524 = vsel %vm1522, %v1485, %v1487
  %v1525 = vsel %vm1522, %v1487, %v1489
  %v1526 = vsel %vm1522, %v1489, %v1491
  %v1527 = vsel %vm1522, %v1493, %v1495
  %v1528 = vsel %vm1522, %v1495, %v1497
  %v1529 = vsel %vm1522, %v1497, %v1499
  %v1530 = vsel %vm1522, %v1499, %v1501
  %v1531 = vsel %vm1522, %v1503, %v1505
  %v1532 = vsel %vm1522, %v1505, %v1507
  %v1533 = vsel %vm1522, %v1507, %v1509
  %v1534 = vsel %vm1522, %v1509, %v1511
  %v1535 = vsel %vm1522, %v1513, %v1515
  %v1536 = vsel %vm1522, %v1515, %v1517
  %v1537 = vsel %vm1522, %v1517, %v1519
  %v1538 = vsel %vm1522, %v1519, %v1521
  %v1555 = vadd.f32 %v1398, %v1523
  %v1556 = vadd.f32 %v1399, %v1524
  %v1557 = vadd.f32 %v1400, %v1525
  %v1558 = vadd.f32 %v1401, %v1526
  %v1559 = vadd.f32 %v1402, %v1527
  %v1560 = vadd.f32 %v1403, %v1528
  %v1561 = vadd.f32 %v1404, %v1529
  %v1562 = vadd.f32 %v1405, %v1530
  %v1563 = vadd.f32 %v1406, %v1531
  %v1564 = vadd.f32 %v1407, %v1532
  %v1565 = vadd.f32 %v1408, %v1533
  %v1566 = vadd.f32 %v1409, %v1534
  %v1567 = vadd.f32 %v1410, %v1535
  %v1568 = vadd.f32 %v1411, %v1536
  %v1569 = vadd.f32 %v1412, %v1537
  %v1570 = vadd.f32 %v1413, %v1538
  %s1571 = scalar_lea.vmem %s2, 2
  %v1572 = vld [vmem:[%s1571] ss:$8 sm:$0xf]
  %v1574 = vperm.slane %v1572, 0
  %v1575 = vperm.slane %v1572, 1
  %v1576 = vperm.slane %v1572, 2
  %v1577 = vperm.slane %v1572, 3
  %1578 = vrot.lane.b32.xlu0 %v1574, 64
  %v1579 = vpop.permute.xlu0 %1578
  %1580 = vrot.lane.b32.xlu0 %v1575, 64
  %v1581 = vpop.permute.xlu0 %1580
  %1582 = vrot.lane.b32.xlu0 %v1576, 64
  %v1583 = vpop.permute.xlu0 %1582
  %1584 = vrot.lane.b32.xlu0 %v1577, 64
  %v1585 = vpop.permute.xlu0 %1584
  %v1586 = vsel %vm1258, %v1579, %v1581
  %v1587 = vsel %vm1258, %v1581, %v1583
  %v1588 = vsel %vm1258, %v1583, %v1585
  %v1594 = vmul.f32 %v1356, %v1579
  %v1595 = vmul.f32 %v1357, %v1586
  %v1596 = vmul.f32 %v1358, %v1587
  %v1597 = vmul.f32 %v1359, %v1588
  %v1598 = vmul.f32 %v1414, %v1585
  %v1599 = vmul.f32 %v1360, %v1579
  %v1600 = vmul.f32 %v1361, %v1586
  %v1601 = vmul.f32 %v1362, %v1587
  %v1602 = vmul.f32 %v1363, %v1588
  %v1603 = vmul.f32 %v1415, %v1585
  %v1604 = vmul.f32 %v1364, %v1579
  %v1605 = vmul.f32 %v1365, %v1586
  %v1606 = vmul.f32 %v1366, %v1587
  %v1607 = vmul.f32 %v1367, %v1588
  %v1608 = vmul.f32 %v1416, %v1585
  %v1609 = vmul.f32 %v1368, %v1579
  %v1610 = vmul.f32 %v1369, %v1586
  %v1611 = vmul.f32 %v1370, %v1587
  %v1612 = vmul.f32 %v1371, %v1588
  %v1613 = vmul.f32 %v1417, %v1585
  %1634 = vrot.lane.b32.xlu0 %v1594, 64
  %v1635 = vpop.permute.xlu0 %1634
  %1636 = vrot.lane.b32.xlu0 %v1595, 64
  %v1637 = vpop.permute.xlu0 %1636
  %1638 = vrot.lane.b32.xlu0 %v1596, 64
  %v1639 = vpop.permute.xlu0 %1638
  %1640 = vrot.lane.b32.xlu0 %v1597, 64
  %v1641 = vpop.permute.xlu0 %1640
  %1642 = vrot.lane.b32.xlu0 %v1598, 64
  %v1643 = vpop.permute.xlu0 %1642
  %1644 = vrot.lane.b32.xlu0 %v1599, 64
  %v1645 = vpop.permute.xlu0 %1644
  %1646 = vrot.lane.b32.xlu0 %v1600, 64
  %v1647 = vpop.permute.xlu0 %1646
  %1648 = vrot.lane.b32.xlu0 %v1601, 64
  %v1649 = vpop.permute.xlu0 %1648
  %1650 = vrot.lane.b32.xlu0 %v1602, 64
  %v1651 = vpop.permute.xlu0 %1650
  %1652 = vrot.lane.b32.xlu0 %v1603, 64
  %v1653 = vpop.permute.xlu0 %1652
  %1654 = vrot.lane.b32.xlu0 %v1604, 64
  %v1655 = vpop.permute.xlu0 %1654
  %1656 = vrot.lane.b32.xlu0 %v1605, 64
  %v1657 = vpop.permute.xlu0 %1656
  %1658 = vrot.lane.b32.xlu0 %v1606, 64
  %v1659 = vpop.permute.xlu0 %1658
  %1660 = vrot.lane.b32.xlu0 %v1607, 64
  %v1661 = vpop.permute.xlu0 %1660
  %1662 = vrot.lane.b32.xlu0 %v1608, 64
  %v1663 = vpop.permute.xlu0 %1662
  %1664 = vrot.lane.b32.xlu0 %v1609, 64
  %v1665 = vpop.permute.xlu0 %1664
  %1666 = vrot.lane.b32.xlu0 %v1610, 64
  %v1667 = vpop.permute.xlu0 %1666
  %1668 = vrot.lane.b32.xlu0 %v1611, 64
  %v1669 = vpop.permute.xlu0 %1668
  %1670 = vrot.lane.b32.xlu0 %v1612, 64
  %v1671 = vpop.permute.xlu0 %1670
  %1672 = vrot.lane.b32.xlu0 %v1613, 64
  %v1673 = vpop.permute.xlu0 %1672
  %v1674 = vsel %vm1258, %v1635, %v1637
  %v1675 = vsel %vm1258, %v1637, %v1639
  %v1676 = vsel %vm1258, %v1639, %v1641
  %v1677 = vsel %vm1258, %v1641, %v1643
  %v1678 = vsel %vm1258, %v1645, %v1647
  %v1679 = vsel %vm1258, %v1647, %v1649
  %v1680 = vsel %vm1258, %v1649, %v1651
  %v1681 = vsel %vm1258, %v1651, %v1653
  %v1682 = vsel %vm1258, %v1655, %v1657
  %v1683 = vsel %vm1258, %v1657, %v1659
  %v1684 = vsel %vm1258, %v1659, %v1661
  %v1685 = vsel %vm1258, %v1661, %v1663
  %v1686 = vsel %vm1258, %v1665, %v1667
  %v1687 = vsel %vm1258, %v1667, %v1669
  %v1688 = vsel %vm1258, %v1669, %v1671
  %v1689 = vsel %vm1258, %v1671, %v1673
  %v1706 = vadd.f32 %v1555, %v1674
  %v1707 = vadd.f32 %v1556, %v1675
  %v1708 = vadd.f32 %v1557, %v1676
  %v1709 = vadd.f32 %v1558, %v1677
  %v1710 = vadd.f32 %v1559, %v1678
  %v1711 = vadd.f32 %v1560, %v1679
  %v1712 = vadd.f32 %v1561, %v1680
  %v1713 = vadd.f32 %v1562, %v1681
  %v1714 = vadd.f32 %v1563, %v1682
  %v1715 = vadd.f32 %v1564, %v1683
  %v1716 = vadd.f32 %v1565, %v1684
  %v1717 = vadd.f32 %v1566, %v1685
  %v1718 = vadd.f32 %v1567, %v1686
  %v1719 = vadd.f32 %v1568, %v1687
  %v1720 = vadd.f32 %v1569, %v1688
  %v1721 = vadd.f32 %v1570, %v1689
  %s1722 = scalar_lea.vmem %s2, 3
  %v1723 = vld [vmem:[%s1722] ss:$8 sm:$0xf]
  %v1725 = vperm.slane %v1723, 0
  %v1726 = vperm.slane %v1723, 1
  %v1727 = vperm.slane %v1723, 2
  %v1728 = vperm.slane %v1723, 3
  %1729 = vrot.lane.b32.xlu0 %v1725, 96
  %v1730 = vpop.permute.xlu0 %1729
  %1731 = vrot.lane.b32.xlu0 %v1726, 96
  %v1732 = vpop.permute.xlu0 %1731
  %1733 = vrot.lane.b32.xlu0 %v1727, 96
  %v1734 = vpop.permute.xlu0 %1733
  %1735 = vrot.lane.b32.xlu0 %v1728, 96
  %v1736 = vpop.permute.xlu0 %1735
  %v1737 = vsel %vm1522, %v1730, %v1732
  %v1738 = vsel %vm1522, %v1732, %v1734
  %v1739 = vsel %vm1522, %v1734, %v1736
  %v1745 = vmul.f32 %v1356, %v1730
  %v1746 = vmul.f32 %v1357, %v1737
  %v1747 = vmul.f32 %v1358, %v1738
  %v1748 = vmul.f32 %v1359, %v1739
  %v1749 = vmul.f32 %v1414, %v1736
  %v1750 = vmul.f32 %v1360, %v1730
  %v1751 = vmul.f32 %v1361, %v1737
  %v1752 = vmul.f32 %v1362, %v1738
  %v1753 = vmul.f32 %v1363, %v1739
  %v1754 = vmul.f32 %v1415, %v1736
  %v1755 = vmul.f32 %v1364, %v1730
  %v1756 = vmul.f32 %v1365, %v1737
  %v1757 = vmul.f32 %v1366, %v1738
  %v1758 = vmul.f32 %v1367, %v1739
  %v1759 = vmul.f32 %v1416, %v1736
  %v1760 = vmul.f32 %v1368, %v1730
  %v1761 = vmul.f32 %v1369, %v1737
  %v1762 = vmul.f32 %v1370, %v1738
  %v1763 = vmul.f32 %v1371, %v1739
  %v1764 = vmul.f32 %v1417, %v1736
  %1785 = vrot.lane.b32.xlu0 %v1745, 32
  %v1786 = vpop.permute.xlu0 %1785
  %1787 = vrot.lane.b32.xlu0 %v1746, 32
  %v1788 = vpop.permute.xlu0 %1787
  %1789 = vrot.lane.b32.xlu0 %v1747, 32
  %v1790 = vpop.permute.xlu0 %1789
  %1791 = vrot.lane.b32.xlu0 %v1748, 32
  %v1792 = vpop.permute.xlu0 %1791
  %1793 = vrot.lane.b32.xlu0 %v1749, 32
  %v1794 = vpop.permute.xlu0 %1793
  %1795 = vrot.lane.b32.xlu0 %v1750, 32
  %v1796 = vpop.permute.xlu0 %1795
  %1797 = vrot.lane.b32.xlu0 %v1751, 32
  %v1798 = vpop.permute.xlu0 %1797
  %1799 = vrot.lane.b32.xlu0 %v1752, 32
  %v1800 = vpop.permute.xlu0 %1799
  %1801 = vrot.lane.b32.xlu0 %v1753, 32
  %v1802 = vpop.permute.xlu0 %1801
  %1803 = vrot.lane.b32.xlu0 %v1754, 32
  %v1804 = vpop.permute.xlu0 %1803
  %1805 = vrot.lane.b32.xlu0 %v1755, 32
  %v1806 = vpop.permute.xlu0 %1805
  %1807 = vrot.lane.b32.xlu0 %v1756, 32
  %v1808 = vpop.permute.xlu0 %1807
  %1809 = vrot.lane.b32.xlu0 %v1757, 32
  %v1810 = vpop.permute.xlu0 %1809
  %1811 = vrot.lane.b32.xlu0 %v1758, 32
  %v1812 = vpop.permute.xlu0 %1811
  %1813 = vrot.lane.b32.xlu0 %v1759, 32
  %v1814 = vpop.permute.xlu0 %1813
  %1815 = vrot.lane.b32.xlu0 %v1760, 32
  %v1816 = vpop.permute.xlu0 %1815
  %1817 = vrot.lane.b32.xlu0 %v1761, 32
  %v1818 = vpop.permute.xlu0 %1817
  %1819 = vrot.lane.b32.xlu0 %v1762, 32
  %v1820 = vpop.permute.xlu0 %1819
  %1821 = vrot.lane.b32.xlu0 %v1763, 32
  %v1822 = vpop.permute.xlu0 %1821
  %1823 = vrot.lane.b32.xlu0 %v1764, 32
  %v1824 = vpop.permute.xlu0 %1823
  %v1825 = vsel %vm1433, %v1786, %v1788
  %v1826 = vsel %vm1433, %v1788, %v1790
  %v1827 = vsel %vm1433, %v1790, %v1792
  %v1828 = vsel %vm1433, %v1792, %v1794
  %v1829 = vsel %vm1433, %v1796, %v1798
  %v1830 = vsel %vm1433, %v1798, %v1800
  %v1831 = vsel %vm1433, %v1800, %v1802
  %v1832 = vsel %vm1433, %v1802, %v1804
  %v1833 = vsel %vm1433, %v1806, %v1808
  %v1834 = vsel %vm1433, %v1808, %v1810
  %v1835 = vsel %vm1433, %v1810, %v1812
  %v1836 = vsel %vm1433, %v1812, %v1814
  %v1837 = vsel %vm1433, %v1816, %v1818
  %v1838 = vsel %vm1433, %v1818, %v1820
  %v1839 = vsel %vm1433, %v1820, %v1822
  %v1840 = vsel %vm1433, %v1822, %v1824
  %v1857 = vadd.f32 %v1706, %v1825
  %v1858 = vadd.f32 %v1707, %v1826
  %v1859 = vadd.f32 %v1708, %v1827
  %v1860 = vadd.f32 %v1709, %v1828
  %v1861 = vadd.f32 %v1710, %v1829
  %v1862 = vadd.f32 %v1711, %v1830
  %v1863 = vadd.f32 %v1712, %v1831
  %v1864 = vadd.f32 %v1713, %v1832
  %v1865 = vadd.f32 %v1714, %v1833
  %v1866 = vadd.f32 %v1715, %v1834
  %v1867 = vadd.f32 %v1716, %v1835
  %v1868 = vadd.f32 %v1717, %v1836
  %v1869 = vadd.f32 %v1718, %v1837
  %v1870 = vadd.f32 %v1719, %v1838
  %v1871 = vadd.f32 %v1720, %v1839
  %v1872 = vadd.f32 %v1721, %v1840
  %s1873 = scalar_lea.vmem %s2, 4
  %v1874 = vld [vmem:[%s1873] ss:$8 sm:$0xf]
  %v1876 = vperm.slane %v1874, 0
  %v1877 = vperm.slane %v1874, 1
  %v1878 = vperm.slane %v1874, 2
  %v1879 = vperm.slane %v1874, 3
  %v1884 = vmul.f32 %v1357, %v1876
  %v1885 = vmul.f32 %v1358, %v1877
  %v1886 = vmul.f32 %v1359, %v1878
  %v1887 = vmul.f32 %v1414, %v1879
  %v1888 = vmul.f32 %v1361, %v1876
  %v1889 = vmul.f32 %v1362, %v1877
  %v1890 = vmul.f32 %v1363, %v1878
  %v1891 = vmul.f32 %v1415, %v1879
  %v1892 = vmul.f32 %v1365, %v1876
  %v1893 = vmul.f32 %v1366, %v1877
  %v1894 = vmul.f32 %v1367, %v1878
  %v1895 = vmul.f32 %v1416, %v1879
  %v1896 = vmul.f32 %v1369, %v1876
  %v1897 = vmul.f32 %v1370, %v1877
  %v1898 = vmul.f32 %v1371, %v1878
  %v1899 = vmul.f32 %v1417, %v1879
  %v1900 = vadd.f32 %v1857, %v1884
  %v1901 = vadd.f32 %v1858, %v1885
  %v1902 = vadd.f32 %v1859, %v1886
  %v1903 = vadd.f32 %v1860, %v1887
  %v1904 = vadd.f32 %v1861, %v1888
  %v1905 = vadd.f32 %v1862, %v1889
  %v1906 = vadd.f32 %v1863, %v1890
  %v1907 = vadd.f32 %v1864, %v1891
  %v1908 = vadd.f32 %v1865, %v1892
  %v1909 = vadd.f32 %v1866, %v1893
  %v1910 = vadd.f32 %v1867, %v1894
  %v1911 = vadd.f32 %v1868, %v1895
  %v1912 = vadd.f32 %v1869, %v1896
  %v1913 = vadd.f32 %v1870, %v1897
  %v1914 = vadd.f32 %v1871, %v1898
  %v1915 = vadd.f32 %v1872, %v1899
  %v1916 = vld [vmem:[#allocation2] sm:$0xfe]
  %v1917 = vld [vmem:[#allocation2 + $0x8] sm:$0xfe]
  %v1918 = vld [vmem:[#allocation2 + $0x10] sm:$0xfe]
  %v1919 = vld [vmem:[#allocation2 + $0x18] sm:$0xfe]
  %v1920 = vld [vmem:[#allocation2 + $0x50] sm:$0x1]
  %v1921 = vld [vmem:[#allocation2 + $0x58] sm:$0x1]
  %v1922 = vld [vmem:[#allocation2 + $0x60] sm:$0x1]
  %v1923 = vld [vmem:[#allocation2 + $0x68] sm:$0x1]
  %v1924 = vld [vmem:[#allocation2 + $0x78] sm:$0xfe]
  %v1925 = vld [vmem:[#allocation2 + $0x80] sm:$0xfe]
  %v1926 = vld [vmem:[#allocation2 + $0x88] sm:$0xfe]
  %v1927 = vld [vmem:[#allocation2 + $0x90] sm:$0xfe]
  %v1928 = vld [vmem:[#allocation2 + $0xc8] sm:$0x1]
  %v1929 = vld [vmem:[#allocation2 + $0xd0] sm:$0x1]
  %v1930 = vld [vmem:[#allocation2 + $0xd8] sm:$0x1]
  %v1931 = vld [vmem:[#allocation2 + $0xe0] sm:$0x1]
  %vm1956 = vcmask 1046528
  %v1957 = vrot.slane %v1916, 1
  %v1958 = vrot.slane %v1360, 1
  %v1959 = vsel %vm1956, %v1957, %v1958
  %v1960 = vrot.slane %v1917, 1
  %v1961 = vrot.slane %v1361, 1
  %v1962 = vsel %vm1956, %v1960, %v1961
  %v1963 = vrot.slane %v1918, 1
  %v1964 = vrot.slane %v1362, 1
  %v1965 = vsel %vm1956, %v1963, %v1964
  %v1966 = vrot.slane %v1919, 1
  %v1967 = vrot.slane %v1363, 1
  %v1968 = vsel %vm1956, %v1966, %v1967
  %v1969 = vrot.slane %v1920, 1
  %v1970 = vsel %vm1956, %v1958, %v1969
  %v1971 = vrot.slane %v1921, 1
  %v1972 = vsel %vm1956, %v1961, %v1971
  %v1973 = vrot.slane %v1922, 1
  %v1974 = vsel %vm1956, %v1964, %v1973
  %v1975 = vrot.slane %v1923, 1
  %v1976 = vsel %vm1956, %v1967, %v1975
  %v1977 = vrot.slane %v1924, 1
  %v1978 = vrot.slane %v1368, 1
  %v1979 = vsel %vm1956, %v1977, %v1978
  %v1980 = vrot.slane %v1925, 1
  %v1981 = vrot.slane %v1369, 1
  %v1982 = vsel %vm1956, %v1980, %v1981
  %v1983 = vrot.slane %v1926, 1
  %v1984 = vrot.slane %v1370, 1
  %v1985 = vsel %vm1956, %v1983, %v1984
  %v1986 = vrot.slane %v1927, 1
  %v1987 = vrot.slane %v1371, 1
  %v1988 = vsel %vm1956, %v1986, %v1987
  %v1989 = vrot.slane %v1928, 1
  %v1990 = vsel %vm1956, %v1978, %v1989
  %v1991 = vrot.slane %v1929, 1
  %v1992 = vsel %vm1956, %v1981, %v1991
  %v1993 = vrot.slane %v1930, 1
  %v1994 = vsel %vm1956, %v1984, %v1993
  %v1995 = vrot.slane %v1931, 1
  %v1996 = vsel %vm1956, %v1987, %v1995
  %s2013 = scalar_lea.vmem %s2, 5
  %v2014 = vld [vmem:[%s2013] ss:$8 sm:$0xf]
  %v2016 = vperm.slane %v2014, 0
  %v2017 = vperm.slane %v2014, 1
  %v2018 = vperm.slane %v2014, 2
  %v2019 = vperm.slane %v2014, 3
  %v2024 = vmul.f32 %v1959, %v2016
  %v2025 = vmul.f32 %v1962, %v2017
  %v2026 = vmul.f32 %v1965, %v2018
  %v2027 = vmul.f32 %v1968, %v2019
  %v2028 = vmul.f32 %v1970, %v2016
  %v2029 = vmul.f32 %v1972, %v2017
  %v2030 = vmul.f32 %v1974, %v2018
  %v2031 = vmul.f32 %v1976, %v2019
  %v2032 = vmul.f32 %v1979, %v2016
  %v2033 = vmul.f32 %v1982, %v2017
  %v2034 = vmul.f32 %v1985, %v2018
  %v2035 = vmul.f32 %v1988, %v2019
  %v2036 = vmul.f32 %v1990, %v2016
  %v2037 = vmul.f32 %v1992, %v2017
  %v2038 = vmul.f32 %v1994, %v2018
  %v2039 = vmul.f32 %v1996, %v2019
  %v2040 = vadd.f32 %v1900, %v2024
  %v2041 = vadd.f32 %v1901, %v2025
  %v2042 = vadd.f32 %v1902, %v2026
  %v2043 = vadd.f32 %v1903, %v2027
  %v2044 = vadd.f32 %v1904, %v2028
  %v2045 = vadd.f32 %v1905, %v2029
  %v2046 = vadd.f32 %v1906, %v2030
  %v2047 = vadd.f32 %v1907, %v2031
  %v2048 = vadd.f32 %v1908, %v2032
  %v2049 = vadd.f32 %v1909, %v2033
  %v2050 = vadd.f32 %v1910, %v2034
  %v2051 = vadd.f32 %v1911, %v2035
  %v2052 = vadd.f32 %v1912, %v2036
  %v2053 = vadd.f32 %v1913, %v2037
  %v2054 = vadd.f32 %v1914, %v2038
  %v2055 = vadd.f32 %v1915, %v2039
  %v2056 = vld [vmem:[#allocation2 + $0x20] sm:$0xfe]
  %v2057 = vld [vmem:[#allocation2 + $0x70] sm:$0x1]
  %v2058 = vld [vmem:[#allocation2 + $0x98] sm:$0xfe]
  %v2059 = vld [vmem:[#allocation2 + $0xe8] sm:$0x1]
  %v2066 = vrot.slane %v2056, 1
  %v2067 = vrot.slane %v1415, 1
  %v2068 = vsel %vm1956, %v2066, %v2067
  %v2069 = vrot.slane %v2057, 1
  %v2070 = vsel %vm1956, %v2067, %v2069
  %v2071 = vrot.slane %v2058, 1
  %v2072 = vrot.slane %v1417, 1
  %v2073 = vsel %vm1956, %v2071, %v2072
  %v2074 = vrot.slane %v2059, 1
  %v2075 = vsel %vm1956, %v2072, %v2074
  %s2080 = scalar_lea.vmem %s2, 6
  %v2081 = vld [vmem:[%s2080] ss:$8 sm:$0xf]
  %v2083 = vperm.slane %v2081, 0
  %v2084 = vperm.slane %v2081, 1
  %v2085 = vperm.slane %v2081, 2
  %v2086 = vperm.slane %v2081, 3
  %2087 = vrot.lane.b32.xlu0 %v2083, 32
  %v2088 = vpop.permute.xlu0 %2087
  %2089 = vrot.lane.b32.xlu0 %v2084, 32
  %v2090 = vpop.permute.xlu0 %2089
  %2091 = vrot.lane.b32.xlu0 %v2085, 32
  %v2092 = vpop.permute.xlu0 %2091
  %2093 = vrot.lane.b32.xlu0 %v2086, 32
  %v2094 = vpop.permute.xlu0 %2093
  %v2095 = vsel %vm1433, %v2088, %v2090
  %v2096 = vsel %vm1433, %v2090, %v2092
  %v2097 = vsel %vm1433, %v2092, %v2094
  %v2103 = vmul.f32 %v1959, %v2088
  %v2104 = vmul.f32 %v1962, %v2095
  %v2105 = vmul.f32 %v1965, %v2096
  %v2106 = vmul.f32 %v1968, %v2097
  %v2107 = vmul.f32 %v2068, %v2094
  %v2108 = vmul.f32 %v1970, %v2088
  %v2109 = vmul.f32 %v1972, %v2095
  %v2110 = vmul.f32 %v1974, %v2096
  %v2111 = vmul.f32 %v1976, %v2097
  %v2112 = vmul.f32 %v2070, %v2094
  %v2113 = vmul.f32 %v1979, %v2088
  %v2114 = vmul.f32 %v1982, %v2095
  %v2115 = vmul.f32 %v1985, %v2096
  %v2116 = vmul.f32 %v1988, %v2097
  %v2117 = vmul.f32 %v2073, %v2094
  %v2118 = vmul.f32 %v1990, %v2088
  %v2119 = vmul.f32 %v1992, %v2095
  %v2120 = vmul.f32 %v1994, %v2096
  %v2121 = vmul.f32 %v1996, %v2097
  %v2122 = vmul.f32 %v2075, %v2094
  %2143 = vrot.lane.b32.xlu0 %v2103, 96
  %v2144 = vpop.permute.xlu0 %2143
  %2145 = vrot.lane.b32.xlu0 %v2104, 96
  %v2146 = vpop.permute.xlu0 %2145
  %2147 = vrot.lane.b32.xlu0 %v2105, 96
  %v2148 = vpop.permute.xlu0 %2147
  %2149 = vrot.lane.b32.xlu0 %v2106, 96
  %v2150 = vpop.permute.xlu0 %2149
  %2151 = vrot.lane.b32.xlu0 %v2107, 96
  %v2152 = vpop.permute.xlu0 %2151
  %2153 = vrot.lane.b32.xlu0 %v2108, 96
  %v2154 = vpop.permute.xlu0 %2153
  %2155 = vrot.lane.b32.xlu0 %v2109, 96
  %v2156 = vpop.permute.xlu0 %2155
  %2157 = vrot.lane.b32.xlu0 %v2110, 96
  %v2158 = vpop.permute.xlu0 %2157
  %2159 = vrot.lane.b32.xlu0 %v2111, 96
  %v2160 = vpop.permute.xlu0 %2159
  %2161 = vrot.lane.b32.xlu0 %v2112, 96
  %v2162 = vpop.permute.xlu0 %2161
  %2163 = vrot.lane.b32.xlu0 %v2113, 96
  %v2164 = vpop.permute.xlu0 %2163
  %2165 = vrot.lane.b32.xlu0 %v2114, 96
  %v2166 = vpop.permute.xlu0 %2165
  %2167 = vrot.lane.b32.xlu0 %v2115, 96
  %v2168 = vpop.permute.xlu0 %2167
  %2169 = vrot.lane.b32.xlu0 %v2116, 96
  %v2170 = vpop.permute.xlu0 %2169
  %2171 = vrot.lane.b32.xlu0 %v2117, 96
  %v2172 = vpop.permute.xlu0 %2171
  %2173 = vrot.lane.b32.xlu0 %v2118, 96
  %v2174 = vpop.permute.xlu0 %2173
  %2175 = vrot.lane.b32.xlu0 %v2119, 96
  %v2176 = vpop.permute.xlu0 %2175
  %2177 = vrot.lane.b32.xlu0 %v2120, 96
  %v2178 = vpop.permute.xlu0 %2177
  %2179 = vrot.lane.b32.xlu0 %v2121, 96
  %v2180 = vpop.permute.xlu0 %2179
  %2181 = vrot.lane.b32.xlu0 %v2122, 96
  %v2182 = vpop.permute.xlu0 %2181
  %v2183 = vsel %vm1522, %v2144, %v2146
  %v2184 = vsel %vm1522, %v2146, %v2148
  %v2185 = vsel %vm1522, %v2148, %v2150
  %v2186 = vsel %vm1522, %v2150, %v2152
  %v2187 = vsel %vm1522, %v2154, %v2156
  %v2188 = vsel %vm1522, %v2156, %v2158
  %v2189 = vsel %vm1522, %v2158, %v2160
  %v2190 = vsel %vm1522, %v2160, %v2162
  %v2191 = vsel %vm1522, %v2164, %v2166
  %v2192 = vsel %vm1522, %v2166, %v2168
  %v2193 = vsel %vm1522, %v2168, %v2170
  %v2194 = vsel %vm1522, %v2170, %v2172
  %v2195 = vsel %vm1522, %v2174, %v2176
  %v2196 = vsel %vm1522, %v2176, %v2178
  %v2197 = vsel %vm1522, %v2178, %v2180
  %v2198 = vsel %vm1522, %v2180, %v2182
  %v2215 = vadd.f32 %v2040, %v2183
  %v2216 = vadd.f32 %v2041, %v2184
  %v2217 = vadd.f32 %v2042, %v2185
  %v2218 = vadd.f32 %v2043, %v2186
  %v2219 = vadd.f32 %v2044, %v2187
  %v2220 = vadd.f32 %v2045, %v2188
  %v2221 = vadd.f32 %v2046, %v2189
  %v2222 = vadd.f32 %v2047, %v2190
  %v2223 = vadd.f32 %v2048, %v2191
  %v2224 = vadd.f32 %v2049, %v2192
  %v2225 = vadd.f32 %v2050, %v2193
  %v2226 = vadd.f32 %v2051, %v2194
  %v2227 = vadd.f32 %v2052, %v2195
  %v2228 = vadd.f32 %v2053, %v2196
  %v2229 = vadd.f32 %v2054, %v2197
  %v2230 = vadd.f32 %v2055, %v2198
  %s2231 = scalar_lea.vmem %s2, 7
  %v2232 = vld [vmem:[%s2231] ss:$8 sm:$0xf]
  %v2234 = vperm.slane %v2232, 0
  %v2235 = vperm.slane %v2232, 1
  %v2236 = vperm.slane %v2232, 2
  %v2237 = vperm.slane %v2232, 3
  %2238 = vrot.lane.b32.xlu0 %v2234, 64
  %v2239 = vpop.permute.xlu0 %2238
  %2240 = vrot.lane.b32.xlu0 %v2235, 64
  %v2241 = vpop.permute.xlu0 %2240
  %2242 = vrot.lane.b32.xlu0 %v2236, 64
  %v2243 = vpop.permute.xlu0 %2242
  %2244 = vrot.lane.b32.xlu0 %v2237, 64
  %v2245 = vpop.permute.xlu0 %2244
  %v2246 = vsel %vm1258, %v2239, %v2241
  %v2247 = vsel %vm1258, %v2241, %v2243
  %v2248 = vsel %vm1258, %v2243, %v2245
  %v2254 = vmul.f32 %v1959, %v2239
  %v2255 = vmul.f32 %v1962, %v2246
  %v2256 = vmul.f32 %v1965, %v2247
  %v2257 = vmul.f32 %v1968, %v2248
  %v2258 = vmul.f32 %v2068, %v2245
  %v2259 = vmul.f32 %v1970, %v2239
  %v2260 = vmul.f32 %v1972, %v2246
  %v2261 = vmul.f32 %v1974, %v2247
  %v2262 = vmul.f32 %v1976, %v2248
  %v2263 = vmul.f32 %v2070, %v2245
  %v2264 = vmul.f32 %v1979, %v2239
  %v2265 = vmul.f32 %v1982, %v2246
  %v2266 = vmul.f32 %v1985, %v2247
  %v2267 = vmul.f32 %v1988, %v2248
  %v2268 = vmul.f32 %v2073, %v2245
  %v2269 = vmul.f32 %v1990, %v2239
  %v2270 = vmul.f32 %v1992, %v2246
  %v2271 = vmul.f32 %v1994, %v2247
  %v2272 = vmul.f32 %v1996, %v2248
  %v2273 = vmul.f32 %v2075, %v2245
  %2294 = vrot.lane.b32.xlu0 %v2254, 64
  %v2295 = vpop.permute.xlu0 %2294
  %2296 = vrot.lane.b32.xlu0 %v2255, 64
  %v2297 = vpop.permute.xlu0 %2296
  %2298 = vrot.lane.b32.xlu0 %v2256, 64
  %v2299 = vpop.permute.xlu0 %2298
  %2300 = vrot.lane.b32.xlu0 %v2257, 64
  %v2301 = vpop.permute.xlu0 %2300
  %2302 = vrot.lane.b32.xlu0 %v2258, 64
  %v2303 = vpop.permute.xlu0 %2302
  %2304 = vrot.lane.b32.xlu0 %v2259, 64
  %v2305 = vpop.permute.xlu0 %2304
  %2306 = vrot.lane.b32.xlu0 %v2260, 64
  %v2307 = vpop.permute.xlu0 %2306
  %2308 = vrot.lane.b32.xlu0 %v2261, 64
  %v2309 = vpop.permute.xlu0 %2308
  %2310 = vrot.lane.b32.xlu0 %v2262, 64
  %v2311 = vpop.permute.xlu0 %2310
  %2312 = vrot.lane.b32.xlu0 %v2263, 64
  %v2313 = vpop.permute.xlu0 %2312
  %2314 = vrot.lane.b32.xlu0 %v2264, 64
  %v2315 = vpop.permute.xlu0 %2314
  %2316 = vrot.lane.b32.xlu0 %v2265, 64
  %v2317 = vpop.permute.xlu0 %2316
  %2318 = vrot.lane.b32.xlu0 %v2266, 64
  %v2319 = vpop.permute.xlu0 %2318
  %2320 = vrot.lane.b32.xlu0 %v2267, 64
  %v2321 = vpop.permute.xlu0 %2320
  %2322 = vrot.lane.b32.xlu0 %v2268, 64
  %v2323 = vpop.permute.xlu0 %2322
  %2324 = vrot.lane.b32.xlu0 %v2269, 64
  %v2325 = vpop.permute.xlu0 %2324
  %2326 = vrot.lane.b32.xlu0 %v2270, 64
  %v2327 = vpop.permute.xlu0 %2326
  %2328 = vrot.lane.b32.xlu0 %v2271, 64
  %v2329 = vpop.permute.xlu0 %2328
  %2330 = vrot.lane.b32.xlu0 %v2272, 64
  %v2331 = vpop.permute.xlu0 %2330
  %2332 = vrot.lane.b32.xlu0 %v2273, 64
  %v2333 = vpop.permute.xlu0 %2332
  %v2334 = vsel %vm1258, %v2295, %v2297
  %v2335 = vsel %vm1258, %v2297, %v2299
  %v2336 = vsel %vm1258, %v2299, %v2301
  %v2337 = vsel %vm1258, %v2301, %v2303
  %v2338 = vsel %vm1258, %v2305, %v2307
  %v2339 = vsel %vm1258, %v2307, %v2309
  %v2340 = vsel %vm1258, %v2309, %v2311
  %v2341 = vsel %vm1258, %v2311, %v2313
  %v2342 = vsel %vm1258, %v2315, %v2317
  %v2343 = vsel %vm1258, %v2317, %v2319
  %v2344 = vsel %vm1258, %v2319, %v2321
  %v2345 = vsel %vm1258, %v2321, %v2323
  %v2346 = vsel %vm1258, %v2325, %v2327
  %v2347 = vsel %vm1258, %v2327, %v2329
  %v2348 = vsel %vm1258, %v2329, %v2331
  %v2349 = vsel %vm1258, %v2331, %v2333
  %v2366 = vadd.f32 %v2215, %v2334
  %v2367 = vadd.f32 %v2216, %v2335
  %v2368 = vadd.f32 %v2217, %v2336
  %v2369 = vadd.f32 %v2218, %v2337
  %v2370 = vadd.f32 %v2219, %v2338
  %v2371 = vadd.f32 %v2220, %v2339
  %v2372 = vadd.f32 %v2221, %v2340
  %v2373 = vadd.f32 %v2222, %v2341
  %v2374 = vadd.f32 %v2223, %v2342
  %v2375 = vadd.f32 %v2224, %v2343
  %v2376 = vadd.f32 %v2225, %v2344
  %v2377 = vadd.f32 %v2226, %v2345
  %v2378 = vadd.f32 %v2227, %v2346
  %v2379 = vadd.f32 %v2228, %v2347
  %v2380 = vadd.f32 %v2229, %v2348
  %v2381 = vadd.f32 %v2230, %v2349
  %s2382 = scalar_lea.vmem %s2, 32
  %v2383 = vld [vmem:[%s2382] ss:$8 sm:$0xf]
  %v2385 = vperm.slane %v2383, 0
  %v2386 = vperm.slane %v2383, 1
  %v2387 = vperm.slane %v2383, 2
  %v2388 = vperm.slane %v2383, 3
  %2389 = vrot.lane.b32.xlu0 %v2385, 96
  %v2390 = vpop.permute.xlu0 %2389
  %2391 = vrot.lane.b32.xlu0 %v2386, 96
  %v2392 = vpop.permute.xlu0 %2391
  %2393 = vrot.lane.b32.xlu0 %v2387, 96
  %v2394 = vpop.permute.xlu0 %2393
  %2395 = vrot.lane.b32.xlu0 %v2388, 96
  %v2396 = vpop.permute.xlu0 %2395
  %v2397 = vsel %vm1522, %v2390, %v2392
  %v2398 = vsel %vm1522, %v2392, %v2394
  %v2399 = vsel %vm1522, %v2394, %v2396
  %v2405 = vmul.f32 %v1959, %v2390
  %v2406 = vmul.f32 %v1962, %v2397
  %v2407 = vmul.f32 %v1965, %v2398
  %v2408 = vmul.f32 %v1968, %v2399
  %v2409 = vmul.f32 %v2068, %v2396
  %v2410 = vmul.f32 %v1970, %v2390
  %v2411 = vmul.f32 %v1972, %v2397
  %v2412 = vmul.f32 %v1974, %v2398
  %v2413 = vmul.f32 %v1976, %v2399
  %v2414 = vmul.f32 %v2070, %v2396
  %v2415 = vmul.f32 %v1979, %v2390
  %v2416 = vmul.f32 %v1982, %v2397
  %v2417 = vmul.f32 %v1985, %v2398
  %v2418 = vmul.f32 %v1988, %v2399
  %v2419 = vmul.f32 %v2073, %v2396
  %v2420 = vmul.f32 %v1990, %v2390
  %v2421 = vmul.f32 %v1992, %v2397
  %v2422 = vmul.f32 %v1994, %v2398
  %v2423 = vmul.f32 %v1996, %v2399
  %v2424 = vmul.f32 %v2075, %v2396
  %2445 = vrot.lane.b32.xlu0 %v2405, 32
  %v2446 = vpop.permute.xlu0 %2445
  %2447 = vrot.lane.b32.xlu0 %v2406, 32
  %v2448 = vpop.permute.xlu0 %2447
  %2449 = vrot.lane.b32.xlu0 %v2407, 32
  %v2450 = vpop.permute.xlu0 %2449
  %2451 = vrot.lane.b32.xlu0 %v2408, 32
  %v2452 = vpop.permute.xlu0 %2451
  %2453 = vrot.lane.b32.xlu0 %v2409, 32
  %v2454 = vpop.permute.xlu0 %2453
  %2455 = vrot.lane.b32.xlu0 %v2410, 32
  %v2456 = vpop.permute.xlu0 %2455
  %2457 = vrot.lane.b32.xlu0 %v2411, 32
  %v2458 = vpop.permute.xlu0 %2457
  %2459 = vrot.lane.b32.xlu0 %v2412, 32
  %v2460 = vpop.permute.xlu0 %2459
  %2461 = vrot.lane.b32.xlu0 %v2413, 32
  %v2462 = vpop.permute.xlu0 %2461
  %2463 = vrot.lane.b32.xlu0 %v2414, 32
  %v2464 = vpop.permute.xlu0 %2463
  %2465 = vrot.lane.b32.xlu0 %v2415, 32
  %v2466 = vpop.permute.xlu0 %2465
  %2467 = vrot.lane.b32.xlu0 %v2416, 32
  %v2468 = vpop.permute.xlu0 %2467
  %2469 = vrot.lane.b32.xlu0 %v2417, 32
  %v2470 = vpop.permute.xlu0 %2469
  %2471 = vrot.lane.b32.xlu0 %v2418, 32
  %v2472 = vpop.permute.xlu0 %2471
  %2473 = vrot.lane.b32.xlu0 %v2419, 32
  %v2474 = vpop.permute.xlu0 %2473
  %2475 = vrot.lane.b32.xlu0 %v2420, 32
  %v2476 = vpop.permute.xlu0 %2475
  %2477 = vrot.lane.b32.xlu0 %v2421, 32
  %v2478 = vpop.permute.xlu0 %2477
  %2479 = vrot.lane.b32.xlu0 %v2422, 32
  %v2480 = vpop.permute.xlu0 %2479
  %2481 = vrot.lane.b32.xlu0 %v2423, 32
  %v2482 = vpop.permute.xlu0 %2481
  %2483 = vrot.lane.b32.xlu0 %v2424, 32
  %v2484 = vpop.permute.xlu0 %2483
  %v2485 = vsel %vm1433, %v2446, %v2448
  %v2486 = vsel %vm1433, %v2448, %v2450
  %v2487 = vsel %vm1433, %v2450, %v2452
  %v2488 = vsel %vm1433, %v2452, %v2454
  %v2489 = vsel %vm1433, %v2456, %v2458
  %v2490 = vsel %vm1433, %v2458, %v2460
  %v2491 = vsel %vm1433, %v2460, %v2462
  %v2492 = vsel %vm1433, %v2462, %v2464
  %v2493 = vsel %vm1433, %v2466, %v2468
  %v2494 = vsel %vm1433, %v2468, %v2470
  %v2495 = vsel %vm1433, %v2470, %v2472
  %v2496 = vsel %vm1433, %v2472, %v2474
  %v2497 = vsel %vm1433, %v2476, %v2478
  %v2498 = vsel %vm1433, %v2478, %v2480
  %v2499 = vsel %vm1433, %v2480, %v2482
  %v2500 = vsel %vm1433, %v2482, %v2484
  %v2517 = vadd.f32 %v2366, %v2485
  %v2518 = vadd.f32 %v2367, %v2486
  %v2519 = vadd.f32 %v2368, %v2487
  %v2520 = vadd.f32 %v2369, %v2488
  %v2521 = vadd.f32 %v2370, %v2489
  %v2522 = vadd.f32 %v2371, %v2490
  %v2523 = vadd.f32 %v2372, %v2491
  %v2524 = vadd.f32 %v2373, %v2492
  %v2525 = vadd.f32 %v2374, %v2493
  %v2526 = vadd.f32 %v2375, %v2494
  %v2527 = vadd.f32 %v2376, %v2495
  %v2528 = vadd.f32 %v2377, %v2496
  %v2529 = vadd.f32 %v2378, %v2497
  %v2530 = vadd.f32 %v2379, %v2498
  %v2531 = vadd.f32 %v2380, %v2499
  %v2532 = vadd.f32 %v2381, %v2500
  %s2533 = scalar_lea.vmem %s2, 33
  %v2534 = vld [vmem:[%s2533] ss:$8 sm:$0xf]
  %v2536 = vperm.slane %v2534, 0
  %v2537 = vperm.slane %v2534, 1
  %v2538 = vperm.slane %v2534, 2
  %v2539 = vperm.slane %v2534, 3
  %v2544 = vmul.f32 %v1962, %v2536
  %v2545 = vmul.f32 %v1965, %v2537
  %v2546 = vmul.f32 %v1968, %v2538
  %v2547 = vmul.f32 %v2068, %v2539
  %v2548 = vmul.f32 %v1972, %v2536
  %v2549 = vmul.f32 %v1974, %v2537
  %v2550 = vmul.f32 %v1976, %v2538
  %v2551 = vmul.f32 %v2070, %v2539
  %v2552 = vmul.f32 %v1982, %v2536
  %v2553 = vmul.f32 %v1985, %v2537
  %v2554 = vmul.f32 %v1988, %v2538
  %v2555 = vmul.f32 %v2073, %v2539
  %v2556 = vmul.f32 %v1992, %v2536
  %v2557 = vmul.f32 %v1994, %v2537
  %v2558 = vmul.f32 %v1996, %v2538
  %v2559 = vmul.f32 %v2075, %v2539
  %v2560 = vadd.f32 %v2517, %v2544
  %v2561 = vadd.f32 %v2518, %v2545
  %v2562 = vadd.f32 %v2519, %v2546
  %v2563 = vadd.f32 %v2520, %v2547
  %v2564 = vadd.f32 %v2521, %v2548
  %v2565 = vadd.f32 %v2522, %v2549
  %v2566 = vadd.f32 %v2523, %v2550
  %v2567 = vadd.f32 %v2524, %v2551
  %v2568 = vadd.f32 %v2525, %v2552
  %v2569 = vadd.f32 %v2526, %v2553
  %v2570 = vadd.f32 %v2527, %v2554
  %v2571 = vadd.f32 %v2528, %v2555
  %v2572 = vadd.f32 %v2529, %v2556
  %v2573 = vadd.f32 %v2530, %v2557
  %v2574 = vadd.f32 %v2531, %v2558
  %v2575 = vadd.f32 %v2532, %v2559
  %v2576 = vld [vmem:[#allocation2] sm:$0xfc]
  %v2577 = vld [vmem:[#allocation2 + $0x8] sm:$0xfc]
  %v2578 = vld [vmem:[#allocation2 + $0x10] sm:$0xfc]
  %v2579 = vld [vmem:[#allocation2 + $0x18] sm:$0xfc]
  %v2580 = vld [vmem:[#allocation2 + $0x50] sm:$0x3]
  %v2581 = vld [vmem:[#allocation2 + $0x58] sm:$0x3]
  %v2582 = vld [vmem:[#allocation2 + $0x60] sm:$0x3]
  %v2583 = vld [vmem:[#allocation2 + $0x68] sm:$0x3]
  %v2584 = vld [vmem:[#allocation2 + $0x78] sm:$0xfc]
  %v2585 = vld [vmem:[#allocation2 + $0x80] sm:$0xfc]
  %v2586 = vld [vmem:[#allocation2 + $0x88] sm:$0xfc]
  %v2587 = vld [vmem:[#allocation2 + $0x90] sm:$0xfc]
  %v2588 = vld [vmem:[#allocation2 + $0xc8] sm:$0x3]
  %v2589 = vld [vmem:[#allocation2 + $0xd0] sm:$0x3]
  %v2590 = vld [vmem:[#allocation2 + $0xd8] sm:$0x3]
  %v2591 = vld [vmem:[#allocation2 + $0xe0] sm:$0x3]
  %vm2608 = vcmask 1045504
  %v2609 = vrot.slane %v2576, 2
  %v2610 = vrot.slane %v1360, 2
  %v2611 = vsel %vm2608, %v2609, %v2610
  %v2612 = vrot.slane %v2577, 2
  %v2613 = vrot.slane %v1361, 2
  %v2614 = vsel %vm2608, %v2612, %v2613
  %v2615 = vrot.slane %v2578, 2
  %v2616 = vrot.slane %v1362, 2
  %v2617 = vsel %vm2608, %v2615, %v2616
  %v2618 = vrot.slane %v2579, 2
  %v2619 = vrot.slane %v1363, 2
  %v2620 = vsel %vm2608, %v2618, %v2619
  %v2621 = vrot.slane %v2580, 2
  %v2622 = vsel %vm2608, %v2610, %v2621
  %v2623 = vrot.slane %v2581, 2
  %v2624 = vsel %vm2608, %v2613, %v2623
  %v2625 = vrot.slane %v2582, 2
  %v2626 = vsel %vm2608, %v2616, %v2625
  %v2627 = vrot.slane %v2583, 2
  %v2628 = vsel %vm2608, %v2619, %v2627
  %v2629 = vrot.slane %v2584, 2
  %v2630 = vrot.slane %v1368, 2
  %v2631 = vsel %vm2608, %v2629, %v2630
  %v2632 = vrot.slane %v2585, 2
  %v2633 = vrot.slane %v1369, 2
  %v2634 = vsel %vm2608, %v2632, %v2633
  %v2635 = vrot.slane %v2586, 2
  %v2636 = vrot.slane %v1370, 2
  %v2637 = vsel %vm2608, %v2635, %v2636
  %v2638 = vrot.slane %v2587, 2
  %v2639 = vrot.slane %v1371, 2
  %v2640 = vsel %vm2608, %v2638, %v2639
  %v2641 = vrot.slane %v2588, 2
  %v2642 = vsel %vm2608, %v2630, %v2641
  %v2643 = vrot.slane %v2589, 2
  %v2644 = vsel %vm2608, %v2633, %v2643
  %v2645 = vrot.slane %v2590, 2
  %v2646 = vsel %vm2608, %v2636, %v2645
  %v2647 = vrot.slane %v2591, 2
  %v2648 = vsel %vm2608, %v2639, %v2647
  %s2665 = scalar_lea.vmem %s2, 34
  %v2666 = vld [vmem:[%s2665] ss:$8 sm:$0xf]
  %v2668 = vperm.slane %v2666, 0
  %v2669 = vperm.slane %v2666, 1
  %v2670 = vperm.slane %v2666, 2
  %v2671 = vperm.slane %v2666, 3
  %v2676 = vmul.f32 %v2611, %v2668
  %v2677 = vmul.f32 %v2614, %v2669
  %v2678 = vmul.f32 %v2617, %v2670
  %v2679 = vmul.f32 %v2620, %v2671
  %v2680 = vmul.f32 %v2622, %v2668
  %v2681 = vmul.f32 %v2624, %v2669
  %v2682 = vmul.f32 %v2626, %v2670
  %v2683 = vmul.f32 %v2628, %v2671
  %v2684 = vmul.f32 %v2631, %v2668
  %v2685 = vmul.f32 %v2634, %v2669
  %v2686 = vmul.f32 %v2637, %v2670
  %v2687 = vmul.f32 %v2640, %v2671
  %v2688 = vmul.f32 %v2642, %v2668
  %v2689 = vmul.f32 %v2644, %v2669
  %v2690 = vmul.f32 %v2646, %v2670
  %v2691 = vmul.f32 %v2648, %v2671
  %v2692 = vadd.f32 %v2560, %v2676
  %v2693 = vadd.f32 %v2561, %v2677
  %v2694 = vadd.f32 %v2562, %v2678
  %v2695 = vadd.f32 %v2563, %v2679
  %v2696 = vadd.f32 %v2564, %v2680
  %v2697 = vadd.f32 %v2565, %v2681
  %v2698 = vadd.f32 %v2566, %v2682
  %v2699 = vadd.f32 %v2567, %v2683
  %v2700 = vadd.f32 %v2568, %v2684
  %v2701 = vadd.f32 %v2569, %v2685
  %v2702 = vadd.f32 %v2570, %v2686
  %v2703 = vadd.f32 %v2571, %v2687
  %v2704 = vadd.f32 %v2572, %v2688
  %v2705 = vadd.f32 %v2573, %v2689
  %v2706 = vadd.f32 %v2574, %v2690
  %v2707 = vadd.f32 %v2575, %v2691
  %v2708 = vld [vmem:[#allocation2 + $0x20] sm:$0xfc]
  %v2709 = vld [vmem:[#allocation2 + $0x70] sm:$0x3]
  %v2710 = vld [vmem:[#allocation2 + $0x98] sm:$0xfc]
  %v2711 = vld [vmem:[#allocation2 + $0xe8] sm:$0x3]
  %v2716 = vrot.slane %v2708, 2
  %v2717 = vrot.slane %v1415, 2
  %v2718 = vsel %vm2608, %v2716, %v2717
  %v2719 = vrot.slane %v2709, 2
  %v2720 = vsel %vm2608, %v2717, %v2719
  %v2721 = vrot.slane %v2710, 2
  %v2722 = vrot.slane %v1417, 2
  %v2723 = vsel %vm2608, %v2721, %v2722
  %v2724 = vrot.slane %v2711, 2
  %v2725 = vsel %vm2608, %v2722, %v2724
  %s2730 = scalar_lea.vmem %s2, 35
  %v2731 = vld [vmem:[%s2730] ss:$8 sm:$0xf]
  %v2733 = vperm.slane %v2731, 0
  %v2734 = vperm.slane %v2731, 1
  %v2735 = vperm.slane %v2731, 2
  %v2736 = vperm.slane %v2731, 3
  %2737 = vrot.lane.b32.xlu0 %v2733, 32
  %v2738 = vpop.permute.xlu0 %2737
  %2739 = vrot.lane.b32.xlu0 %v2734, 32
  %v2740 = vpop.permute.xlu0 %2739
  %2741 = vrot.lane.b32.xlu0 %v2735, 32
  %v2742 = vpop.permute.xlu0 %2741
  %2743 = vrot.lane.b32.xlu0 %v2736, 32
  %v2744 = vpop.permute.xlu0 %2743
  %v2745 = vsel %vm1433, %v2738, %v2740
  %v2746 = vsel %vm1433, %v2740, %v2742
  %v2747 = vsel %vm1433, %v2742, %v2744
  %v2753 = vmul.f32 %v2611, %v2738
  %v2754 = vmul.f32 %v2614, %v2745
  %v2755 = vmul.f32 %v2617, %v2746
  %v2756 = vmul.f32 %v2620, %v2747
  %v2757 = vmul.f32 %v2718, %v2744
  %v2758 = vmul.f32 %v2622, %v2738
  %v2759 = vmul.f32 %v2624, %v2745
  %v2760 = vmul.f32 %v2626, %v2746
  %v2761 = vmul.f32 %v2628, %v2747
  %v2762 = vmul.f32 %v2720, %v2744
  %v2763 = vmul.f32 %v2631, %v2738
  %v2764 = vmul.f32 %v2634, %v2745
  %v2765 = vmul.f32 %v2637, %v2746
  %v2766 = vmul.f32 %v2640, %v2747
  %v2767 = vmul.f32 %v2723, %v2744
  %v2768 = vmul.f32 %v2642, %v2738
  %v2769 = vmul.f32 %v2644, %v2745
  %v2770 = vmul.f32 %v2646, %v2746
  %v2771 = vmul.f32 %v2648, %v2747
  %v2772 = vmul.f32 %v2725, %v2744
  %2793 = vrot.lane.b32.xlu0 %v2753, 96
  %v2794 = vpop.permute.xlu0 %2793
  %2795 = vrot.lane.b32.xlu0 %v2754, 96
  %v2796 = vpop.permute.xlu0 %2795
  %2797 = vrot.lane.b32.xlu0 %v2755, 96
  %v2798 = vpop.permute.xlu0 %2797
  %2799 = vrot.lane.b32.xlu0 %v2756, 96
  %v2800 = vpop.permute.xlu0 %2799
  %2801 = vrot.lane.b32.xlu0 %v2757, 96
  %v2802 = vpop.permute.xlu0 %2801
  %2803 = vrot.lane.b32.xlu0 %v2758, 96
  %v2804 = vpop.permute.xlu0 %2803
  %2805 = vrot.lane.b32.xlu0 %v2759, 96
  %v2806 = vpop.permute.xlu0 %2805
  %2807 = vrot.lane.b32.xlu0 %v2760, 96
  %v2808 = vpop.permute.xlu0 %2807
  %2809 = vrot.lane.b32.xlu0 %v2761, 96
  %v2810 = vpop.permute.xlu0 %2809
  %2811 = vrot.lane.b32.xlu0 %v2762, 96
  %v2812 = vpop.permute.xlu0 %2811
  %2813 = vrot.lane.b32.xlu0 %v2763, 96
  %v2814 = vpop.permute.xlu0 %2813
  %2815 = vrot.lane.b32.xlu0 %v2764, 96
  %v2816 = vpop.permute.xlu0 %2815
  %2817 = vrot.lane.b32.xlu0 %v2765, 96
  %v2818 = vpop.permute.xlu0 %2817
  %2819 = vrot.lane.b32.xlu0 %v2766, 96
  %v2820 = vpop.permute.xlu0 %2819
  %2821 = vrot.lane.b32.xlu0 %v2767, 96
  %v2822 = vpop.permute.xlu0 %2821
  %2823 = vrot.lane.b32.xlu0 %v2768, 96
  %v2824 = vpop.permute.xlu0 %2823
  %2825 = vrot.lane.b32.xlu0 %v2769, 96
  %v2826 = vpop.permute.xlu0 %2825
  %2827 = vrot.lane.b32.xlu0 %v2770, 96
  %v2828 = vpop.permute.xlu0 %2827
  %2829 = vrot.lane.b32.xlu0 %v2771, 96
  %v2830 = vpop.permute.xlu0 %2829
  %2831 = vrot.lane.b32.xlu0 %v2772, 96
  %v2832 = vpop.permute.xlu0 %2831
  %v2833 = vsel %vm1522, %v2794, %v2796
  %v2834 = vsel %vm1522, %v2796, %v2798
  %v2835 = vsel %vm1522, %v2798, %v2800
  %v2836 = vsel %vm1522, %v2800, %v2802
  %v2837 = vsel %vm1522, %v2804, %v2806
  %v2838 = vsel %vm1522, %v2806, %v2808
  %v2839 = vsel %vm1522, %v2808, %v2810
  %v2840 = vsel %vm1522, %v2810, %v2812
  %v2841 = vsel %vm1522, %v2814, %v2816
  %v2842 = vsel %vm1522, %v2816, %v2818
  %v2843 = vsel %vm1522, %v2818, %v2820
  %v2844 = vsel %vm1522, %v2820, %v2822
  %v2845 = vsel %vm1522, %v2824, %v2826
  %v2846 = vsel %vm1522, %v2826, %v2828
  %v2847 = vsel %vm1522, %v2828, %v2830
  %v2848 = vsel %vm1522, %v2830, %v2832
  %v2865 = vadd.f32 %v2692, %v2833
  %v2866 = vadd.f32 %v2693, %v2834
  %v2867 = vadd.f32 %v2694, %v2835
  %v2868 = vadd.f32 %v2695, %v2836
  %v2869 = vadd.f32 %v2696, %v2837
  %v2870 = vadd.f32 %v2697, %v2838
  %v2871 = vadd.f32 %v2698, %v2839
  %v2872 = vadd.f32 %v2699, %v2840
  %v2873 = vadd.f32 %v2700, %v2841
  %v2874 = vadd.f32 %v2701, %v2842
  %v2875 = vadd.f32 %v2702, %v2843
  %v2876 = vadd.f32 %v2703, %v2844
  %v2877 = vadd.f32 %v2704, %v2845
  %v2878 = vadd.f32 %v2705, %v2846
  %v2879 = vadd.f32 %v2706, %v2847
  %v2880 = vadd.f32 %v2707, %v2848
  %s2881 = scalar_lea.vmem %s2, 36
  %v2882 = vld [vmem:[%s2881] ss:$8 sm:$0xf]
  %v2884 = vperm.slane %v2882, 0
  %v2885 = vperm.slane %v2882, 1
  %v2886 = vperm.slane %v2882, 2
  %v2887 = vperm.slane %v2882, 3
  %2888 = vrot.lane.b32.xlu0 %v2884, 64
  %v2889 = vpop.permute.xlu0 %2888
  %2890 = vrot.lane.b32.xlu0 %v2885, 64
  %v2891 = vpop.permute.xlu0 %2890
  %2892 = vrot.lane.b32.xlu0 %v2886, 64
  %v2893 = vpop.permute.xlu0 %2892
  %2894 = vrot.lane.b32.xlu0 %v2887, 64
  %v2895 = vpop.permute.xlu0 %2894
  %v2896 = vsel %vm1258, %v2889, %v2891
  %v2897 = vsel %vm1258, %v2891, %v2893
  %v2898 = vsel %vm1258, %v2893, %v2895
  %v2904 = vmul.f32 %v2611, %v2889
  %v2905 = vmul.f32 %v2614, %v2896
  %v2906 = vmul.f32 %v2617, %v2897
  %v2907 = vmul.f32 %v2620, %v2898
  %v2908 = vmul.f32 %v2718, %v2895
  %v2909 = vmul.f32 %v2622, %v2889
  %v2910 = vmul.f32 %v2624, %v2896
  %v2911 = vmul.f32 %v2626, %v2897
  %v2912 = vmul.f32 %v2628, %v2898
  %v2913 = vmul.f32 %v2720, %v2895
  %v2914 = vmul.f32 %v2631, %v2889
  %v2915 = vmul.f32 %v2634, %v2896
  %v2916 = vmul.f32 %v2637, %v2897
  %v2917 = vmul.f32 %v2640, %v2898
  %v2918 = vmul.f32 %v2723, %v2895
  %v2919 = vmul.f32 %v2642, %v2889
  %v2920 = vmul.f32 %v2644, %v2896
  %v2921 = vmul.f32 %v2646, %v2897
  %v2922 = vmul.f32 %v2648, %v2898
  %v2923 = vmul.f32 %v2725, %v2895
  %2944 = vrot.lane.b32.xlu0 %v2904, 64
  %v2945 = vpop.permute.xlu0 %2944
  %2946 = vrot.lane.b32.xlu0 %v2905, 64
  %v2947 = vpop.permute.xlu0 %2946
  %2948 = vrot.lane.b32.xlu0 %v2906, 64
  %v2949 = vpop.permute.xlu0 %2948
  %2950 = vrot.lane.b32.xlu0 %v2907, 64
  %v2951 = vpop.permute.xlu0 %2950
  %2952 = vrot.lane.b32.xlu0 %v2908, 64
  %v2953 = vpop.permute.xlu0 %2952
  %2954 = vrot.lane.b32.xlu0 %v2909, 64
  %v2955 = vpop.permute.xlu0 %2954
  %2956 = vrot.lane.b32.xlu0 %v2910, 64
  %v2957 = vpop.permute.xlu0 %2956
  %2958 = vrot.lane.b32.xlu0 %v2911, 64
  %v2959 = vpop.permute.xlu0 %2958
  %2960 = vrot.lane.b32.xlu0 %v2912, 64
  %v2961 = vpop.permute.xlu0 %2960
  %2962 = vrot.lane.b32.xlu0 %v2913, 64
  %v2963 = vpop.permute.xlu0 %2962
  %2964 = vrot.lane.b32.xlu0 %v2914, 64
  %v2965 = vpop.permute.xlu0 %2964
  %2966 = vrot.lane.b32.xlu0 %v2915, 64
  %v2967 = vpop.permute.xlu0 %2966
  %2968 = vrot.lane.b32.xlu0 %v2916, 64
  %v2969 = vpop.permute.xlu0 %2968
  %2970 = vrot.lane.b32.xlu0 %v2917, 64
  %v2971 = vpop.permute.xlu0 %2970
  %2972 = vrot.lane.b32.xlu0 %v2918, 64
  %v2973 = vpop.permute.xlu0 %2972
  %2974 = vrot.lane.b32.xlu0 %v2919, 64
  %v2975 = vpop.permute.xlu0 %2974
  %2976 = vrot.lane.b32.xlu0 %v2920, 64
  %v2977 = vpop.permute.xlu0 %2976
  %2978 = vrot.lane.b32.xlu0 %v2921, 64
  %v2979 = vpop.permute.xlu0 %2978
  %2980 = vrot.lane.b32.xlu0 %v2922, 64
  %v2981 = vpop.permute.xlu0 %2980
  %2982 = vrot.lane.b32.xlu0 %v2923, 64
  %v2983 = vpop.permute.xlu0 %2982
  %v2984 = vsel %vm1258, %v2945, %v2947
  %v2985 = vsel %vm1258, %v2947, %v2949
  %v2986 = vsel %vm1258, %v2949, %v2951
  %v2987 = vsel %vm1258, %v2951, %v2953
  %v2988 = vsel %vm1258, %v2955, %v2957
  %v2989 = vsel %vm1258, %v2957, %v2959
  %v2990 = vsel %vm1258, %v2959, %v2961
  %v2991 = vsel %vm1258, %v2961, %v2963
  %v2992 = vsel %vm1258, %v2965, %v2967
  %v2993 = vsel %vm1258, %v2967, %v2969
  %v2994 = vsel %vm1258, %v2969, %v2971
  %v2995 = vsel %vm1258, %v2971, %v2973
  %v2996 = vsel %vm1258, %v2975, %v2977
  %v2997 = vsel %vm1258, %v2977, %v2979
  %v2998 = vsel %vm1258, %v2979, %v2981
  %v2999 = vsel %vm1258, %v2981, %v2983
  %v3016 = vadd.f32 %v2865, %v2984
  %v3017 = vadd.f32 %v2866, %v2985
  %v3018 = vadd.f32 %v2867, %v2986
  %v3019 = vadd.f32 %v2868, %v2987
  %v3020 = vadd.f32 %v2869, %v2988
  %v3021 = vadd.f32 %v2870, %v2989
  %v3022 = vadd.f32 %v2871, %v2990
  %v3023 = vadd.f32 %v2872, %v2991
  %v3024 = vadd.f32 %v2873, %v2992
  %v3025 = vadd.f32 %v2874, %v2993
  %v3026 = vadd.f32 %v2875, %v2994
  %v3027 = vadd.f32 %v2876, %v2995
  %v3028 = vadd.f32 %v2877, %v2996
  %v3029 = vadd.f32 %v2878, %v2997
  %v3030 = vadd.f32 %v2879, %v2998
  %v3031 = vadd.f32 %v2880, %v2999
  %s3032 = scalar_lea.vmem %s2, 37
  %v3033 = vld [vmem:[%s3032] ss:$8 sm:$0xf]
  %v3035 = vperm.slane %v3033, 0
  %v3036 = vperm.slane %v3033, 1
  %v3037 = vperm.slane %v3033, 2
  %v3038 = vperm.slane %v3033, 3
  %3039 = vrot.lane.b32.xlu0 %v3035, 96
  %v3040 = vpop.permute.xlu0 %3039
  %3041 = vrot.lane.b32.xlu0 %v3036, 96
  %v3042 = vpop.permute.xlu0 %3041
  %3043 = vrot.lane.b32.xlu0 %v3037, 96
  %v3044 = vpop.permute.xlu0 %3043
  %3045 = vrot.lane.b32.xlu0 %v3038, 96
  %v3046 = vpop.permute.xlu0 %3045
  %v3047 = vsel %vm1522, %v3040, %v3042
  %v3048 = vsel %vm1522, %v3042, %v3044
  %v3049 = vsel %vm1522, %v3044, %v3046
  %v3055 = vmul.f32 %v2611, %v3040
  %v3056 = vmul.f32 %v2614, %v3047
  %v3057 = vmul.f32 %v2617, %v3048
  %v3058 = vmul.f32 %v2620, %v3049
  %v3059 = vmul.f32 %v2718, %v3046
  %v3060 = vmul.f32 %v2622, %v3040
  %v3061 = vmul.f32 %v2624, %v3047
  %v3062 = vmul.f32 %v2626, %v3048
  %v3063 = vmul.f32 %v2628, %v3049
  %v3064 = vmul.f32 %v2720, %v3046
  %v3065 = vmul.f32 %v2631, %v3040
  %v3066 = vmul.f32 %v2634, %v3047
  %v3067 = vmul.f32 %v2637, %v3048
  %v3068 = vmul.f32 %v2640, %v3049
  %v3069 = vmul.f32 %v2723, %v3046
  %v3070 = vmul.f32 %v2642, %v3040
  %v3071 = vmul.f32 %v2644, %v3047
  %v3072 = vmul.f32 %v2646, %v3048
  %v3073 = vmul.f32 %v2648, %v3049
  %v3074 = vmul.f32 %v2725, %v3046
  %3095 = vrot.lane.b32.xlu0 %v3055, 32
  %v3096 = vpop.permute.xlu0 %3095
  %3097 = vrot.lane.b32.xlu0 %v3056, 32
  %v3098 = vpop.permute.xlu0 %3097
  %3099 = vrot.lane.b32.xlu0 %v3057, 32
  %v3100 = vpop.permute.xlu0 %3099
  %3101 = vrot.lane.b32.xlu0 %v3058, 32
  %v3102 = vpop.permute.xlu0 %3101
  %3103 = vrot.lane.b32.xlu0 %v3059, 32
  %v3104 = vpop.permute.xlu0 %3103
  %3105 = vrot.lane.b32.xlu0 %v3060, 32
  %v3106 = vpop.permute.xlu0 %3105
  %3107 = vrot.lane.b32.xlu0 %v3061, 32
  %v3108 = vpop.permute.xlu0 %3107
  %3109 = vrot.lane.b32.xlu0 %v3062, 32
  %v3110 = vpop.permute.xlu0 %3109
  %3111 = vrot.lane.b32.xlu0 %v3063, 32
  %v3112 = vpop.permute.xlu0 %3111
  %3113 = vrot.lane.b32.xlu0 %v3064, 32
  %v3114 = vpop.permute.xlu0 %3113
  %3115 = vrot.lane.b32.xlu0 %v3065, 32
  %v3116 = vpop.permute.xlu0 %3115
  %3117 = vrot.lane.b32.xlu0 %v3066, 32
  %v3118 = vpop.permute.xlu0 %3117
  %3119 = vrot.lane.b32.xlu0 %v3067, 32
  %v3120 = vpop.permute.xlu0 %3119
  %3121 = vrot.lane.b32.xlu0 %v3068, 32
  %v3122 = vpop.permute.xlu0 %3121
  %3123 = vrot.lane.b32.xlu0 %v3069, 32
  %v3124 = vpop.permute.xlu0 %3123
  %3125 = vrot.lane.b32.xlu0 %v3070, 32
  %v3126 = vpop.permute.xlu0 %3125
  %3127 = vrot.lane.b32.xlu0 %v3071, 32
  %v3128 = vpop.permute.xlu0 %3127
  %3129 = vrot.lane.b32.xlu0 %v3072, 32
  %v3130 = vpop.permute.xlu0 %3129
  %3131 = vrot.lane.b32.xlu0 %v3073, 32
  %v3132 = vpop.permute.xlu0 %3131
  %3133 = vrot.lane.b32.xlu0 %v3074, 32
  %v3134 = vpop.permute.xlu0 %3133
  %v3135 = vsel %vm1433, %v3096, %v3098
  %v3136 = vsel %vm1433, %v3098, %v3100
  %v3137 = vsel %vm1433, %v3100, %v3102
  %v3138 = vsel %vm1433, %v3102, %v3104
  %v3139 = vsel %vm1433, %v3106, %v3108
  %v3140 = vsel %vm1433, %v3108, %v3110
  %v3141 = vsel %vm1433, %v3110, %v3112
  %v3142 = vsel %vm1433, %v3112, %v3114
  %v3143 = vsel %vm1433, %v3116, %v3118
  %v3144 = vsel %vm1433, %v3118, %v3120
  %v3145 = vsel %vm1433, %v3120, %v3122
  %v3146 = vsel %vm1433, %v3122, %v3124
  %v3147 = vsel %vm1433, %v3126, %v3128
  %v3148 = vsel %vm1433, %v3128, %v3130
  %v3149 = vsel %vm1433, %v3130, %v3132
  %v3150 = vsel %vm1433, %v3132, %v3134
  %v3167 = vadd.f32 %v3016, %v3135
  %v3168 = vadd.f32 %v3017, %v3136
  %v3169 = vadd.f32 %v3018, %v3137
  %v3170 = vadd.f32 %v3019, %v3138
  %v3171 = vadd.f32 %v3020, %v3139
  %v3172 = vadd.f32 %v3021, %v3140
  %v3173 = vadd.f32 %v3022, %v3141
  %v3174 = vadd.f32 %v3023, %v3142
  %v3175 = vadd.f32 %v3024, %v3143
  %v3176 = vadd.f32 %v3025, %v3144
  %v3177 = vadd.f32 %v3026, %v3145
  %v3178 = vadd.f32 %v3027, %v3146
  %v3179 = vadd.f32 %v3028, %v3147
  %v3180 = vadd.f32 %v3029, %v3148
  %v3181 = vadd.f32 %v3030, %v3149
  %v3182 = vadd.f32 %v3031, %v3150
  %s3183 = scalar_lea.vmem %s2, 38
  %v3184 = vld [vmem:[%s3183] ss:$8 sm:$0xf]
  %v3186 = vperm.slane %v3184, 0
  %v3187 = vperm.slane %v3184, 1
  %v3188 = vperm.slane %v3184, 2
  %v3189 = vperm.slane %v3184, 3
  %v3194 = vmul.f32 %v2614, %v3186
  %v3195 = vmul.f32 %v2617, %v3187
  %v3196 = vmul.f32 %v2620, %v3188
  %v3197 = vmul.f32 %v2718, %v3189
  %v3198 = vmul.f32 %v2624, %v3186
  %v3199 = vmul.f32 %v2626, %v3187
  %v3200 = vmul.f32 %v2628, %v3188
  %v3201 = vmul.f32 %v2720, %v3189
  %v3202 = vmul.f32 %v2634, %v3186
  %v3203 = vmul.f32 %v2637, %v3187
  %v3204 = vmul.f32 %v2640, %v3188
  %v3205 = vmul.f32 %v2723, %v3189
  %v3206 = vmul.f32 %v2644, %v3186
  %v3207 = vmul.f32 %v2646, %v3187
  %v3208 = vmul.f32 %v2648, %v3188
  %v3209 = vmul.f32 %v2725, %v3189
  %v3210 = vadd.f32 %v3167, %v3194
  %v3211 = vadd.f32 %v3168, %v3195
  %v3212 = vadd.f32 %v3169, %v3196
  %v3213 = vadd.f32 %v3170, %v3197
  %v3214 = vadd.f32 %v3171, %v3198
  %v3215 = vadd.f32 %v3172, %v3199
  %v3216 = vadd.f32 %v3173, %v3200
  %v3217 = vadd.f32 %v3174, %v3201
  %v3218 = vadd.f32 %v3175, %v3202
  %v3219 = vadd.f32 %v3176, %v3203
  %v3220 = vadd.f32 %v3177, %v3204
  %v3221 = vadd.f32 %v3178, %v3205
  %v3222 = vadd.f32 %v3179, %v3206
  %v3223 = vadd.f32 %v3180, %v3207
  %v3224 = vadd.f32 %v3181, %v3208
  %v3225 = vadd.f32 %v3182, %v3209
  %v3226 = vld [vmem:[#allocation2] sm:$0xf8]
  %v3227 = vld [vmem:[#allocation2 + $0x8] sm:$0xf8]
  %v3228 = vld [vmem:[#allocation2 + $0x10] sm:$0xf8]
  %v3229 = vld [vmem:[#allocation2 + $0x18] sm:$0xf8]
  %v3230 = vld [vmem:[#allocation2 + $0x50] sm:$0x7]
  %v3231 = vld [vmem:[#allocation2 + $0x58] sm:$0x7]
  %v3232 = vld [vmem:[#allocation2 + $0x60] sm:$0x7]
  %v3233 = vld [vmem:[#allocation2 + $0x68] sm:$0x7]
  %v3234 = vld [vmem:[#allocation2 + $0x78] sm:$0xf8]
  %v3235 = vld [vmem:[#allocation2 + $0x80] sm:$0xf8]
  %v3236 = vld [vmem:[#allocation2 + $0x88] sm:$0xf8]
  %v3237 = vld [vmem:[#allocation2 + $0x90] sm:$0xf8]
  %v3238 = vld [vmem:[#allocation2 + $0xc8] sm:$0x7]
  %v3239 = vld [vmem:[#allocation2 + $0xd0] sm:$0x7]
  %v3240 = vld [vmem:[#allocation2 + $0xd8] sm:$0x7]
  %v3241 = vld [vmem:[#allocation2 + $0xe0] sm:$0x7]
  %vm3258 = vcmask 1044480
  %v3259 = vrot.slane %v3226, 3
  %v3260 = vrot.slane %v1360, 3
  %v3261 = vsel %vm3258, %v3259, %v3260
  %v3262 = vrot.slane %v3227, 3
  %v3263 = vrot.slane %v1361, 3
  %v3264 = vsel %vm3258, %v3262, %v3263
  %v3265 = vrot.slane %v3228, 3
  %v3266 = vrot.slane %v1362, 3
  %v3267 = vsel %vm3258, %v3265, %v3266
  %v3268 = vrot.slane %v3229, 3
  %v3269 = vrot.slane %v1363, 3
  %v3270 = vsel %vm3258, %v3268, %v3269
  %v3271 = vrot.slane %v3230, 3
  %v3272 = vsel %vm3258, %v3260, %v3271
  %v3273 = vrot.slane %v3231, 3
  %v3274 = vsel %vm3258, %v3263, %v3273
  %v3275 = vrot.slane %v3232, 3
  %v3276 = vsel %vm3258, %v3266, %v3275
  %v3277 = vrot.slane %v3233, 3
  %v3278 = vsel %vm3258, %v3269, %v3277
  %v3279 = vrot.slane %v3234, 3
  %v3280 = vrot.slane %v1368, 3
  %v3281 = vsel %vm3258, %v3279, %v3280
  %v3282 = vrot.slane %v3235, 3
  %v3283 = vrot.slane %v1369, 3
  %v3284 = vsel %vm3258, %v3282, %v3283
  %v3285 = vrot.slane %v3236, 3
  %v3286 = vrot.slane %v1370, 3
  %v3287 = vsel %vm3258, %v3285, %v3286
  %v3288 = vrot.slane %v3237, 3
  %v3289 = vrot.slane %v1371, 3
  %v3290 = vsel %vm3258, %v3288, %v3289
  %v3291 = vrot.slane %v3238, 3
  %v3292 = vsel %vm3258, %v3280, %v3291
  %v3293 = vrot.slane %v3239, 3
  %v3294 = vsel %vm3258, %v3283, %v3293
  %v3295 = vrot.slane %v3240, 3
  %v3296 = vsel %vm3258, %v3286, %v3295
  %v3297 = vrot.slane %v3241, 3
  %v3298 = vsel %vm3258, %v3289, %v3297
  %s3315 = scalar_lea.vmem %s2, 39
  %v3316 = vld [vmem:[%s3315] ss:$8 sm:$0xf]
  %v3318 = vperm.slane %v3316, 0
  %v3319 = vperm.slane %v3316, 1
  %v3320 = vperm.slane %v3316, 2
  %v3321 = vperm.slane %v3316, 3
  %v3326 = vmul.f32 %v3261, %v3318
  %v3327 = vmul.f32 %v3264, %v3319
  %v3328 = vmul.f32 %v3267, %v3320
  %v3329 = vmul.f32 %v3270, %v3321
  %v3330 = vmul.f32 %v3272, %v3318
  %v3331 = vmul.f32 %v3274, %v3319
  %v3332 = vmul.f32 %v3276, %v3320
  %v3333 = vmul.f32 %v3278, %v3321
  %v3334 = vmul.f32 %v3281, %v3318
  %v3335 = vmul.f32 %v3284, %v3319
  %v3336 = vmul.f32 %v3287, %v3320
  %v3337 = vmul.f32 %v3290, %v3321
  %v3338 = vmul.f32 %v3292, %v3318
  %v3339 = vmul.f32 %v3294, %v3319
  %v3340 = vmul.f32 %v3296, %v3320
  %v3341 = vmul.f32 %v3298, %v3321
  %v3342 = vadd.f32 %v3210, %v3326
  %v3343 = vadd.f32 %v3211, %v3327
  %v3344 = vadd.f32 %v3212, %v3328
  %v3345 = vadd.f32 %v3213, %v3329
  %v3346 = vadd.f32 %v3214, %v3330
  %v3347 = vadd.f32 %v3215, %v3331
  %v3348 = vadd.f32 %v3216, %v3332
  %v3349 = vadd.f32 %v3217, %v3333
  %v3350 = vadd.f32 %v3218, %v3334
  %v3351 = vadd.f32 %v3219, %v3335
  %v3352 = vadd.f32 %v3220, %v3336
  %v3353 = vadd.f32 %v3221, %v3337
  %v3354 = vadd.f32 %v3222, %v3338
  %v3355 = vadd.f32 %v3223, %v3339
  %v3356 = vadd.f32 %v3224, %v3340
  %v3357 = vadd.f32 %v3225, %v3341
  %v3358 = vld [vmem:[#allocation2 + $0x20] sm:$0xf8]
  %v3359 = vld [vmem:[#allocation2 + $0x70] sm:$0x7]
  %v3360 = vld [vmem:[#allocation2 + $0x98] sm:$0xf8]
  %v3361 = vld [vmem:[#allocation2 + $0xe8] sm:$0x7]
  %v3366 = vrot.slane %v3358, 3
  %v3367 = vrot.slane %v1415, 3
  %v3368 = vsel %vm3258, %v3366, %v3367
  %v3369 = vrot.slane %v3359, 3
  %v3370 = vsel %vm3258, %v3367, %v3369
  %v3371 = vrot.slane %v3360, 3
  %v3372 = vrot.slane %v1417, 3
  %v3373 = vsel %vm3258, %v3371, %v3372
  %v3374 = vrot.slane %v3361, 3
  %v3375 = vsel %vm3258, %v3372, %v3374
  %s3380 = scalar_lea.vmem %s2, 64
  %v3381 = vld [vmem:[%s3380] ss:$8 sm:$0xf]
  %v3383 = vperm.slane %v3381, 0
  %v3384 = vperm.slane %v3381, 1
  %v3385 = vperm.slane %v3381, 2
  %v3386 = vperm.slane %v3381, 3
  %3387 = vrot.lane.b32.xlu0 %v3383, 32
  %v3388 = vpop.permute.xlu0 %3387
  %3389 = vrot.lane.b32.xlu0 %v3384, 32
  %v3390 = vpop.permute.xlu0 %3389
  %3391 = vrot.lane.b32.xlu0 %v3385, 32
  %v3392 = vpop.permute.xlu0 %3391
  %3393 = vrot.lane.b32.xlu0 %v3386, 32
  %v3394 = vpop.permute.xlu0 %3393
  %v3395 = vsel %vm1433, %v3388, %v3390
  %v3396 = vsel %vm1433, %v3390, %v3392
  %v3397 = vsel %vm1433, %v3392, %v3394
  %v3403 = vmul.f32 %v3261, %v3388
  %v3404 = vmul.f32 %v3264, %v3395
  %v3405 = vmul.f32 %v3267, %v3396
  %v3406 = vmul.f32 %v3270, %v3397
  %v3407 = vmul.f32 %v3368, %v3394
  %v3408 = vmul.f32 %v3272, %v3388
  %v3409 = vmul.f32 %v3274, %v3395
  %v3410 = vmul.f32 %v3276, %v3396
  %v3411 = vmul.f32 %v3278, %v3397
  %v3412 = vmul.f32 %v3370, %v3394
  %v3413 = vmul.f32 %v3281, %v3388
  %v3414 = vmul.f32 %v3284, %v3395
  %v3415 = vmul.f32 %v3287, %v3396
  %v3416 = vmul.f32 %v3290, %v3397
  %v3417 = vmul.f32 %v3373, %v3394
  %v3418 = vmul.f32 %v3292, %v3388
  %v3419 = vmul.f32 %v3294, %v3395
  %v3420 = vmul.f32 %v3296, %v3396
  %v3421 = vmul.f32 %v3298, %v3397
  %v3422 = vmul.f32 %v3375, %v3394
  %3443 = vrot.lane.b32.xlu0 %v3403, 96
  %v3444 = vpop.permute.xlu0 %3443
  %3445 = vrot.lane.b32.xlu0 %v3404, 96
  %v3446 = vpop.permute.xlu0 %3445
  %3447 = vrot.lane.b32.xlu0 %v3405, 96
  %v3448 = vpop.permute.xlu0 %3447
  %3449 = vrot.lane.b32.xlu0 %v3406, 96
  %v3450 = vpop.permute.xlu0 %3449
  %3451 = vrot.lane.b32.xlu0 %v3407, 96
  %v3452 = vpop.permute.xlu0 %3451
  %3453 = vrot.lane.b32.xlu0 %v3408, 96
  %v3454 = vpop.permute.xlu0 %3453
  %3455 = vrot.lane.b32.xlu0 %v3409, 96
  %v3456 = vpop.permute.xlu0 %3455
  %3457 = vrot.lane.b32.xlu0 %v3410, 96
  %v3458 = vpop.permute.xlu0 %3457
  %3459 = vrot.lane.b32.xlu0 %v3411, 96
  %v3460 = vpop.permute.xlu0 %3459
  %3461 = vrot.lane.b32.xlu0 %v3412, 96
  %v3462 = vpop.permute.xlu0 %3461
  %3463 = vrot.lane.b32.xlu0 %v3413, 96
  %v3464 = vpop.permute.xlu0 %3463
  %3465 = vrot.lane.b32.xlu0 %v3414, 96
  %v3466 = vpop.permute.xlu0 %3465
  %3467 = vrot.lane.b32.xlu0 %v3415, 96
  %v3468 = vpop.permute.xlu0 %3467
  %3469 = vrot.lane.b32.xlu0 %v3416, 96
  %v3470 = vpop.permute.xlu0 %3469
  %3471 = vrot.lane.b32.xlu0 %v3417, 96
  %v3472 = vpop.permute.xlu0 %3471
  %3473 = vrot.lane.b32.xlu0 %v3418, 96
  %v3474 = vpop.permute.xlu0 %3473
  %3475 = vrot.lane.b32.xlu0 %v3419, 96
  %v3476 = vpop.permute.xlu0 %3475
  %3477 = vrot.lane.b32.xlu0 %v3420, 96
  %v3478 = vpop.permute.xlu0 %3477
  %3479 = vrot.lane.b32.xlu0 %v3421, 96
  %v3480 = vpop.permute.xlu0 %3479
  %3481 = vrot.lane.b32.xlu0 %v3422, 96
  %v3482 = vpop.permute.xlu0 %3481
  %v3483 = vsel %vm1522, %v3444, %v3446
  %v3484 = vsel %vm1522, %v3446, %v3448
  %v3485 = vsel %vm1522, %v3448, %v3450
  %v3486 = vsel %vm1522, %v3450, %v3452
  %v3487 = vsel %vm1522, %v3454, %v3456
  %v3488 = vsel %vm1522, %v3456, %v3458
  %v3489 = vsel %vm1522, %v3458, %v3460
  %v3490 = vsel %vm1522, %v3460, %v3462
  %v3491 = vsel %vm1522, %v3464, %v3466
  %v3492 = vsel %vm1522, %v3466, %v3468
  %v3493 = vsel %vm1522, %v3468, %v3470
  %v3494 = vsel %vm1522, %v3470, %v3472
  %v3495 = vsel %vm1522, %v3474, %v3476
  %v3496 = vsel %vm1522, %v3476, %v3478
  %v3497 = vsel %vm1522, %v3478, %v3480
  %v3498 = vsel %vm1522, %v3480, %v3482
  %v3515 = vadd.f32 %v3342, %v3483
  %v3516 = vadd.f32 %v3343, %v3484
  %v3517 = vadd.f32 %v3344, %v3485
  %v3518 = vadd.f32 %v3345, %v3486
  %v3519 = vadd.f32 %v3346, %v3487
  %v3520 = vadd.f32 %v3347, %v3488
  %v3521 = vadd.f32 %v3348, %v3489
  %v3522 = vadd.f32 %v3349, %v3490
  %v3523 = vadd.f32 %v3350, %v3491
  %v3524 = vadd.f32 %v3351, %v3492
  %v3525 = vadd.f32 %v3352, %v3493
  %v3526 = vadd.f32 %v3353, %v3494
  %v3527 = vadd.f32 %v3354, %v3495
  %v3528 = vadd.f32 %v3355, %v3496
  %v3529 = vadd.f32 %v3356, %v3497
  %v3530 = vadd.f32 %v3357, %v3498
  %s3531 = scalar_lea.vmem %s2, 65
  %v3532 = vld [vmem:[%s3531] ss:$8 sm:$0xf]
  %v3534 = vperm.slane %v3532, 0
  %v3535 = vperm.slane %v3532, 1
  %v3536 = vperm.slane %v3532, 2
  %v3537 = vperm.slane %v3532, 3
  %3538 = vrot.lane.b32.xlu0 %v3534, 64
  %v3539 = vpop.permute.xlu0 %3538
  %3540 = vrot.lane.b32.xlu0 %v3535, 64
  %v3541 = vpop.permute.xlu0 %3540
  %3542 = vrot.lane.b32.xlu0 %v3536, 64
  %v3543 = vpop.permute.xlu0 %3542
  %3544 = vrot.lane.b32.xlu0 %v3537, 64
  %v3545 = vpop.permute.xlu0 %3544
  %v3546 = vsel %vm1258, %v3539, %v3541
  %v3547 = vsel %vm1258, %v3541, %v3543
  %v3548 = vsel %vm1258, %v3543, %v3545
  %v3554 = vmul.f32 %v3261, %v3539
  %v3555 = vmul.f32 %v3264, %v3546
  %v3556 = vmul.f32 %v3267, %v3547
  %v3557 = vmul.f32 %v3270, %v3548
  %v3558 = vmul.f32 %v3368, %v3545
  %v3559 = vmul.f32 %v3272, %v3539
  %v3560 = vmul.f32 %v3274, %v3546
  %v3561 = vmul.f32 %v3276, %v3547
  %v3562 = vmul.f32 %v3278, %v3548
  %v3563 = vmul.f32 %v3370, %v3545
  %v3564 = vmul.f32 %v3281, %v3539
  %v3565 = vmul.f32 %v3284, %v3546
  %v3566 = vmul.f32 %v3287, %v3547
  %v3567 = vmul.f32 %v3290, %v3548
  %v3568 = vmul.f32 %v3373, %v3545
  %v3569 = vmul.f32 %v3292, %v3539
  %v3570 = vmul.f32 %v3294, %v3546
  %v3571 = vmul.f32 %v3296, %v3547
  %v3572 = vmul.f32 %v3298, %v3548
  %v3573 = vmul.f32 %v3375, %v3545
  %3594 = vrot.lane.b32.xlu0 %v3554, 64
  %v3595 = vpop.permute.xlu0 %3594
  %3596 = vrot.lane.b32.xlu0 %v3555, 64
  %v3597 = vpop.permute.xlu0 %3596
  %3598 = vrot.lane.b32.xlu0 %v3556, 64
  %v3599 = vpop.permute.xlu0 %3598
  %3600 = vrot.lane.b32.xlu0 %v3557, 64
  %v3601 = vpop.permute.xlu0 %3600
  %3602 = vrot.lane.b32.xlu0 %v3558, 64
  %v3603 = vpop.permute.xlu0 %3602
  %3604 = vrot.lane.b32.xlu0 %v3559, 64
  %v3605 = vpop.permute.xlu0 %3604
  %3606 = vrot.lane.b32.xlu0 %v3560, 64
  %v3607 = vpop.permute.xlu0 %3606
  %3608 = vrot.lane.b32.xlu0 %v3561, 64
  %v3609 = vpop.permute.xlu0 %3608
  %3610 = vrot.lane.b32.xlu0 %v3562, 64
  %v3611 = vpop.permute.xlu0 %3610
  %3612 = vrot.lane.b32.xlu0 %v3563, 64
  %v3613 = vpop.permute.xlu0 %3612
  %3614 = vrot.lane.b32.xlu0 %v3564, 64
  %v3615 = vpop.permute.xlu0 %3614
  %3616 = vrot.lane.b32.xlu0 %v3565, 64
  %v3617 = vpop.permute.xlu0 %3616
  %3618 = vrot.lane.b32.xlu0 %v3566, 64
  %v3619 = vpop.permute.xlu0 %3618
  %3620 = vrot.lane.b32.xlu0 %v3567, 64
  %v3621 = vpop.permute.xlu0 %3620
  %3622 = vrot.lane.b32.xlu0 %v3568, 64
  %v3623 = vpop.permute.xlu0 %3622
  %3624 = vrot.lane.b32.xlu0 %v3569, 64
  %v3625 = vpop.permute.xlu0 %3624
  %3626 = vrot.lane.b32.xlu0 %v3570, 64
  %v3627 = vpop.permute.xlu0 %3626
  %3628 = vrot.lane.b32.xlu0 %v3571, 64
  %v3629 = vpop.permute.xlu0 %3628
  %3630 = vrot.lane.b32.xlu0 %v3572, 64
  %v3631 = vpop.permute.xlu0 %3630
  %3632 = vrot.lane.b32.xlu0 %v3573, 64
  %v3633 = vpop.permute.xlu0 %3632
  %v3634 = vsel %vm1258, %v3595, %v3597
  %v3635 = vsel %vm1258, %v3597, %v3599
  %v3636 = vsel %vm1258, %v3599, %v3601
  %v3637 = vsel %vm1258, %v3601, %v3603
  %v3638 = vsel %vm1258, %v3605, %v3607
  %v3639 = vsel %vm1258, %v3607, %v3609
  %v3640 = vsel %vm1258, %v3609, %v3611
  %v3641 = vsel %vm1258, %v3611, %v3613
  %v3642 = vsel %vm1258, %v3615, %v3617
  %v3643 = vsel %vm1258, %v3617, %v3619
  %v3644 = vsel %vm1258, %v3619, %v3621
  %v3645 = vsel %vm1258, %v3621, %v3623
  %v3646 = vsel %vm1258, %v3625, %v3627
  %v3647 = vsel %vm1258, %v3627, %v3629
  %v3648 = vsel %vm1258, %v3629, %v3631
  %v3649 = vsel %vm1258, %v3631, %v3633
  %v3666 = vadd.f32 %v3515, %v3634
  %v3667 = vadd.f32 %v3516, %v3635
  %v3668 = vadd.f32 %v3517, %v3636
  %v3669 = vadd.f32 %v3518, %v3637
  %v3670 = vadd.f32 %v3519, %v3638
  %v3671 = vadd.f32 %v3520, %v3639
  %v3672 = vadd.f32 %v3521, %v3640
  %v3673 = vadd.f32 %v3522, %v3641
  %v3674 = vadd.f32 %v3523, %v3642
  %v3675 = vadd.f32 %v3524, %v3643
  %v3676 = vadd.f32 %v3525, %v3644
  %v3677 = vadd.f32 %v3526, %v3645
  %v3678 = vadd.f32 %v3527, %v3646
  %v3679 = vadd.f32 %v3528, %v3647
  %v3680 = vadd.f32 %v3529, %v3648
  %v3681 = vadd.f32 %v3530, %v3649
  %s3682 = scalar_lea.vmem %s2, 66
  %v3683 = vld [vmem:[%s3682] ss:$8 sm:$0xf]
  %v3685 = vperm.slane %v3683, 0
  %v3686 = vperm.slane %v3683, 1
  %v3687 = vperm.slane %v3683, 2
  %v3688 = vperm.slane %v3683, 3
  %3689 = vrot.lane.b32.xlu0 %v3685, 96
  %v3690 = vpop.permute.xlu0 %3689
  %3691 = vrot.lane.b32.xlu0 %v3686, 96
  %v3692 = vpop.permute.xlu0 %3691
  %3693 = vrot.lane.b32.xlu0 %v3687, 96
  %v3694 = vpop.permute.xlu0 %3693
  %3695 = vrot.lane.b32.xlu0 %v3688, 96
  %v3696 = vpop.permute.xlu0 %3695
  %v3697 = vsel %vm1522, %v3690, %v3692
  %v3698 = vsel %vm1522, %v3692, %v3694
  %v3699 = vsel %vm1522, %v3694, %v3696
  %v3705 = vmul.f32 %v3261, %v3690
  %v3706 = vmul.f32 %v3264, %v3697
  %v3707 = vmul.f32 %v3267, %v3698
  %v3708 = vmul.f32 %v3270, %v3699
  %v3709 = vmul.f32 %v3368, %v3696
  %v3710 = vmul.f32 %v3272, %v3690
  %v3711 = vmul.f32 %v3274, %v3697
  %v3712 = vmul.f32 %v3276, %v3698
  %v3713 = vmul.f32 %v3278, %v3699
  %v3714 = vmul.f32 %v3370, %v3696
  %v3715 = vmul.f32 %v3281, %v3690
  %v3716 = vmul.f32 %v3284, %v3697
  %v3717 = vmul.f32 %v3287, %v3698
  %v3718 = vmul.f32 %v3290, %v3699
  %v3719 = vmul.f32 %v3373, %v3696
  %v3720 = vmul.f32 %v3292, %v3690
  %v3721 = vmul.f32 %v3294, %v3697
  %v3722 = vmul.f32 %v3296, %v3698
  %v3723 = vmul.f32 %v3298, %v3699
  %v3724 = vmul.f32 %v3375, %v3696
  %3745 = vrot.lane.b32.xlu0 %v3705, 32
  %v3746 = vpop.permute.xlu0 %3745
  %3747 = vrot.lane.b32.xlu0 %v3706, 32
  %v3748 = vpop.permute.xlu0 %3747
  %3749 = vrot.lane.b32.xlu0 %v3707, 32
  %v3750 = vpop.permute.xlu0 %3749
  %3751 = vrot.lane.b32.xlu0 %v3708, 32
  %v3752 = vpop.permute.xlu0 %3751
  %3753 = vrot.lane.b32.xlu0 %v3709, 32
  %v3754 = vpop.permute.xlu0 %3753
  %3755 = vrot.lane.b32.xlu0 %v3710, 32
  %v3756 = vpop.permute.xlu0 %3755
  %3757 = vrot.lane.b32.xlu0 %v3711, 32
  %v3758 = vpop.permute.xlu0 %3757
  %3759 = vrot.lane.b32.xlu0 %v3712, 32
  %v3760 = vpop.permute.xlu0 %3759
  %3761 = vrot.lane.b32.xlu0 %v3713, 32
  %v3762 = vpop.permute.xlu0 %3761
  %3763 = vrot.lane.b32.xlu0 %v3714, 32
  %v3764 = vpop.permute.xlu0 %3763
  %3765 = vrot.lane.b32.xlu0 %v3715, 32
  %v3766 = vpop.permute.xlu0 %3765
  %3767 = vrot.lane.b32.xlu0 %v3716, 32
  %v3768 = vpop.permute.xlu0 %3767
  %3769 = vrot.lane.b32.xlu0 %v3717, 32
  %v3770 = vpop.permute.xlu0 %3769
  %3771 = vrot.lane.b32.xlu0 %v3718, 32
  %v3772 = vpop.permute.xlu0 %3771
  %3773 = vrot.lane.b32.xlu0 %v3719, 32
  %v3774 = vpop.permute.xlu0 %3773
  %3775 = vrot.lane.b32.xlu0 %v3720, 32
  %v3776 = vpop.permute.xlu0 %3775
  %3777 = vrot.lane.b32.xlu0 %v3721, 32
  %v3778 = vpop.permute.xlu0 %3777
  %3779 = vrot.lane.b32.xlu0 %v3722, 32
  %v3780 = vpop.permute.xlu0 %3779
  %3781 = vrot.lane.b32.xlu0 %v3723, 32
  %v3782 = vpop.permute.xlu0 %3781
  %3783 = vrot.lane.b32.xlu0 %v3724, 32
  %v3784 = vpop.permute.xlu0 %3783
  %v3785 = vsel %vm1433, %v3746, %v3748
  %v3786 = vsel %vm1433, %v3748, %v3750
  %v3787 = vsel %vm1433, %v3750, %v3752
  %v3788 = vsel %vm1433, %v3752, %v3754
  %v3789 = vsel %vm1433, %v3756, %v3758
  %v3790 = vsel %vm1433, %v3758, %v3760
  %v3791 = vsel %vm1433, %v3760, %v3762
  %v3792 = vsel %vm1433, %v3762, %v3764
  %v3793 = vsel %vm1433, %v3766, %v3768
  %v3794 = vsel %vm1433, %v3768, %v3770
  %v3795 = vsel %vm1433, %v3770, %v3772
  %v3796 = vsel %vm1433, %v3772, %v3774
  %v3797 = vsel %vm1433, %v3776, %v3778
  %v3798 = vsel %vm1433, %v3778, %v3780
  %v3799 = vsel %vm1433, %v3780, %v3782
  %v3800 = vsel %vm1433, %v3782, %v3784
  %v3817 = vadd.f32 %v3666, %v3785
  %v3818 = vadd.f32 %v3667, %v3786
  %v3819 = vadd.f32 %v3668, %v3787
  %v3820 = vadd.f32 %v3669, %v3788
  %v3821 = vadd.f32 %v3670, %v3789
  %v3822 = vadd.f32 %v3671, %v3790
  %v3823 = vadd.f32 %v3672, %v3791
  %v3824 = vadd.f32 %v3673, %v3792
  %v3825 = vadd.f32 %v3674, %v3793
  %v3826 = vadd.f32 %v3675, %v3794
  %v3827 = vadd.f32 %v3676, %v3795
  %v3828 = vadd.f32 %v3677, %v3796
  %v3829 = vadd.f32 %v3678, %v3797
  %v3830 = vadd.f32 %v3679, %v3798
  %v3831 = vadd.f32 %v3680, %v3799
  %v3832 = vadd.f32 %v3681, %v3800
  %s3833 = scalar_lea.vmem %s2, 67
  %v3834 = vld [vmem:[%s3833] ss:$8 sm:$0xf]
  %v3836 = vperm.slane %v3834, 0
  %v3837 = vperm.slane %v3834, 1
  %v3838 = vperm.slane %v3834, 2
  %v3839 = vperm.slane %v3834, 3
  %v3844 = vmul.f32 %v3264, %v3836
  %v3845 = vmul.f32 %v3267, %v3837
  %v3846 = vmul.f32 %v3270, %v3838
  %v3847 = vmul.f32 %v3368, %v3839
  %v3848 = vmul.f32 %v3274, %v3836
  %v3849 = vmul.f32 %v3276, %v3837
  %v3850 = vmul.f32 %v3278, %v3838
  %v3851 = vmul.f32 %v3370, %v3839
  %v3852 = vmul.f32 %v3284, %v3836
  %v3853 = vmul.f32 %v3287, %v3837
  %v3854 = vmul.f32 %v3290, %v3838
  %v3855 = vmul.f32 %v3373, %v3839
  %v3856 = vmul.f32 %v3294, %v3836
  %v3857 = vmul.f32 %v3296, %v3837
  %v3858 = vmul.f32 %v3298, %v3838
  %v3859 = vmul.f32 %v3375, %v3839
  %v3860 = vadd.f32 %v3817, %v3844
  %v3861 = vadd.f32 %v3818, %v3845
  %v3862 = vadd.f32 %v3819, %v3846
  %v3863 = vadd.f32 %v3820, %v3847
  %v3864 = vadd.f32 %v3821, %v3848
  %v3865 = vadd.f32 %v3822, %v3849
  %v3866 = vadd.f32 %v3823, %v3850
  %v3867 = vadd.f32 %v3824, %v3851
  %v3868 = vadd.f32 %v3825, %v3852
  %v3869 = vadd.f32 %v3826, %v3853
  %v3870 = vadd.f32 %v3827, %v3854
  %v3871 = vadd.f32 %v3828, %v3855
  %v3872 = vadd.f32 %v3829, %v3856
  %v3873 = vadd.f32 %v3830, %v3857
  %v3874 = vadd.f32 %v3831, %v3858
  %v3875 = vadd.f32 %v3832, %v3859
  %v3876 = vld [vmem:[#allocation2] sm:$0xf0]
  %v3877 = vld [vmem:[#allocation2 + $0x8] sm:$0xf0]
  %v3878 = vld [vmem:[#allocation2 + $0x10] sm:$0xf0]
  %v3879 = vld [vmem:[#allocation2 + $0x18] sm:$0xf0]
  %v3880 = vld [vmem:[#allocation2 + $0x50] sm:$0xf]
  %v3881 = vld [vmem:[#allocation2 + $0x58] sm:$0xf]
  %v3882 = vld [vmem:[#allocation2 + $0x60] sm:$0xf]
  %v3883 = vld [vmem:[#allocation2 + $0x68] sm:$0xf]
  %v3884 = vld [vmem:[#allocation2 + $0x78] sm:$0xf0]
  %v3885 = vld [vmem:[#allocation2 + $0x80] sm:$0xf0]
  %v3886 = vld [vmem:[#allocation2 + $0x88] sm:$0xf0]
  %v3887 = vld [vmem:[#allocation2 + $0x90] sm:$0xf0]
  %v3888 = vld [vmem:[#allocation2 + $0xc8] sm:$0xf]
  %v3889 = vld [vmem:[#allocation2 + $0xd0] sm:$0xf]
  %v3890 = vld [vmem:[#allocation2 + $0xd8] sm:$0xf]
  %v3891 = vld [vmem:[#allocation2 + $0xe0] sm:$0xf]
  %vm3908 = vcmask 1043456
  %v3909 = vrot.slane %v3876, 4
  %v3910 = vrot.slane %v1360, 4
  %v3911 = vsel %vm3908, %v3909, %v3910
  %v3912 = vrot.slane %v3877, 4
  %v3913 = vrot.slane %v1361, 4
  %v3914 = vsel %vm3908, %v3912, %v3913
  %v3915 = vrot.slane %v3878, 4
  %v3916 = vrot.slane %v1362, 4
  %v3917 = vsel %vm3908, %v3915, %v3916
  %v3918 = vrot.slane %v3879, 4
  %v3919 = vrot.slane %v1363, 4
  %v3920 = vsel %vm3908, %v3918, %v3919
  %v3921 = vrot.slane %v3880, 4
  %v3922 = vsel %vm3908, %v3910, %v3921
  %v3923 = vrot.slane %v3881, 4
  %v3924 = vsel %vm3908, %v3913, %v3923
  %v3925 = vrot.slane %v3882, 4
  %v3926 = vsel %vm3908, %v3916, %v3925
  %v3927 = vrot.slane %v3883, 4
  %v3928 = vsel %vm3908, %v3919, %v3927
  %v3929 = vrot.slane %v3884, 4
  %v3930 = vrot.slane %v1368, 4
  %v3931 = vsel %vm3908, %v3929, %v3930
  %v3932 = vrot.slane %v3885, 4
  %v3933 = vrot.slane %v1369, 4
  %v3934 = vsel %vm3908, %v3932, %v3933
  %v3935 = vrot.slane %v3886, 4
  %v3936 = vrot.slane %v1370, 4
  %v3937 = vsel %vm3908, %v3935, %v3936
  %v3938 = vrot.slane %v3887, 4
  %v3939 = vrot.slane %v1371, 4
  %v3940 = vsel %vm3908, %v3938, %v3939
  %v3941 = vrot.slane %v3888, 4
  %v3942 = vsel %vm3908, %v3930, %v3941
  %v3943 = vrot.slane %v3889, 4
  %v3944 = vsel %vm3908, %v3933, %v3943
  %v3945 = vrot.slane %v3890, 4
  %v3946 = vsel %vm3908, %v3936, %v3945
  %v3947 = vrot.slane %v3891, 4
  %v3948 = vsel %vm3908, %v3939, %v3947
  %s3965 = scalar_lea.vmem %s2, 68
  %v3966 = vld [vmem:[%s3965] ss:$8 sm:$0xf]
  %v3968 = vperm.slane %v3966, 0
  %v3969 = vperm.slane %v3966, 1
  %v3970 = vperm.slane %v3966, 2
  %v3971 = vperm.slane %v3966, 3
  %v3976 = vmul.f32 %v3911, %v3968
  %v3977 = vmul.f32 %v3914, %v3969
  %v3978 = vmul.f32 %v3917, %v3970
  %v3979 = vmul.f32 %v3920, %v3971
  %v3980 = vmul.f32 %v3922, %v3968
  %v3981 = vmul.f32 %v3924, %v3969
  %v3982 = vmul.f32 %v3926, %v3970
  %v3983 = vmul.f32 %v3928, %v3971
  %v3984 = vmul.f32 %v3931, %v3968
  %v3985 = vmul.f32 %v3934, %v3969
  %v3986 = vmul.f32 %v3937, %v3970
  %v3987 = vmul.f32 %v3940, %v3971
  %v3988 = vmul.f32 %v3942, %v3968
  %v3989 = vmul.f32 %v3944, %v3969
  %v3990 = vmul.f32 %v3946, %v3970
  %v3991 = vmul.f32 %v3948, %v3971
  %v3992 = vadd.f32 %v3860, %v3976
  %v3993 = vadd.f32 %v3861, %v3977
  %v3994 = vadd.f32 %v3862, %v3978
  %v3995 = vadd.f32 %v3863, %v3979
  %v3996 = vadd.f32 %v3864, %v3980
  %v3997 = vadd.f32 %v3865, %v3981
  %v3998 = vadd.f32 %v3866, %v3982
  %v3999 = vadd.f32 %v3867, %v3983
  %v4000 = vadd.f32 %v3868, %v3984
  %v4001 = vadd.f32 %v3869, %v3985
  %v4002 = vadd.f32 %v3870, %v3986
  %v4003 = vadd.f32 %v3871, %v3987
  %v4004 = vadd.f32 %v3872, %v3988
  %v4005 = vadd.f32 %v3873, %v3989
  %v4006 = vadd.f32 %v3874, %v3990
  %v4007 = vadd.f32 %v3875, %v3991
  %v4008 = vld [vmem:[#allocation2 + $0x20] sm:$0xf0]
  %v4009 = vld [vmem:[#allocation2 + $0x70] sm:$0xf]
  %v4010 = vld [vmem:[#allocation2 + $0x98] sm:$0xf0]
  %v4011 = vld [vmem:[#allocation2 + $0xe8] sm:$0xf]
  %v4016 = vrot.slane %v4008, 4
  %v4017 = vrot.slane %v1415, 4
  %v4018 = vsel %vm3908, %v4016, %v4017
  %v4019 = vrot.slane %v4009, 4
  %v4020 = vsel %vm3908, %v4017, %v4019
  %v4021 = vrot.slane %v4010, 4
  %v4022 = vrot.slane %v1417, 4
  %v4023 = vsel %vm3908, %v4021, %v4022
  %v4024 = vrot.slane %v4011, 4
  %v4025 = vsel %vm3908, %v4022, %v4024
  %s4030 = scalar_lea.vmem %s2, 69
  %v4031 = vld [vmem:[%s4030] ss:$8 sm:$0xf]
  %v4033 = vperm.slane %v4031, 0
  %v4034 = vperm.slane %v4031, 1
  %v4035 = vperm.slane %v4031, 2
  %v4036 = vperm.slane %v4031, 3
  %4037 = vrot.lane.b32.xlu0 %v4033, 32
  %v4038 = vpop.permute.xlu0 %4037
  %4039 = vrot.lane.b32.xlu0 %v4034, 32
  %v4040 = vpop.permute.xlu0 %4039
  %4041 = vrot.lane.b32.xlu0 %v4035, 32
  %v4042 = vpop.permute.xlu0 %4041
  %4043 = vrot.lane.b32.xlu0 %v4036, 32
  %v4044 = vpop.permute.xlu0 %4043
  %v4045 = vsel %vm1433, %v4038, %v4040
  %v4046 = vsel %vm1433, %v4040, %v4042
  %v4047 = vsel %vm1433, %v4042, %v4044
  %v4053 = vmul.f32 %v3911, %v4038
  %v4054 = vmul.f32 %v3914, %v4045
  %v4055 = vmul.f32 %v3917, %v4046
  %v4056 = vmul.f32 %v3920, %v4047
  %v4057 = vmul.f32 %v4018, %v4044
  %v4058 = vmul.f32 %v3922, %v4038
  %v4059 = vmul.f32 %v3924, %v4045
  %v4060 = vmul.f32 %v3926, %v4046
  %v4061 = vmul.f32 %v3928, %v4047
  %v4062 = vmul.f32 %v4020, %v4044
  %v4063 = vmul.f32 %v3931, %v4038
  %v4064 = vmul.f32 %v3934, %v4045
  %v4065 = vmul.f32 %v3937, %v4046
  %v4066 = vmul.f32 %v3940, %v4047
  %v4067 = vmul.f32 %v4023, %v4044
  %v4068 = vmul.f32 %v3942, %v4038
  %v4069 = vmul.f32 %v3944, %v4045
  %v4070 = vmul.f32 %v3946, %v4046
  %v4071 = vmul.f32 %v3948, %v4047
  %v4072 = vmul.f32 %v4025, %v4044
  %4093 = vrot.lane.b32.xlu0 %v4053, 96
  %v4094 = vpop.permute.xlu0 %4093
  %4095 = vrot.lane.b32.xlu0 %v4054, 96
  %v4096 = vpop.permute.xlu0 %4095
  %4097 = vrot.lane.b32.xlu0 %v4055, 96
  %v4098 = vpop.permute.xlu0 %4097
  %4099 = vrot.lane.b32.xlu0 %v4056, 96
  %v4100 = vpop.permute.xlu0 %4099
  %4101 = vrot.lane.b32.xlu0 %v4057, 96
  %v4102 = vpop.permute.xlu0 %4101
  %4103 = vrot.lane.b32.xlu0 %v4058, 96
  %v4104 = vpop.permute.xlu0 %4103
  %4105 = vrot.lane.b32.xlu0 %v4059, 96
  %v4106 = vpop.permute.xlu0 %4105
  %4107 = vrot.lane.b32.xlu0 %v4060, 96
  %v4108 = vpop.permute.xlu0 %4107
  %4109 = vrot.lane.b32.xlu0 %v4061, 96
  %v4110 = vpop.permute.xlu0 %4109
  %4111 = vrot.lane.b32.xlu0 %v4062, 96
  %v4112 = vpop.permute.xlu0 %4111
  %4113 = vrot.lane.b32.xlu0 %v4063, 96
  %v4114 = vpop.permute.xlu0 %4113
  %4115 = vrot.lane.b32.xlu0 %v4064, 96
  %v4116 = vpop.permute.xlu0 %4115
  %4117 = vrot.lane.b32.xlu0 %v4065, 96
  %v4118 = vpop.permute.xlu0 %4117
  %4119 = vrot.lane.b32.xlu0 %v4066, 96
  %v4120 = vpop.permute.xlu0 %4119
  %4121 = vrot.lane.b32.xlu0 %v4067, 96
  %v4122 = vpop.permute.xlu0 %4121
  %4123 = vrot.lane.b32.xlu0 %v4068, 96
  %v4124 = vpop.permute.xlu0 %4123
  %4125 = vrot.lane.b32.xlu0 %v4069, 96
  %v4126 = vpop.permute.xlu0 %4125
  %4127 = vrot.lane.b32.xlu0 %v4070, 96
  %v4128 = vpop.permute.xlu0 %4127
  %4129 = vrot.lane.b32.xlu0 %v4071, 96
  %v4130 = vpop.permute.xlu0 %4129
  %4131 = vrot.lane.b32.xlu0 %v4072, 96
  %v4132 = vpop.permute.xlu0 %4131
  %v4133 = vsel %vm1522, %v4094, %v4096
  %v4134 = vsel %vm1522, %v4096, %v4098
  %v4135 = vsel %vm1522, %v4098, %v4100
  %v4136 = vsel %vm1522, %v4100, %v4102
  %v4137 = vsel %vm1522, %v4104, %v4106
  %v4138 = vsel %vm1522, %v4106, %v4108
  %v4139 = vsel %vm1522, %v4108, %v4110
  %v4140 = vsel %vm1522, %v4110, %v4112
  %v4141 = vsel %vm1522, %v4114, %v4116
  %v4142 = vsel %vm1522, %v4116, %v4118
  %v4143 = vsel %vm1522, %v4118, %v4120
  %v4144 = vsel %vm1522, %v4120, %v4122
  %v4145 = vsel %vm1522, %v4124, %v4126
  %v4146 = vsel %vm1522, %v4126, %v4128
  %v4147 = vsel %vm1522, %v4128, %v4130
  %v4148 = vsel %vm1522, %v4130, %v4132
  %v4165 = vadd.f32 %v3992, %v4133
  %v4166 = vadd.f32 %v3993, %v4134
  %v4167 = vadd.f32 %v3994, %v4135
  %v4168 = vadd.f32 %v3995, %v4136
  %v4169 = vadd.f32 %v3996, %v4137
  %v4170 = vadd.f32 %v3997, %v4138
  %v4171 = vadd.f32 %v3998, %v4139
  %v4172 = vadd.f32 %v3999, %v4140
  %v4173 = vadd.f32 %v4000, %v4141
  %v4174 = vadd.f32 %v4001, %v4142
  %v4175 = vadd.f32 %v4002, %v4143
  %v4176 = vadd.f32 %v4003, %v4144
  %v4177 = vadd.f32 %v4004, %v4145
  %v4178 = vadd.f32 %v4005, %v4146
  %v4179 = vadd.f32 %v4006, %v4147
  %v4180 = vadd.f32 %v4007, %v4148
  %s4181 = scalar_lea.vmem %s2, 70
  %v4182 = vld [vmem:[%s4181] ss:$8 sm:$0xf]
  %v4184 = vperm.slane %v4182, 0
  %v4185 = vperm.slane %v4182, 1
  %v4186 = vperm.slane %v4182, 2
  %v4187 = vperm.slane %v4182, 3
  %4188 = vrot.lane.b32.xlu0 %v4184, 64
  %v4189 = vpop.permute.xlu0 %4188
  %4190 = vrot.lane.b32.xlu0 %v4185, 64
  %v4191 = vpop.permute.xlu0 %4190
  %4192 = vrot.lane.b32.xlu0 %v4186, 64
  %v4193 = vpop.permute.xlu0 %4192
  %4194 = vrot.lane.b32.xlu0 %v4187, 64
  %v4195 = vpop.permute.xlu0 %4194
  %v4196 = vsel %vm1258, %v4189, %v4191
  %v4197 = vsel %vm1258, %v4191, %v4193
  %v4198 = vsel %vm1258, %v4193, %v4195
  %v4204 = vmul.f32 %v3911, %v4189
  %v4205 = vmul.f32 %v3914, %v4196
  %v4206 = vmul.f32 %v3917, %v4197
  %v4207 = vmul.f32 %v3920, %v4198
  %v4208 = vmul.f32 %v4018, %v4195
  %v4209 = vmul.f32 %v3922, %v4189
  %v4210 = vmul.f32 %v3924, %v4196
  %v4211 = vmul.f32 %v3926, %v4197
  %v4212 = vmul.f32 %v3928, %v4198
  %v4213 = vmul.f32 %v4020, %v4195
  %v4214 = vmul.f32 %v3931, %v4189
  %v4215 = vmul.f32 %v3934, %v4196
  %v4216 = vmul.f32 %v3937, %v4197
  %v4217 = vmul.f32 %v3940, %v4198
  %v4218 = vmul.f32 %v4023, %v4195
  %v4219 = vmul.f32 %v3942, %v4189
  %v4220 = vmul.f32 %v3944, %v4196
  %v4221 = vmul.f32 %v3946, %v4197
  %v4222 = vmul.f32 %v3948, %v4198
  %v4223 = vmul.f32 %v4025, %v4195
  %4244 = vrot.lane.b32.xlu0 %v4204, 64
  %v4245 = vpop.permute.xlu0 %4244
  %4246 = vrot.lane.b32.xlu0 %v4205, 64
  %v4247 = vpop.permute.xlu0 %4246
  %4248 = vrot.lane.b32.xlu0 %v4206, 64
  %v4249 = vpop.permute.xlu0 %4248
  %4250 = vrot.lane.b32.xlu0 %v4207, 64
  %v4251 = vpop.permute.xlu0 %4250
  %4252 = vrot.lane.b32.xlu0 %v4208, 64
  %v4253 = vpop.permute.xlu0 %4252
  %4254 = vrot.lane.b32.xlu0 %v4209, 64
  %v4255 = vpop.permute.xlu0 %4254
  %4256 = vrot.lane.b32.xlu0 %v4210, 64
  %v4257 = vpop.permute.xlu0 %4256
  %4258 = vrot.lane.b32.xlu0 %v4211, 64
  %v4259 = vpop.permute.xlu0 %4258
  %4260 = vrot.lane.b32.xlu0 %v4212, 64
  %v4261 = vpop.permute.xlu0 %4260
  %4262 = vrot.lane.b32.xlu0 %v4213, 64
  %v4263 = vpop.permute.xlu0 %4262
  %4264 = vrot.lane.b32.xlu0 %v4214, 64
  %v4265 = vpop.permute.xlu0 %4264
  %4266 = vrot.lane.b32.xlu0 %v4215, 64
  %v4267 = vpop.permute.xlu0 %4266
  %4268 = vrot.lane.b32.xlu0 %v4216, 64
  %v4269 = vpop.permute.xlu0 %4268
  %4270 = vrot.lane.b32.xlu0 %v4217, 64
  %v4271 = vpop.permute.xlu0 %4270
  %4272 = vrot.lane.b32.xlu0 %v4218, 64
  %v4273 = vpop.permute.xlu0 %4272
  %4274 = vrot.lane.b32.xlu0 %v4219, 64
  %v4275 = vpop.permute.xlu0 %4274
  %4276 = vrot.lane.b32.xlu0 %v4220, 64
  %v4277 = vpop.permute.xlu0 %4276
  %4278 = vrot.lane.b32.xlu0 %v4221, 64
  %v4279 = vpop.permute.xlu0 %4278
  %4280 = vrot.lane.b32.xlu0 %v4222, 64
  %v4281 = vpop.permute.xlu0 %4280
  %4282 = vrot.lane.b32.xlu0 %v4223, 64
  %v4283 = vpop.permute.xlu0 %4282
  %v4284 = vsel %vm1258, %v4245, %v4247
  %v4285 = vsel %vm1258, %v4247, %v4249
  %v4286 = vsel %vm1258, %v4249, %v4251
  %v4287 = vsel %vm1258, %v4251, %v4253
  %v4288 = vsel %vm1258, %v4255, %v4257
  %v4289 = vsel %vm1258, %v4257, %v4259
  %v4290 = vsel %vm1258, %v4259, %v4261
  %v4291 = vsel %vm1258, %v4261, %v4263
  %v4292 = vsel %vm1258, %v4265, %v4267
  %v4293 = vsel %vm1258, %v4267, %v4269
  %v4294 = vsel %vm1258, %v4269, %v4271
  %v4295 = vsel %vm1258, %v4271, %v4273
  %v4296 = vsel %vm1258, %v4275, %v4277
  %v4297 = vsel %vm1258, %v4277, %v4279
  %v4298 = vsel %vm1258, %v4279, %v4281
  %v4299 = vsel %vm1258, %v4281, %v4283
  %v4316 = vadd.f32 %v4165, %v4284
  %v4317 = vadd.f32 %v4166, %v4285
  %v4318 = vadd.f32 %v4167, %v4286
  %v4319 = vadd.f32 %v4168, %v4287
  %v4320 = vadd.f32 %v4169, %v4288
  %v4321 = vadd.f32 %v4170, %v4289
  %v4322 = vadd.f32 %v4171, %v4290
  %v4323 = vadd.f32 %v4172, %v4291
  %v4324 = vadd.f32 %v4173, %v4292
  %v4325 = vadd.f32 %v4174, %v4293
  %v4326 = vadd.f32 %v4175, %v4294
  %v4327 = vadd.f32 %v4176, %v4295
  %v4328 = vadd.f32 %v4177, %v4296
  %v4329 = vadd.f32 %v4178, %v4297
  %v4330 = vadd.f32 %v4179, %v4298
  %v4331 = vadd.f32 %v4180, %v4299
  %s4332 = scalar_lea.vmem %s2, 71
  %v4333 = vld [vmem:[%s4332] ss:$8 sm:$0xf]
  %v4335 = vperm.slane %v4333, 0
  %v4336 = vperm.slane %v4333, 1
  %v4337 = vperm.slane %v4333, 2
  %v4338 = vperm.slane %v4333, 3
  %4339 = vrot.lane.b32.xlu0 %v4335, 96
  %v4340 = vpop.permute.xlu0 %4339
  %4341 = vrot.lane.b32.xlu0 %v4336, 96
  %v4342 = vpop.permute.xlu0 %4341
  %4343 = vrot.lane.b32.xlu0 %v4337, 96
  %v4344 = vpop.permute.xlu0 %4343
  %4345 = vrot.lane.b32.xlu0 %v4338, 96
  %v4346 = vpop.permute.xlu0 %4345
  %v4347 = vsel %vm1522, %v4340, %v4342
  %v4348 = vsel %vm1522, %v4342, %v4344
  %v4349 = vsel %vm1522, %v4344, %v4346
  %v4355 = vmul.f32 %v3911, %v4340
  %v4356 = vmul.f32 %v3914, %v4347
  %v4357 = vmul.f32 %v3917, %v4348
  %v4358 = vmul.f32 %v3920, %v4349
  %v4359 = vmul.f32 %v4018, %v4346
  %v4360 = vmul.f32 %v3922, %v4340
  %v4361 = vmul.f32 %v3924, %v4347
  %v4362 = vmul.f32 %v3926, %v4348
  %v4363 = vmul.f32 %v3928, %v4349
  %v4364 = vmul.f32 %v4020, %v4346
  %v4365 = vmul.f32 %v3931, %v4340
  %v4366 = vmul.f32 %v3934, %v4347
  %v4367 = vmul.f32 %v3937, %v4348
  %v4368 = vmul.f32 %v3940, %v4349
  %v4369 = vmul.f32 %v4023, %v4346
  %v4370 = vmul.f32 %v3942, %v4340
  %v4371 = vmul.f32 %v3944, %v4347
  %v4372 = vmul.f32 %v3946, %v4348
  %v4373 = vmul.f32 %v3948, %v4349
  %v4374 = vmul.f32 %v4025, %v4346
  %4395 = vrot.lane.b32.xlu0 %v4355, 32
  %v4396 = vpop.permute.xlu0 %4395
  %4397 = vrot.lane.b32.xlu0 %v4356, 32
  %v4398 = vpop.permute.xlu0 %4397
  %4399 = vrot.lane.b32.xlu0 %v4357, 32
  %v4400 = vpop.permute.xlu0 %4399
  %4401 = vrot.lane.b32.xlu0 %v4358, 32
  %v4402 = vpop.permute.xlu0 %4401
  %4403 = vrot.lane.b32.xlu0 %v4359, 32
  %v4404 = vpop.permute.xlu0 %4403
  %4405 = vrot.lane.b32.xlu0 %v4360, 32
  %v4406 = vpop.permute.xlu0 %4405
  %4407 = vrot.lane.b32.xlu0 %v4361, 32
  %v4408 = vpop.permute.xlu0 %4407
  %4409 = vrot.lane.b32.xlu0 %v4362, 32
  %v4410 = vpop.permute.xlu0 %4409
  %4411 = vrot.lane.b32.xlu0 %v4363, 32
  %v4412 = vpop.permute.xlu0 %4411
  %4413 = vrot.lane.b32.xlu0 %v4364, 32
  %v4414 = vpop.permute.xlu0 %4413
  %4415 = vrot.lane.b32.xlu0 %v4365, 32
  %v4416 = vpop.permute.xlu0 %4415
  %4417 = vrot.lane.b32.xlu0 %v4366, 32
  %v4418 = vpop.permute.xlu0 %4417
  %4419 = vrot.lane.b32.xlu0 %v4367, 32
  %v4420 = vpop.permute.xlu0 %4419
  %4421 = vrot.lane.b32.xlu0 %v4368, 32
  %v4422 = vpop.permute.xlu0 %4421
  %4423 = vrot.lane.b32.xlu0 %v4369, 32
  %v4424 = vpop.permute.xlu0 %4423
  %4425 = vrot.lane.b32.xlu0 %v4370, 32
  %v4426 = vpop.permute.xlu0 %4425
  %4427 = vrot.lane.b32.xlu0 %v4371, 32
  %v4428 = vpop.permute.xlu0 %4427
  %4429 = vrot.lane.b32.xlu0 %v4372, 32
  %v4430 = vpop.permute.xlu0 %4429
  %4431 = vrot.lane.b32.xlu0 %v4373, 32
  %v4432 = vpop.permute.xlu0 %4431
  %4433 = vrot.lane.b32.xlu0 %v4374, 32
  %v4434 = vpop.permute.xlu0 %4433
  %v4435 = vsel %vm1433, %v4396, %v4398
  %v4436 = vsel %vm1433, %v4398, %v4400
  %v4437 = vsel %vm1433, %v4400, %v4402
  %v4438 = vsel %vm1433, %v4402, %v4404
  %v4439 = vsel %vm1433, %v4406, %v4408
  %v4440 = vsel %vm1433, %v4408, %v4410
  %v4441 = vsel %vm1433, %v4410, %v4412
  %v4442 = vsel %vm1433, %v4412, %v4414
  %v4443 = vsel %vm1433, %v4416, %v4418
  %v4444 = vsel %vm1433, %v4418, %v4420
  %v4445 = vsel %vm1433, %v4420, %v4422
  %v4446 = vsel %vm1433, %v4422, %v4424
  %v4447 = vsel %vm1433, %v4426, %v4428
  %v4448 = vsel %vm1433, %v4428, %v4430
  %v4449 = vsel %vm1433, %v4430, %v4432
  %v4450 = vsel %vm1433, %v4432, %v4434
  %v4467 = vadd.f32 %v4316, %v4435
  %v4468 = vadd.f32 %v4317, %v4436
  %v4469 = vadd.f32 %v4318, %v4437
  %v4470 = vadd.f32 %v4319, %v4438
  %v4471 = vadd.f32 %v4320, %v4439
  %v4472 = vadd.f32 %v4321, %v4440
  %v4473 = vadd.f32 %v4322, %v4441
  %v4474 = vadd.f32 %v4323, %v4442
  %v4475 = vadd.f32 %v4324, %v4443
  %v4476 = vadd.f32 %v4325, %v4444
  %v4477 = vadd.f32 %v4326, %v4445
  %v4478 = vadd.f32 %v4327, %v4446
  %v4479 = vadd.f32 %v4328, %v4447
  %v4480 = vadd.f32 %v4329, %v4448
  %v4481 = vadd.f32 %v4330, %v4449
  %v4482 = vadd.f32 %v4331, %v4450
  %s4483 = scalar_lea.vmem %s2, 96
  %v4484 = vld [vmem:[%s4483] ss:$8 sm:$0xf]
  %v4486 = vperm.slane %v4484, 0
  %v4487 = vperm.slane %v4484, 1
  %v4488 = vperm.slane %v4484, 2
  %v4489 = vperm.slane %v4484, 3
  %v4494 = vmul.f32 %v3914, %v4486
  %v4495 = vmul.f32 %v3917, %v4487
  %v4496 = vmul.f32 %v3920, %v4488
  %v4497 = vmul.f32 %v4018, %v4489
  %v4498 = vmul.f32 %v3924, %v4486
  %v4499 = vmul.f32 %v3926, %v4487
  %v4500 = vmul.f32 %v3928, %v4488
  %v4501 = vmul.f32 %v4020, %v4489
  %v4502 = vmul.f32 %v3934, %v4486
  %v4503 = vmul.f32 %v3937, %v4487
  %v4504 = vmul.f32 %v3940, %v4488
  %v4505 = vmul.f32 %v4023, %v4489
  %v4506 = vmul.f32 %v3944, %v4486
  %v4507 = vmul.f32 %v3946, %v4487
  %v4508 = vmul.f32 %v3948, %v4488
  %v4509 = vmul.f32 %v4025, %v4489
  %v4510 = vadd.f32 %v4467, %v4494
  %v4511 = vadd.f32 %v4468, %v4495
  %v4512 = vadd.f32 %v4469, %v4496
  %v4513 = vadd.f32 %v4470, %v4497
  %v4514 = vadd.f32 %v4471, %v4498
  %v4515 = vadd.f32 %v4472, %v4499
  %v4516 = vadd.f32 %v4473, %v4500
  %v4517 = vadd.f32 %v4474, %v4501
  %v4518 = vadd.f32 %v4475, %v4502
  %v4519 = vadd.f32 %v4476, %v4503
  %v4520 = vadd.f32 %v4477, %v4504
  %v4521 = vadd.f32 %v4478, %v4505
  %v4522 = vadd.f32 %v4479, %v4506
  %v4523 = vadd.f32 %v4480, %v4507
  %v4524 = vadd.f32 %v4481, %v4508
  %v4525 = vadd.f32 %v4482, %v4509
  %v4526 = vmul.f32 %v4510, 0.5
  %v4527 = vmul.f32 %v4511, 0.5
  %v4528 = vmul.f32 %v4512, 0.5
  %v4529 = vmul.f32 %v4513, 0.5
  %v4530 = vmul.f32 %v4514, 0.5
  %v4531 = vmul.f32 %v4515, 0.5
  %v4532 = vmul.f32 %v4516, 0.5
  %v4533 = vmul.f32 %v4517, 0.5
  %v4534 = vmul.f32 %v4518, 0.5
  %v4535 = vmul.f32 %v4519, 0.5
  %v4536 = vmul.f32 %v4520, 0.5
  %v4537 = vmul.f32 %v4521, 0.5
  %v4538 = vmul.f32 %v4522, 0.5
  %v4539 = vmul.f32 %v4523, 0.5
  %v4540 = vmul.f32 %v4524, 0.5
  %v4541 = vmul.f32 %v4525, 0.5
  %v4542 = vmul.f32 %v4510, 0.044715
  %v4543 = vmul.f32 %v4511, 0.044715
  %v4544 = vmul.f32 %v4512, 0.044715
  %v4545 = vmul.f32 %v4513, 0.044715
  %v4546 = vmul.f32 %v4514, 0.044715
  %v4547 = vmul.f32 %v4515, 0.044715
  %v4548 = vmul.f32 %v4516, 0.044715
  %v4549 = vmul.f32 %v4517, 0.044715
  %v4550 = vmul.f32 %v4518, 0.044715
  %v4551 = vmul.f32 %v4519, 0.044715
  %v4552 = vmul.f32 %v4520, 0.044715
  %v4553 = vmul.f32 %v4521, 0.044715
  %v4554 = vmul.f32 %v4522, 0.044715
  %v4555 = vmul.f32 %v4523, 0.044715
  %v4556 = vmul.f32 %v4524, 0.044715
  %v4557 = vmul.f32 %v4525, 0.044715
  %v4558 = vmul.f32 %v4542, %v4510
  %v4559 = vmul.f32 %v4543, %v4511
  %v4560 = vmul.f32 %v4544, %v4512
  %v4561 = vmul.f32 %v4545, %v4513
  %v4562 = vmul.f32 %v4546, %v4514
  %v4563 = vmul.f32 %v4547, %v4515
  %v4564 = vmul.f32 %v4548, %v4516
  %v4565 = vmul.f32 %v4549, %v4517
  %v4566 = vmul.f32 %v4550, %v4518
  %v4567 = vmul.f32 %v4551, %v4519
  %v4568 = vmul.f32 %v4552, %v4520
  %v4569 = vmul.f32 %v4553, %v4521
  %v4570 = vmul.f32 %v4554, %v4522
  %v4571 = vmul.f32 %v4555, %v4523
  %v4572 = vmul.f32 %v4556, %v4524
  %v4573 = vmul.f32 %v4557, %v4525
  %v4574 = vmul.f32 %v4558, %v4510
  %v4575 = vmul.f32 %v4559, %v4511
  %v4576 = vmul.f32 %v4560, %v4512
  %v4577 = vmul.f32 %v4561, %v4513
  %v4578 = vmul.f32 %v4562, %v4514
  %v4579 = vmul.f32 %v4563, %v4515
  %v4580 = vmul.f32 %v4564, %v4516
  %v4581 = vmul.f32 %v4565, %v4517
  %v4582 = vmul.f32 %v4566, %v4518
  %v4583 = vmul.f32 %v4567, %v4519
  %v4584 = vmul.f32 %v4568, %v4520
  %v4585 = vmul.f32 %v4569, %v4521
  %v4586 = vmul.f32 %v4570, %v4522
  %v4587 = vmul.f32 %v4571, %v4523
  %v4588 = vmul.f32 %v4572, %v4524
  %v4589 = vmul.f32 %v4573, %v4525
  %v4590 = vadd.f32 %v4510, %v4574
  %v4591 = vadd.f32 %v4511, %v4575
  %v4592 = vadd.f32 %v4512, %v4576
  %v4593 = vadd.f32 %v4513, %v4577
  %v4594 = vadd.f32 %v4514, %v4578
  %v4595 = vadd.f32 %v4515, %v4579
  %v4596 = vadd.f32 %v4516, %v4580
  %v4597 = vadd.f32 %v4517, %v4581
  %v4598 = vadd.f32 %v4518, %v4582
  %v4599 = vadd.f32 %v4519, %v4583
  %v4600 = vadd.f32 %v4520, %v4584
  %v4601 = vadd.f32 %v4521, %v4585
  %v4602 = vadd.f32 %v4522, %v4586
  %v4603 = vadd.f32 %v4523, %v4587
  %v4604 = vadd.f32 %v4524, %v4588
  %v4605 = vadd.f32 %v4525, %v4589
  %v4606 = vmul.f32 %v4590, 0.7978846
  %v4607 = vmul.f32 %v4591, 0.7978846
  %v4608 = vmul.f32 %v4592, 0.7978846
  %v4609 = vmul.f32 %v4593, 0.7978846
  %v4610 = vmul.f32 %v4594, 0.7978846
  %v4611 = vmul.f32 %v4595, 0.7978846
  %v4612 = vmul.f32 %v4596, 0.7978846
  %v4613 = vmul.f32 %v4597, 0.7978846
  %v4614 = vmul.f32 %v4598, 0.7978846
  %v4615 = vmul.f32 %v4599, 0.7978846
  %v4616 = vmul.f32 %v4600, 0.7978846
  %v4617 = vmul.f32 %v4601, 0.7978846
  %v4618 = vmul.f32 %v4602, 0.7978846
  %v4619 = vmul.f32 %v4603, 0.7978846
  %v4620 = vmul.f32 %v4604, 0.7978846
  %v4621 = vmul.f32 %v4605, 0.7978846
  %v4622 = vtanh.pop %v4606
  %v4623 = vtanh.pop %v4607
  %v4624 = vtanh.pop %v4608
  %v4625 = vtanh.pop %v4609
  %v4626 = vtanh.pop %v4610
  %v4627 = vtanh.pop %v4611
  %v4628 = vtanh.pop %v4612
  %v4629 = vtanh.pop %v4613
  %v4630 = vtanh.pop %v4614
  %v4631 = vtanh.pop %v4615
  %v4632 = vtanh.pop %v4616
  %v4633 = vtanh.pop %v4617
  %v4634 = vtanh.pop %v4618
  %v4635 = vtanh.pop %v4619
  %v4636 = vtanh.pop %v4620
  %v4637 = vtanh.pop %v4621
  %v4638 = vadd.f32 %v4622, 1.0
  %v4639 = vadd.f32 %v4623, 1.0
  %v4640 = vadd.f32 %v4624, 1.0
  %v4641 = vadd.f32 %v4625, 1.0
  %v4642 = vadd.f32 %v4626, 1.0
  %v4643 = vadd.f32 %v4627, 1.0
  %v4644 = vadd.f32 %v4628, 1.0
  %v4645 = vadd.f32 %v4629, 1.0
  %v4646 = vadd.f32 %v4630, 1.0
  %v4647 = vadd.f32 %v4631, 1.0
  %v4648 = vadd.f32 %v4632, 1.0
  %v4649 = vadd.f32 %v4633, 1.0
  %v4650 = vadd.f32 %v4634, 1.0
  %v4651 = vadd.f32 %v4635, 1.0
  %v4652 = vadd.f32 %v4636, 1.0
  %v4653 = vadd.f32 %v4637, 1.0
  %v4654 = vmul.f32 %v4526, %v4638
  %v4655 = vmul.f32 %v4527, %v4639
  %v4656 = vmul.f32 %v4528, %v4640
  %v4657 = vmul.f32 %v4529, %v4641
  %v4658 = vmul.f32 %v4530, %v4642
  %v4659 = vmul.f32 %v4531, %v4643
  %v4660 = vmul.f32 %v4532, %v4644
  %v4661 = vmul.f32 %v4533, %v4645
  %v4662 = vmul.f32 %v4534, %v4646
  %v4663 = vmul.f32 %v4535, %v4647
  %v4664 = vmul.f32 %v4536, %v4648
  %v4665 = vmul.f32 %v4537, %v4649
  %v4666 = vmul.f32 %v4538, %v4650
  %v4667 = vmul.f32 %v4539, %v4651
  %v4668 = vmul.f32 %v4540, %v4652
  %v4669 = vmul.f32 %v4541, %v4653
  %v4670 = vld [vmem:[%s4] sm:$0xf]
  %v4671 = vld [vmem:[%s5] sm:$0xf]
  %v4672 = vadd.f32 %v4654, %v4658
  %v4673 = vadd.f32 %v4672, %v4662
  %v4674 = vadd.f32 %v4673, %v4666
  %v4675 = vrot.slane %v4674, 4
  %v4676 = vadd.f32 %v4674, %v4675
  %v4677 = vrot.slane %v4676, 2
  %v4678 = vadd.f32 %v4676, %v4677
  %v4679 = vrot.slane %v4678, 1
  %v4680 = vadd.f32 %v4678, %v4679
  %v4681 = vadd.f32 %v4655, %v4659
  %v4682 = vadd.f32 %v4681, %v4663
  %v4683 = vadd.f32 %v4682, %v4667
  %v4684 = vrot.slane %v4683, 4
  %v4685 = vadd.f32 %v4683, %v4684
  %v4686 = vrot.slane %v4685, 2
  %v4687 = vadd.f32 %v4685, %v4686
  %v4688 = vrot.slane %v4687, 1
  %v4689 = vadd.f32 %v4687, %v4688
  %v4690 = vadd.f32 %v4656, %v4660
  %v4691 = vadd.f32 %v4690, %v4664
  %v4692 = vadd.f32 %v4691, %v4668
  %v4693 = vrot.slane %v4692, 4
  %v4694 = vadd.f32 %v4692, %v4693
  %v4695 = vrot.slane %v4694, 2
  %v4696 = vadd.f32 %v4694, %v4695
  %v4697 = vrot.slane %v4696, 1
  %v4698 = vadd.f32 %v4696, %v4697
  %v4699 = vadd.f32 %v4657, %v4661
  %v4700 = vadd.f32 %v4699, %v4665
  %v4701 = vadd.f32 %v4700, %v4669
  %v4702 = vrot.slane %v4701, 4
  %v4703 = vadd.f32 %v4701, %v4702
  %v4704 = vrot.slane %v4703, 2
  %v4705 = vadd.f32 %v4703, %v4704
  %v4706 = vrot.slane %v4705, 1
  %v4707 = vadd.f32 %v4705, %v4706
  %v4708 = vmul.f32 %v4654, %v4654
  %v4709 = vmul.f32 %v4655, %v4655
  %v4710 = vmul.f32 %v4656, %v4656
  %v4711 = vmul.f32 %v4657, %v4657
  %v4712 = vmul.f32 %v4658, %v4658
  %v4713 = vmul.f32 %v4659, %v4659
  %v4714 = vmul.f32 %v4660, %v4660
  %v4715 = vmul.f32 %v4661, %v4661
  %v4716 = vmul.f32 %v4662, %v4662
  %v4717 = vmul.f32 %v4663, %v4663
  %v4718 = vmul.f32 %v4664, %v4664
  %v4719 = vmul.f32 %v4665, %v4665
  %v4720 = vmul.f32 %v4666, %v4666
  %v4721 = vmul.f32 %v4667, %v4667
  %v4722 = vmul.f32 %v4668, %v4668
  %v4723 = vmul.f32 %v4669, %v4669
  %v4724 = vadd.f32 %v4708, %v4712
  %v4725 = vadd.f32 %v4724, %v4716
  %v4726 = vadd.f32 %v4725, %v4720
  %v4727 = vrot.slane %v4726, 4
  %v4728 = vadd.f32 %v4726, %v4727
  %v4729 = vrot.slane %v4728, 2
  %v4730 = vadd.f32 %v4728, %v4729
  %v4731 = vrot.slane %v4730, 1
  %v4732 = vadd.f32 %v4730, %v4731
  %v4733 = vadd.f32 %v4709, %v4713
  %v4734 = vadd.f32 %v4733, %v4717
  %v4735 = vadd.f32 %v4734, %v4721
  %v4736 = vrot.slane %v4735, 4
  %v4737 = vadd.f32 %v4735, %v4736
  %v4738 = vrot.slane %v4737, 2
  %v4739 = vadd.f32 %v4737, %v4738
  %v4740 = vrot.slane %v4739, 1
  %v4741 = vadd.f32 %v4739, %v4740
  %v4742 = vadd.f32 %v4710, %v4714
  %v4743 = vadd.f32 %v4742, %v4718
  %v4744 = vadd.f32 %v4743, %v4722
  %v4745 = vrot.slane %v4744, 4
  %v4746 = vadd.f32 %v4744, %v4745
  %v4747 = vrot.slane %v4746, 2
  %v4748 = vadd.f32 %v4746, %v4747
  %v4749 = vrot.slane %v4748, 1
  %v4750 = vadd.f32 %v4748, %v4749
  %v4751 = vadd.f32 %v4711, %v4715
  %v4752 = vadd.f32 %v4751, %v4719
  %v4753 = vadd.f32 %v4752, %v4723
  %v4754 = vrot.slane %v4753, 4
  %v4755 = vadd.f32 %v4753, %v4754
  %v4756 = vrot.slane %v4755, 2
  %v4757 = vadd.f32 %v4755, %v4756
  %v4758 = vrot.slane %v4757, 1
  %v4759 = vadd.f32 %v4757, %v4758
  %vm4760 = vcmask 1040384
  %v4761 = vsel %vm4760, %v4680, %v4732
  %v4762 = vsel %vm4760, %v4689, %v4741
  %v4763 = vsel %vm4760, %v4698, %v4750
  %v4764 = vsel %vm4760, %v4707, %v4759
  %v4765 = vadd.f32 %v4761, %v4763
  %v4766 = vadd.f32 %v4762, %v4764
  %v4767 = vadd.f32 %v4765, %v4766
  %4768 = vrot.lane.b32.xlu0 %v4767, 64
  %v4769 = vpop.permute.xlu0 %4768
  %v4770 = vlaneseq
  %v4771 = vand.u32 %v4770, 127
  %v4772 = vadd.f32 %v4767, %v4769
  %4773 = vrot.lane.b32.xlu0 %v4772, 32
  %v4774 = vpop.permute.xlu0 %4773
  %v4775 = vadd.f32 %v4772, %v4774
  %v4776 = vmul.f32 %v4775, 0.001953125
  %v4777 = vmul.f32 %v4776, %v4776
  %v4779 = vrot.slane %v4777, 7
  %v4781 = vsub.f32 %v4776, %v4779
  %v4782 = vperm.slane %v4776, 0
  %v4783 = vsub.f32 %v4654, %v4782
  %v4784 = vsub.f32 %v4655, %v4782
  %v4785 = vsub.f32 %v4656, %v4782
  %v4786 = vsub.f32 %v4657, %v4782
  %v4787 = vsub.f32 %v4658, %v4782
  %v4788 = vsub.f32 %v4659, %v4782
  %v4789 = vsub.f32 %v4660, %v4782
  %v4790 = vsub.f32 %v4661, %v4782
  %v4791 = vsub.f32 %v4662, %v4782
  %v4792 = vsub.f32 %v4663, %v4782
  %v4793 = vsub.f32 %v4664, %v4782
  %v4794 = vsub.f32 %v4665, %v4782
  %v4795 = vsub.f32 %v4666, %v4782
  %v4796 = vsub.f32 %v4667, %v4782
  %v4797 = vsub.f32 %v4668, %v4782
  %v4798 = vsub.f32 %v4669, %v4782
  %v4799 = vadd.f32 %v4781, 1e-05
  %v4800 = vrsqrt.pop %v4799
  %v4801 = vmul.f32 %v4800, %v4799
  %v4802 = vmul.f32 %v4801, %v4800
  %v4803 = vmul.f32 0.5, %v4802
  %v4804 = vsub.f32 1.5, %v4803
  %v4805 = vmul.f32 %v4800, %v4804
  %vm4806 = vweird.f32 %v4799
  %vm4807 = vweird.f32 %v4800
  %vm4808 = vmor %vm4806, %vm4807
  %v4809 = vsel %vm4808, %v4800, %v4805
  %v4810 = vperm.slane %v4809, 1
  %v4811 = vmul.f32 %v4783, %v4810
  %v4812 = vmul.f32 %v4784, %v4810
  %v4813 = vmul.f32 %v4785, %v4810
  %v4814 = vmul.f32 %v4786, %v4810
  %v4815 = vmul.f32 %v4787, %v4810
  %v4816 = vmul.f32 %v4788, %v4810
  %v4817 = vmul.f32 %v4789, %v4810
  %v4818 = vmul.f32 %v4790, %v4810
  %v4819 = vmul.f32 %v4791, %v4810
  %v4820 = vmul.f32 %v4792, %v4810
  %v4821 = vmul.f32 %v4793, %v4810
  %v4822 = vmul.f32 %v4794, %v4810
  %v4823 = vmul.f32 %v4795, %v4810
  %v4824 = vmul.f32 %v4796, %v4810
  %v4825 = vmul.f32 %v4797, %v4810
  %v4826 = vmul.f32 %v4798, %v4810
  %v4828 = vperm.slane %v4670, 0
  %v4829 = vperm.slane %v4670, 1
  %v4830 = vperm.slane %v4670, 2
  %v4831 = vperm.slane %v4670, 3
  %v4836 = vmul.f32 %v4811, %v4828
  %v4837 = vmul.f32 %v4812, %v4829
  %v4838 = vmul.f32 %v4813, %v4830
  %v4839 = vmul.f32 %v4814, %v4831
  %v4840 = vmul.f32 %v4815, %v4828
  %v4841 = vmul.f32 %v4816, %v4829
  %v4842 = vmul.f32 %v4817, %v4830
  %v4843 = vmul.f32 %v4818, %v4831
  %v4844 = vmul.f32 %v4819, %v4828
  %v4845 = vmul.f32 %v4820, %v4829
  %v4846 = vmul.f32 %v4821, %v4830
  %v4847 = vmul.f32 %v4822, %v4831
  %v4848 = vmul.f32 %v4823, %v4828
  %v4849 = vmul.f32 %v4824, %v4829
  %v4850 = vmul.f32 %v4825, %v4830
  %v4851 = vmul.f32 %v4826, %v4831
  %v4853 = vperm.slane %v4671, 0
  %v4854 = vperm.slane %v4671, 1
  %v4855 = vperm.slane %v4671, 2
  %v4856 = vperm.slane %v4671, 3
  %v4861 = vadd.f32 %v4836, %v4853
  %v4862 = vadd.f32 %v4837, %v4854
  %v4863 = vadd.f32 %v4838, %v4855
  %v4864 = vadd.f32 %v4839, %v4856
  %v4865 = vadd.f32 %v4840, %v4853
  %v4866 = vadd.f32 %v4841, %v4854
  %v4867 = vadd.f32 %v4842, %v4855
  %v4868 = vadd.f32 %v4843, %v4856
  %v4869 = vadd.f32 %v4844, %v4853
  %v4870 = vadd.f32 %v4845, %v4854
  %v4871 = vadd.f32 %v4846, %v4855
  %v4872 = vadd.f32 %v4847, %v4856
  %v4873 = vadd.f32 %v4848, %v4853
  %v4874 = vadd.f32 %v4849, %v4854
  %v4875 = vadd.f32 %v4850, %v4855
  %v4876 = vadd.f32 %v4851, %v4856
  %v4877 = vadd.f32 %v4861, %v606
  %v4878 = vadd.f32 %v4862, %v780
  %v4879 = vadd.f32 %v4863, %v954
  %v4880 = vadd.f32 %v4864, %v1128
  %v4881 = vadd.f32 %v4865, %v609
  %v4882 = vadd.f32 %v4866, %v783
  %v4883 = vadd.f32 %v4867, %v957
  %v4884 = vadd.f32 %v4868, %v1131
  %v4885 = vadd.f32 %v4869, %v612
  %v4886 = vadd.f32 %v4870, %v786
  %v4887 = vadd.f32 %v4871, %v960
  %v4888 = vadd.f32 %v4872, %v1134
  %v4889 = vadd.f32 %v4873, %v615
  %v4890 = vadd.f32 %v4874, %v789
  %v4891 = vadd.f32 %v4875, %v963
  %v4892 = vadd.f32 %v4876, %v1137
  %v4893 = vpack.c.bf16 %v4881, %v4877
  %v4894 = vpack.c.bf16 %v4882, %v4878
  %v4895 = vpack.c.bf16 %v4883, %v4879
  %v4896 = vpack.c.bf16 %v4884, %v4880
  %v4897 = vpack.c.bf16 %v4889, %v4885
  %v4898 = vpack.c.bf16 %v4890, %v4886
  %v4899 = vpack.c.bf16 %v4891, %v4887
  %v4900 = vpack.c.bf16 %v4892, %v4888
  %v4901 = vld [vmem:[%s6] sm:$0xff]
  %v4902 = vld [vmem:[%s6 + $0x8] sm:$0xff]
  %v4903 = vld [vmem:[%s6 + $0x10] sm:$0xff]
  %v4904 = vld [vmem:[%s6 + $0x18] sm:$0xff]
  %v4905 = vld [vmem:[%s6 + $0x20] sm:$0xff]
  %v4906 = vld [vmem:[%s6 + $0x28] sm:$0xff]
  %v4907 = vld [vmem:[%s6 + $0x30] sm:$0xff]
  %v4908 = vld [vmem:[%s6 + $0x38] sm:$0xff]
  %v4909 = vld [vmem:[%s6 + $0x40] sm:$0xff]
  %v4910 = vld [vmem:[%s6 + $0x48] sm:$0xff]
  %v4911 = vld [vmem:[%s6 + $0x50] sm:$0xff]
  %v4912 = vld [vmem:[%s6 + $0x58] sm:$0xff]
  %v4913 = vld [vmem:[%s6 + $0x60] sm:$0xff]
  %v4914 = vld [vmem:[%s6 + $0x68] sm:$0xff]
  %v4915 = vld [vmem:[%s6 + $0x70] sm:$0xff]
  %v4916 = vld [vmem:[%s6 + $0x78] sm:$0xff]
  %v4917 = vld [vmem:[%s6 + $0x80] sm:$0xff]
  %v4918 = vld [vmem:[%s6 + $0x88] sm:$0xff]
  %v4919 = vld [vmem:[%s6 + $0x90] sm:$0xff]
  %v4920 = vld [vmem:[%s6 + $0x98] sm:$0xff]
  %v4921 = vld [vmem:[%s6 + $0xa0] sm:$0xff]
  %v4922 = vld [vmem:[%s6 + $0xa8] sm:$0xff]
  %v4923 = vld [vmem:[%s6 + $0xb0] sm:$0xff]
  %v4924 = vld [vmem:[%s6 + $0xb8] sm:$0xff]
  %v4925 = vld [vmem:[%s6 + $0xc0] sm:$0xff]
  %v4926 = vld [vmem:[%s6 + $0xc8] sm:$0xff]
  %v4927 = vld [vmem:[%s6 + $0xd0] sm:$0xff]
  %v4928 = vld [vmem:[%s6 + $0xd8] sm:$0xff]
  %v4929 = vld [vmem:[%s6 + $0xe0] sm:$0xff]
  %v4930 = vld [vmem:[%s6 + $0xe8] sm:$0xff]
  %v4931 = vld [vmem:[%s6 + $0xf0] sm:$0xff]
  %v4932 = vld [vmem:[%s6 + $0xf8] sm:$0xff]
  %v4933 = vld [vmem:[%s6 + $0x100] sm:$0xff]
  %v4934 = vld [vmem:[%s6 + $0x108] sm:$0xff]
  %v4935 = vld [vmem:[%s6 + $0x110] sm:$0xff]
  %v4936 = vld [vmem:[%s6 + $0x118] sm:$0xff]
  %v4937 = vld [vmem:[%s6 + $0x120] sm:$0xff]
  %v4938 = vld [vmem:[%s6 + $0x128] sm:$0xff]
  %v4939 = vld [vmem:[%s6 + $0x130] sm:$0xff]
  %v4940 = vld [vmem:[%s6 + $0x138] sm:$0xff]
  %v4941 = vld [vmem:[%s6 + $0x140] sm:$0xff]
  %v4942 = vld [vmem:[%s6 + $0x148] sm:$0xff]
  %v4943 = vld [vmem:[%s6 + $0x150] sm:$0xff]
  %v4944 = vld [vmem:[%s6 + $0x158] sm:$0xff]
  %v4945 = vld [vmem:[%s6 + $0x160] sm:$0xff]
  %v4946 = vld [vmem:[%s6 + $0x168] sm:$0xff]
  %v4947 = vld [vmem:[%s6 + $0x170] sm:$0xff]
  %v4948 = vld [vmem:[%s6 + $0x178] sm:$0xff]
  %v4949 = vld [vmem:[%s6 + $0x180] sm:$0xff]
  %v4950 = vld [vmem:[%s6 + $0x188] sm:$0xff]
  %v4951 = vld [vmem:[%s6 + $0x190] sm:$0xff]
  %v4952 = vld [vmem:[%s6 + $0x198] sm:$0xff]
  %v4953 = vld [vmem:[%s6 + $0x1a0] sm:$0xff]
  %v4954 = vld [vmem:[%s6 + $0x1a8] sm:$0xff]
  %v4955 = vld [vmem:[%s6 + $0x1b0] sm:$0xff]
  %v4956 = vld [vmem:[%s6 + $0x1b8] sm:$0xff]
  %v4957 = vld [vmem:[%s6 + $0x1c0] sm:$0xff]
  %v4958 = vld [vmem:[%s6 + $0x1c8] sm:$0xff]
  %v4959 = vld [vmem:[%s6 + $0x1d0] sm:$0xff]
  %v4960 = vld [vmem:[%s6 + $0x1d8] sm:$0xff]
  %v4961 = vld [vmem:[%s6 + $0x1e0] sm:$0xff]
  %v4962 = vld [vmem:[%s6 + $0x1e8] sm:$0xff]
  %v4963 = vld [vmem:[%s6 + $0x1f0] sm:$0xff]
  %v4964 = vld [vmem:[%s6 + $0x1f8] sm:$0xff]
  %v4965 = vld [vmem:[%s6 + $0x200] sm:$0xff]
  %v4966 = vld [vmem:[%s6 + $0x208] sm:$0xff]
  %v4967 = vld [vmem:[%s6 + $0x210] sm:$0xff]
  %v4968 = vld [vmem:[%s6 + $0x218] sm:$0xff]
  %v4969 = vld [vmem:[%s6 + $0x220] sm:$0xff]
  %v4970 = vld [vmem:[%s6 + $0x228] sm:$0xff]
  %v4971 = vld [vmem:[%s6 + $0x230] sm:$0xff]
  %v4972 = vld [vmem:[%s6 + $0x238] sm:$0xff]
  %v4973 = vld [vmem:[%s6 + $0x240] sm:$0xff]
  %v4974 = vld [vmem:[%s6 + $0x248] sm:$0xff]
  %v4975 = vld [vmem:[%s6 + $0x250] sm:$0xff]
  %v4976 = vld [vmem:[%s6 + $0x258] sm:$0xff]
  %v4977 = vld [vmem:[%s6 + $0x260] sm:$0xff]
  %v4978 = vld [vmem:[%s6 + $0x268] sm:$0xff]
  %v4979 = vld [vmem:[%s6 + $0x270] sm:$0xff]
  %v4980 = vld [vmem:[%s6 + $0x278] sm:$0xff]
  %v4981 = vld [vmem:[%s6 + $0x280] sm:$0xff]
  %v4982 = vld [vmem:[%s6 + $0x288] sm:$0xff]
  %v4983 = vld [vmem:[%s6 + $0x290] sm:$0xff]
  %v4984 = vld [vmem:[%s6 + $0x298] sm:$0xff]
  %v4985 = vld [vmem:[%s6 + $0x2a0] sm:$0xff]
  %v4986 = vld [vmem:[%s6 + $0x2a8] sm:$0xff]
  %v4987 = vld [vmem:[%s6 + $0x2b0] sm:$0xff]
  %v4988 = vld [vmem:[%s6 + $0x2b8] sm:$0xff]
  %v4989 = vld [vmem:[%s6 + $0x2c0] sm:$0xff]
  %v4990 = vld [vmem:[%s6 + $0x2c8] sm:$0xff]
  %v4991 = vld [vmem:[%s6 + $0x2d0] sm:$0xff]
  %v4992 = vld [vmem:[%s6 + $0x2d8] sm:$0xff]
  %v4993 = vld [vmem:[%s6 + $0x2e0] sm:$0xff]
  %v4994 = vld [vmem:[%s6 + $0x2e8] sm:$0xff]
  %v4995 = vld [vmem:[%s6 + $0x2f0] sm:$0xff]
  %v4996 = vld [vmem:[%s6 + $0x2f8] sm:$0xff]
  %v4997 = vld [vmem:[%s6 + $0x300] sm:$0xff]
  %v4998 = vld [vmem:[%s6 + $0x308] sm:$0xff]
  %v4999 = vld [vmem:[%s6 + $0x310] sm:$0xff]
  %v5000 = vld [vmem:[%s6 + $0x318] sm:$0xff]
  %v5001 = vld [vmem:[%s6 + $0x320] sm:$0xff]
  %v5002 = vld [vmem:[%s6 + $0x328] sm:$0xff]
  %v5003 = vld [vmem:[%s6 + $0x330] sm:$0xff]
  %v5004 = vld [vmem:[%s6 + $0x338] sm:$0xff]
  %v5005 = vld [vmem:[%s6 + $0x340] sm:$0xff]
  %v5006 = vld [vmem:[%s6 + $0x348] sm:$0xff]
  %v5007 = vld [vmem:[%s6 + $0x350] sm:$0xff]
  %v5008 = vld [vmem:[%s6 + $0x358] sm:$0xff]
  %v5009 = vld [vmem:[%s6 + $0x360] sm:$0xff]
  %v5010 = vld [vmem:[%s6 + $0x368] sm:$0xff]
  %v5011 = vld [vmem:[%s6 + $0x370] sm:$0xff]
  %v5012 = vld [vmem:[%s6 + $0x378] sm:$0xff]
  %v5013 = vld [vmem:[%s6 + $0x380] sm:$0xff]
  %v5014 = vld [vmem:[%s6 + $0x388] sm:$0xff]
  %v5015 = vld [vmem:[%s6 + $0x390] sm:$0xff]
  %v5016 = vld [vmem:[%s6 + $0x398] sm:$0xff]
  %v5017 = vld [vmem:[%s6 + $0x3a0] sm:$0xff]
  %v5018 = vld [vmem:[%s6 + $0x3a8] sm:$0xff]
  %v5019 = vld [vmem:[%s6 + $0x3b0] sm:$0xff]
  %v5020 = vld [vmem:[%s6 + $0x3b8] sm:$0xff]
  %v5021 = vld [vmem:[%s6 + $0x3c0] sm:$0xff]
  %v5022 = vld [vmem:[%s6 + $0x3c8] sm:$0xff]
  %v5023 = vld [vmem:[%s6 + $0x3d0] sm:$0xff]
  %v5024 = vld [vmem:[%s6 + $0x3d8] sm:$0xff]
  %v5025 = vld [vmem:[%s6 + $0x3e0] sm:$0xff]
  %v5026 = vld [vmem:[%s6 + $0x3e8] sm:$0xff]
  %v5027 = vld [vmem:[%s6 + $0x3f0] sm:$0xff]
  %v5028 = vld [vmem:[%s6 + $0x3f8] sm:$0xff]
  %v5029 = vld [vmem:[%s7] sm:$0xf]
  %v5031 = vperm.slane %v5029, 0
  %v5032 = vperm.slane %v5029, 1
  %v5033 = vperm.slane %v5029, 2
  %v5034 = vperm.slane %v5029, 3
  %v5167 = vunpack.c.l.b16 %v4901
  %v5168 = vunpack.c.h.b16 %v4901
  %v5169 = vunpack.c.l.b16 %v4902
  %v5170 = vunpack.c.h.b16 %v4902
  %v5171 = vunpack.c.l.b16 %v4903
  %v5172 = vunpack.c.h.b16 %v4903
  %v5173 = vunpack.c.l.b16 %v4904
  %v5174 = vunpack.c.h.b16 %v4904
  %v5175 = vunpack.c.l.b16 %v4905
  %v5176 = vunpack.c.h.b16 %v4905
  %v5177 = vunpack.c.l.b16 %v4906
  %v5178 = vunpack.c.h.b16 %v4906
  %v5179 = vunpack.c.l.b16 %v4907
  %v5180 = vunpack.c.h.b16 %v4907
  %v5181 = vunpack.c.l.b16 %v4908
  %v5182 = vunpack.c.h.b16 %v4908
  %v5183 = vunpack.c.l.b16 %v4909
  %v5184 = vunpack.c.h.b16 %v4909
  %v5185 = vunpack.c.l.b16 %v4910
  %v5186 = vunpack.c.h.b16 %v4910
  %v5187 = vunpack.c.l.b16 %v4911
  %v5188 = vunpack.c.h.b16 %v4911
  %v5189 = vunpack.c.l.b16 %v4912
  %v5190 = vunpack.c.h.b16 %v4912
  %v5191 = vunpack.c.l.b16 %v4913
  %v5192 = vunpack.c.h.b16 %v4913
  %v5193 = vunpack.c.l.b16 %v4914
  %v5194 = vunpack.c.h.b16 %v4914
  %v5195 = vunpack.c.l.b16 %v4915
  %v5196 = vunpack.c.h.b16 %v4915
  %v5197 = vunpack.c.l.b16 %v4916
  %v5198 = vunpack.c.h.b16 %v4916
  %v5199 = vunpack.c.l.b16 %v4917
  %v5200 = vunpack.c.h.b16 %v4917
  %v5201 = vunpack.c.l.b16 %v4918
  %v5202 = vunpack.c.h.b16 %v4918
  %v5203 = vunpack.c.l.b16 %v4919
  %v5204 = vunpack.c.h.b16 %v4919
  %v5205 = vunpack.c.l.b16 %v4920
  %v5206 = vunpack.c.h.b16 %v4920
  %v5207 = vunpack.c.l.b16 %v4921
  %v5208 = vunpack.c.h.b16 %v4921
  %v5209 = vunpack.c.l.b16 %v4922
  %v5210 = vunpack.c.h.b16 %v4922
  %v5211 = vunpack.c.l.b16 %v4923
  %v5212 = vunpack.c.h.b16 %v4923
  %v5213 = vunpack.c.l.b16 %v4924
  %v5214 = vunpack.c.h.b16 %v4924
  %v5215 = vunpack.c.l.b16 %v4925
  %v5216 = vunpack.c.h.b16 %v4925
  %v5217 = vunpack.c.l.b16 %v4926
  %v5218 = vunpack.c.h.b16 %v4926
  %v5219 = vunpack.c.l.b16 %v4927
  %v5220 = vunpack.c.h.b16 %v4927
  %v5221 = vunpack.c.l.b16 %v4928
  %v5222 = vunpack.c.h.b16 %v4928
  %v5223 = vunpack.c.l.b16 %v4929
  %v5224 = vunpack.c.h.b16 %v4929
  %v5225 = vunpack.c.l.b16 %v4930
  %v5226 = vunpack.c.h.b16 %v4930
  %v5227 = vunpack.c.l.b16 %v4931
  %v5228 = vunpack.c.h.b16 %v4931
  %v5229 = vunpack.c.l.b16 %v4932
  %v5230 = vunpack.c.h.b16 %v4932
  %v5231 = vunpack.c.l.b16 %v4933
  %v5232 = vunpack.c.h.b16 %v4933
  %v5233 = vunpack.c.l.b16 %v4934
  %v5234 = vunpack.c.h.b16 %v4934
  %v5235 = vunpack.c.l.b16 %v4935
  %v5236 = vunpack.c.h.b16 %v4935
  %v5237 = vunpack.c.l.b16 %v4936
  %v5238 = vunpack.c.h.b16 %v4936
  %v5239 = vunpack.c.l.b16 %v4937
  %v5240 = vunpack.c.h.b16 %v4937
  %v5241 = vunpack.c.l.b16 %v4938
  %v5242 = vunpack.c.h.b16 %v4938
  %v5243 = vunpack.c.l.b16 %v4939
  %v5244 = vunpack.c.h.b16 %v4939
  %v5245 = vunpack.c.l.b16 %v4940
  %v5246 = vunpack.c.h.b16 %v4940
  %v5247 = vunpack.c.l.b16 %v4941
  %v5248 = vunpack.c.h.b16 %v4941
  %v5249 = vunpack.c.l.b16 %v4942
  %v5250 = vunpack.c.h.b16 %v4942
  %v5251 = vunpack.c.l.b16 %v4943
  %v5252 = vunpack.c.h.b16 %v4943
  %v5253 = vunpack.c.l.b16 %v4944
  %v5254 = vunpack.c.h.b16 %v4944
  %v5255 = vunpack.c.l.b16 %v4945
  %v5256 = vunpack.c.h.b16 %v4945
  %v5257 = vunpack.c.l.b16 %v4946
  %v5258 = vunpack.c.h.b16 %v4946
  %v5259 = vunpack.c.l.b16 %v4947
  %v5260 = vunpack.c.h.b16 %v4947
  %v5261 = vunpack.c.l.b16 %v4948
  %v5262 = vunpack.c.h.b16 %v4948
  %v5263 = vunpack.c.l.b16 %v4949
  %v5264 = vunpack.c.h.b16 %v4949
  %v5265 = vunpack.c.l.b16 %v4950
  %v5266 = vunpack.c.h.b16 %v4950
  %v5267 = vunpack.c.l.b16 %v4951
  %v5268 = vunpack.c.h.b16 %v4951
  %v5269 = vunpack.c.l.b16 %v4952
  %v5270 = vunpack.c.h.b16 %v4952
  %v5271 = vunpack.c.l.b16 %v4953
  %v5272 = vunpack.c.h.b16 %v4953
  %v5273 = vunpack.c.l.b16 %v4954
  %v5274 = vunpack.c.h.b16 %v4954
  %v5275 = vunpack.c.l.b16 %v4955
  %v5276 = vunpack.c.h.b16 %v4955
  %v5277 = vunpack.c.l.b16 %v4956
  %v5278 = vunpack.c.h.b16 %v4956
  %v5279 = vunpack.c.l.b16 %v4957
  %v5280 = vunpack.c.h.b16 %v4957
  %v5281 = vunpack.c.l.b16 %v4958
  %v5282 = vunpack.c.h.b16 %v4958
  %v5283 = vunpack.c.l.b16 %v4959
  %v5284 = vunpack.c.h.b16 %v4959
  %v5285 = vunpack.c.l.b16 %v4960
  %v5286 = vunpack.c.h.b16 %v4960
  %v5287 = vunpack.c.l.b16 %v4961
  %v5288 = vunpack.c.h.b16 %v4961
  %v5289 = vunpack.c.l.b16 %v4962
  %v5290 = vunpack.c.h.b16 %v4962
  %v5291 = vunpack.c.l.b16 %v4963
  %v5292 = vunpack.c.h.b16 %v4963
  %v5293 = vunpack.c.l.b16 %v4964
  %v5294 = vunpack.c.h.b16 %v4964
  %v5295 = vunpack.c.l.b16 %v4965
  %v5296 = vunpack.c.h.b16 %v4965
  %v5297 = vunpack.c.l.b16 %v4966
  %v5298 = vunpack.c.h.b16 %v4966
  %v5299 = vunpack.c.l.b16 %v4967
  %v5300 = vunpack.c.h.b16 %v4967
  %v5301 = vunpack.c.l.b16 %v4968
  %v5302 = vunpack.c.h.b16 %v4968
  %v5303 = vunpack.c.l.b16 %v4969
  %v5304 = vunpack.c.h.b16 %v4969
  %v5305 = vunpack.c.l.b16 %v4970
  %v5306 = vunpack.c.h.b16 %v4970
  %v5307 = vunpack.c.l.b16 %v4971
  %v5308 = vunpack.c.h.b16 %v4971
  %v5309 = vunpack.c.l.b16 %v4972
  %v5310 = vunpack.c.h.b16 %v4972
  %v5311 = vunpack.c.l.b16 %v4973
  %v5312 = vunpack.c.h.b16 %v4973
  %v5313 = vunpack.c.l.b16 %v4974
  %v5314 = vunpack.c.h.b16 %v4974
  %v5315 = vunpack.c.l.b16 %v4975
  %v5316 = vunpack.c.h.b16 %v4975
  %v5317 = vunpack.c.l.b16 %v4976
  %v5318 = vunpack.c.h.b16 %v4976
  %v5319 = vunpack.c.l.b16 %v4977
  %v5320 = vunpack.c.h.b16 %v4977
  %v5321 = vunpack.c.l.b16 %v4978
  %v5322 = vunpack.c.h.b16 %v4978
  %v5323 = vunpack.c.l.b16 %v4979
  %v5324 = vunpack.c.h.b16 %v4979
  %v5325 = vunpack.c.l.b16 %v4980
  %v5326 = vunpack.c.h.b16 %v4980
  %v5327 = vunpack.c.l.b16 %v4981
  %v5328 = vunpack.c.h.b16 %v4981
  %v5329 = vunpack.c.l.b16 %v4982
  %v5330 = vunpack.c.h.b16 %v4982
  %v5331 = vunpack.c.l.b16 %v4983
  %v5332 = vunpack.c.h.b16 %v4983
  %v5333 = vunpack.c.l.b16 %v4984
  %v5334 = vunpack.c.h.b16 %v4984
  %v5335 = vunpack.c.l.b16 %v4985
  %v5336 = vunpack.c.h.b16 %v4985
  %v5337 = vunpack.c.l.b16 %v4986
  %v5338 = vunpack.c.h.b16 %v4986
  %v5339 = vunpack.c.l.b16 %v4987
  %v5340 = vunpack.c.h.b16 %v4987
  %v5341 = vunpack.c.l.b16 %v4988
  %v5342 = vunpack.c.h.b16 %v4988
  %v5343 = vunpack.c.l.b16 %v4989
  %v5344 = vunpack.c.h.b16 %v4989
  %v5345 = vunpack.c.l.b16 %v4990
  %v5346 = vunpack.c.h.b16 %v4990
  %v5347 = vunpack.c.l.b16 %v4991
  %v5348 = vunpack.c.h.b16 %v4991
  %v5349 = vunpack.c.l.b16 %v4992
  %v5350 = vunpack.c.h.b16 %v4992
  %v5351 = vunpack.c.l.b16 %v4993
  %v5352 = vunpack.c.h.b16 %v4993
  %v5353 = vunpack.c.l.b16 %v4994
  %v5354 = vunpack.c.h.b16 %v4994
  %v5355 = vunpack.c.l.b16 %v4995
  %v5356 = vunpack.c.h.b16 %v4995
  %v5357 = vunpack.c.l.b16 %v4996
  %v5358 = vunpack.c.h.b16 %v4996
  %v5359 = vunpack.c.l.b16 %v4997
  %v5360 = vunpack.c.h.b16 %v4997
  %v5361 = vunpack.c.l.b16 %v4998
  %v5362 = vunpack.c.h.b16 %v4998
  %v5363 = vunpack.c.l.b16 %v4999
  %v5364 = vunpack.c.h.b16 %v4999
  %v5365 = vunpack.c.l.b16 %v5000
  %v5366 = vunpack.c.h.b16 %v5000
  %v5367 = vunpack.c.l.b16 %v5001
  %v5368 = vunpack.c.h.b16 %v5001
  %v5369 = vunpack.c.l.b16 %v5002
  %v5370 = vunpack.c.h.b16 %v5002
  %v5371 = vunpack.c.l.b16 %v5003
  %v5372 = vunpack.c.h.b16 %v5003
  %v5373 = vunpack.c.l.b16 %v5004
  %v5374 = vunpack.c.h.b16 %v5004
  %v5375 = vunpack.c.l.b16 %v5005
  %v5376 = vunpack.c.h.b16 %v5005
  %v5377 = vunpack.c.l.b16 %v5006
  %v5378 = vunpack.c.h.b16 %v5006
  %v5379 = vunpack.c.l.b16 %v5007
  %v5380 = vunpack.c.h.b16 %v5007
  %v5381 = vunpack.c.l.b16 %v5008
  %v5382 = vunpack.c.h.b16 %v5008
  %v5383 = vunpack.c.l.b16 %v5009
  %v5384 = vunpack.c.h.b16 %v5009
  %v5385 = vunpack.c.l.b16 %v5010
  %v5386 = vunpack.c.h.b16 %v5010
  %v5387 = vunpack.c.l.b16 %v5011
  %v5388 = vunpack.c.h.b16 %v5011
  %v5389 = vunpack.c.l.b16 %v5012
  %v5390 = vunpack.c.h.b16 %v5012
  %v5391 = vunpack.c.l.b16 %v5013
  %v5392 = vunpack.c.h.b16 %v5013
  %v5393 = vunpack.c.l.b16 %v5014
  %v5394 = vunpack.c.h.b16 %v5014
  %v5395 = vunpack.c.l.b16 %v5015
  %v5396 = vunpack.c.h.b16 %v5015
  %v5397 = vunpack.c.l.b16 %v5016
  %v5398 = vunpack.c.h.b16 %v5016
  %v5399 = vunpack.c.l.b16 %v5017
  %v5400 = vunpack.c.h.b16 %v5017
  %v5401 = vunpack.c.l.b16 %v5018
  %v5402 = vunpack.c.h.b16 %v5018
  %v5403 = vunpack.c.l.b16 %v5019
  %v5404 = vunpack.c.h.b16 %v5019
  %v5405 = vunpack.c.l.b16 %v5020
  %v5406 = vunpack.c.h.b16 %v5020
  %v5407 = vunpack.c.l.b16 %v5021
  %v5408 = vunpack.c.h.b16 %v5021
  %v5409 = vunpack.c.l.b16 %v5022
  %v5410 = vunpack.c.h.b16 %v5022
  %v5411 = vunpack.c.l.b16 %v5023
  %v5412 = vunpack.c.h.b16 %v5023
  %v5413 = vunpack.c.l.b16 %v5024
  %v5414 = vunpack.c.h.b16 %v5024
  %v5415 = vunpack.c.l.b16 %v5025
  %v5416 = vunpack.c.h.b16 %v5025
  %v5417 = vunpack.c.l.b16 %v5026
  %v5418 = vunpack.c.h.b16 %v5026
  %v5419 = vunpack.c.l.b16 %v5027
  %v5420 = vunpack.c.h.b16 %v5027
  %v5421 = vunpack.c.l.b16 %v5028
  %v5422 = vunpack.c.h.b16 %v5028
  %v5423 = vpack.c.b16 %v5171, %v5167
  %v5424 = vpack.c.b16 %v5172, %v5168
  %v5425 = vpack.c.b16 %v5173, %v5169
  %v5426 = vpack.c.b16 %v5174, %v5170
  %v5427 = vpack.c.b16 %v5179, %v5175
  %v5428 = vpack.c.b16 %v5180, %v5176
  %v5429 = vpack.c.b16 %v5181, %v5177
  %v5430 = vpack.c.b16 %v5182, %v5178
  %v5431 = vpack.c.b16 %v5187, %v5183
  %v5432 = vpack.c.b16 %v5188, %v5184
  %v5433 = vpack.c.b16 %v5189, %v5185
  %v5434 = vpack.c.b16 %v5190, %v5186
  %v5435 = vpack.c.b16 %v5195, %v5191
  %v5436 = vpack.c.b16 %v5196, %v5192
  %v5437 = vpack.c.b16 %v5197, %v5193
  %v5438 = vpack.c.b16 %v5198, %v5194
  %v5439 = vpack.c.b16 %v5203, %v5199
  %v5440 = vpack.c.b16 %v5204, %v5200
  %v5441 = vpack.c.b16 %v5205, %v5201
  %v5442 = vpack.c.b16 %v5206, %v5202
  %v5443 = vpack.c.b16 %v5211, %v5207
  %v5444 = vpack.c.b16 %v5212, %v5208
  %v5445 = vpack.c.b16 %v5213, %v5209
  %v5446 = vpack.c.b16 %v5214, %v5210
  %v5447 = vpack.c.b16 %v5219, %v5215
  %v5448 = vpack.c.b16 %v5220, %v5216
  %v5449 = vpack.c.b16 %v5221, %v5217
  %v5450 = vpack.c.b16 %v5222, %v5218
  %v5451 = vpack.c.b16 %v5227, %v5223
  %v5452 = vpack.c.b16 %v5228, %v5224
  %v5453 = vpack.c.b16 %v5229, %v5225
  %v5454 = vpack.c.b16 %v5230, %v5226
  %v5455 = vpack.c.b16 %v5235, %v5231
  %v5456 = vpack.c.b16 %v5236, %v5232
  %v5457 = vpack.c.b16 %v5237, %v5233
  %v5458 = vpack.c.b16 %v5238, %v5234
  %v5459 = vpack.c.b16 %v5243, %v5239
  %v5460 = vpack.c.b16 %v5244, %v5240
  %v5461 = vpack.c.b16 %v5245, %v5241
  %v5462 = vpack.c.b16 %v5246, %v5242
  %v5463 = vpack.c.b16 %v5251, %v5247
  %v5464 = vpack.c.b16 %v5252, %v5248
  %v5465 = vpack.c.b16 %v5253, %v5249
  %v5466 = vpack.c.b16 %v5254, %v5250
  %v5467 = vpack.c.b16 %v5259, %v5255
  %v5468 = vpack.c.b16 %v5260, %v5256
  %v5469 = vpack.c.b16 %v5261, %v5257
  %v5470 = vpack.c.b16 %v5262, %v5258
  %v5471 = vpack.c.b16 %v5267, %v5263
  %v5472 = vpack.c.b16 %v5268, %v5264
  %v5473 = vpack.c.b16 %v5269, %v5265
  %v5474 = vpack.c.b16 %v5270, %v5266
  %v5475 = vpack.c.b16 %v5275, %v5271
  %v5476 = vpack.c.b16 %v5276, %v5272
  %v5477 = vpack.c.b16 %v5277, %v5273
  %v5478 = vpack.c.b16 %v5278, %v5274
  %v5479 = vpack.c.b16 %v5283, %v5279
  %v5480 = vpack.c.b16 %v5284, %v5280
  %v5481 = vpack.c.b16 %v5285, %v5281
  %v5482 = vpack.c.b16 %v5286, %v5282
  %v5483 = vpack.c.b16 %v5291, %v5287
  %v5484 = vpack.c.b16 %v5292, %v5288
  %v5485 = vpack.c.b16 %v5293, %v5289
  %v5486 = vpack.c.b16 %v5294, %v5290
  %v5487 = vpack.c.b16 %v5299, %v5295
  %v5488 = vpack.c.b16 %v5300, %v5296
  %v5489 = vpack.c.b16 %v5301, %v5297
  %v5490 = vpack.c.b16 %v5302, %v5298
  %v5491 = vpack.c.b16 %v5307, %v5303
  %v5492 = vpack.c.b16 %v5308, %v5304
  %v5493 = vpack.c.b16 %v5309, %v5305
  %v5494 = vpack.c.b16 %v5310, %v5306
  %v5495 = vpack.c.b16 %v5315, %v5311
  %v5496 = vpack.c.b16 %v5316, %v5312
  %v5497 = vpack.c.b16 %v5317, %v5313
  %v5498 = vpack.c.b16 %v5318, %v5314
  %v5499 = vpack.c.b16 %v5323, %v5319
  %v5500 = vpack.c.b16 %v5324, %v5320
  %v5501 = vpack.c.b16 %v5325, %v5321
  %v5502 = vpack.c.b16 %v5326, %v5322
  %v5503 = vpack.c.b16 %v5331, %v5327
  %v5504 = vpack.c.b16 %v5332, %v5328
  %v5505 = vpack.c.b16 %v5333, %v5329
  %v5506 = vpack.c.b16 %v5334, %v5330
  %v5507 = vpack.c.b16 %v5339, %v5335
  %v5508 = vpack.c.b16 %v5340, %v5336
  %v5509 = vpack.c.b16 %v5341, %v5337
  %v5510 = vpack.c.b16 %v5342, %v5338
  %v5511 = vpack.c.b16 %v5347, %v5343
  %v5512 = vpack.c.b16 %v5348, %v5344
  %v5513 = vpack.c.b16 %v5349, %v5345
  %v5514 = vpack.c.b16 %v5350, %v5346
  %v5515 = vpack.c.b16 %v5355, %v5351
  %v5516 = vpack.c.b16 %v5356, %v5352
  %v5517 = vpack.c.b16 %v5357, %v5353
  %v5518 = vpack.c.b16 %v5358, %v5354
  %v5519 = vpack.c.b16 %v5363, %v5359
  %v5520 = vpack.c.b16 %v5364, %v5360
  %v5521 = vpack.c.b16 %v5365, %v5361
  %v5522 = vpack.c.b16 %v5366, %v5362
  %v5523 = vpack.c.b16 %v5371, %v5367
  %v5524 = vpack.c.b16 %v5372, %v5368
  %v5525 = vpack.c.b16 %v5373, %v5369
  %v5526 = vpack.c.b16 %v5374, %v5370
  %v5527 = vpack.c.b16 %v5379, %v5375
  %v5528 = vpack.c.b16 %v5380, %v5376
  %v5529 = vpack.c.b16 %v5381, %v5377
  %v5530 = vpack.c.b16 %v5382, %v5378
  %v5531 = vpack.c.b16 %v5387, %v5383
  %v5532 = vpack.c.b16 %v5388, %v5384
  %v5533 = vpack.c.b16 %v5389, %v5385
  %v5534 = vpack.c.b16 %v5390, %v5386
  %v5535 = vpack.c.b16 %v5395, %v5391
  %v5536 = vpack.c.b16 %v5396, %v5392
  %v5537 = vpack.c.b16 %v5397, %v5393
  %v5538 = vpack.c.b16 %v5398, %v5394
  %v5539 = vpack.c.b16 %v5403, %v5399
  %v5540 = vpack.c.b16 %v5404, %v5400
  %v5541 = vpack.c.b16 %v5405, %v5401
  %v5542 = vpack.c.b16 %v5406, %v5402
  %v5543 = vpack.c.b16 %v5411, %v5407
  %v5544 = vpack.c.b16 %v5412, %v5408
  %v5545 = vpack.c.b16 %v5413, %v5409
  %v5546 = vpack.c.b16 %v5414, %v5410
  %v5547 = vpack.c.b16 %v5419, %v5415
  %v5548 = vpack.c.b16 %v5420, %v5416
  %v5549 = vpack.c.b16 %v5421, %v5417
  %v5550 = vpack.c.b16 %v5422, %v5418
  %5679 = vmatpush.bf16.msra.mxu0 %v5451
  %5680 = vmatpush.bf16.msra.mxu0 %v5447
  %5681 = vmatpush.bf16.msra.mxu0 %v5443
  %5682 = vmatpush.bf16.msra.mxu0 %v5439
  %5683 = vmatpush.bf16.msra.mxu0 %v5435
  %5684 = vmatpush.bf16.msra.mxu0 %v5431
  %5685 = vmatpush.bf16.msra.mxu0 %v5427
  %5686 = vmatpush.bf16.msra.mxu0 %v5423
  %5687 = vmatmul.bf16.gmra.mxu0 %v4893
  %v5688 = vpop.f32.mrf.mxu0
  %v5689 = vadd.f32 %v5031, %v5688
  %v5690 = vpop.f32.mrf.mxu0
  %v5691 = vadd.f32 %v5031, %v5690
  %5692 = vmatmul.bf16.gmra.mxu0 %v4897
  %v5693 = vpop.f32.mrf.mxu0
  %v5694 = vadd.f32 %v5031, %v5693
  %v5695 = vpop.f32.mrf.mxu0
  %v5696 = vadd.f32 %v5031, %v5695
  %5697 = vdwg.mxu0
  %5698 = vmatpush.bf16.msra.mxu0 %v5483
  %5699 = vmatpush.bf16.msra.mxu0 %v5479
  %5700 = vmatpush.bf16.msra.mxu0 %v5475
  %5701 = vmatpush.bf16.msra.mxu0 %v5471
  %5702 = vmatpush.bf16.msra.mxu0 %v5467
  %5703 = vmatpush.bf16.msra.mxu0 %v5463
  %5704 = vmatpush.bf16.msra.mxu0 %v5459
  %5705 = vmatpush.bf16.msra.mxu0 %v5455
  %5706 = vmatmul.bf16.gmra.mxu0 %v4894
  %v5707 = vpop.f32.mrf.mxu0
  %v5708 = vadd.f32 %v5689, %v5707
  %v5709 = vpop.f32.mrf.mxu0
  %v5710 = vadd.f32 %v5691, %v5709
  %5711 = vmatmul.bf16.gmra.mxu0 %v4898
  %v5712 = vpop.f32.mrf.mxu0
  %v5713 = vadd.f32 %v5694, %v5712
  %v5714 = vpop.f32.mrf.mxu0
  %v5715 = vadd.f32 %v5696, %v5714
  %5716 = vdwg.mxu0
  %5717 = vmatpush.bf16.msra.mxu0 %v5515
  %5718 = vmatpush.bf16.msra.mxu0 %v5511
  %5719 = vmatpush.bf16.msra.mxu0 %v5507
  %5720 = vmatpush.bf16.msra.mxu0 %v5503
  %5721 = vmatpush.bf16.msra.mxu0 %v5499
  %5722 = vmatpush.bf16.msra.mxu0 %v5495
  %5723 = vmatpush.bf16.msra.mxu0 %v5491
  %5724 = vmatpush.bf16.msra.mxu0 %v5487
  %5725 = vmatmul.bf16.gmra.mxu0 %v4895
  %v5726 = vpop.f32.mrf.mxu0
  %v5727 = vadd.f32 %v5708, %v5726
  %v5728 = vpop.f32.mrf.mxu0
  %v5729 = vadd.f32 %v5710, %v5728
  %5730 = vmatmul.bf16.gmra.mxu0 %v4899
  %v5731 = vpop.f32.mrf.mxu0
  %v5732 = vadd.f32 %v5713, %v5731
  %v5733 = vpop.f32.mrf.mxu0
  %v5734 = vadd.f32 %v5715, %v5733
  %5735 = vdwg.mxu0
  %5736 = vmatpush.bf16.msra.mxu0 %v5547
  %5737 = vmatpush.bf16.msra.mxu0 %v5543
  %5738 = vmatpush.bf16.msra.mxu0 %v5539
  %5739 = vmatpush.bf16.msra.mxu0 %v5535
  %5740 = vmatpush.bf16.msra.mxu0 %v5531
  %5741 = vmatpush.bf16.msra.mxu0 %v5527
  %5742 = vmatpush.bf16.msra.mxu0 %v5523
  %5743 = vmatpush.bf16.msra.mxu0 %v5519
  %5744 = vmatmul.bf16.gmra.mxu0 %v4896
  %v5745 = vpop.f32.mrf.mxu0
  %v5746 = vadd.f32 %v5727, %v5745
  %v5747 = vpop.f32.mrf.mxu0
  %v5748 = vadd.f32 %v5729, %v5747
  %5749 = vmatmul.bf16.gmra.mxu0 %v4900
  %v5750 = vpop.f32.mrf.mxu0
  %v5751 = vadd.f32 %v5732, %v5750
  %v5752 = vpop.f32.mrf.mxu0
  %v5753 = vadd.f32 %v5734, %v5752
  %5754 = vdwg.mxu0
  %5755 = vmatpush.bf16.msra.mxu0 %v5452
  %5756 = vmatpush.bf16.msra.mxu0 %v5448
  %5757 = vmatpush.bf16.msra.mxu0 %v5444
  %5758 = vmatpush.bf16.msra.mxu0 %v5440
  %5759 = vmatpush.bf16.msra.mxu0 %v5436
  %5760 = vmatpush.bf16.msra.mxu0 %v5432
  %5761 = vmatpush.bf16.msra.mxu0 %v5428
  %5762 = vmatpush.bf16.msra.mxu0 %v5424
  %5763 = vmatmul.bf16.gmra.mxu0 %v4893
  %v5764 = vpop.f32.mrf.mxu0
  %v5765 = vadd.f32 %v5032, %v5764
  %v5766 = vpop.f32.mrf.mxu0
  %v5767 = vadd.f32 %v5032, %v5766
  %5768 = vmatmul.bf16.gmra.mxu0 %v4897
  %v5769 = vpop.f32.mrf.mxu0
  %v5770 = vadd.f32 %v5032, %v5769
  %v5771 = vpop.f32.mrf.mxu0
  %v5772 = vadd.f32 %v5032, %v5771
  %5773 = vdwg.mxu0
  %5774 = vmatpush.bf16.msra.mxu0 %v5484
  %5775 = vmatpush.bf16.msra.mxu0 %v5480
  %5776 = vmatpush.bf16.msra.mxu0 %v5476
  %5777 = vmatpush.bf16.msra.mxu0 %v5472
  %5778 = vmatpush.bf16.msra.mxu0 %v5468
  %5779 = vmatpush.bf16.msra.mxu0 %v5464
  %5780 = vmatpush.bf16.msra.mxu0 %v5460
  %5781 = vmatpush.bf16.msra.mxu0 %v5456
  %5782 = vmatmul.bf16.gmra.mxu0 %v4894
  %v5783 = vpop.f32.mrf.mxu0
  %v5784 = vadd.f32 %v5765, %v5783
  %v5785 = vpop.f32.mrf.mxu0
  %v5786 = vadd.f32 %v5767, %v5785
  %5787 = vmatmul.bf16.gmra.mxu0 %v4898
  %v5788 = vpop.f32.mrf.mxu0
  %v5789 = vadd.f32 %v5770, %v5788
  %v5790 = vpop.f32.mrf.mxu0
  %v5791 = vadd.f32 %v5772, %v5790
  %5792 = vdwg.mxu0
  %5793 = vmatpush.bf16.msra.mxu0 %v5516
  %5794 = vmatpush.bf16.msra.mxu0 %v5512
  %5795 = vmatpush.bf16.msra.mxu0 %v5508
  %5796 = vmatpush.bf16.msra.mxu0 %v5504
  %5797 = vmatpush.bf16.msra.mxu0 %v5500
  %5798 = vmatpush.bf16.msra.mxu0 %v5496
  %5799 = vmatpush.bf16.msra.mxu0 %v5492
  %5800 = vmatpush.bf16.msra.mxu0 %v5488
  %5801 = vmatmul.bf16.gmra.mxu0 %v4895
  %v5802 = vpop.f32.mrf.mxu0
  %v5803 = vadd.f32 %v5784, %v5802
  %v5804 = vpop.f32.mrf.mxu0
  %v5805 = vadd.f32 %v5786, %v5804
  %5806 = vmatmul.bf16.gmra.mxu0 %v4899
  %v5807 = vpop.f32.mrf.mxu0
  %v5808 = vadd.f32 %v5789, %v5807
  %v5809 = vpop.f32.mrf.mxu0
  %v5810 = vadd.f32 %v5791, %v5809
  %5811 = vdwg.mxu0
  %5812 = vmatpush.bf16.msra.mxu0 %v5548
  %5813 = vmatpush.bf16.msra.mxu0 %v5544
  %5814 = vmatpush.bf16.msra.mxu0 %v5540
  %5815 = vmatpush.bf16.msra.mxu0 %v5536
  %5816 = vmatpush.bf16.msra.mxu0 %v5532
  %5817 = vmatpush.bf16.msra.mxu0 %v5528
  %5818 = vmatpush.bf16.msra.mxu0 %v5524
  %5819 = vmatpush.bf16.msra.mxu0 %v5520
  %5820 = vmatmul.bf16.gmra.mxu0 %v4896
  %v5821 = vpop.f32.mrf.mxu0
  %v5822 = vadd.f32 %v5803, %v5821
  %v5823 = vpop.f32.mrf.mxu0
  %v5824 = vadd.f32 %v5805, %v5823
  %5825 = vmatmul.bf16.gmra.mxu0 %v4900
  %v5826 = vpop.f32.mrf.mxu0
  %v5827 = vadd.f32 %v5808, %v5826
  %v5828 = vpop.f32.mrf.mxu0
  %v5829 = vadd.f32 %v5810, %v5828
  %5830 = vdwg.mxu0
  %5831 = vmatpush.bf16.msra.mxu0 %v5453
  %5832 = vmatpush.bf16.msra.mxu0 %v5449
  %5833 = vmatpush.bf16.msra.mxu0 %v5445
  %5834 = vmatpush.bf16.msra.mxu0 %v5441
  %5835 = vmatpush.bf16.msra.mxu0 %v5437
  %5836 = vmatpush.bf16.msra.mxu0 %v5433
  %5837 = vmatpush.bf16.msra.mxu0 %v5429
  %5838 = vmatpush.bf16.msra.mxu0 %v5425
  %5839 = vmatmul.bf16.gmra.mxu0 %v4893
  %v5840 = vpop.f32.mrf.mxu0
  %v5841 = vadd.f32 %v5033, %v5840
  %v5842 = vpop.f32.mrf.mxu0
  %v5843 = vadd.f32 %v5033, %v5842
  %5844 = vmatmul.bf16.gmra.mxu0 %v4897
  %v5845 = vpop.f32.mrf.mxu0
  %v5846 = vadd.f32 %v5033, %v5845
  %v5847 = vpop.f32.mrf.mxu0
  %v5848 = vadd.f32 %v5033, %v5847
  %5849 = vdwg.mxu0
  %5850 = vmatpush.bf16.msra.mxu0 %v5485
  %5851 = vmatpush.bf16.msra.mxu0 %v5481
  %5852 = vmatpush.bf16.msra.mxu0 %v5477
  %5853 = vmatpush.bf16.msra.mxu0 %v5473
  %5854 = vmatpush.bf16.msra.mxu0 %v5469
  %5855 = vmatpush.bf16.msra.mxu0 %v5465
  %5856 = vmatpush.bf16.msra.mxu0 %v5461
  %5857 = vmatpush.bf16.msra.mxu0 %v5457
  %5858 = vmatmul.bf16.gmra.mxu0 %v4894
  %v5859 = vpop.f32.mrf.mxu0
  %v5860 = vadd.f32 %v5841, %v5859
  %v5861 = vpop.f32.mrf.mxu0
  %v5862 = vadd.f32 %v5843, %v5861
  %5863 = vmatmul.bf16.gmra.mxu0 %v4898
  %v5864 = vpop.f32.mrf.mxu0
  %v5865 = vadd.f32 %v5846, %v5864
  %v5866 = vpop.f32.mrf.mxu0
  %v5867 = vadd.f32 %v5848, %v5866
  %5868 = vdwg.mxu0
  %5869 = vmatpush.bf16.msra.mxu0 %v5517
  %5870 = vmatpush.bf16.msra.mxu0 %v5513
  %5871 = vmatpush.bf16.msra.mxu0 %v5509
  %5872 = vmatpush.bf16.msra.mxu0 %v5505
  %5873 = vmatpush.bf16.msra.mxu0 %v5501
  %5874 = vmatpush.bf16.msra.mxu0 %v5497
  %5875 = vmatpush.bf16.msra.mxu0 %v5493
  %5876 = vmatpush.bf16.msra.mxu0 %v5489
  %5877 = vmatmul.bf16.gmra.mxu0 %v4895
  %v5878 = vpop.f32.mrf.mxu0
  %v5879 = vadd.f32 %v5860, %v5878
  %v5880 = vpop.f32.mrf.mxu0
  %v5881 = vadd.f32 %v5862, %v5880
  %5882 = vmatmul.bf16.gmra.mxu0 %v4899
  %v5883 = vpop.f32.mrf.mxu0
  %v5884 = vadd.f32 %v5865, %v5883
  %v5885 = vpop.f32.mrf.mxu0
  %v5886 = vadd.f32 %v5867, %v5885
  %5887 = vdwg.mxu0
  %5888 = vmatpush.bf16.msra.mxu0 %v5549
  %5889 = vmatpush.bf16.msra.mxu0 %v5545
  %5890 = vmatpush.bf16.msra.mxu0 %v5541
  %5891 = vmatpush.bf16.msra.mxu0 %v5537
  %5892 = vmatpush.bf16.msra.mxu0 %v5533
  %5893 = vmatpush.bf16.msra.mxu0 %v5529
  %5894 = vmatpush.bf16.msra.mxu0 %v5525
  %5895 = vmatpush.bf16.msra.mxu0 %v5521
  %5896 = vmatmul.bf16.gmra.mxu0 %v4896
  %v5897 = vpop.f32.mrf.mxu0
  %v5898 = vadd.f32 %v5879, %v5897
  %v5899 = vpop.f32.mrf.mxu0
  %v5900 = vadd.f32 %v5881, %v5899
  %5901 = vmatmul.bf16.gmra.mxu0 %v4900
  %v5902 = vpop.f32.mrf.mxu0
  %v5903 = vadd.f32 %v5884, %v5902
  %v5904 = vpop.f32.mrf.mxu0
  %v5905 = vadd.f32 %v5886, %v5904
  %5906 = vdwg.mxu0
  %5907 = vmatpush.bf16.msra.mxu0 %v5454
  %5908 = vmatpush.bf16.msra.mxu0 %v5450
  %5909 = vmatpush.bf16.msra.mxu0 %v5446
  %5910 = vmatpush.bf16.msra.mxu0 %v5442
  %5911 = vmatpush.bf16.msra.mxu0 %v5438
  %5912 = vmatpush.bf16.msra.mxu0 %v5434
  %5913 = vmatpush.bf16.msra.mxu0 %v5430
  %5914 = vmatpush.bf16.msra.mxu0 %v5426
  %5915 = vmatmul.bf16.gmra.mxu0 %v4893
  %v5916 = vpop.f32.mrf.mxu0
  %v5917 = vadd.f32 %v5034, %v5916
  %v5918 = vpop.f32.mrf.mxu0
  %v5919 = vadd.f32 %v5034, %v5918
  %5920 = vmatmul.bf16.gmra.mxu0 %v4897
  %v5921 = vpop.f32.mrf.mxu0
  %v5922 = vadd.f32 %v5034, %v5921
  %v5923 = vpop.f32.mrf.mxu0
  %v5924 = vadd.f32 %v5034, %v5923
  %5925 = vdwg.mxu0
  %5926 = vmatpush.bf16.msra.mxu0 %v5486
  %5927 = vmatpush.bf16.msra.mxu0 %v5482
  %5928 = vmatpush.bf16.msra.mxu0 %v5478
  %5929 = vmatpush.bf16.msra.mxu0 %v5474
  %5930 = vmatpush.bf16.msra.mxu0 %v5470
  %5931 = vmatpush.bf16.msra.mxu0 %v5466
  %5932 = vmatpush.bf16.msra.mxu0 %v5462
  %5933 = vmatpush.bf16.msra.mxu0 %v5458
  %5934 = vmatmul.bf16.gmra.mxu0 %v4894
  %v5935 = vpop.f32.mrf.mxu0
  %v5936 = vadd.f32 %v5917, %v5935
  %v5937 = vpop.f32.mrf.mxu0
  %v5938 = vadd.f32 %v5919, %v5937
  %5939 = vmatmul.bf16.gmra.mxu0 %v4898
  %v5940 = vpop.f32.mrf.mxu0
  %v5941 = vadd.f32 %v5922, %v5940
  %v5942 = vpop.f32.mrf.mxu0
  %v5943 = vadd.f32 %v5924, %v5942
  %5944 = vdwg.mxu0
  %5945 = vmatpush.bf16.msra.mxu0 %v5518
  %5946 = vmatpush.bf16.msra.mxu0 %v5514
  %5947 = vmatpush.bf16.msra.mxu0 %v5510
  %5948 = vmatpush.bf16.msra.mxu0 %v5506
  %5949 = vmatpush.bf16.msra.mxu0 %v5502
  %5950 = vmatpush.bf16.msra.mxu0 %v5498
  %5951 = vmatpush.bf16.msra.mxu0 %v5494
  %5952 = vmatpush.bf16.msra.mxu0 %v5490
  %5953 = vmatmul.bf16.gmra.mxu0 %v4895
  %v5954 = vpop.f32.mrf.mxu0
  %v5955 = vadd.f32 %v5936, %v5954
  %v5956 = vpop.f32.mrf.mxu0
  %v5957 = vadd.f32 %v5938, %v5956
  %5958 = vmatmul.bf16.gmra.mxu0 %v4899
  %v5959 = vpop.f32.mrf.mxu0
  %v5960 = vadd.f32 %v5941, %v5959
  %v5961 = vpop.f32.mrf.mxu0
  %v5962 = vadd.f32 %v5943, %v5961
  %5963 = vdwg.mxu0
  %5964 = vmatpush.bf16.msra.mxu0 %v5550
  %5965 = vmatpush.bf16.msra.mxu0 %v5546
  %5966 = vmatpush.bf16.msra.mxu0 %v5542
  %5967 = vmatpush.bf16.msra.mxu0 %v5538
  %5968 = vmatpush.bf16.msra.mxu0 %v5534
  %5969 = vmatpush.bf16.msra.mxu0 %v5530
  %5970 = vmatpush.bf16.msra.mxu0 %v5526
  %5971 = vmatpush.bf16.msra.mxu0 %v5522
  %5972 = vmatmul.bf16.gmra.mxu0 %v4896
  %v5973 = vpop.f32.mrf.mxu0
  %v5974 = vadd.f32 %v5955, %v5973
  %v5975 = vpop.f32.mrf.mxu0
  %v5976 = vadd.f32 %v5957, %v5975
  %5977 = vmatmul.bf16.gmra.mxu0 %v4900
  %v5978 = vpop.f32.mrf.mxu0
  %v5979 = vadd.f32 %v5960, %v5978
  %v5980 = vpop.f32.mrf.mxu0
  %v5981 = vadd.f32 %v5962, %v5980
  %5982 = vdwg.mxu0
  %v5983 = vmul.f32 %v5746, 0.5
  %v5984 = vmul.f32 %v5822, 0.5
  %v5985 = vmul.f32 %v5898, 0.5
  %v5986 = vmul.f32 %v5974, 0.5
  %v5987 = vmul.f32 %v5748, 0.5
  %v5988 = vmul.f32 %v5824, 0.5
  %v5989 = vmul.f32 %v5900, 0.5
  %v5990 = vmul.f32 %v5976, 0.5
  %v5991 = vmul.f32 %v5751, 0.5
  %v5992 = vmul.f32 %v5827, 0.5
  %v5993 = vmul.f32 %v5903, 0.5
  %v5994 = vmul.f32 %v5979, 0.5
  %v5995 = vmul.f32 %v5753, 0.5
  %v5996 = vmul.f32 %v5829, 0.5
  %v5997 = vmul.f32 %v5905, 0.5
  %v5998 = vmul.f32 %v5981, 0.5
  %v5999 = vmul.f32 %v5746, 0.044715
  %v6000 = vmul.f32 %v5822, 0.044715
  %v6001 = vmul.f32 %v5898, 0.044715
  %v6002 = vmul.f32 %v5974, 0.044715
  %v6003 = vmul.f32 %v5748, 0.044715
  %v6004 = vmul.f32 %v5824, 0.044715
  %v6005 = vmul.f32 %v5900, 0.044715
  %v6006 = vmul.f32 %v5976, 0.044715
  %v6007 = vmul.f32 %v5751, 0.044715
  %v6008 = vmul.f32 %v5827, 0.044715
  %v6009 = vmul.f32 %v5903, 0.044715
  %v6010 = vmul.f32 %v5979, 0.044715
  %v6011 = vmul.f32 %v5753, 0.044715
  %v6012 = vmul.f32 %v5829, 0.044715
  %v6013 = vmul.f32 %v5905, 0.044715
  %v6014 = vmul.f32 %v5981, 0.044715
  %v6015 = vmul.f32 %v5999, %v5746
  %v6016 = vmul.f32 %v6000, %v5822
  %v6017 = vmul.f32 %v6001, %v5898
  %v6018 = vmul.f32 %v6002, %v5974
  %v6019 = vmul.f32 %v6003, %v5748
  %v6020 = vmul.f32 %v6004, %v5824
  %v6021 = vmul.f32 %v6005, %v5900
  %v6022 = vmul.f32 %v6006, %v5976
  %v6023 = vmul.f32 %v6007, %v5751
  %v6024 = vmul.f32 %v6008, %v5827
  %v6025 = vmul.f32 %v6009, %v5903
  %v6026 = vmul.f32 %v6010, %v5979
  %v6027 = vmul.f32 %v6011, %v5753
  %v6028 = vmul.f32 %v6012, %v5829
  %v6029 = vmul.f32 %v6013, %v5905
  %v6030 = vmul.f32 %v6014, %v5981
  %v6031 = vmul.f32 %v6015, %v5746
  %v6032 = vmul.f32 %v6016, %v5822
  %v6033 = vmul.f32 %v6017, %v5898
  %v6034 = vmul.f32 %v6018, %v5974
  %v6035 = vmul.f32 %v6019, %v5748
  %v6036 = vmul.f32 %v6020, %v5824
  %v6037 = vmul.f32 %v6021, %v5900
  %v6038 = vmul.f32 %v6022, %v5976
  %v6039 = vmul.f32 %v6023, %v5751
  %v6040 = vmul.f32 %v6024, %v5827
  %v6041 = vmul.f32 %v6025, %v5903
  %v6042 = vmul.f32 %v6026, %v5979
  %v6043 = vmul.f32 %v6027, %v5753
  %v6044 = vmul.f32 %v6028, %v5829
  %v6045 = vmul.f32 %v6029, %v5905
  %v6046 = vmul.f32 %v6030, %v5981
  %v6047 = vadd.f32 %v5746, %v6031
  %v6048 = vadd.f32 %v5822, %v6032
  %v6049 = vadd.f32 %v5898, %v6033
  %v6050 = vadd.f32 %v5974, %v6034
  %v6051 = vadd.f32 %v5748, %v6035
  %v6052 = vadd.f32 %v5824, %v6036
  %v6053 = vadd.f32 %v5900, %v6037
  %v6054 = vadd.f32 %v5976, %v6038
  %v6055 = vadd.f32 %v5751, %v6039
  %v6056 = vadd.f32 %v5827, %v6040
  %v6057 = vadd.f32 %v5903, %v6041
  %v6058 = vadd.f32 %v5979, %v6042
  %v6059 = vadd.f32 %v5753, %v6043
  %v6060 = vadd.f32 %v5829, %v6044
  %v6061 = vadd.f32 %v5905, %v6045
  %v6062 = vadd.f32 %v5981, %v6046
  %v6063 = vmul.f32 %v6047, 0.7978846
  %v6064 = vmul.f32 %v6048, 0.7978846
  %v6065 = vmul.f32 %v6049, 0.7978846
  %v6066 = vmul.f32 %v6050, 0.7978846
  %v6067 = vmul.f32 %v6051, 0.7978846
  %v6068 = vmul.f32 %v6052, 0.7978846
  %v6069 = vmul.f32 %v6053, 0.7978846
  %v6070 = vmul.f32 %v6054, 0.7978846
  %v6071 = vmul.f32 %v6055, 0.7978846
  %v6072 = vmul.f32 %v6056, 0.7978846
  %v6073 = vmul.f32 %v6057, 0.7978846
  %v6074 = vmul.f32 %v6058, 0.7978846
  %v6075 = vmul.f32 %v6059, 0.7978846
  %v6076 = vmul.f32 %v6060, 0.7978846
  %v6077 = vmul.f32 %v6061, 0.7978846
  %v6078 = vmul.f32 %v6062, 0.7978846
  %v6079 = vtanh.pop %v6063
  %v6080 = vtanh.pop %v6064
  %v6081 = vtanh.pop %v6065
  %v6082 = vtanh.pop %v6066
  %v6083 = vtanh.pop %v6067
  %v6084 = vtanh.pop %v6068
  %v6085 = vtanh.pop %v6069
  %v6086 = vtanh.pop %v6070
  %v6087 = vtanh.pop %v6071
  %v6088 = vtanh.pop %v6072
  %v6089 = vtanh.pop %v6073
  %v6090 = vtanh.pop %v6074
  %v6091 = vtanh.pop %v6075
  %v6092 = vtanh.pop %v6076
  %v6093 = vtanh.pop %v6077
  %v6094 = vtanh.pop %v6078
  %v6095 = vadd.f32 %v6079, 1.0
  %v6096 = vadd.f32 %v6080, 1.0
  %v6097 = vadd.f32 %v6081, 1.0
  %v6098 = vadd.f32 %v6082, 1.0
  %v6099 = vadd.f32 %v6083, 1.0
  %v6100 = vadd.f32 %v6084, 1.0
  %v6101 = vadd.f32 %v6085, 1.0
  %v6102 = vadd.f32 %v6086, 1.0
  %v6103 = vadd.f32 %v6087, 1.0
  %v6104 = vadd.f32 %v6088, 1.0
  %v6105 = vadd.f32 %v6089, 1.0
  %v6106 = vadd.f32 %v6090, 1.0
  %v6107 = vadd.f32 %v6091, 1.0
  %v6108 = vadd.f32 %v6092, 1.0
  %v6109 = vadd.f32 %v6093, 1.0
  %v6110 = vadd.f32 %v6094, 1.0
  %v6111 = vmul.f32 %v5983, %v6095
  %v6112 = vmul.f32 %v5984, %v6096
  %v6113 = vmul.f32 %v5985, %v6097
  %v6114 = vmul.f32 %v5986, %v6098
  %v6115 = vmul.f32 %v5987, %v6099
  %v6116 = vmul.f32 %v5988, %v6100
  %v6117 = vmul.f32 %v5989, %v6101
  %v6118 = vmul.f32 %v5990, %v6102
  %v6119 = vmul.f32 %v5991, %v6103
  %v6120 = vmul.f32 %v5992, %v6104
  %v6121 = vmul.f32 %v5993, %v6105
  %v6122 = vmul.f32 %v5994, %v6106
  %v6123 = vmul.f32 %v5995, %v6107
  %v6124 = vmul.f32 %v5996, %v6108
  %v6125 = vmul.f32 %v5997, %v6109
  %v6126 = vmul.f32 %v5998, %v6110
  %v6127 = vld [vmem:[%s8] sm:$0xf]
  %v6128 = vld [vmem:[%s9] sm:$0xf]
  %v6129 = vadd.f32 %v6111, %v6115
  %v6130 = vadd.f32 %v6129, %v6119
  %v6131 = vadd.f32 %v6130, %v6123
  %v6132 = vrot.slane %v6131, 4
  %v6133 = vadd.f32 %v6131, %v6132
  %v6134 = vrot.slane %v6133, 2
  %v6135 = vadd.f32 %v6133, %v6134
  %v6136 = vrot.slane %v6135, 1
  %v6137 = vadd.f32 %v6135, %v6136
  %v6138 = vadd.f32 %v6112, %v6116
  %v6139 = vadd.f32 %v6138, %v6120
  %v6140 = vadd.f32 %v6139, %v6124
  %v6141 = vrot.slane %v6140, 4
  %v6142 = vadd.f32 %v6140, %v6141
  %v6143 = vrot.slane %v6142, 2
  %v6144 = vadd.f32 %v6142, %v6143
  %v6145 = vrot.slane %v6144, 1
  %v6146 = vadd.f32 %v6144, %v6145
  %v6147 = vadd.f32 %v6113, %v6117
  %v6148 = vadd.f32 %v6147, %v6121
  %v6149 = vadd.f32 %v6148, %v6125
  %v6150 = vrot.slane %v6149, 4
  %v6151 = vadd.f32 %v6149, %v6150
  %v6152 = vrot.slane %v6151, 2
  %v6153 = vadd.f32 %v6151, %v6152
  %v6154 = vrot.slane %v6153, 1
  %v6155 = vadd.f32 %v6153, %v6154
  %v6156 = vadd.f32 %v6114, %v6118
  %v6157 = vadd.f32 %v6156, %v6122
  %v6158 = vadd.f32 %v6157, %v6126
  %v6159 = vrot.slane %v6158, 4
  %v6160 = vadd.f32 %v6158, %v6159
  %v6161 = vrot.slane %v6160, 2
  %v6162 = vadd.f32 %v6160, %v6161
  %v6163 = vrot.slane %v6162, 1
  %v6164 = vadd.f32 %v6162, %v6163
  %v6165 = vmul.f32 %v6111, %v6111
  %v6166 = vmul.f32 %v6112, %v6112
  %v6167 = vmul.f32 %v6113, %v6113
  %v6168 = vmul.f32 %v6114, %v6114
  %v6169 = vmul.f32 %v6115, %v6115
  %v6170 = vmul.f32 %v6116, %v6116
  %v6171 = vmul.f32 %v6117, %v6117
  %v6172 = vmul.f32 %v6118, %v6118
  %v6173 = vmul.f32 %v6119, %v6119
  %v6174 = vmul.f32 %v6120, %v6120
  %v6175 = vmul.f32 %v6121, %v6121
  %v6176 = vmul.f32 %v6122, %v6122
  %v6177 = vmul.f32 %v6123, %v6123
  %v6178 = vmul.f32 %v6124, %v6124
  %v6179 = vmul.f32 %v6125, %v6125
  %v6180 = vmul.f32 %v6126, %v6126
  %v6181 = vadd.f32 %v6165, %v6169
  %v6182 = vadd.f32 %v6181, %v6173
  %v6183 = vadd.f32 %v6182, %v6177
  %v6184 = vrot.slane %v6183, 4
  %v6185 = vadd.f32 %v6183, %v6184
  %v6186 = vrot.slane %v6185, 2
  %v6187 = vadd.f32 %v6185, %v6186
  %v6188 = vrot.slane %v6187, 1
  %v6189 = vadd.f32 %v6187, %v6188
  %v6190 = vadd.f32 %v6166, %v6170
  %v6191 = vadd.f32 %v6190, %v6174
  %v6192 = vadd.f32 %v6191, %v6178
  %v6193 = vrot.slane %v6192, 4
  %v6194 = vadd.f32 %v6192, %v6193
  %v6195 = vrot.slane %v6194, 2
  %v6196 = vadd.f32 %v6194, %v6195
  %v6197 = vrot.slane %v6196, 1
  %v6198 = vadd.f32 %v6196, %v6197
  %v6199 = vadd.f32 %v6167, %v6171
  %v6200 = vadd.f32 %v6199, %v6175
  %v6201 = vadd.f32 %v6200, %v6179
  %v6202 = vrot.slane %v6201, 4
  %v6203 = vadd.f32 %v6201, %v6202
  %v6204 = vrot.slane %v6203, 2
  %v6205 = vadd.f32 %v6203, %v6204
  %v6206 = vrot.slane %v6205, 1
  %v6207 = vadd.f32 %v6205, %v6206
  %v6208 = vadd.f32 %v6168, %v6172
  %v6209 = vadd.f32 %v6208, %v6176
  %v6210 = vadd.f32 %v6209, %v6180
  %v6211 = vrot.slane %v6210, 4
  %v6212 = vadd.f32 %v6210, %v6211
  %v6213 = vrot.slane %v6212, 2
  %v6214 = vadd.f32 %v6212, %v6213
  %v6215 = vrot.slane %v6214, 1
  %v6216 = vadd.f32 %v6214, %v6215
  %v6217 = vsel %vm4760, %v6137, %v6189
  %v6218 = vsel %vm4760, %v6146, %v6198
  %v6219 = vsel %vm4760, %v6155, %v6207
  %v6220 = vsel %vm4760, %v6164, %v6216
  %v6221 = vadd.f32 %v6217, %v6219
  %v6222 = vadd.f32 %v6218, %v6220
  %v6223 = vadd.f32 %v6221, %v6222
  %6224 = vrot.lane.b32.xlu0 %v6223, 64
  %v6225 = vpop.permute.xlu0 %6224
  %v6226 = vadd.f32 %v6223, %v6225
  %6227 = vrot.lane.b32.xlu0 %v6226, 32
  %v6228 = vpop.permute.xlu0 %6227
  %v6229 = vadd.f32 %v6226, %v6228
  %v6230 = vmul.f32 %v6229, 0.001953125
  %v6231 = vmul.f32 %v6230, %v6230
  %v6233 = vrot.slane %v6231, 7
  %v6235 = vsub.f32 %v6230, %v6233
  %v6236 = vperm.slane %v6230, 0
  %v6237 = vsub.f32 %v6111, %v6236
  %v6238 = vsub.f32 %v6112, %v6236
  %v6239 = vsub.f32 %v6113, %v6236
  %v6240 = vsub.f32 %v6114, %v6236
  %v6241 = vsub.f32 %v6115, %v6236
  %v6242 = vsub.f32 %v6116, %v6236
  %v6243 = vsub.f32 %v6117, %v6236
  %v6244 = vsub.f32 %v6118, %v6236
  %v6245 = vsub.f32 %v6119, %v6236
  %v6246 = vsub.f32 %v6120, %v6236
  %v6247 = vsub.f32 %v6121, %v6236
  %v6248 = vsub.f32 %v6122, %v6236
  %v6249 = vsub.f32 %v6123, %v6236
  %v6250 = vsub.f32 %v6124, %v6236
  %v6251 = vsub.f32 %v6125, %v6236
  %v6252 = vsub.f32 %v6126, %v6236
  %v6253 = vadd.f32 %v6235, 1e-05
  %v6254 = vrsqrt.pop %v6253
  %v6255 = vmul.f32 %v6254, %v6253
  %v6256 = vmul.f32 %v6255, %v6254
  %v6257 = vmul.f32 0.5, %v6256
  %v6258 = vsub.f32 1.5, %v6257
  %v6259 = vmul.f32 %v6254, %v6258
  %vm6260 = vweird.f32 %v6253
  %vm6261 = vweird.f32 %v6254
  %vm6262 = vmor %vm6260, %vm6261
  %v6263 = vsel %vm6262, %v6254, %v6259
  %v6264 = vperm.slane %v6263, 1
  %v6265 = vmul.f32 %v6237, %v6264
  %v6266 = vmul.f32 %v6238, %v6264
  %v6267 = vmul.f32 %v6239, %v6264
  %v6268 = vmul.f32 %v6240, %v6264
  %v6269 = vmul.f32 %v6241, %v6264
  %v6270 = vmul.f32 %v6242, %v6264
  %v6271 = vmul.f32 %v6243, %v6264
  %v6272 = vmul.f32 %v6244, %v6264
  %v6273 = vmul.f32 %v6245, %v6264
  %v6274 = vmul.f32 %v6246, %v6264
  %v6275 = vmul.f32 %v6247, %v6264
  %v6276 = vmul.f32 %v6248, %v6264
  %v6277 = vmul.f32 %v6249, %v6264
  %v6278 = vmul.f32 %v6250, %v6264
  %v6279 = vmul.f32 %v6251, %v6264
  %v6280 = vmul.f32 %v6252, %v6264
  %v6282 = vperm.slane %v6127, 0
  %v6283 = vperm.slane %v6127, 1
  %v6284 = vperm.slane %v6127, 2
  %v6285 = vperm.slane %v6127, 3
  %v6290 = vmul.f32 %v6265, %v6282
  %v6291 = vmul.f32 %v6266, %v6283
  %v6292 = vmul.f32 %v6267, %v6284
  %v6293 = vmul.f32 %v6268, %v6285
  %v6294 = vmul.f32 %v6269, %v6282
  %v6295 = vmul.f32 %v6270, %v6283
  %v6296 = vmul.f32 %v6271, %v6284
  %v6297 = vmul.f32 %v6272, %v6285
  %v6298 = vmul.f32 %v6273, %v6282
  %v6299 = vmul.f32 %v6274, %v6283
  %v6300 = vmul.f32 %v6275, %v6284
  %v6301 = vmul.f32 %v6276, %v6285
  %v6302 = vmul.f32 %v6277, %v6282
  %v6303 = vmul.f32 %v6278, %v6283
  %v6304 = vmul.f32 %v6279, %v6284
  %v6305 = vmul.f32 %v6280, %v6285
  %v6307 = vperm.slane %v6128, 0
  %v6308 = vperm.slane %v6128, 1
  %v6309 = vperm.slane %v6128, 2
  %v6310 = vperm.slane %v6128, 3
  %v6315 = vadd.f32 %v6290, %v6307
  %v6316 = vadd.f32 %v6291, %v6308
  %v6317 = vadd.f32 %v6292, %v6309
  %v6318 = vadd.f32 %v6293, %v6310
  %v6319 = vadd.f32 %v6294, %v6307
  %v6320 = vadd.f32 %v6295, %v6308
  %v6321 = vadd.f32 %v6296, %v6309
  %v6322 = vadd.f32 %v6297, %v6310
  %v6323 = vadd.f32 %v6298, %v6307
  %v6324 = vadd.f32 %v6299, %v6308
  %v6325 = vadd.f32 %v6300, %v6309
  %v6326 = vadd.f32 %v6301, %v6310
  %v6327 = vadd.f32 %v6302, %v6307
  %v6328 = vadd.f32 %v6303, %v6308
  %v6329 = vadd.f32 %v6304, %v6309
  %v6330 = vadd.f32 %v6305, %v6310
  %v6347 = vrot.slane %v6315, 6
  %v6348 = vrot.slane %v6316, 6
  %v6349 = vrot.slane %v6317, 6
  %v6350 = vrot.slane %v6318, 6
  %v6351 = vrot.slane %v6319, 6
  %v6352 = vsel %vm1185, %v6347, %v6351
  %v6353 = vrot.slane %v6320, 6
  %v6354 = vsel %vm1185, %v6348, %v6353
  %v6355 = vrot.slane %v6321, 6
  %v6356 = vsel %vm1185, %v6349, %v6355
  %v6357 = vrot.slane %v6322, 6
  %v6358 = vsel %vm1185, %v6350, %v6357
  %v6359 = vrot.slane %v6323, 6
  %v6360 = vrot.slane %v6324, 6
  %v6361 = vrot.slane %v6325, 6
  %v6362 = vrot.slane %v6326, 6
  %v6363 = vrot.slane %v6327, 6
  %v6364 = vsel %vm1185, %v6359, %v6363
  %v6365 = vrot.slane %v6328, 6
  %v6366 = vsel %vm1185, %v6360, %v6365
  %v6367 = vrot.slane %v6329, 6
  %v6368 = vsel %vm1185, %v6361, %v6367
  %v6369 = vrot.slane %v6330, 6
  %v6370 = vsel %vm1185, %v6362, %v6369
  %6371 = vrot.lane.b32.xlu0 %v6347, 64
  %v6372 = vpop.permute.xlu0 %6371
  %6373 = vrot.lane.b32.xlu0 %v6348, 64
  %v6374 = vpop.permute.xlu0 %6373
  %6375 = vrot.lane.b32.xlu0 %v6349, 64
  %v6376 = vpop.permute.xlu0 %6375
  %6377 = vrot.lane.b32.xlu0 %v6350, 64
  %v6378 = vpop.permute.xlu0 %6377
  %6379 = vrot.lane.b32.xlu0 %v6352, 64
  %v6380 = vpop.permute.xlu0 %6379
  %6381 = vrot.lane.b32.xlu0 %v6354, 64
  %v6382 = vpop.permute.xlu0 %6381
  %6383 = vrot.lane.b32.xlu0 %v6356, 64
  %v6384 = vpop.permute.xlu0 %6383
  %6385 = vrot.lane.b32.xlu0 %v6358, 64
  %v6386 = vpop.permute.xlu0 %6385
  %6387 = vrot.lane.b32.xlu0 %v6351, 64
  %v6388 = vpop.permute.xlu0 %6387
  %6389 = vrot.lane.b32.xlu0 %v6353, 64
  %v6390 = vpop.permute.xlu0 %6389
  %6391 = vrot.lane.b32.xlu0 %v6355, 64
  %v6392 = vpop.permute.xlu0 %6391
  %6393 = vrot.lane.b32.xlu0 %v6357, 64
  %v6394 = vpop.permute.xlu0 %6393
  %6395 = vrot.lane.b32.xlu0 %v6359, 64
  %v6396 = vpop.permute.xlu0 %6395
  %6397 = vrot.lane.b32.xlu0 %v6360, 64
  %v6398 = vpop.permute.xlu0 %6397
  %6399 = vrot.lane.b32.xlu0 %v6361, 64
  %v6400 = vpop.permute.xlu0 %6399
  %6401 = vrot.lane.b32.xlu0 %v6362, 64
  %v6402 = vpop.permute.xlu0 %6401
  %6403 = vrot.lane.b32.xlu0 %v6364, 64
  %v6404 = vpop.permute.xlu0 %6403
  %6405 = vrot.lane.b32.xlu0 %v6366, 64
  %v6406 = vpop.permute.xlu0 %6405
  %6407 = vrot.lane.b32.xlu0 %v6368, 64
  %v6408 = vpop.permute.xlu0 %6407
  %6409 = vrot.lane.b32.xlu0 %v6370, 64
  %v6410 = vpop.permute.xlu0 %6409
  %6411 = vrot.lane.b32.xlu0 %v6363, 64
  %v6412 = vpop.permute.xlu0 %6411
  %6413 = vrot.lane.b32.xlu0 %v6365, 64
  %v6414 = vpop.permute.xlu0 %6413
  %6415 = vrot.lane.b32.xlu0 %v6367, 64
  %v6416 = vpop.permute.xlu0 %6415
  %6417 = vrot.lane.b32.xlu0 %v6369, 64
  %v6418 = vpop.permute.xlu0 %6417
  %v6419 = vsel %vm1258, %v6372, %v6374
  %v6420 = vsel %vm1258, %v6374, %v6376
  %v6421 = vsel %vm1258, %v6376, %v6378
  %v6422 = vsel %vm1258, %v6380, %v6382
  %v6423 = vsel %vm1258, %v6382, %v6384
  %v6424 = vsel %vm1258, %v6384, %v6386
  %v6425 = vsel %vm1258, %v6388, %v6390
  %v6426 = vsel %vm1258, %v6390, %v6392
  %v6427 = vsel %vm1258, %v6392, %v6394
  %v6428 = vsel %vm1258, %v6396, %v6398
  %v6429 = vsel %vm1258, %v6398, %v6400
  %v6430 = vsel %vm1258, %v6400, %v6402
  %v6431 = vsel %vm1258, %v6404, %v6406
  %v6432 = vsel %vm1258, %v6406, %v6408
  %v6433 = vsel %vm1258, %v6408, %v6410
  %v6434 = vsel %vm1258, %v6412, %v6414
  %v6435 = vsel %vm1258, %v6414, %v6416
  %v6436 = vsel %vm1258, %v6416, %v6418
  %6467 = vst.msk [vmem:[#allocation2] sm:$0xfc] %vm1307, %v6372
  %6468 = vst [vmem:[#allocation2 + $0x8] sm:$0xfc] %v6419
  %6469 = vst [vmem:[#allocation2 + $0x10] sm:$0xfc] %v6420
  %6470 = vst [vmem:[#allocation2 + $0x18] sm:$0xfc] %v6421
  %6471 = vst.msk [vmem:[#allocation2 + $0x20] sm:$0xfc] %vm1312, %v6378
  %6472 = vst.msk [vmem:[#allocation2 + $0x28] sm:$0xff] %vm1314, %v6380
  %6473 = vst [vmem:[#allocation2 + $0x30] sm:$0xff] %v6422
  %6474 = vst [vmem:[#allocation2 + $0x38] sm:$0xff] %v6423
  %6475 = vst [vmem:[#allocation2 + $0x40] sm:$0xff] %v6424
  %6476 = vst.msk [vmem:[#allocation2 + $0x48] sm:$0xff] %vm1258, %v6386
  %6477 = vst.msk [vmem:[#allocation2 + $0x50] sm:$0x3] %vm1320, %v6388
  %6478 = vst [vmem:[#allocation2 + $0x58] sm:$0x3] %v6425
  %6479 = vst [vmem:[#allocation2 + $0x60] sm:$0x3] %v6426
  %6480 = vst [vmem:[#allocation2 + $0x68] sm:$0x3] %v6427
  %6481 = vst.msk [vmem:[#allocation2 + $0x70] sm:$0x3] %vm1325, %v6394
  %6482 = vst.msk [vmem:[#allocation2 + $0x78] sm:$0xfc] %vm1307, %v6396
  %6483 = vst [vmem:[#allocation2 + $0x80] sm:$0xfc] %v6428
  %6484 = vst [vmem:[#allocation2 + $0x88] sm:$0xfc] %v6429
  %6485 = vst [vmem:[#allocation2 + $0x90] sm:$0xfc] %v6430
  %6486 = vst.msk [vmem:[#allocation2 + $0x98] sm:$0xfc] %vm1312, %v6402
  %6487 = vst.msk [vmem:[#allocation2 + $0xa0] sm:$0xff] %vm1314, %v6404
  %6488 = vst [vmem:[#allocation2 + $0xa8] sm:$0xff] %v6431
  %6489 = vst [vmem:[#allocation2 + $0xb0] sm:$0xff] %v6432
  %6490 = vst [vmem:[#allocation2 + $0xb8] sm:$0xff] %v6433
  %6491 = vst.msk [vmem:[#allocation2 + $0xc0] sm:$0xff] %vm1258, %v6410
  %6492 = vst.msk [vmem:[#allocation2 + $0xc8] sm:$0x3] %vm1320, %v6412
  %6493 = vst [vmem:[#allocation2 + $0xd0] sm:$0x3] %v6434
  %6494 = vst [vmem:[#allocation2 + $0xd8] sm:$0x3] %v6435
  %6495 = vst [vmem:[#allocation2 + $0xe0] sm:$0x3] %v6436
  %6496 = vst.msk [vmem:[#allocation2 + $0xe8] sm:$0x3] %vm1325, %v6418
  %s6497 = scalar_lea.vmem %s3, 4
  %v6498 = vld [vmem:[%s6497] sm:$0xf]
  %v6500 = vperm.slane %v6498, 0
  %v6501 = vperm.slane %v6498, 1
  %v6502 = vperm.slane %v6498, 2
  %v6503 = vperm.slane %v6498, 3
  %v6508 = vadd.f32 %v6500, 0.0
  %v6509 = vadd.f32 %v6501, 0.0
  %v6510 = vadd.f32 %v6502, 0.0
  %v6511 = vadd.f32 %v6503, 0.0
  %v6512 = vld [vmem:[#allocation2] sm:$0xff]
  %v6513 = vld [vmem:[#allocation2 + $0x8] sm:$0xff]
  %v6514 = vld [vmem:[#allocation2 + $0x10] sm:$0xff]
  %v6515 = vld [vmem:[#allocation2 + $0x18] sm:$0xff]
  %v6516 = vld [vmem:[#allocation2 + $0x28] sm:$0xff]
  %v6517 = vld [vmem:[#allocation2 + $0x30] sm:$0xff]
  %v6518 = vld [vmem:[#allocation2 + $0x38] sm:$0xff]
  %v6519 = vld [vmem:[#allocation2 + $0x40] sm:$0xff]
  %v6520 = vld [vmem:[#allocation2 + $0x78] sm:$0xff]
  %v6521 = vld [vmem:[#allocation2 + $0x80] sm:$0xff]
  %v6522 = vld [vmem:[#allocation2 + $0x88] sm:$0xff]
  %v6523 = vld [vmem:[#allocation2 + $0x90] sm:$0xff]
  %v6524 = vld [vmem:[#allocation2 + $0xa0] sm:$0xff]
  %v6525 = vld [vmem:[#allocation2 + $0xa8] sm:$0xff]
  %v6526 = vld [vmem:[#allocation2 + $0xb0] sm:$0xff]
  %v6527 = vld [vmem:[#allocation2 + $0xb8] sm:$0xff]
  %s6528 = scalar_lea.vmem %s2, 128
  %v6529 = vld [vmem:[%s6528] ss:$8 sm:$0xf]
  %v6531 = vperm.slane %v6529, 0
  %v6532 = vperm.slane %v6529, 1
  %v6533 = vperm.slane %v6529, 2
  %v6534 = vperm.slane %v6529, 3
  %v6539 = vmul.f32 %v6512, %v6531
  %v6540 = vmul.f32 %v6513, %v6532
  %v6541 = vmul.f32 %v6514, %v6533
  %v6542 = vmul.f32 %v6515, %v6534
  %v6543 = vmul.f32 %v6516, %v6531
  %v6544 = vmul.f32 %v6517, %v6532
  %v6545 = vmul.f32 %v6518, %v6533
  %v6546 = vmul.f32 %v6519, %v6534
  %v6547 = vmul.f32 %v6520, %v6531
  %v6548 = vmul.f32 %v6521, %v6532
  %v6549 = vmul.f32 %v6522, %v6533
  %v6550 = vmul.f32 %v6523, %v6534
  %v6551 = vmul.f32 %v6524, %v6531
  %v6552 = vmul.f32 %v6525, %v6532
  %v6553 = vmul.f32 %v6526, %v6533
  %v6554 = vmul.f32 %v6527, %v6534
  %v6555 = vadd.f32 %v6508, %v6539
  %v6556 = vadd.f32 %v6509, %v6540
  %v6557 = vadd.f32 %v6510, %v6541
  %v6558 = vadd.f32 %v6511, %v6542
  %v6559 = vadd.f32 %v6508, %v6543
  %v6560 = vadd.f32 %v6509, %v6544
  %v6561 = vadd.f32 %v6510, %v6545
  %v6562 = vadd.f32 %v6511, %v6546
  %v6563 = vadd.f32 %v6508, %v6547
  %v6564 = vadd.f32 %v6509, %v6548
  %v6565 = vadd.f32 %v6510, %v6549
  %v6566 = vadd.f32 %v6511, %v6550
  %v6567 = vadd.f32 %v6508, %v6551
  %v6568 = vadd.f32 %v6509, %v6552
  %v6569 = vadd.f32 %v6510, %v6553
  %v6570 = vadd.f32 %v6511, %v6554
  %v6571 = vld [vmem:[#allocation2 + $0x20] sm:$0xff]
  %v6572 = vld [vmem:[#allocation2 + $0x48] sm:$0xff]
  %v6573 = vld [vmem:[#allocation2 + $0x98] sm:$0xff]
  %v6574 = vld [vmem:[#allocation2 + $0xc0] sm:$0xff]
  %s6575 = scalar_lea.vmem %s6528, 1
  %v6576 = vld [vmem:[%s6575] ss:$8 sm:$0xf]
  %v6578 = vperm.slane %v6576, 0
  %v6579 = vperm.slane %v6576, 1
  %v6580 = vperm.slane %v6576, 2
  %v6581 = vperm.slane %v6576, 3
  %6582 = vrot.lane.b32.xlu0 %v6578, 32
  %v6583 = vpop.permute.xlu0 %6582
  %6584 = vrot.lane.b32.xlu0 %v6579, 32
  %v6585 = vpop.permute.xlu0 %6584
  %6586 = vrot.lane.b32.xlu0 %v6580, 32
  %v6587 = vpop.permute.xlu0 %6586
  %6588 = vrot.lane.b32.xlu0 %v6581, 32
  %v6589 = vpop.permute.xlu0 %6588
  %v6590 = vsel %vm1433, %v6583, %v6585
  %v6591 = vsel %vm1433, %v6585, %v6587
  %v6592 = vsel %vm1433, %v6587, %v6589
  %v6598 = vmul.f32 %v6512, %v6583
  %v6599 = vmul.f32 %v6513, %v6590
  %v6600 = vmul.f32 %v6514, %v6591
  %v6601 = vmul.f32 %v6515, %v6592
  %v6602 = vmul.f32 %v6571, %v6589
  %v6603 = vmul.f32 %v6516, %v6583
  %v6604 = vmul.f32 %v6517, %v6590
  %v6605 = vmul.f32 %v6518, %v6591
  %v6606 = vmul.f32 %v6519, %v6592
  %v6607 = vmul.f32 %v6572, %v6589
  %v6608 = vmul.f32 %v6520, %v6583
  %v6609 = vmul.f32 %v6521, %v6590
  %v6610 = vmul.f32 %v6522, %v6591
  %v6611 = vmul.f32 %v6523, %v6592
  %v6612 = vmul.f32 %v6573, %v6589
  %v6613 = vmul.f32 %v6524, %v6583
  %v6614 = vmul.f32 %v6525, %v6590
  %v6615 = vmul.f32 %v6526, %v6591
  %v6616 = vmul.f32 %v6527, %v6592
  %v6617 = vmul.f32 %v6574, %v6589
  %6638 = vrot.lane.b32.xlu0 %v6598, 96
  %v6639 = vpop.permute.xlu0 %6638
  %6640 = vrot.lane.b32.xlu0 %v6599, 96
  %v6641 = vpop.permute.xlu0 %6640
  %6642 = vrot.lane.b32.xlu0 %v6600, 96
  %v6643 = vpop.permute.xlu0 %6642
  %6644 = vrot.lane.b32.xlu0 %v6601, 96
  %v6645 = vpop.permute.xlu0 %6644
  %6646 = vrot.lane.b32.xlu0 %v6602, 96
  %v6647 = vpop.permute.xlu0 %6646
  %6648 = vrot.lane.b32.xlu0 %v6603, 96
  %v6649 = vpop.permute.xlu0 %6648
  %6650 = vrot.lane.b32.xlu0 %v6604, 96
  %v6651 = vpop.permute.xlu0 %6650
  %6652 = vrot.lane.b32.xlu0 %v6605, 96
  %v6653 = vpop.permute.xlu0 %6652
  %6654 = vrot.lane.b32.xlu0 %v6606, 96
  %v6655 = vpop.permute.xlu0 %6654
  %6656 = vrot.lane.b32.xlu0 %v6607, 96
  %v6657 = vpop.permute.xlu0 %6656
  %6658 = vrot.lane.b32.xlu0 %v6608, 96
  %v6659 = vpop.permute.xlu0 %6658
  %6660 = vrot.lane.b32.xlu0 %v6609, 96
  %v6661 = vpop.permute.xlu0 %6660
  %6662 = vrot.lane.b32.xlu0 %v6610, 96
  %v6663 = vpop.permute.xlu0 %6662
  %6664 = vrot.lane.b32.xlu0 %v6611, 96
  %v6665 = vpop.permute.xlu0 %6664
  %6666 = vrot.lane.b32.xlu0 %v6612, 96
  %v6667 = vpop.permute.xlu0 %6666
  %6668 = vrot.lane.b32.xlu0 %v6613, 96
  %v6669 = vpop.permute.xlu0 %6668
  %6670 = vrot.lane.b32.xlu0 %v6614, 96
  %v6671 = vpop.permute.xlu0 %6670
  %6672 = vrot.lane.b32.xlu0 %v6615, 96
  %v6673 = vpop.permute.xlu0 %6672
  %6674 = vrot.lane.b32.xlu0 %v6616, 96
  %v6675 = vpop.permute.xlu0 %6674
  %6676 = vrot.lane.b32.xlu0 %v6617, 96
  %v6677 = vpop.permute.xlu0 %6676
  %v6678 = vsel %vm1522, %v6639, %v6641
  %v6679 = vsel %vm1522, %v6641, %v6643
  %v6680 = vsel %vm1522, %v6643, %v6645
  %v6681 = vsel %vm1522, %v6645, %v6647
  %v6682 = vsel %vm1522, %v6649, %v6651
  %v6683 = vsel %vm1522, %v6651, %v6653
  %v6684 = vsel %vm1522, %v6653, %v6655
  %v6685 = vsel %vm1522, %v6655, %v6657
  %v6686 = vsel %vm1522, %v6659, %v6661
  %v6687 = vsel %vm1522, %v6661, %v6663
  %v6688 = vsel %vm1522, %v6663, %v6665
  %v6689 = vsel %vm1522, %v6665, %v6667
  %v6690 = vsel %vm1522, %v6669, %v6671
  %v6691 = vsel %vm1522, %v6671, %v6673
  %v6692 = vsel %vm1522, %v6673, %v6675
  %v6693 = vsel %vm1522, %v6675, %v6677
  %v6710 = vadd.f32 %v6555, %v6678
  %v6711 = vadd.f32 %v6556, %v6679
  %v6712 = vadd.f32 %v6557, %v6680
  %v6713 = vadd.f32 %v6558, %v6681
  %v6714 = vadd.f32 %v6559, %v6682
  %v6715 = vadd.f32 %v6560, %v6683
  %v6716 = vadd.f32 %v6561, %v6684
  %v6717 = vadd.f32 %v6562, %v6685
  %v6718 = vadd.f32 %v6563, %v6686
  %v6719 = vadd.f32 %v6564, %v6687
  %v6720 = vadd.f32 %v6565, %v6688
  %v6721 = vadd.f32 %v6566, %v6689
  %v6722 = vadd.f32 %v6567, %v6690
  %v6723 = vadd.f32 %v6568, %v6691
  %v6724 = vadd.f32 %v6569, %v6692
  %v6725 = vadd.f32 %v6570, %v6693
  %s6726 = scalar_lea.vmem %s6528, 2
  %v6727 = vld [vmem:[%s6726] ss:$8 sm:$0xf]
  %v6729 = vperm.slane %v6727, 0
  %v6730 = vperm.slane %v6727, 1
  %v6731 = vperm.slane %v6727, 2
  %v6732 = vperm.slane %v6727, 3
  %6733 = vrot.lane.b32.xlu0 %v6729, 64
  %v6734 = vpop.permute.xlu0 %6733
  %6735 = vrot.lane.b32.xlu0 %v6730, 64
  %v6736 = vpop.permute.xlu0 %6735
  %6737 = vrot.lane.b32.xlu0 %v6731, 64
  %v6738 = vpop.permute.xlu0 %6737
  %6739 = vrot.lane.b32.xlu0 %v6732, 64
  %v6740 = vpop.permute.xlu0 %6739
  %v6741 = vsel %vm1258, %v6734, %v6736
  %v6742 = vsel %vm1258, %v6736, %v6738
  %v6743 = vsel %vm1258, %v6738, %v6740
  %v6749 = vmul.f32 %v6512, %v6734
  %v6750 = vmul.f32 %v6513, %v6741
  %v6751 = vmul.f32 %v6514, %v6742
  %v6752 = vmul.f32 %v6515, %v6743
  %v6753 = vmul.f32 %v6571, %v6740
  %v6754 = vmul.f32 %v6516, %v6734
  %v6755 = vmul.f32 %v6517, %v6741
  %v6756 = vmul.f32 %v6518, %v6742
  %v6757 = vmul.f32 %v6519, %v6743
  %v6758 = vmul.f32 %v6572, %v6740
  %v6759 = vmul.f32 %v6520, %v6734
  %v6760 = vmul.f32 %v6521, %v6741
  %v6761 = vmul.f32 %v6522, %v6742
  %v6762 = vmul.f32 %v6523, %v6743
  %v6763 = vmul.f32 %v6573, %v6740
  %v6764 = vmul.f32 %v6524, %v6734
  %v6765 = vmul.f32 %v6525, %v6741
  %v6766 = vmul.f32 %v6526, %v6742
  %v6767 = vmul.f32 %v6527, %v6743
  %v6768 = vmul.f32 %v6574, %v6740
  %6789 = vrot.lane.b32.xlu0 %v6749, 64
  %v6790 = vpop.permute.xlu0 %6789
  %6791 = vrot.lane.b32.xlu0 %v6750, 64
  %v6792 = vpop.permute.xlu0 %6791
  %6793 = vrot.lane.b32.xlu0 %v6751, 64
  %v6794 = vpop.permute.xlu0 %6793
  %6795 = vrot.lane.b32.xlu0 %v6752, 64
  %v6796 = vpop.permute.xlu0 %6795
  %6797 = vrot.lane.b32.xlu0 %v6753, 64
  %v6798 = vpop.permute.xlu0 %6797
  %6799 = vrot.lane.b32.xlu0 %v6754, 64
  %v6800 = vpop.permute.xlu0 %6799
  %6801 = vrot.lane.b32.xlu0 %v6755, 64
  %v6802 = vpop.permute.xlu0 %6801
  %6803 = vrot.lane.b32.xlu0 %v6756, 64
  %v6804 = vpop.permute.xlu0 %6803
  %6805 = vrot.lane.b32.xlu0 %v6757, 64
  %v6806 = vpop.permute.xlu0 %6805
  %6807 = vrot.lane.b32.xlu0 %v6758, 64
  %v6808 = vpop.permute.xlu0 %6807
  %6809 = vrot.lane.b32.xlu0 %v6759, 64
  %v6810 = vpop.permute.xlu0 %6809
  %6811 = vrot.lane.b32.xlu0 %v6760, 64
  %v6812 = vpop.permute.xlu0 %6811
  %6813 = vrot.lane.b32.xlu0 %v6761, 64
  %v6814 = vpop.permute.xlu0 %6813
  %6815 = vrot.lane.b32.xlu0 %v6762, 64
  %v6816 = vpop.permute.xlu0 %6815
  %6817 = vrot.lane.b32.xlu0 %v6763, 64
  %v6818 = vpop.permute.xlu0 %6817
  %6819 = vrot.lane.b32.xlu0 %v6764, 64
  %v6820 = vpop.permute.xlu0 %6819
  %6821 = vrot.lane.b32.xlu0 %v6765, 64
  %v6822 = vpop.permute.xlu0 %6821
  %6823 = vrot.lane.b32.xlu0 %v6766, 64
  %v6824 = vpop.permute.xlu0 %6823
  %6825 = vrot.lane.b32.xlu0 %v6767, 64
  %v6826 = vpop.permute.xlu0 %6825
  %6827 = vrot.lane.b32.xlu0 %v6768, 64
  %v6828 = vpop.permute.xlu0 %6827
  %v6829 = vsel %vm1258, %v6790, %v6792
  %v6830 = vsel %vm1258, %v6792, %v6794
  %v6831 = vsel %vm1258, %v6794, %v6796
  %v6832 = vsel %vm1258, %v6796, %v6798
  %v6833 = vsel %vm1258, %v6800, %v6802
  %v6834 = vsel %vm1258, %v6802, %v6804
  %v6835 = vsel %vm1258, %v6804, %v6806
  %v6836 = vsel %vm1258, %v6806, %v6808
  %v6837 = vsel %vm1258, %v6810, %v6812
  %v6838 = vsel %vm1258, %v6812, %v6814
  %v6839 = vsel %vm1258, %v6814, %v6816
  %v6840 = vsel %vm1258, %v6816, %v6818
  %v6841 = vsel %vm1258, %v6820, %v6822
  %v6842 = vsel %vm1258, %v6822, %v6824
  %v6843 = vsel %vm1258, %v6824, %v6826
  %v6844 = vsel %vm1258, %v6826, %v6828
  %v6861 = vadd.f32 %v6710, %v6829
  %v6862 = vadd.f32 %v6711, %v6830
  %v6863 = vadd.f32 %v6712, %v6831
  %v6864 = vadd.f32 %v6713, %v6832
  %v6865 = vadd.f32 %v6714, %v6833
  %v6866 = vadd.f32 %v6715, %v6834
  %v6867 = vadd.f32 %v6716, %v6835
  %v6868 = vadd.f32 %v6717, %v6836
  %v6869 = vadd.f32 %v6718, %v6837
  %v6870 = vadd.f32 %v6719, %v6838
  %v6871 = vadd.f32 %v6720, %v6839
  %v6872 = vadd.f32 %v6721, %v6840
  %v6873 = vadd.f32 %v6722, %v6841
  %v6874 = vadd.f32 %v6723, %v6842
  %v6875 = vadd.f32 %v6724, %v6843
  %v6876 = vadd.f32 %v6725, %v6844
  %s6877 = scalar_lea.vmem %s6528, 3
  %v6878 = vld [vmem:[%s6877] ss:$8 sm:$0xf]
  %v6880 = vperm.slane %v6878, 0
  %v6881 = vperm.slane %v6878, 1
  %v6882 = vperm.slane %v6878, 2
  %v6883 = vperm.slane %v6878, 3
  %6884 = vrot.lane.b32.xlu0 %v6880, 96
  %v6885 = vpop.permute.xlu0 %6884
  %6886 = vrot.lane.b32.xlu0 %v6881, 96
  %v6887 = vpop.permute.xlu0 %6886
  %6888 = vrot.lane.b32.xlu0 %v6882, 96
  %v6889 = vpop.permute.xlu0 %6888
  %6890 = vrot.lane.b32.xlu0 %v6883, 96
  %v6891 = vpop.permute.xlu0 %6890
  %v6892 = vsel %vm1522, %v6885, %v6887
  %v6893 = vsel %vm1522, %v6887, %v6889
  %v6894 = vsel %vm1522, %v6889, %v6891
  %v6900 = vmul.f32 %v6512, %v6885
  %v6901 = vmul.f32 %v6513, %v6892
  %v6902 = vmul.f32 %v6514, %v6893
  %v6903 = vmul.f32 %v6515, %v6894
  %v6904 = vmul.f32 %v6571, %v6891
  %v6905 = vmul.f32 %v6516, %v6885
  %v6906 = vmul.f32 %v6517, %v6892
  %v6907 = vmul.f32 %v6518, %v6893
  %v6908 = vmul.f32 %v6519, %v6894
  %v6909 = vmul.f32 %v6572, %v6891
  %v6910 = vmul.f32 %v6520, %v6885
  %v6911 = vmul.f32 %v6521, %v6892
  %v6912 = vmul.f32 %v6522, %v6893
  %v6913 = vmul.f32 %v6523, %v6894
  %v6914 = vmul.f32 %v6573, %v6891
  %v6915 = vmul.f32 %v6524, %v6885
  %v6916 = vmul.f32 %v6525, %v6892
  %v6917 = vmul.f32 %v6526, %v6893
  %v6918 = vmul.f32 %v6527, %v6894
  %v6919 = vmul.f32 %v6574, %v6891
  %6940 = vrot.lane.b32.xlu0 %v6900, 32
  %v6941 = vpop.permute.xlu0 %6940
  %6942 = vrot.lane.b32.xlu0 %v6901, 32
  %v6943 = vpop.permute.xlu0 %6942
  %6944 = vrot.lane.b32.xlu0 %v6902, 32
  %v6945 = vpop.permute.xlu0 %6944
  %6946 = vrot.lane.b32.xlu0 %v6903, 32
  %v6947 = vpop.permute.xlu0 %6946
  %6948 = vrot.lane.b32.xlu0 %v6904, 32
  %v6949 = vpop.permute.xlu0 %6948
  %6950 = vrot.lane.b32.xlu0 %v6905, 32
  %v6951 = vpop.permute.xlu0 %6950
  %6952 = vrot.lane.b32.xlu0 %v6906, 32
  %v6953 = vpop.permute.xlu0 %6952
  %6954 = vrot.lane.b32.xlu0 %v6907, 32
  %v6955 = vpop.permute.xlu0 %6954
  %6956 = vrot.lane.b32.xlu0 %v6908, 32
  %v6957 = vpop.permute.xlu0 %6956
  %6958 = vrot.lane.b32.xlu0 %v6909, 32
  %v6959 = vpop.permute.xlu0 %6958
  %6960 = vrot.lane.b32.xlu0 %v6910, 32
  %v6961 = vpop.permute.xlu0 %6960
  %6962 = vrot.lane.b32.xlu0 %v6911, 32
  %v6963 = vpop.permute.xlu0 %6962
  %6964 = vrot.lane.b32.xlu0 %v6912, 32
  %v6965 = vpop.permute.xlu0 %6964
  %6966 = vrot.lane.b32.xlu0 %v6913, 32
  %v6967 = vpop.permute.xlu0 %6966
  %6968 = vrot.lane.b32.xlu0 %v6914, 32
  %v6969 = vpop.permute.xlu0 %6968
  %6970 = vrot.lane.b32.xlu0 %v6915, 32
  %v6971 = vpop.permute.xlu0 %6970
  %6972 = vrot.lane.b32.xlu0 %v6916, 32
  %v6973 = vpop.permute.xlu0 %6972
  %6974 = vrot.lane.b32.xlu0 %v6917, 32
  %v6975 = vpop.permute.xlu0 %6974
  %6976 = vrot.lane.b32.xlu0 %v6918, 32
  %v6977 = vpop.permute.xlu0 %6976
  %6978 = vrot.lane.b32.xlu0 %v6919, 32
  %v6979 = vpop.permute.xlu0 %6978
  %v6980 = vsel %vm1433, %v6941, %v6943
  %v6981 = vsel %vm1433, %v6943, %v6945
  %v6982 = vsel %vm1433, %v6945, %v6947
  %v6983 = vsel %vm1433, %v6947, %v6949
  %v6984 = vsel %vm1433, %v6951, %v6953
  %v6985 = vsel %vm1433, %v6953, %v6955
  %v6986 = vsel %vm1433, %v6955, %v6957
  %v6987 = vsel %vm1433, %v6957, %v6959
  %v6988 = vsel %vm1433, %v6961, %v6963
  %v6989 = vsel %vm1433, %v6963, %v6965
  %v6990 = vsel %vm1433, %v6965, %v6967
  %v6991 = vsel %vm1433, %v6967, %v6969
  %v6992 = vsel %vm1433, %v6971, %v6973
  %v6993 = vsel %vm1433, %v6973, %v6975
  %v6994 = vsel %vm1433, %v6975, %v6977
  %v6995 = vsel %vm1433, %v6977, %v6979
  %v7012 = vadd.f32 %v6861, %v6980
  %v7013 = vadd.f32 %v6862, %v6981
  %v7014 = vadd.f32 %v6863, %v6982
  %v7015 = vadd.f32 %v6864, %v6983
  %v7016 = vadd.f32 %v6865, %v6984
  %v7017 = vadd.f32 %v6866, %v6985
  %v7018 = vadd.f32 %v6867, %v6986
  %v7019 = vadd.f32 %v6868, %v6987
  %v7020 = vadd.f32 %v6869, %v6988
  %v7021 = vadd.f32 %v6870, %v6989
  %v7022 = vadd.f32 %v6871, %v6990
  %v7023 = vadd.f32 %v6872, %v6991
  %v7024 = vadd.f32 %v6873, %v6992
  %v7025 = vadd.f32 %v6874, %v6993
  %v7026 = vadd.f32 %v6875, %v6994
  %v7027 = vadd.f32 %v6876, %v6995
  %s7028 = scalar_lea.vmem %s6528, 4
  %v7029 = vld [vmem:[%s7028] ss:$8 sm:$0xf]
  %v7031 = vperm.slane %v7029, 0
  %v7032 = vperm.slane %v7029, 1
  %v7033 = vperm.slane %v7029, 2
  %v7034 = vperm.slane %v7029, 3
  %v7039 = vmul.f32 %v6513, %v7031
  %v7040 = vmul.f32 %v6514, %v7032
  %v7041 = vmul.f32 %v6515, %v7033
  %v7042 = vmul.f32 %v6571, %v7034
  %v7043 = vmul.f32 %v6517, %v7031
  %v7044 = vmul.f32 %v6518, %v7032
  %v7045 = vmul.f32 %v6519, %v7033
  %v7046 = vmul.f32 %v6572, %v7034
  %v7047 = vmul.f32 %v6521, %v7031
  %v7048 = vmul.f32 %v6522, %v7032
  %v7049 = vmul.f32 %v6523, %v7033
  %v7050 = vmul.f32 %v6573, %v7034
  %v7051 = vmul.f32 %v6525, %v7031
  %v7052 = vmul.f32 %v6526, %v7032
  %v7053 = vmul.f32 %v6527, %v7033
  %v7054 = vmul.f32 %v6574, %v7034
  %v7055 = vadd.f32 %v7012, %v7039
  %v7056 = vadd.f32 %v7013, %v7040
  %v7057 = vadd.f32 %v7014, %v7041
  %v7058 = vadd.f32 %v7015, %v7042
  %v7059 = vadd.f32 %v7016, %v7043
  %v7060 = vadd.f32 %v7017, %v7044
  %v7061 = vadd.f32 %v7018, %v7045
  %v7062 = vadd.f32 %v7019, %v7046
  %v7063 = vadd.f32 %v7020, %v7047
  %v7064 = vadd.f32 %v7021, %v7048
  %v7065 = vadd.f32 %v7022, %v7049
  %v7066 = vadd.f32 %v7023, %v7050
  %v7067 = vadd.f32 %v7024, %v7051
  %v7068 = vadd.f32 %v7025, %v7052
  %v7069 = vadd.f32 %v7026, %v7053
  %v7070 = vadd.f32 %v7027, %v7054
  %v7071 = vld [vmem:[#allocation2] sm:$0xfe]
  %v7072 = vld [vmem:[#allocation2 + $0x8] sm:$0xfe]
  %v7073 = vld [vmem:[#allocation2 + $0x10] sm:$0xfe]
  %v7074 = vld [vmem:[#allocation2 + $0x18] sm:$0xfe]
  %v7075 = vld [vmem:[#allocation2 + $0x50] sm:$0x1]
  %v7076 = vld [vmem:[#allocation2 + $0x58] sm:$0x1]
  %v7077 = vld [vmem:[#allocation2 + $0x60] sm:$0x1]
  %v7078 = vld [vmem:[#allocation2 + $0x68] sm:$0x1]
  %v7079 = vld [vmem:[#allocation2 + $0x78] sm:$0xfe]
  %v7080 = vld [vmem:[#allocation2 + $0x80] sm:$0xfe]
  %v7081 = vld [vmem:[#allocation2 + $0x88] sm:$0xfe]
  %v7082 = vld [vmem:[#allocation2 + $0x90] sm:$0xfe]
  %v7083 = vld [vmem:[#allocation2 + $0xc8] sm:$0x1]
  %v7084 = vld [vmem:[#allocation2 + $0xd0] sm:$0x1]
  %v7085 = vld [vmem:[#allocation2 + $0xd8] sm:$0x1]
  %v7086 = vld [vmem:[#allocation2 + $0xe0] sm:$0x1]
  %v7111 = vrot.slane %v7071, 1
  %v7112 = vrot.slane %v6516, 1
  %v7113 = vsel %vm1956, %v7111, %v7112
  %v7114 = vrot.slane %v7072, 1
  %v7115 = vrot.slane %v6517, 1
  %v7116 = vsel %vm1956, %v7114, %v7115
  %v7117 = vrot.slane %v7073, 1
  %v7118 = vrot.slane %v6518, 1
  %v7119 = vsel %vm1956, %v7117, %v7118
  %v7120 = vrot.slane %v7074, 1
  %v7121 = vrot.slane %v6519, 1
  %v7122 = vsel %vm1956, %v7120, %v7121
  %v7123 = vrot.slane %v7075, 1
  %v7124 = vsel %vm1956, %v7112, %v7123
  %v7125 = vrot.slane %v7076, 1
  %v7126 = vsel %vm1956, %v7115, %v7125
  %v7127 = vrot.slane %v7077, 1
  %v7128 = vsel %vm1956, %v7118, %v7127
  %v7129 = vrot.slane %v7078, 1
  %v7130 = vsel %vm1956, %v7121, %v7129
  %v7131 = vrot.slane %v7079, 1
  %v7132 = vrot.slane %v6524, 1
  %v7133 = vsel %vm1956, %v7131, %v7132
  %v7134 = vrot.slane %v7080, 1
  %v7135 = vrot.slane %v6525, 1
  %v7136 = vsel %vm1956, %v7134, %v7135
  %v7137 = vrot.slane %v7081, 1
  %v7138 = vrot.slane %v6526, 1
  %v7139 = vsel %vm1956, %v7137, %v7138
  %v7140 = vrot.slane %v7082, 1
  %v7141 = vrot.slane %v6527, 1
  %v7142 = vsel %vm1956, %v7140, %v7141
  %v7143 = vrot.slane %v7083, 1
  %v7144 = vsel %vm1956, %v7132, %v7143
  %v7145 = vrot.slane %v7084, 1
  %v7146 = vsel %vm1956, %v7135, %v7145
  %v7147 = vrot.slane %v7085, 1
  %v7148 = vsel %vm1956, %v7138, %v7147
  %v7149 = vrot.slane %v7086, 1
  %v7150 = vsel %vm1956, %v7141, %v7149
  %s7167 = scalar_lea.vmem %s6528, 5
  %v7168 = vld [vmem:[%s7167] ss:$8 sm:$0xf]
  %v7170 = vperm.slane %v7168, 0
  %v7171 = vperm.slane %v7168, 1
  %v7172 = vperm.slane %v7168, 2
  %v7173 = vperm.slane %v7168, 3
  %v7178 = vmul.f32 %v7113, %v7170
  %v7179 = vmul.f32 %v7116, %v7171
  %v7180 = vmul.f32 %v7119, %v7172
  %v7181 = vmul.f32 %v7122, %v7173
  %v7182 = vmul.f32 %v7124, %v7170
  %v7183 = vmul.f32 %v7126, %v7171
  %v7184 = vmul.f32 %v7128, %v7172
  %v7185 = vmul.f32 %v7130, %v7173
  %v7186 = vmul.f32 %v7133, %v7170
  %v7187 = vmul.f32 %v7136, %v7171
  %v7188 = vmul.f32 %v7139, %v7172
  %v7189 = vmul.f32 %v7142, %v7173
  %v7190 = vmul.f32 %v7144, %v7170
  %v7191 = vmul.f32 %v7146, %v7171
  %v7192 = vmul.f32 %v7148, %v7172
  %v7193 = vmul.f32 %v7150, %v7173
  %v7194 = vadd.f32 %v7055, %v7178
  %v7195 = vadd.f32 %v7056, %v7179
  %v7196 = vadd.f32 %v7057, %v7180
  %v7197 = vadd.f32 %v7058, %v7181
  %v7198 = vadd.f32 %v7059, %v7182
  %v7199 = vadd.f32 %v7060, %v7183
  %v7200 = vadd.f32 %v7061, %v7184
  %v7201 = vadd.f32 %v7062, %v7185
  %v7202 = vadd.f32 %v7063, %v7186
  %v7203 = vadd.f32 %v7064, %v7187
  %v7204 = vadd.f32 %v7065, %v7188
  %v7205 = vadd.f32 %v7066, %v7189
  %v7206 = vadd.f32 %v7067, %v7190
  %v7207 = vadd.f32 %v7068, %v7191
  %v7208 = vadd.f32 %v7069, %v7192
  %v7209 = vadd.f32 %v7070, %v7193
  %v7210 = vld [vmem:[#allocation2 + $0x20] sm:$0xfe]
  %v7211 = vld [vmem:[#allocation2 + $0x70] sm:$0x1]
  %v7212 = vld [vmem:[#allocation2 + $0x98] sm:$0xfe]
  %v7213 = vld [vmem:[#allocation2 + $0xe8] sm:$0x1]
  %v7220 = vrot.slane %v7210, 1
  %v7221 = vrot.slane %v6572, 1
  %v7222 = vsel %vm1956, %v7220, %v7221
  %v7223 = vrot.slane %v7211, 1
  %v7224 = vsel %vm1956, %v7221, %v7223
  %v7225 = vrot.slane %v7212, 1
  %v7226 = vrot.slane %v6574, 1
  %v7227 = vsel %vm1956, %v7225, %v7226
  %v7228 = vrot.slane %v7213, 1
  %v7229 = vsel %vm1956, %v7226, %v7228
  %s7234 = scalar_lea.vmem %s6528, 6
  %v7235 = vld [vmem:[%s7234] ss:$8 sm:$0xf]
  %v7237 = vperm.slane %v7235, 0
  %v7238 = vperm.slane %v7235, 1
  %v7239 = vperm.slane %v7235, 2
  %v7240 = vperm.slane %v7235, 3
  %7241 = vrot.lane.b32.xlu0 %v7237, 32
  %v7242 = vpop.permute.xlu0 %7241
  %7243 = vrot.lane.b32.xlu0 %v7238, 32
  %v7244 = vpop.permute.xlu0 %7243
  %7245 = vrot.lane.b32.xlu0 %v7239, 32
  %v7246 = vpop.permute.xlu0 %7245
  %7247 = vrot.lane.b32.xlu0 %v7240, 32
  %v7248 = vpop.permute.xlu0 %7247
  %v7249 = vsel %vm1433, %v7242, %v7244
  %v7250 = vsel %vm1433, %v7244, %v7246
  %v7251 = vsel %vm1433, %v7246, %v7248
  %v7257 = vmul.f32 %v7113, %v7242
  %v7258 = vmul.f32 %v7116, %v7249
  %v7259 = vmul.f32 %v7119, %v7250
  %v7260 = vmul.f32 %v7122, %v7251
  %v7261 = vmul.f32 %v7222, %v7248
  %v7262 = vmul.f32 %v7124, %v7242
  %v7263 = vmul.f32 %v7126, %v7249
  %v7264 = vmul.f32 %v7128, %v7250
  %v7265 = vmul.f32 %v7130, %v7251
  %v7266 = vmul.f32 %v7224, %v7248
  %v7267 = vmul.f32 %v7133, %v7242
  %v7268 = vmul.f32 %v7136, %v7249
  %v7269 = vmul.f32 %v7139, %v7250
  %v7270 = vmul.f32 %v7142, %v7251
  %v7271 = vmul.f32 %v7227, %v7248
  %v7272 = vmul.f32 %v7144, %v7242
  %v7273 = vmul.f32 %v7146, %v7249
  %v7274 = vmul.f32 %v7148, %v7250
  %v7275 = vmul.f32 %v7150, %v7251
  %v7276 = vmul.f32 %v7229, %v7248
  %7297 = vrot.lane.b32.xlu0 %v7257, 96
  %v7298 = vpop.permute.xlu0 %7297
  %7299 = vrot.lane.b32.xlu0 %v7258, 96
  %v7300 = vpop.permute.xlu0 %7299
  %7301 = vrot.lane.b32.xlu0 %v7259, 96
  %v7302 = vpop.permute.xlu0 %7301
  %7303 = vrot.lane.b32.xlu0 %v7260, 96
  %v7304 = vpop.permute.xlu0 %7303
  %7305 = vrot.lane.b32.xlu0 %v7261, 96
  %v7306 = vpop.permute.xlu0 %7305
  %7307 = vrot.lane.b32.xlu0 %v7262, 96
  %v7308 = vpop.permute.xlu0 %7307
  %7309 = vrot.lane.b32.xlu0 %v7263, 96
  %v7310 = vpop.permute.xlu0 %7309
  %7311 = vrot.lane.b32.xlu0 %v7264, 96
  %v7312 = vpop.permute.xlu0 %7311
  %7313 = vrot.lane.b32.xlu0 %v7265, 96
  %v7314 = vpop.permute.xlu0 %7313
  %7315 = vrot.lane.b32.xlu0 %v7266, 96
  %v7316 = vpop.permute.xlu0 %7315
  %7317 = vrot.lane.b32.xlu0 %v7267, 96
  %v7318 = vpop.permute.xlu0 %7317
  %7319 = vrot.lane.b32.xlu0 %v7268, 96
  %v7320 = vpop.permute.xlu0 %7319
  %7321 = vrot.lane.b32.xlu0 %v7269, 96
  %v7322 = vpop.permute.xlu0 %7321
  %7323 = vrot.lane.b32.xlu0 %v7270, 96
  %v7324 = vpop.permute.xlu0 %7323
  %7325 = vrot.lane.b32.xlu0 %v7271, 96
  %v7326 = vpop.permute.xlu0 %7325
  %7327 = vrot.lane.b32.xlu0 %v7272, 96
  %v7328 = vpop.permute.xlu0 %7327
  %7329 = vrot.lane.b32.xlu0 %v7273, 96
  %v7330 = vpop.permute.xlu0 %7329
  %7331 = vrot.lane.b32.xlu0 %v7274, 96
  %v7332 = vpop.permute.xlu0 %7331
  %7333 = vrot.lane.b32.xlu0 %v7275, 96
  %v7334 = vpop.permute.xlu0 %7333
  %7335 = vrot.lane.b32.xlu0 %v7276, 96
  %v7336 = vpop.permute.xlu0 %7335
  %v7337 = vsel %vm1522, %v7298, %v7300
  %v7338 = vsel %vm1522, %v7300, %v7302
  %v7339 = vsel %vm1522, %v7302, %v7304
  %v7340 = vsel %vm1522, %v7304, %v7306
  %v7341 = vsel %vm1522, %v7308, %v7310
  %v7342 = vsel %vm1522, %v7310, %v7312
  %v7343 = vsel %vm1522, %v7312, %v7314
  %v7344 = vsel %vm1522, %v7314, %v7316
  %v7345 = vsel %vm1522, %v7318, %v7320
  %v7346 = vsel %vm1522, %v7320, %v7322
  %v7347 = vsel %vm1522, %v7322, %v7324
  %v7348 = vsel %vm1522, %v7324, %v7326
  %v7349 = vsel %vm1522, %v7328, %v7330
  %v7350 = vsel %vm1522, %v7330, %v7332
  %v7351 = vsel %vm1522, %v7332, %v7334
  %v7352 = vsel %vm1522, %v7334, %v7336
  %v7369 = vadd.f32 %v7194, %v7337
  %v7370 = vadd.f32 %v7195, %v7338
  %v7371 = vadd.f32 %v7196, %v7339
  %v7372 = vadd.f32 %v7197, %v7340
  %v7373 = vadd.f32 %v7198, %v7341
  %v7374 = vadd.f32 %v7199, %v7342
  %v7375 = vadd.f32 %v7200, %v7343
  %v7376 = vadd.f32 %v7201, %v7344
  %v7377 = vadd.f32 %v7202, %v7345
  %v7378 = vadd.f32 %v7203, %v7346
  %v7379 = vadd.f32 %v7204, %v7347
  %v7380 = vadd.f32 %v7205, %v7348
  %v7381 = vadd.f32 %v7206, %v7349
  %v7382 = vadd.f32 %v7207, %v7350
  %v7383 = vadd.f32 %v7208, %v7351
  %v7384 = vadd.f32 %v7209, %v7352
  %s7385 = scalar_lea.vmem %s6528, 7
  %v7386 = vld [vmem:[%s7385] ss:$8 sm:$0xf]
  %v7388 = vperm.slane %v7386, 0
  %v7389 = vperm.slane %v7386, 1
  %v7390 = vperm.slane %v7386, 2
  %v7391 = vperm.slane %v7386, 3
  %7392 = vrot.lane.b32.xlu0 %v7388, 64
  %v7393 = vpop.permute.xlu0 %7392
  %7394 = vrot.lane.b32.xlu0 %v7389, 64
  %v7395 = vpop.permute.xlu0 %7394
  %7396 = vrot.lane.b32.xlu0 %v7390, 64
  %v7397 = vpop.permute.xlu0 %7396
  %7398 = vrot.lane.b32.xlu0 %v7391, 64
  %v7399 = vpop.permute.xlu0 %7398
  %v7400 = vsel %vm1258, %v7393, %v7395
  %v7401 = vsel %vm1258, %v7395, %v7397
  %v7402 = vsel %vm1258, %v7397, %v7399
  %v7408 = vmul.f32 %v7113, %v7393
  %v7409 = vmul.f32 %v7116, %v7400
  %v7410 = vmul.f32 %v7119, %v7401
  %v7411 = vmul.f32 %v7122, %v7402
  %v7412 = vmul.f32 %v7222, %v7399
  %v7413 = vmul.f32 %v7124, %v7393
  %v7414 = vmul.f32 %v7126, %v7400
  %v7415 = vmul.f32 %v7128, %v7401
  %v7416 = vmul.f32 %v7130, %v7402
  %v7417 = vmul.f32 %v7224, %v7399
  %v7418 = vmul.f32 %v7133, %v7393
  %v7419 = vmul.f32 %v7136, %v7400
  %v7420 = vmul.f32 %v7139, %v7401
  %v7421 = vmul.f32 %v7142, %v7402
  %v7422 = vmul.f32 %v7227, %v7399
  %v7423 = vmul.f32 %v7144, %v7393
  %v7424 = vmul.f32 %v7146, %v7400
  %v7425 = vmul.f32 %v7148, %v7401
  %v7426 = vmul.f32 %v7150, %v7402
  %v7427 = vmul.f32 %v7229, %v7399
  %7448 = vrot.lane.b32.xlu0 %v7408, 64
  %v7449 = vpop.permute.xlu0 %7448
  %7450 = vrot.lane.b32.xlu0 %v7409, 64
  %v7451 = vpop.permute.xlu0 %7450
  %7452 = vrot.lane.b32.xlu0 %v7410, 64
  %v7453 = vpop.permute.xlu0 %7452
  %7454 = vrot.lane.b32.xlu0 %v7411, 64
  %v7455 = vpop.permute.xlu0 %7454
  %7456 = vrot.lane.b32.xlu0 %v7412, 64
  %v7457 = vpop.permute.xlu0 %7456
  %7458 = vrot.lane.b32.xlu0 %v7413, 64
  %v7459 = vpop.permute.xlu0 %7458
  %7460 = vrot.lane.b32.xlu0 %v7414, 64
  %v7461 = vpop.permute.xlu0 %7460
  %7462 = vrot.lane.b32.xlu0 %v7415, 64
  %v7463 = vpop.permute.xlu0 %7462
  %7464 = vrot.lane.b32.xlu0 %v7416, 64
  %v7465 = vpop.permute.xlu0 %7464
  %7466 = vrot.lane.b32.xlu0 %v7417, 64
  %v7467 = vpop.permute.xlu0 %7466
  %7468 = vrot.lane.b32.xlu0 %v7418, 64
  %v7469 = vpop.permute.xlu0 %7468
  %7470 = vrot.lane.b32.xlu0 %v7419, 64
  %v7471 = vpop.permute.xlu0 %7470
  %7472 = vrot.lane.b32.xlu0 %v7420, 64
  %v7473 = vpop.permute.xlu0 %7472
  %7474 = vrot.lane.b32.xlu0 %v7421, 64
  %v7475 = vpop.permute.xlu0 %7474
  %7476 = vrot.lane.b32.xlu0 %v7422, 64
  %v7477 = vpop.permute.xlu0 %7476
  %7478 = vrot.lane.b32.xlu0 %v7423, 64
  %v7479 = vpop.permute.xlu0 %7478
  %7480 = vrot.lane.b32.xlu0 %v7424, 64
  %v7481 = vpop.permute.xlu0 %7480
  %7482 = vrot.lane.b32.xlu0 %v7425, 64
  %v7483 = vpop.permute.xlu0 %7482
  %7484 = vrot.lane.b32.xlu0 %v7426, 64
  %v7485 = vpop.permute.xlu0 %7484
  %7486 = vrot.lane.b32.xlu0 %v7427, 64
  %v7487 = vpop.permute.xlu0 %7486
  %v7488 = vsel %vm1258, %v7449, %v7451
  %v7489 = vsel %vm1258, %v7451, %v7453
  %v7490 = vsel %vm1258, %v7453, %v7455
  %v7491 = vsel %vm1258, %v7455, %v7457
  %v7492 = vsel %vm1258, %v7459, %v7461
  %v7493 = vsel %vm1258, %v7461, %v7463
  %v7494 = vsel %vm1258, %v7463, %v7465
  %v7495 = vsel %vm1258, %v7465, %v7467
  %v7496 = vsel %vm1258, %v7469, %v7471
  %v7497 = vsel %vm1258, %v7471, %v7473
  %v7498 = vsel %vm1258, %v7473, %v7475
  %v7499 = vsel %vm1258, %v7475, %v7477
  %v7500 = vsel %vm1258, %v7479, %v7481
  %v7501 = vsel %vm1258, %v7481, %v7483
  %v7502 = vsel %vm1258, %v7483, %v7485
  %v7503 = vsel %vm1258, %v7485, %v7487
  %v7520 = vadd.f32 %v7369, %v7488
  %v7521 = vadd.f32 %v7370, %v7489
  %v7522 = vadd.f32 %v7371, %v7490
  %v7523 = vadd.f32 %v7372, %v7491
  %v7524 = vadd.f32 %v7373, %v7492
  %v7525 = vadd.f32 %v7374, %v7493
  %v7526 = vadd.f32 %v7375, %v7494
  %v7527 = vadd.f32 %v7376, %v7495
  %v7528 = vadd.f32 %v7377, %v7496
  %v7529 = vadd.f32 %v7378, %v7497
  %v7530 = vadd.f32 %v7379, %v7498
  %v7531 = vadd.f32 %v7380, %v7499
  %v7532 = vadd.f32 %v7381, %v7500
  %v7533 = vadd.f32 %v7382, %v7501
  %v7534 = vadd.f32 %v7383, %v7502
  %v7535 = vadd.f32 %v7384, %v7503
  %s7536 = scalar_lea.vmem %s6528, 32
  %v7537 = vld [vmem:[%s7536] ss:$8 sm:$0xf]
  %v7539 = vperm.slane %v7537, 0
  %v7540 = vperm.slane %v7537, 1
  %v7541 = vperm.slane %v7537, 2
  %v7542 = vperm.slane %v7537, 3
  %7543 = vrot.lane.b32.xlu0 %v7539, 96
  %v7544 = vpop.permute.xlu0 %7543
  %7545 = vrot.lane.b32.xlu0 %v7540, 96
  %v7546 = vpop.permute.xlu0 %7545
  %7547 = vrot.lane.b32.xlu0 %v7541, 96
  %v7548 = vpop.permute.xlu0 %7547
  %7549 = vrot.lane.b32.xlu0 %v7542, 96
  %v7550 = vpop.permute.xlu0 %7549
  %v7551 = vsel %vm1522, %v7544, %v7546
  %v7552 = vsel %vm1522, %v7546, %v7548
  %v7553 = vsel %vm1522, %v7548, %v7550
  %v7559 = vmul.f32 %v7113, %v7544
  %v7560 = vmul.f32 %v7116, %v7551
  %v7561 = vmul.f32 %v7119, %v7552
  %v7562 = vmul.f32 %v7122, %v7553
  %v7563 = vmul.f32 %v7222, %v7550
  %v7564 = vmul.f32 %v7124, %v7544
  %v7565 = vmul.f32 %v7126, %v7551
  %v7566 = vmul.f32 %v7128, %v7552
  %v7567 = vmul.f32 %v7130, %v7553
  %v7568 = vmul.f32 %v7224, %v7550
  %v7569 = vmul.f32 %v7133, %v7544
  %v7570 = vmul.f32 %v7136, %v7551
  %v7571 = vmul.f32 %v7139, %v7552
  %v7572 = vmul.f32 %v7142, %v7553
  %v7573 = vmul.f32 %v7227, %v7550
  %v7574 = vmul.f32 %v7144, %v7544
  %v7575 = vmul.f32 %v7146, %v7551
  %v7576 = vmul.f32 %v7148, %v7552
  %v7577 = vmul.f32 %v7150, %v7553
  %v7578 = vmul.f32 %v7229, %v7550
  %7599 = vrot.lane.b32.xlu0 %v7559, 32
  %v7600 = vpop.permute.xlu0 %7599
  %7601 = vrot.lane.b32.xlu0 %v7560, 32
  %v7602 = vpop.permute.xlu0 %7601
  %7603 = vrot.lane.b32.xlu0 %v7561, 32
  %v7604 = vpop.permute.xlu0 %7603
  %7605 = vrot.lane.b32.xlu0 %v7562, 32
  %v7606 = vpop.permute.xlu0 %7605
  %7607 = vrot.lane.b32.xlu0 %v7563, 32
  %v7608 = vpop.permute.xlu0 %7607
  %7609 = vrot.lane.b32.xlu0 %v7564, 32
  %v7610 = vpop.permute.xlu0 %7609
  %7611 = vrot.lane.b32.xlu0 %v7565, 32
  %v7612 = vpop.permute.xlu0 %7611
  %7613 = vrot.lane.b32.xlu0 %v7566, 32
  %v7614 = vpop.permute.xlu0 %7613
  %7615 = vrot.lane.b32.xlu0 %v7567, 32
  %v7616 = vpop.permute.xlu0 %7615
  %7617 = vrot.lane.b32.xlu0 %v7568, 32
  %v7618 = vpop.permute.xlu0 %7617
  %7619 = vrot.lane.b32.xlu0 %v7569, 32
  %v7620 = vpop.permute.xlu0 %7619
  %7621 = vrot.lane.b32.xlu0 %v7570, 32
  %v7622 = vpop.permute.xlu0 %7621
  %7623 = vrot.lane.b32.xlu0 %v7571, 32
  %v7624 = vpop.permute.xlu0 %7623
  %7625 = vrot.lane.b32.xlu0 %v7572, 32
  %v7626 = vpop.permute.xlu0 %7625
  %7627 = vrot.lane.b32.xlu0 %v7573, 32
  %v7628 = vpop.permute.xlu0 %7627
  %7629 = vrot.lane.b32.xlu0 %v7574, 32
  %v7630 = vpop.permute.xlu0 %7629
  %7631 = vrot.lane.b32.xlu0 %v7575, 32
  %v7632 = vpop.permute.xlu0 %7631
  %7633 = vrot.lane.b32.xlu0 %v7576, 32
  %v7634 = vpop.permute.xlu0 %7633
  %7635 = vrot.lane.b32.xlu0 %v7577, 32
  %v7636 = vpop.permute.xlu0 %7635
  %7637 = vrot.lane.b32.xlu0 %v7578, 32
  %v7638 = vpop.permute.xlu0 %7637
  %v7639 = vsel %vm1433, %v7600, %v7602
  %v7640 = vsel %vm1433, %v7602, %v7604
  %v7641 = vsel %vm1433, %v7604, %v7606
  %v7642 = vsel %vm1433, %v7606, %v7608
  %v7643 = vsel %vm1433, %v7610, %v7612
  %v7644 = vsel %vm1433, %v7612, %v7614
  %v7645 = vsel %vm1433, %v7614, %v7616
  %v7646 = vsel %vm1433, %v7616, %v7618
  %v7647 = vsel %vm1433, %v7620, %v7622
  %v7648 = vsel %vm1433, %v7622, %v7624
  %v7649 = vsel %vm1433, %v7624, %v7626
  %v7650 = vsel %vm1433, %v7626, %v7628
  %v7651 = vsel %vm1433, %v7630, %v7632
  %v7652 = vsel %vm1433, %v7632, %v7634
  %v7653 = vsel %vm1433, %v7634, %v7636
  %v7654 = vsel %vm1433, %v7636, %v7638
  %v7671 = vadd.f32 %v7520, %v7639
  %v7672 = vadd.f32 %v7521, %v7640
  %v7673 = vadd.f32 %v7522, %v7641
  %v7674 = vadd.f32 %v7523, %v7642
  %v7675 = vadd.f32 %v7524, %v7643
  %v7676 = vadd.f32 %v7525, %v7644
  %v7677 = vadd.f32 %v7526, %v7645
  %v7678 = vadd.f32 %v7527, %v7646
  %v7679 = vadd.f32 %v7528, %v7647
  %v7680 = vadd.f32 %v7529, %v7648
  %v7681 = vadd.f32 %v7530, %v7649
  %v7682 = vadd.f32 %v7531, %v7650
  %v7683 = vadd.f32 %v7532, %v7651
  %v7684 = vadd.f32 %v7533, %v7652
  %v7685 = vadd.f32 %v7534, %v7653
  %v7686 = vadd.f32 %v7535, %v7654
  %s7687 = scalar_lea.vmem %s6528, 33
  %v7688 = vld [vmem:[%s7687] ss:$8 sm:$0xf]
  %v7690 = vperm.slane %v7688, 0
  %v7691 = vperm.slane %v7688, 1
  %v7692 = vperm.slane %v7688, 2
  %v7693 = vperm.slane %v7688, 3
  %v7698 = vmul.f32 %v7116, %v7690
  %v7699 = vmul.f32 %v7119, %v7691
  %v7700 = vmul.f32 %v7122, %v7692
  %v7701 = vmul.f32 %v7222, %v7693
  %v7702 = vmul.f32 %v7126, %v7690
  %v7703 = vmul.f32 %v7128, %v7691
  %v7704 = vmul.f32 %v7130, %v7692
  %v7705 = vmul.f32 %v7224, %v7693
  %v7706 = vmul.f32 %v7136, %v7690
  %v7707 = vmul.f32 %v7139, %v7691
  %v7708 = vmul.f32 %v7142, %v7692
  %v7709 = vmul.f32 %v7227, %v7693
  %v7710 = vmul.f32 %v7146, %v7690
  %v7711 = vmul.f32 %v7148, %v7691
  %v7712 = vmul.f32 %v7150, %v7692
  %v7713 = vmul.f32 %v7229, %v7693
  %v7714 = vadd.f32 %v7671, %v7698
  %v7715 = vadd.f32 %v7672, %v7699
  %v7716 = vadd.f32 %v7673, %v7700
  %v7717 = vadd.f32 %v7674, %v7701
  %v7718 = vadd.f32 %v7675, %v7702
  %v7719 = vadd.f32 %v7676, %v7703
  %v7720 = vadd.f32 %v7677, %v7704
  %v7721 = vadd.f32 %v7678, %v7705
  %v7722 = vadd.f32 %v7679, %v7706
  %v7723 = vadd.f32 %v7680, %v7707
  %v7724 = vadd.f32 %v7681, %v7708
  %v7725 = vadd.f32 %v7682, %v7709
  %v7726 = vadd.f32 %v7683, %v7710
  %v7727 = vadd.f32 %v7684, %v7711
  %v7728 = vadd.f32 %v7685, %v7712
  %v7729 = vadd.f32 %v7686, %v7713
  %v7730 = vld [vmem:[#allocation2] sm:$0xfc]
  %v7731 = vld [vmem:[#allocation2 + $0x8] sm:$0xfc]
  %v7732 = vld [vmem:[#allocation2 + $0x10] sm:$0xfc]
  %v7733 = vld [vmem:[#allocation2 + $0x18] sm:$0xfc]
  %v7734 = vld [vmem:[#allocation2 + $0x50] sm:$0x3]
  %v7735 = vld [vmem:[#allocation2 + $0x58] sm:$0x3]
  %v7736 = vld [vmem:[#allocation2 + $0x60] sm:$0x3]
  %v7737 = vld [vmem:[#allocation2 + $0x68] sm:$0x3]
  %v7738 = vld [vmem:[#allocation2 + $0x78] sm:$0xfc]
  %v7739 = vld [vmem:[#allocation2 + $0x80] sm:$0xfc]
  %v7740 = vld [vmem:[#allocation2 + $0x88] sm:$0xfc]
  %v7741 = vld [vmem:[#allocation2 + $0x90] sm:$0xfc]
  %v7742 = vld [vmem:[#allocation2 + $0xc8] sm:$0x3]
  %v7743 = vld [vmem:[#allocation2 + $0xd0] sm:$0x3]
  %v7744 = vld [vmem:[#allocation2 + $0xd8] sm:$0x3]
  %v7745 = vld [vmem:[#allocation2 + $0xe0] sm:$0x3]
  %v7762 = vrot.slane %v7730, 2
  %v7763 = vrot.slane %v6516, 2
  %v7764 = vsel %vm2608, %v7762, %v7763
  %v7765 = vrot.slane %v7731, 2
  %v7766 = vrot.slane %v6517, 2
  %v7767 = vsel %vm2608, %v7765, %v7766
  %v7768 = vrot.slane %v7732, 2
  %v7769 = vrot.slane %v6518, 2
  %v7770 = vsel %vm2608, %v7768, %v7769
  %v7771 = vrot.slane %v7733, 2
  %v7772 = vrot.slane %v6519, 2
  %v7773 = vsel %vm2608, %v7771, %v7772
  %v7774 = vrot.slane %v7734, 2
  %v7775 = vsel %vm2608, %v7763, %v7774
  %v7776 = vrot.slane %v7735, 2
  %v7777 = vsel %vm2608, %v7766, %v7776
  %v7778 = vrot.slane %v7736, 2
  %v7779 = vsel %vm2608, %v7769, %v7778
  %v7780 = vrot.slane %v7737, 2
  %v7781 = vsel %vm2608, %v7772, %v7780
  %v7782 = vrot.slane %v7738, 2
  %v7783 = vrot.slane %v6524, 2
  %v7784 = vsel %vm2608, %v7782, %v7783
  %v7785 = vrot.slane %v7739, 2
  %v7786 = vrot.slane %v6525, 2
  %v7787 = vsel %vm2608, %v7785, %v7786
  %v7788 = vrot.slane %v7740, 2
  %v7789 = vrot.slane %v6526, 2
  %v7790 = vsel %vm2608, %v7788, %v7789
  %v7791 = vrot.slane %v7741, 2
  %v7792 = vrot.slane %v6527, 2
  %v7793 = vsel %vm2608, %v7791, %v7792
  %v7794 = vrot.slane %v7742, 2
  %v7795 = vsel %vm2608, %v7783, %v7794
  %v7796 = vrot.slane %v7743, 2
  %v7797 = vsel %vm2608, %v7786, %v7796
  %v7798 = vrot.slane %v7744, 2
  %v7799 = vsel %vm2608, %v7789, %v7798
  %v7800 = vrot.slane %v7745, 2
  %v7801 = vsel %vm2608, %v7792, %v7800
  %s7818 = scalar_lea.vmem %s6528, 34
  %v7819 = vld [vmem:[%s7818] ss:$8 sm:$0xf]
  %v7821 = vperm.slane %v7819, 0
  %v7822 = vperm.slane %v7819, 1
  %v7823 = vperm.slane %v7819, 2
  %v7824 = vperm.slane %v7819, 3
  %v7829 = vmul.f32 %v7764, %v7821
  %v7830 = vmul.f32 %v7767, %v7822
  %v7831 = vmul.f32 %v7770, %v7823
  %v7832 = vmul.f32 %v7773, %v7824
  %v7833 = vmul.f32 %v7775, %v7821
  %v7834 = vmul.f32 %v7777, %v7822
  %v7835 = vmul.f32 %v7779, %v7823
  %v7836 = vmul.f32 %v7781, %v7824
  %v7837 = vmul.f32 %v7784, %v7821
  %v7838 = vmul.f32 %v7787, %v7822
  %v7839 = vmul.f32 %v7790, %v7823
  %v7840 = vmul.f32 %v7793, %v7824
  %v7841 = vmul.f32 %v7795, %v7821
  %v7842 = vmul.f32 %v7797, %v7822
  %v7843 = vmul.f32 %v7799, %v7823
  %v7844 = vmul.f32 %v7801, %v7824
  %v7845 = vadd.f32 %v7714, %v7829
  %v7846 = vadd.f32 %v7715, %v7830
  %v7847 = vadd.f32 %v7716, %v7831
  %v7848 = vadd.f32 %v7717, %v7832
  %v7849 = vadd.f32 %v7718, %v7833
  %v7850 = vadd.f32 %v7719, %v7834
  %v7851 = vadd.f32 %v7720, %v7835
  %v7852 = vadd.f32 %v7721, %v7836
  %v7853 = vadd.f32 %v7722, %v7837
  %v7854 = vadd.f32 %v7723, %v7838
  %v7855 = vadd.f32 %v7724, %v7839
  %v7856 = vadd.f32 %v7725, %v7840
  %v7857 = vadd.f32 %v7726, %v7841
  %v7858 = vadd.f32 %v7727, %v7842
  %v7859 = vadd.f32 %v7728, %v7843
  %v7860 = vadd.f32 %v7729, %v7844
  %v7861 = vld [vmem:[#allocation2 + $0x20] sm:$0xfc]
  %v7862 = vld [vmem:[#allocation2 + $0x70] sm:$0x3]
  %v7863 = vld [vmem:[#allocation2 + $0x98] sm:$0xfc]
  %v7864 = vld [vmem:[#allocation2 + $0xe8] sm:$0x3]
  %v7869 = vrot.slane %v7861, 2
  %v7870 = vrot.slane %v6572, 2
  %v7871 = vsel %vm2608, %v7869, %v7870
  %v7872 = vrot.slane %v7862, 2
  %v7873 = vsel %vm2608, %v7870, %v7872
  %v7874 = vrot.slane %v7863, 2
  %v7875 = vrot.slane %v6574, 2
  %v7876 = vsel %vm2608, %v7874, %v7875
  %v7877 = vrot.slane %v7864, 2
  %v7878 = vsel %vm2608, %v7875, %v7877
  %s7883 = scalar_lea.vmem %s6528, 35
  %v7884 = vld [vmem:[%s7883] ss:$8 sm:$0xf]
  %v7886 = vperm.slane %v7884, 0
  %v7887 = vperm.slane %v7884, 1
  %v7888 = vperm.slane %v7884, 2
  %v7889 = vperm.slane %v7884, 3
  %7890 = vrot.lane.b32.xlu0 %v7886, 32
  %v7891 = vpop.permute.xlu0 %7890
  %7892 = vrot.lane.b32.xlu0 %v7887, 32
  %v7893 = vpop.permute.xlu0 %7892
  %7894 = vrot.lane.b32.xlu0 %v7888, 32
  %v7895 = vpop.permute.xlu0 %7894
  %7896 = vrot.lane.b32.xlu0 %v7889, 32
  %v7897 = vpop.permute.xlu0 %7896
  %v7898 = vsel %vm1433, %v7891, %v7893
  %v7899 = vsel %vm1433, %v7893, %v7895
  %v7900 = vsel %vm1433, %v7895, %v7897
  %v7906 = vmul.f32 %v7764, %v7891
  %v7907 = vmul.f32 %v7767, %v7898
  %v7908 = vmul.f32 %v7770, %v7899
  %v7909 = vmul.f32 %v7773, %v7900
  %v7910 = vmul.f32 %v7871, %v7897
  %v7911 = vmul.f32 %v7775, %v7891
  %v7912 = vmul.f32 %v7777, %v7898
  %v7913 = vmul.f32 %v7779, %v7899
  %v7914 = vmul.f32 %v7781, %v7900
  %v7915 = vmul.f32 %v7873, %v7897
  %v7916 = vmul.f32 %v7784, %v7891
  %v7917 = vmul.f32 %v7787, %v7898
  %v7918 = vmul.f32 %v7790, %v7899
  %v7919 = vmul.f32 %v7793, %v7900
  %v7920 = vmul.f32 %v7876, %v7897
  %v7921 = vmul.f32 %v7795, %v7891
  %v7922 = vmul.f32 %v7797, %v7898
  %v7923 = vmul.f32 %v7799, %v7899
  %v7924 = vmul.f32 %v7801, %v7900
  %v7925 = vmul.f32 %v7878, %v7897
  %7946 = vrot.lane.b32.xlu0 %v7906, 96
  %v7947 = vpop.permute.xlu0 %7946
  %7948 = vrot.lane.b32.xlu0 %v7907, 96
  %v7949 = vpop.permute.xlu0 %7948
  %7950 = vrot.lane.b32.xlu0 %v7908, 96
  %v7951 = vpop.permute.xlu0 %7950
  %7952 = vrot.lane.b32.xlu0 %v7909, 96
  %v7953 = vpop.permute.xlu0 %7952
  %7954 = vrot.lane.b32.xlu0 %v7910, 96
  %v7955 = vpop.permute.xlu0 %7954
  %7956 = vrot.lane.b32.xlu0 %v7911, 96
  %v7957 = vpop.permute.xlu0 %7956
  %7958 = vrot.lane.b32.xlu0 %v7912, 96
  %v7959 = vpop.permute.xlu0 %7958
  %7960 = vrot.lane.b32.xlu0 %v7913, 96
  %v7961 = vpop.permute.xlu0 %7960
  %7962 = vrot.lane.b32.xlu0 %v7914, 96
  %v7963 = vpop.permute.xlu0 %7962
  %7964 = vrot.lane.b32.xlu0 %v7915, 96
  %v7965 = vpop.permute.xlu0 %7964
  %7966 = vrot.lane.b32.xlu0 %v7916, 96
  %v7967 = vpop.permute.xlu0 %7966
  %7968 = vrot.lane.b32.xlu0 %v7917, 96
  %v7969 = vpop.permute.xlu0 %7968
  %7970 = vrot.lane.b32.xlu0 %v7918, 96
  %v7971 = vpop.permute.xlu0 %7970
  %7972 = vrot.lane.b32.xlu0 %v7919, 96
  %v7973 = vpop.permute.xlu0 %7972
  %7974 = vrot.lane.b32.xlu0 %v7920, 96
  %v7975 = vpop.permute.xlu0 %7974
  %7976 = vrot.lane.b32.xlu0 %v7921, 96
  %v7977 = vpop.permute.xlu0 %7976
  %7978 = vrot.lane.b32.xlu0 %v7922, 96
  %v7979 = vpop.permute.xlu0 %7978
  %7980 = vrot.lane.b32.xlu0 %v7923, 96
  %v7981 = vpop.permute.xlu0 %7980
  %7982 = vrot.lane.b32.xlu0 %v7924, 96
  %v7983 = vpop.permute.xlu0 %7982
  %7984 = vrot.lane.b32.xlu0 %v7925, 96
  %v7985 = vpop.permute.xlu0 %7984
  %v7986 = vsel %vm1522, %v7947, %v7949
  %v7987 = vsel %vm1522, %v7949, %v7951
  %v7988 = vsel %vm1522, %v7951, %v7953
  %v7989 = vsel %vm1522, %v7953, %v7955
  %v7990 = vsel %vm1522, %v7957, %v7959
  %v7991 = vsel %vm1522, %v7959, %v7961
  %v7992 = vsel %vm1522, %v7961, %v7963
  %v7993 = vsel %vm1522, %v7963, %v7965
  %v7994 = vsel %vm1522, %v7967, %v7969
  %v7995 = vsel %vm1522, %v7969, %v7971
  %v7996 = vsel %vm1522, %v7971, %v7973
  %v7997 = vsel %vm1522, %v7973, %v7975
  %v7998 = vsel %vm1522, %v7977, %v7979
  %v7999 = vsel %vm1522, %v7979, %v7981
  %v8000 = vsel %vm1522, %v7981, %v7983
  %v8001 = vsel %vm1522, %v7983, %v7985
  %v8018 = vadd.f32 %v7845, %v7986
  %v8019 = vadd.f32 %v7846, %v7987
  %v8020 = vadd.f32 %v7847, %v7988
  %v8021 = vadd.f32 %v7848, %v7989
  %v8022 = vadd.f32 %v7849, %v7990
  %v8023 = vadd.f32 %v7850, %v7991
  %v8024 = vadd.f32 %v7851, %v7992
  %v8025 = vadd.f32 %v7852, %v7993
  %v8026 = vadd.f32 %v7853, %v7994
  %v8027 = vadd.f32 %v7854, %v7995
  %v8028 = vadd.f32 %v7855, %v7996
  %v8029 = vadd.f32 %v7856, %v7997
  %v8030 = vadd.f32 %v7857, %v7998
  %v8031 = vadd.f32 %v7858, %v7999
  %v8032 = vadd.f32 %v7859, %v8000
  %v8033 = vadd.f32 %v7860, %v8001
  %s8034 = scalar_lea.vmem %s6528, 36
  %v8035 = vld [vmem:[%s8034] ss:$8 sm:$0xf]
  %v8037 = vperm.slane %v8035, 0
  %v8038 = vperm.slane %v8035, 1
  %v8039 = vperm.slane %v8035, 2
  %v8040 = vperm.slane %v8035, 3
  %8041 = vrot.lane.b32.xlu0 %v8037, 64
  %v8042 = vpop.permute.xlu0 %8041
  %8043 = vrot.lane.b32.xlu0 %v8038, 64
  %v8044 = vpop.permute.xlu0 %8043
  %8045 = vrot.lane.b32.xlu0 %v8039, 64
  %v8046 = vpop.permute.xlu0 %8045
  %8047 = vrot.lane.b32.xlu0 %v8040, 64
  %v8048 = vpop.permute.xlu0 %8047
  %v8049 = vsel %vm1258, %v8042, %v8044
  %v8050 = vsel %vm1258, %v8044, %v8046
  %v8051 = vsel %vm1258, %v8046, %v8048
  %v8057 = vmul.f32 %v7764, %v8042
  %v8058 = vmul.f32 %v7767, %v8049
  %v8059 = vmul.f32 %v7770, %v8050
  %v8060 = vmul.f32 %v7773, %v8051
  %v8061 = vmul.f32 %v7871, %v8048
  %v8062 = vmul.f32 %v7775, %v8042
  %v8063 = vmul.f32 %v7777, %v8049
  %v8064 = vmul.f32 %v7779, %v8050
  %v8065 = vmul.f32 %v7781, %v8051
  %v8066 = vmul.f32 %v7873, %v8048
  %v8067 = vmul.f32 %v7784, %v8042
  %v8068 = vmul.f32 %v7787, %v8049
  %v8069 = vmul.f32 %v7790, %v8050
  %v8070 = vmul.f32 %v7793, %v8051
  %v8071 = vmul.f32 %v7876, %v8048
  %v8072 = vmul.f32 %v7795, %v8042
  %v8073 = vmul.f32 %v7797, %v8049
  %v8074 = vmul.f32 %v7799, %v8050
  %v8075 = vmul.f32 %v7801, %v8051
  %v8076 = vmul.f32 %v7878, %v8048
  %8097 = vrot.lane.b32.xlu0 %v8057, 64
  %v8098 = vpop.permute.xlu0 %8097
  %8099 = vrot.lane.b32.xlu0 %v8058, 64
  %v8100 = vpop.permute.xlu0 %8099
  %8101 = vrot.lane.b32.xlu0 %v8059, 64
  %v8102 = vpop.permute.xlu0 %8101
  %8103 = vrot.lane.b32.xlu0 %v8060, 64
  %v8104 = vpop.permute.xlu0 %8103
  %8105 = vrot.lane.b32.xlu0 %v8061, 64
  %v8106 = vpop.permute.xlu0 %8105
  %8107 = vrot.lane.b32.xlu0 %v8062, 64
  %v8108 = vpop.permute.xlu0 %8107
  %8109 = vrot.lane.b32.xlu0 %v8063, 64
  %v8110 = vpop.permute.xlu0 %8109
  %8111 = vrot.lane.b32.xlu0 %v8064, 64
  %v8112 = vpop.permute.xlu0 %8111
  %8113 = vrot.lane.b32.xlu0 %v8065, 64
  %v8114 = vpop.permute.xlu0 %8113
  %8115 = vrot.lane.b32.xlu0 %v8066, 64
  %v8116 = vpop.permute.xlu0 %8115
  %8117 = vrot.lane.b32.xlu0 %v8067, 64
  %v8118 = vpop.permute.xlu0 %8117
  %8119 = vrot.lane.b32.xlu0 %v8068, 64
  %v8120 = vpop.permute.xlu0 %8119
  %8121 = vrot.lane.b32.xlu0 %v8069, 64
  %v8122 = vpop.permute.xlu0 %8121
  %8123 = vrot.lane.b32.xlu0 %v8070, 64
  %v8124 = vpop.permute.xlu0 %8123
  %8125 = vrot.lane.b32.xlu0 %v8071, 64
  %v8126 = vpop.permute.xlu0 %8125
  %8127 = vrot.lane.b32.xlu0 %v8072, 64
  %v8128 = vpop.permute.xlu0 %8127
  %8129 = vrot.lane.b32.xlu0 %v8073, 64
  %v8130 = vpop.permute.xlu0 %8129
  %8131 = vrot.lane.b32.xlu0 %v8074, 64
  %v8132 = vpop.permute.xlu0 %8131
  %8133 = vrot.lane.b32.xlu0 %v8075, 64
  %v8134 = vpop.permute.xlu0 %8133
  %8135 = vrot.lane.b32.xlu0 %v8076, 64
  %v8136 = vpop.permute.xlu0 %8135
  %v8137 = vsel %vm1258, %v8098, %v8100
  %v8138 = vsel %vm1258, %v8100, %v8102
  %v8139 = vsel %vm1258, %v8102, %v8104
  %v8140 = vsel %vm1258, %v8104, %v8106
  %v8141 = vsel %vm1258, %v8108, %v8110
  %v8142 = vsel %vm1258, %v8110, %v8112
  %v8143 = vsel %vm1258, %v8112, %v8114
  %v8144 = vsel %vm1258, %v8114, %v8116
  %v8145 = vsel %vm1258, %v8118, %v8120
  %v8146 = vsel %vm1258, %v8120, %v8122
  %v8147 = vsel %vm1258, %v8122, %v8124
  %v8148 = vsel %vm1258, %v8124, %v8126
  %v8149 = vsel %vm1258, %v8128, %v8130
  %v8150 = vsel %vm1258, %v8130, %v8132
  %v8151 = vsel %vm1258, %v8132, %v8134
  %v8152 = vsel %vm1258, %v8134, %v8136
  %v8169 = vadd.f32 %v8018, %v8137
  %v8170 = vadd.f32 %v8019, %v8138
  %v8171 = vadd.f32 %v8020, %v8139
  %v8172 = vadd.f32 %v8021, %v8140
  %v8173 = vadd.f32 %v8022, %v8141
  %v8174 = vadd.f32 %v8023, %v8142
  %v8175 = vadd.f32 %v8024, %v8143
  %v8176 = vadd.f32 %v8025, %v8144
  %v8177 = vadd.f32 %v8026, %v8145
  %v8178 = vadd.f32 %v8027, %v8146
  %v8179 = vadd.f32 %v8028, %v8147
  %v8180 = vadd.f32 %v8029, %v8148
  %v8181 = vadd.f32 %v8030, %v8149
  %v8182 = vadd.f32 %v8031, %v8150
  %v8183 = vadd.f32 %v8032, %v8151
  %v8184 = vadd.f32 %v8033, %v8152
  %s8185 = scalar_lea.vmem %s6528, 37
  %v8186 = vld [vmem:[%s8185] ss:$8 sm:$0xf]
  %v8188 = vperm.slane %v8186, 0
  %v8189 = vperm.slane %v8186, 1
  %v8190 = vperm.slane %v8186, 2
  %v8191 = vperm.slane %v8186, 3
  %8192 = vrot.lane.b32.xlu0 %v8188, 96
  %v8193 = vpop.permute.xlu0 %8192
  %8194 = vrot.lane.b32.xlu0 %v8189, 96
  %v8195 = vpop.permute.xlu0 %8194
  %8196 = vrot.lane.b32.xlu0 %v8190, 96
  %v8197 = vpop.permute.xlu0 %8196
  %8198 = vrot.lane.b32.xlu0 %v8191, 96
  %v8199 = vpop.permute.xlu0 %8198
  %v8200 = vsel %vm1522, %v8193, %v8195
  %v8201 = vsel %vm1522, %v8195, %v8197
  %v8202 = vsel %vm1522, %v8197, %v8199
  %v8208 = vmul.f32 %v7764, %v8193
  %v8209 = vmul.f32 %v7767, %v8200
  %v8210 = vmul.f32 %v7770, %v8201
  %v8211 = vmul.f32 %v7773, %v8202
  %v8212 = vmul.f32 %v7871, %v8199
  %v8213 = vmul.f32 %v7775, %v8193
  %v8214 = vmul.f32 %v7777, %v8200
  %v8215 = vmul.f32 %v7779, %v8201
  %v8216 = vmul.f32 %v7781, %v8202
  %v8217 = vmul.f32 %v7873, %v8199
  %v8218 = vmul.f32 %v7784, %v8193
  %v8219 = vmul.f32 %v7787, %v8200
  %v8220 = vmul.f32 %v7790, %v8201
  %v8221 = vmul.f32 %v7793, %v8202
  %v8222 = vmul.f32 %v7876, %v8199
  %v8223 = vmul.f32 %v7795, %v8193
  %v8224 = vmul.f32 %v7797, %v8200
  %v8225 = vmul.f32 %v7799, %v8201
  %v8226 = vmul.f32 %v7801, %v8202
  %v8227 = vmul.f32 %v7878, %v8199
  %8248 = vrot.lane.b32.xlu0 %v8208, 32
  %v8249 = vpop.permute.xlu0 %8248
  %8250 = vrot.lane.b32.xlu0 %v8209, 32
  %v8251 = vpop.permute.xlu0 %8250
  %8252 = vrot.lane.b32.xlu0 %v8210, 32
  %v8253 = vpop.permute.xlu0 %8252
  %8254 = vrot.lane.b32.xlu0 %v8211, 32
  %v8255 = vpop.permute.xlu0 %8254
  %8256 = vrot.lane.b32.xlu0 %v8212, 32
  %v8257 = vpop.permute.xlu0 %8256
  %8258 = vrot.lane.b32.xlu0 %v8213, 32
  %v8259 = vpop.permute.xlu0 %8258
  %8260 = vrot.lane.b32.xlu0 %v8214, 32
  %v8261 = vpop.permute.xlu0 %8260
  %8262 = vrot.lane.b32.xlu0 %v8215, 32
  %v8263 = vpop.permute.xlu0 %8262
  %8264 = vrot.lane.b32.xlu0 %v8216, 32
  %v8265 = vpop.permute.xlu0 %8264
  %8266 = vrot.lane.b32.xlu0 %v8217, 32
  %v8267 = vpop.permute.xlu0 %8266
  %8268 = vrot.lane.b32.xlu0 %v8218, 32
  %v8269 = vpop.permute.xlu0 %8268
  %8270 = vrot.lane.b32.xlu0 %v8219, 32
  %v8271 = vpop.permute.xlu0 %8270
  %8272 = vrot.lane.b32.xlu0 %v8220, 32
  %v8273 = vpop.permute.xlu0 %8272
  %8274 = vrot.lane.b32.xlu0 %v8221, 32
  %v8275 = vpop.permute.xlu0 %8274
  %8276 = vrot.lane.b32.xlu0 %v8222, 32
  %v8277 = vpop.permute.xlu0 %8276
  %8278 = vrot.lane.b32.xlu0 %v8223, 32
  %v8279 = vpop.permute.xlu0 %8278
  %8280 = vrot.lane.b32.xlu0 %v8224, 32
  %v8281 = vpop.permute.xlu0 %8280
  %8282 = vrot.lane.b32.xlu0 %v8225, 32
  %v8283 = vpop.permute.xlu0 %8282
  %8284 = vrot.lane.b32.xlu0 %v8226, 32
  %v8285 = vpop.permute.xlu0 %8284
  %8286 = vrot.lane.b32.xlu0 %v8227, 32
  %v8287 = vpop.permute.xlu0 %8286
  %v8288 = vsel %vm1433, %v8249, %v8251
  %v8289 = vsel %vm1433, %v8251, %v8253
  %v8290 = vsel %vm1433, %v8253, %v8255
  %v8291 = vsel %vm1433, %v8255, %v8257
  %v8292 = vsel %vm1433, %v8259, %v8261
  %v8293 = vsel %vm1433, %v8261, %v8263
  %v8294 = vsel %vm1433, %v8263, %v8265
  %v8295 = vsel %vm1433, %v8265, %v8267
  %v8296 = vsel %vm1433, %v8269, %v8271
  %v8297 = vsel %vm1433, %v8271, %v8273
  %v8298 = vsel %vm1433, %v8273, %v8275
  %v8299 = vsel %vm1433, %v8275, %v8277
  %v8300 = vsel %vm1433, %v8279, %v8281
  %v8301 = vsel %vm1433, %v8281, %v8283
  %v8302 = vsel %vm1433, %v8283, %v8285
  %v8303 = vsel %vm1433, %v8285, %v8287
  %v8320 = vadd.f32 %v8169, %v8288
  %v8321 = vadd.f32 %v8170, %v8289
  %v8322 = vadd.f32 %v8171, %v8290
  %v8323 = vadd.f32 %v8172, %v8291
  %v8324 = vadd.f32 %v8173, %v8292
  %v8325 = vadd.f32 %v8174, %v8293
  %v8326 = vadd.f32 %v8175, %v8294
  %v8327 = vadd.f32 %v8176, %v8295
  %v8328 = vadd.f32 %v8177, %v8296
  %v8329 = vadd.f32 %v8178, %v8297
  %v8330 = vadd.f32 %v8179, %v8298
  %v8331 = vadd.f32 %v8180, %v8299
  %v8332 = vadd.f32 %v8181, %v8300
  %v8333 = vadd.f32 %v8182, %v8301
  %v8334 = vadd.f32 %v8183, %v8302
  %v8335 = vadd.f32 %v8184, %v8303
  %s8336 = scalar_lea.vmem %s6528, 38
  %v8337 = vld [vmem:[%s8336] ss:$8 sm:$0xf]
  %v8339 = vperm.slane %v8337, 0
  %v8340 = vperm.slane %v8337, 1
  %v8341 = vperm.slane %v8337, 2
  %v8342 = vperm.slane %v8337, 3
  %v8347 = vmul.f32 %v7767, %v8339
  %v8348 = vmul.f32 %v7770, %v8340
  %v8349 = vmul.f32 %v7773, %v8341
  %v8350 = vmul.f32 %v7871, %v8342
  %v8351 = vmul.f32 %v7777, %v8339
  %v8352 = vmul.f32 %v7779, %v8340
  %v8353 = vmul.f32 %v7781, %v8341
  %v8354 = vmul.f32 %v7873, %v8342
  %v8355 = vmul.f32 %v7787, %v8339
  %v8356 = vmul.f32 %v7790, %v8340
  %v8357 = vmul.f32 %v7793, %v8341
  %v8358 = vmul.f32 %v7876, %v8342
  %v8359 = vmul.f32 %v7797, %v8339
  %v8360 = vmul.f32 %v7799, %v8340
  %v8361 = vmul.f32 %v7801, %v8341
  %v8362 = vmul.f32 %v7878, %v8342
  %v8363 = vadd.f32 %v8320, %v8347
  %v8364 = vadd.f32 %v8321, %v8348
  %v8365 = vadd.f32 %v8322, %v8349
  %v8366 = vadd.f32 %v8323, %v8350
  %v8367 = vadd.f32 %v8324, %v8351
  %v8368 = vadd.f32 %v8325, %v8352
  %v8369 = vadd.f32 %v8326, %v8353
  %v8370 = vadd.f32 %v8327, %v8354
  %v8371 = vadd.f32 %v8328, %v8355
  %v8372 = vadd.f32 %v8329, %v8356
  %v8373 = vadd.f32 %v8330, %v8357
  %v8374 = vadd.f32 %v8331, %v8358
  %v8375 = vadd.f32 %v8332, %v8359
  %v8376 = vadd.f32 %v8333, %v8360
  %v8377 = vadd.f32 %v8334, %v8361
  %v8378 = vadd.f32 %v8335, %v8362
  %v8379 = vld [vmem:[#allocation2] sm:$0xf8]
  %v8380 = vld [vmem:[#allocation2 + $0x8] sm:$0xf8]
  %v8381 = vld [vmem:[#allocation2 + $0x10] sm:$0xf8]
  %v8382 = vld [vmem:[#allocation2 + $0x18] sm:$0xf8]
  %v8383 = vld [vmem:[#allocation2 + $0x50] sm:$0x7]
  %v8384 = vld [vmem:[#allocation2 + $0x58] sm:$0x7]
  %v8385 = vld [vmem:[#allocation2 + $0x60] sm:$0x7]
  %v8386 = vld [vmem:[#allocation2 + $0x68] sm:$0x7]
  %v8387 = vld [vmem:[#allocation2 + $0x78] sm:$0xf8]
  %v8388 = vld [vmem:[#allocation2 + $0x80] sm:$0xf8]
  %v8389 = vld [vmem:[#allocation2 + $0x88] sm:$0xf8]
  %v8390 = vld [vmem:[#allocation2 + $0x90] sm:$0xf8]
  %v8391 = vld [vmem:[#allocation2 + $0xc8] sm:$0x7]
  %v8392 = vld [vmem:[#allocation2 + $0xd0] sm:$0x7]
  %v8393 = vld [vmem:[#allocation2 + $0xd8] sm:$0x7]
  %v8394 = vld [vmem:[#allocation2 + $0xe0] sm:$0x7]
  %v8411 = vrot.slane %v8379, 3
  %v8412 = vrot.slane %v6516, 3
  %v8413 = vsel %vm3258, %v8411, %v8412
  %v8414 = vrot.slane %v8380, 3
  %v8415 = vrot.slane %v6517, 3
  %v8416 = vsel %vm3258, %v8414, %v8415
  %v8417 = vrot.slane %v8381, 3
  %v8418 = vrot.slane %v6518, 3
  %v8419 = vsel %vm3258, %v8417, %v8418
  %v8420 = vrot.slane %v8382, 3
  %v8421 = vrot.slane %v6519, 3
  %v8422 = vsel %vm3258, %v8420, %v8421
  %v8423 = vrot.slane %v8383, 3
  %v8424 = vsel %vm3258, %v8412, %v8423
  %v8425 = vrot.slane %v8384, 3
  %v8426 = vsel %vm3258, %v8415, %v8425
  %v8427 = vrot.slane %v8385, 3
  %v8428 = vsel %vm3258, %v8418, %v8427
  %v8429 = vrot.slane %v8386, 3
  %v8430 = vsel %vm3258, %v8421, %v8429
  %v8431 = vrot.slane %v8387, 3
  %v8432 = vrot.slane %v6524, 3
  %v8433 = vsel %vm3258, %v8431, %v8432
  %v8434 = vrot.slane %v8388, 3
  %v8435 = vrot.slane %v6525, 3
  %v8436 = vsel %vm3258, %v8434, %v8435
  %v8437 = vrot.slane %v8389, 3
  %v8438 = vrot.slane %v6526, 3
  %v8439 = vsel %vm3258, %v8437, %v8438
  %v8440 = vrot.slane %v8390, 3
  %v8441 = vrot.slane %v6527, 3
  %v8442 = vsel %vm3258, %v8440, %v8441
  %v8443 = vrot.slane %v8391, 3
  %v8444 = vsel %vm3258, %v8432, %v8443
  %v8445 = vrot.slane %v8392, 3
  %v8446 = vsel %vm3258, %v8435, %v8445
  %v8447 = vrot.slane %v8393, 3
  %v8448 = vsel %vm3258, %v8438, %v8447
  %v8449 = vrot.slane %v8394, 3
  %v8450 = vsel %vm3258, %v8441, %v8449
  %s8467 = scalar_lea.vmem %s6528, 39
  %v8468 = vld [vmem:[%s8467] ss:$8 sm:$0xf]
  %v8470 = vperm.slane %v8468, 0
  %v8471 = vperm.slane %v8468, 1
  %v8472 = vperm.slane %v8468, 2
  %v8473 = vperm.slane %v8468, 3
  %v8478 = vmul.f32 %v8413, %v8470
  %v8479 = vmul.f32 %v8416, %v8471
  %v8480 = vmul.f32 %v8419, %v8472
  %v8481 = vmul.f32 %v8422, %v8473
  %v8482 = vmul.f32 %v8424, %v8470
  %v8483 = vmul.f32 %v8426, %v8471
  %v8484 = vmul.f32 %v8428, %v8472
  %v8485 = vmul.f32 %v8430, %v8473
  %v8486 = vmul.f32 %v8433, %v8470
  %v8487 = vmul.f32 %v8436, %v8471
  %v8488 = vmul.f32 %v8439, %v8472
  %v8489 = vmul.f32 %v8442, %v8473
  %v8490 = vmul.f32 %v8444, %v8470
  %v8491 = vmul.f32 %v8446, %v8471
  %v8492 = vmul.f32 %v8448, %v8472
  %v8493 = vmul.f32 %v8450, %v8473
  %v8494 = vadd.f32 %v8363, %v8478
  %v8495 = vadd.f32 %v8364, %v8479
  %v8496 = vadd.f32 %v8365, %v8480
  %v8497 = vadd.f32 %v8366, %v8481
  %v8498 = vadd.f32 %v8367, %v8482
  %v8499 = vadd.f32 %v8368, %v8483
  %v8500 = vadd.f32 %v8369, %v8484
  %v8501 = vadd.f32 %v8370, %v8485
  %v8502 = vadd.f32 %v8371, %v8486
  %v8503 = vadd.f32 %v8372, %v8487
  %v8504 = vadd.f32 %v8373, %v8488
  %v8505 = vadd.f32 %v8374, %v8489
  %v8506 = vadd.f32 %v8375, %v8490
  %v8507 = vadd.f32 %v8376, %v8491
  %v8508 = vadd.f32 %v8377, %v8492
  %v8509 = vadd.f32 %v8378, %v8493
  %v8510 = vld [vmem:[#allocation2 + $0x20] sm:$0xf8]
  %v8511 = vld [vmem:[#allocation2 + $0x70] sm:$0x7]
  %v8512 = vld [vmem:[#allocation2 + $0x98] sm:$0xf8]
  %v8513 = vld [vmem:[#allocation2 + $0xe8] sm:$0x7]
  %v8518 = vrot.slane %v8510, 3
  %v8519 = vrot.slane %v6572, 3
  %v8520 = vsel %vm3258, %v8518, %v8519
  %v8521 = vrot.slane %v8511, 3
  %v8522 = vsel %vm3258, %v8519, %v8521
  %v8523 = vrot.slane %v8512, 3
  %v8524 = vrot.slane %v6574, 3
  %v8525 = vsel %vm3258, %v8523, %v8524
  %v8526 = vrot.slane %v8513, 3
  %v8527 = vsel %vm3258, %v8524, %v8526
  %s8532 = scalar_lea.vmem %s6528, 64
  %v8533 = vld [vmem:[%s8532] ss:$8 sm:$0xf]
  %v8535 = vperm.slane %v8533, 0
  %v8536 = vperm.slane %v8533, 1
  %v8537 = vperm.slane %v8533, 2
  %v8538 = vperm.slane %v8533, 3
  %8539 = vrot.lane.b32.xlu0 %v8535, 32
  %v8540 = vpop.permute.xlu0 %8539
  %8541 = vrot.lane.b32.xlu0 %v8536, 32
  %v8542 = vpop.permute.xlu0 %8541
  %8543 = vrot.lane.b32.xlu0 %v8537, 32
  %v8544 = vpop.permute.xlu0 %8543
  %8545 = vrot.lane.b32.xlu0 %v8538, 32
  %v8546 = vpop.permute.xlu0 %8545
  %v8547 = vsel %vm1433, %v8540, %v8542
  %v8548 = vsel %vm1433, %v8542, %v8544
  %v8549 = vsel %vm1433, %v8544, %v8546
  %v8555 = vmul.f32 %v8413, %v8540
  %v8556 = vmul.f32 %v8416, %v8547
  %v8557 = vmul.f32 %v8419, %v8548
  %v8558 = vmul.f32 %v8422, %v8549
  %v8559 = vmul.f32 %v8520, %v8546
  %v8560 = vmul.f32 %v8424, %v8540
  %v8561 = vmul.f32 %v8426, %v8547
  %v8562 = vmul.f32 %v8428, %v8548
  %v8563 = vmul.f32 %v8430, %v8549
  %v8564 = vmul.f32 %v8522, %v8546
  %v8565 = vmul.f32 %v8433, %v8540
  %v8566 = vmul.f32 %v8436, %v8547
  %v8567 = vmul.f32 %v8439, %v8548
  %v8568 = vmul.f32 %v8442, %v8549
  %v8569 = vmul.f32 %v8525, %v8546
  %v8570 = vmul.f32 %v8444, %v8540
  %v8571 = vmul.f32 %v8446, %v8547
  %v8572 = vmul.f32 %v8448, %v8548
  %v8573 = vmul.f32 %v8450, %v8549
  %v8574 = vmul.f32 %v8527, %v8546
  %8595 = vrot.lane.b32.xlu0 %v8555, 96
  %v8596 = vpop.permute.xlu0 %8595
  %8597 = vrot.lane.b32.xlu0 %v8556, 96
  %v8598 = vpop.permute.xlu0 %8597
  %8599 = vrot.lane.b32.xlu0 %v8557, 96
  %v8600 = vpop.permute.xlu0 %8599
  %8601 = vrot.lane.b32.xlu0 %v8558, 96
  %v8602 = vpop.permute.xlu0 %8601
  %8603 = vrot.lane.b32.xlu0 %v8559, 96
  %v8604 = vpop.permute.xlu0 %8603
  %8605 = vrot.lane.b32.xlu0 %v8560, 96
  %v8606 = vpop.permute.xlu0 %8605
  %8607 = vrot.lane.b32.xlu0 %v8561, 96
  %v8608 = vpop.permute.xlu0 %8607
  %8609 = vrot.lane.b32.xlu0 %v8562, 96
  %v8610 = vpop.permute.xlu0 %8609
  %8611 = vrot.lane.b32.xlu0 %v8563, 96
  %v8612 = vpop.permute.xlu0 %8611
  %8613 = vrot.lane.b32.xlu0 %v8564, 96
  %v8614 = vpop.permute.xlu0 %8613
  %8615 = vrot.lane.b32.xlu0 %v8565, 96
  %v8616 = vpop.permute.xlu0 %8615
  %8617 = vrot.lane.b32.xlu0 %v8566, 96
  %v8618 = vpop.permute.xlu0 %8617
  %8619 = vrot.lane.b32.xlu0 %v8567, 96
  %v8620 = vpop.permute.xlu0 %8619
  %8621 = vrot.lane.b32.xlu0 %v8568, 96
  %v8622 = vpop.permute.xlu0 %8621
  %8623 = vrot.lane.b32.xlu0 %v8569, 96
  %v8624 = vpop.permute.xlu0 %8623
  %8625 = vrot.lane.b32.xlu0 %v8570, 96
  %v8626 = vpop.permute.xlu0 %8625
  %8627 = vrot.lane.b32.xlu0 %v8571, 96
  %v8628 = vpop.permute.xlu0 %8627
  %8629 = vrot.lane.b32.xlu0 %v8572, 96
  %v8630 = vpop.permute.xlu0 %8629
  %8631 = vrot.lane.b32.xlu0 %v8573, 96
  %v8632 = vpop.permute.xlu0 %8631
  %8633 = vrot.lane.b32.xlu0 %v8574, 96
  %v8634 = vpop.permute.xlu0 %8633
  %v8635 = vsel %vm1522, %v8596, %v8598
  %v8636 = vsel %vm1522, %v8598, %v8600
  %v8637 = vsel %vm1522, %v8600, %v8602
  %v8638 = vsel %vm1522, %v8602, %v8604
  %v8639 = vsel %vm1522, %v8606, %v8608
  %v8640 = vsel %vm1522, %v8608, %v8610
  %v8641 = vsel %vm1522, %v8610, %v8612
  %v8642 = vsel %vm1522, %v8612, %v8614
  %v8643 = vsel %vm1522, %v8616, %v8618
  %v8644 = vsel %vm1522, %v8618, %v8620
  %v8645 = vsel %vm1522, %v8620, %v8622
  %v8646 = vsel %vm1522, %v8622, %v8624
  %v8647 = vsel %vm1522, %v8626, %v8628
  %v8648 = vsel %vm1522, %v8628, %v8630
  %v8649 = vsel %vm1522, %v8630, %v8632
  %v8650 = vsel %vm1522, %v8632, %v8634
  %v8667 = vadd.f32 %v8494, %v8635
  %v8668 = vadd.f32 %v8495, %v8636
  %v8669 = vadd.f32 %v8496, %v8637
  %v8670 = vadd.f32 %v8497, %v8638
  %v8671 = vadd.f32 %v8498, %v8639
  %v8672 = vadd.f32 %v8499, %v8640
  %v8673 = vadd.f32 %v8500, %v8641
  %v8674 = vadd.f32 %v8501, %v8642
  %v8675 = vadd.f32 %v8502, %v8643
  %v8676 = vadd.f32 %v8503, %v8644
  %v8677 = vadd.f32 %v8504, %v8645
  %v8678 = vadd.f32 %v8505, %v8646
  %v8679 = vadd.f32 %v8506, %v8647
  %v8680 = vadd.f32 %v8507, %v8648
  %v8681 = vadd.f32 %v8508, %v8649
  %v8682 = vadd.f32 %v8509, %v8650
  %s8683 = scalar_lea.vmem %s6528, 65
  %v8684 = vld [vmem:[%s8683] ss:$8 sm:$0xf]
  %v8686 = vperm.slane %v8684, 0
  %v8687 = vperm.slane %v8684, 1
  %v8688 = vperm.slane %v8684, 2
  %v8689 = vperm.slane %v8684, 3
  %8690 = vrot.lane.b32.xlu0 %v8686, 64
  %v8691 = vpop.permute.xlu0 %8690
  %8692 = vrot.lane.b32.xlu0 %v8687, 64
  %v8693 = vpop.permute.xlu0 %8692
  %8694 = vrot.lane.b32.xlu0 %v8688, 64
  %v8695 = vpop.permute.xlu0 %8694
  %8696 = vrot.lane.b32.xlu0 %v8689, 64
  %v8697 = vpop.permute.xlu0 %8696
  %v8698 = vsel %vm1258, %v8691, %v8693
  %v8699 = vsel %vm1258, %v8693, %v8695
  %v8700 = vsel %vm1258, %v8695, %v8697
  %v8706 = vmul.f32 %v8413, %v8691
  %v8707 = vmul.f32 %v8416, %v8698
  %v8708 = vmul.f32 %v8419, %v8699
  %v8709 = vmul.f32 %v8422, %v8700
  %v8710 = vmul.f32 %v8520, %v8697
  %v8711 = vmul.f32 %v8424, %v8691
  %v8712 = vmul.f32 %v8426, %v8698
  %v8713 = vmul.f32 %v8428, %v8699
  %v8714 = vmul.f32 %v8430, %v8700
  %v8715 = vmul.f32 %v8522, %v8697
  %v8716 = vmul.f32 %v8433, %v8691
  %v8717 = vmul.f32 %v8436, %v8698
  %v8718 = vmul.f32 %v8439, %v8699
  %v8719 = vmul.f32 %v8442, %v8700
  %v8720 = vmul.f32 %v8525, %v8697
  %v8721 = vmul.f32 %v8444, %v8691
  %v8722 = vmul.f32 %v8446, %v8698
  %v8723 = vmul.f32 %v8448, %v8699
  %v8724 = vmul.f32 %v8450, %v8700
  %v8725 = vmul.f32 %v8527, %v8697
  %8746 = vrot.lane.b32.xlu0 %v8706, 64
  %v8747 = vpop.permute.xlu0 %8746
  %8748 = vrot.lane.b32.xlu0 %v8707, 64
  %v8749 = vpop.permute.xlu0 %8748
  %8750 = vrot.lane.b32.xlu0 %v8708, 64
  %v8751 = vpop.permute.xlu0 %8750
  %8752 = vrot.lane.b32.xlu0 %v8709, 64
  %v8753 = vpop.permute.xlu0 %8752
  %8754 = vrot.lane.b32.xlu0 %v8710, 64
  %v8755 = vpop.permute.xlu0 %8754
  %8756 = vrot.lane.b32.xlu0 %v8711, 64
  %v8757 = vpop.permute.xlu0 %8756
  %8758 = vrot.lane.b32.xlu0 %v8712, 64
  %v8759 = vpop.permute.xlu0 %8758
  %8760 = vrot.lane.b32.xlu0 %v8713, 64
  %v8761 = vpop.permute.xlu0 %8760
  %8762 = vrot.lane.b32.xlu0 %v8714, 64
  %v8763 = vpop.permute.xlu0 %8762
  %8764 = vrot.lane.b32.xlu0 %v8715, 64
  %v8765 = vpop.permute.xlu0 %8764
  %8766 = vrot.lane.b32.xlu0 %v8716, 64
  %v8767 = vpop.permute.xlu0 %8766
  %8768 = vrot.lane.b32.xlu0 %v8717, 64
  %v8769 = vpop.permute.xlu0 %8768
  %8770 = vrot.lane.b32.xlu0 %v8718, 64
  %v8771 = vpop.permute.xlu0 %8770
  %8772 = vrot.lane.b32.xlu0 %v8719, 64
  %v8773 = vpop.permute.xlu0 %8772
  %8774 = vrot.lane.b32.xlu0 %v8720, 64
  %v8775 = vpop.permute.xlu0 %8774
  %8776 = vrot.lane.b32.xlu0 %v8721, 64
  %v8777 = vpop.permute.xlu0 %8776
  %8778 = vrot.lane.b32.xlu0 %v8722, 64
  %v8779 = vpop.permute.xlu0 %8778
  %8780 = vrot.lane.b32.xlu0 %v8723, 64
  %v8781 = vpop.permute.xlu0 %8780
  %8782 = vrot.lane.b32.xlu0 %v8724, 64
  %v8783 = vpop.permute.xlu0 %8782
  %8784 = vrot.lane.b32.xlu0 %v8725, 64
  %v8785 = vpop.permute.xlu0 %8784
  %v8786 = vsel %vm1258, %v8747, %v8749
  %v8787 = vsel %vm1258, %v8749, %v8751
  %v8788 = vsel %vm1258, %v8751, %v8753
  %v8789 = vsel %vm1258, %v8753, %v8755
  %v8790 = vsel %vm1258, %v8757, %v8759
  %v8791 = vsel %vm1258, %v8759, %v8761
  %v8792 = vsel %vm1258, %v8761, %v8763
  %v8793 = vsel %vm1258, %v8763, %v8765
  %v8794 = vsel %vm1258, %v8767, %v8769
  %v8795 = vsel %vm1258, %v8769, %v8771
  %v8796 = vsel %vm1258, %v8771, %v8773
  %v8797 = vsel %vm1258, %v8773, %v8775
  %v8798 = vsel %vm1258, %v8777, %v8779
  %v8799 = vsel %vm1258, %v8779, %v8781
  %v8800 = vsel %vm1258, %v8781, %v8783
  %v8801 = vsel %vm1258, %v8783, %v8785
  %v8818 = vadd.f32 %v8667, %v8786
  %v8819 = vadd.f32 %v8668, %v8787
  %v8820 = vadd.f32 %v8669, %v8788
  %v8821 = vadd.f32 %v8670, %v8789
  %v8822 = vadd.f32 %v8671, %v8790
  %v8823 = vadd.f32 %v8672, %v8791
  %v8824 = vadd.f32 %v8673, %v8792
  %v8825 = vadd.f32 %v8674, %v8793
  %v8826 = vadd.f32 %v8675, %v8794
  %v8827 = vadd.f32 %v8676, %v8795
  %v8828 = vadd.f32 %v8677, %v8796
  %v8829 = vadd.f32 %v8678, %v8797
  %v8830 = vadd.f32 %v8679, %v8798
  %v8831 = vadd.f32 %v8680, %v8799
  %v8832 = vadd.f32 %v8681, %v8800
  %v8833 = vadd.f32 %v8682, %v8801
  %s8834 = scalar_lea.vmem %s6528, 66
  %v8835 = vld [vmem:[%s8834] ss:$8 sm:$0xf]
  %v8837 = vperm.slane %v8835, 0
  %v8838 = vperm.slane %v8835, 1
  %v8839 = vperm.slane %v8835, 2
  %v8840 = vperm.slane %v8835, 3
  %8841 = vrot.lane.b32.xlu0 %v8837, 96
  %v8842 = vpop.permute.xlu0 %8841
  %8843 = vrot.lane.b32.xlu0 %v8838, 96
  %v8844 = vpop.permute.xlu0 %8843
  %8845 = vrot.lane.b32.xlu0 %v8839, 96
  %v8846 = vpop.permute.xlu0 %8845
  %8847 = vrot.lane.b32.xlu0 %v8840, 96
  %v8848 = vpop.permute.xlu0 %8847
  %v8849 = vsel %vm1522, %v8842, %v8844
  %v8850 = vsel %vm1522, %v8844, %v8846
  %v8851 = vsel %vm1522, %v8846, %v8848
  %v8857 = vmul.f32 %v8413, %v8842
  %v8858 = vmul.f32 %v8416, %v8849
  %v8859 = vmul.f32 %v8419, %v8850
  %v8860 = vmul.f32 %v8422, %v8851
  %v8861 = vmul.f32 %v8520, %v8848
  %v8862 = vmul.f32 %v8424, %v8842
  %v8863 = vmul.f32 %v8426, %v8849
  %v8864 = vmul.f32 %v8428, %v8850
  %v8865 = vmul.f32 %v8430, %v8851
  %v8866 = vmul.f32 %v8522, %v8848
  %v8867 = vmul.f32 %v8433, %v8842
  %v8868 = vmul.f32 %v8436, %v8849
  %v8869 = vmul.f32 %v8439, %v8850
  %v8870 = vmul.f32 %v8442, %v8851
  %v8871 = vmul.f32 %v8525, %v8848
  %v8872 = vmul.f32 %v8444, %v8842
  %v8873 = vmul.f32 %v8446, %v8849
  %v8874 = vmul.f32 %v8448, %v8850
  %v8875 = vmul.f32 %v8450, %v8851
  %v8876 = vmul.f32 %v8527, %v8848
  %8897 = vrot.lane.b32.xlu0 %v8857, 32
  %v8898 = vpop.permute.xlu0 %8897
  %8899 = vrot.lane.b32.xlu0 %v8858, 32
  %v8900 = vpop.permute.xlu0 %8899
  %8901 = vrot.lane.b32.xlu0 %v8859, 32
  %v8902 = vpop.permute.xlu0 %8901
  %8903 = vrot.lane.b32.xlu0 %v8860, 32
  %v8904 = vpop.permute.xlu0 %8903
  %8905 = vrot.lane.b32.xlu0 %v8861, 32
  %v8906 = vpop.permute.xlu0 %8905
  %8907 = vrot.lane.b32.xlu0 %v8862, 32
  %v8908 = vpop.permute.xlu0 %8907
  %8909 = vrot.lane.b32.xlu0 %v8863, 32
  %v8910 = vpop.permute.xlu0 %8909
  %8911 = vrot.lane.b32.xlu0 %v8864, 32
  %v8912 = vpop.permute.xlu0 %8911
  %8913 = vrot.lane.b32.xlu0 %v8865, 32
  %v8914 = vpop.permute.xlu0 %8913
  %8915 = vrot.lane.b32.xlu0 %v8866, 32
  %v8916 = vpop.permute.xlu0 %8915
  %8917 = vrot.lane.b32.xlu0 %v8867, 32
  %v8918 = vpop.permute.xlu0 %8917
  %8919 = vrot.lane.b32.xlu0 %v8868, 32
  %v8920 = vpop.permute.xlu0 %8919
  %8921 = vrot.lane.b32.xlu0 %v8869, 32
  %v8922 = vpop.permute.xlu0 %8921
  %8923 = vrot.lane.b32.xlu0 %v8870, 32
  %v8924 = vpop.permute.xlu0 %8923
  %8925 = vrot.lane.b32.xlu0 %v8871, 32
  %v8926 = vpop.permute.xlu0 %8925
  %8927 = vrot.lane.b32.xlu0 %v8872, 32
  %v8928 = vpop.permute.xlu0 %8927
  %8929 = vrot.lane.b32.xlu0 %v8873, 32
  %v8930 = vpop.permute.xlu0 %8929
  %8931 = vrot.lane.b32.xlu0 %v8874, 32
  %v8932 = vpop.permute.xlu0 %8931
  %8933 = vrot.lane.b32.xlu0 %v8875, 32
  %v8934 = vpop.permute.xlu0 %8933
  %8935 = vrot.lane.b32.xlu0 %v8876, 32
  %v8936 = vpop.permute.xlu0 %8935
  %v8937 = vsel %vm1433, %v8898, %v8900
  %v8938 = vsel %vm1433, %v8900, %v8902
  %v8939 = vsel %vm1433, %v8902, %v8904
  %v8940 = vsel %vm1433, %v8904, %v8906
  %v8941 = vsel %vm1433, %v8908, %v8910
  %v8942 = vsel %vm1433, %v8910, %v8912
  %v8943 = vsel %vm1433, %v8912, %v8914
  %v8944 = vsel %vm1433, %v8914, %v8916
  %v8945 = vsel %vm1433, %v8918, %v8920
  %v8946 = vsel %vm1433, %v8920, %v8922
  %v8947 = vsel %vm1433, %v8922, %v8924
  %v8948 = vsel %vm1433, %v8924, %v8926
  %v8949 = vsel %vm1433, %v8928, %v8930
  %v8950 = vsel %vm1433, %v8930, %v8932
  %v8951 = vsel %vm1433, %v8932, %v8934
  %v8952 = vsel %vm1433, %v8934, %v8936
  %v8969 = vadd.f32 %v8818, %v8937
  %v8970 = vadd.f32 %v8819, %v8938
  %v8971 = vadd.f32 %v8820, %v8939
  %v8972 = vadd.f32 %v8821, %v8940
  %v8973 = vadd.f32 %v8822, %v8941
  %v8974 = vadd.f32 %v8823, %v8942
  %v8975 = vadd.f32 %v8824, %v8943
  %v8976 = vadd.f32 %v8825, %v8944
  %v8977 = vadd.f32 %v8826, %v8945
  %v8978 = vadd.f32 %v8827, %v8946
  %v8979 = vadd.f32 %v8828, %v8947
  %v8980 = vadd.f32 %v8829, %v8948
  %v8981 = vadd.f32 %v8830, %v8949
  %v8982 = vadd.f32 %v8831, %v8950
  %v8983 = vadd.f32 %v8832, %v8951
  %v8984 = vadd.f32 %v8833, %v8952
  %s8985 = scalar_lea.vmem %s6528, 67
  %v8986 = vld [vmem:[%s8985] ss:$8 sm:$0xf]
  %v8988 = vperm.slane %v8986, 0
  %v8989 = vperm.slane %v8986, 1
  %v8990 = vperm.slane %v8986, 2
  %v8991 = vperm.slane %v8986, 3
  %v8996 = vmul.f32 %v8416, %v8988
  %v8997 = vmul.f32 %v8419, %v8989
  %v8998 = vmul.f32 %v8422, %v8990
  %v8999 = vmul.f32 %v8520, %v8991
  %v9000 = vmul.f32 %v8426, %v8988
  %v9001 = vmul.f32 %v8428, %v8989
  %v9002 = vmul.f32 %v8430, %v8990
  %v9003 = vmul.f32 %v8522, %v8991
  %v9004 = vmul.f32 %v8436, %v8988
  %v9005 = vmul.f32 %v8439, %v8989
  %v9006 = vmul.f32 %v8442, %v8990
  %v9007 = vmul.f32 %v8525, %v8991
  %v9008 = vmul.f32 %v8446, %v8988
  %v9009 = vmul.f32 %v8448, %v8989
  %v9010 = vmul.f32 %v8450, %v8990
  %v9011 = vmul.f32 %v8527, %v8991
  %v9012 = vadd.f32 %v8969, %v8996
  %v9013 = vadd.f32 %v8970, %v8997
  %v9014 = vadd.f32 %v8971, %v8998
  %v9015 = vadd.f32 %v8972, %v8999
  %v9016 = vadd.f32 %v8973, %v9000
  %v9017 = vadd.f32 %v8974, %v9001
  %v9018 = vadd.f32 %v8975, %v9002
  %v9019 = vadd.f32 %v8976, %v9003
  %v9020 = vadd.f32 %v8977, %v9004
  %v9021 = vadd.f32 %v8978, %v9005
  %v9022 = vadd.f32 %v8979, %v9006
  %v9023 = vadd.f32 %v8980, %v9007
  %v9024 = vadd.f32 %v8981, %v9008
  %v9025 = vadd.f32 %v8982, %v9009
  %v9026 = vadd.f32 %v8983, %v9010
  %v9027 = vadd.f32 %v8984, %v9011
  %v9028 = vld [vmem:[#allocation2] sm:$0xf0]
  %v9029 = vld [vmem:[#allocation2 + $0x8] sm:$0xf0]
  %v9030 = vld [vmem:[#allocation2 + $0x10] sm:$0xf0]
  %v9031 = vld [vmem:[#allocation2 + $0x18] sm:$0xf0]
  %v9032 = vld [vmem:[#allocation2 + $0x50] sm:$0xf]
  %v9033 = vld [vmem:[#allocation2 + $0x58] sm:$0xf]
  %v9034 = vld [vmem:[#allocation2 + $0x60] sm:$0xf]
  %v9035 = vld [vmem:[#allocation2 + $0x68] sm:$0xf]
  %v9036 = vld [vmem:[#allocation2 + $0x78] sm:$0xf0]
  %v9037 = vld [vmem:[#allocation2 + $0x80] sm:$0xf0]
  %v9038 = vld [vmem:[#allocation2 + $0x88] sm:$0xf0]
  %v9039 = vld [vmem:[#allocation2 + $0x90] sm:$0xf0]
  %v9040 = vld [vmem:[#allocation2 + $0xc8] sm:$0xf]
  %v9041 = vld [vmem:[#allocation2 + $0xd0] sm:$0xf]
  %v9042 = vld [vmem:[#allocation2 + $0xd8] sm:$0xf]
  %v9043 = vld [vmem:[#allocation2 + $0xe0] sm:$0xf]
  %v9060 = vrot.slane %v9028, 4
  %v9061 = vrot.slane %v6516, 4
  %v9062 = vsel %vm3908, %v9060, %v9061
  %v9063 = vrot.slane %v9029, 4
  %v9064 = vrot.slane %v6517, 4
  %v9065 = vsel %vm3908, %v9063, %v9064
  %v9066 = vrot.slane %v9030, 4
  %v9067 = vrot.slane %v6518, 4
  %v9068 = vsel %vm3908, %v9066, %v9067
  %v9069 = vrot.slane %v9031, 4
  %v9070 = vrot.slane %v6519, 4
  %v9071 = vsel %vm3908, %v9069, %v9070
  %v9072 = vrot.slane %v9032, 4
  %v9073 = vsel %vm3908, %v9061, %v9072
  %v9074 = vrot.slane %v9033, 4
  %v9075 = vsel %vm3908, %v9064, %v9074
  %v9076 = vrot.slane %v9034, 4
  %v9077 = vsel %vm3908, %v9067, %v9076
  %v9078 = vrot.slane %v9035, 4
  %v9079 = vsel %vm3908, %v9070, %v9078
  %v9080 = vrot.slane %v9036, 4
  %v9081 = vrot.slane %v6524, 4
  %v9082 = vsel %vm3908, %v9080, %v9081
  %v9083 = vrot.slane %v9037, 4
  %v9084 = vrot.slane %v6525, 4
  %v9085 = vsel %vm3908, %v9083, %v9084
  %v9086 = vrot.slane %v9038, 4
  %v9087 = vrot.slane %v6526, 4
  %v9088 = vsel %vm3908, %v9086, %v9087
  %v9089 = vrot.slane %v9039, 4
  %v9090 = vrot.slane %v6527, 4
  %v9091 = vsel %vm3908, %v9089, %v9090
  %v9092 = vrot.slane %v9040, 4
  %v9093 = vsel %vm3908, %v9081, %v9092
  %v9094 = vrot.slane %v9041, 4
  %v9095 = vsel %vm3908, %v9084, %v9094
  %v9096 = vrot.slane %v9042, 4
  %v9097 = vsel %vm3908, %v9087, %v9096
  %v9098 = vrot.slane %v9043, 4
  %v9099 = vsel %vm3908, %v9090, %v9098
  %s9116 = scalar_lea.vmem %s6528, 68
  %v9117 = vld [vmem:[%s9116] ss:$8 sm:$0xf]
  %v9119 = vperm.slane %v9117, 0
  %v9120 = vperm.slane %v9117, 1
  %v9121 = vperm.slane %v9117, 2
  %v9122 = vperm.slane %v9117, 3
  %v9127 = vmul.f32 %v9062, %v9119
  %v9128 = vmul.f32 %v9065, %v9120
  %v9129 = vmul.f32 %v9068, %v9121
  %v9130 = vmul.f32 %v9071, %v9122
  %v9131 = vmul.f32 %v9073, %v9119
  %v9132 = vmul.f32 %v9075, %v9120
  %v9133 = vmul.f32 %v9077, %v9121
  %v9134 = vmul.f32 %v9079, %v9122
  %v9135 = vmul.f32 %v9082, %v9119
  %v9136 = vmul.f32 %v9085, %v9120
  %v9137 = vmul.f32 %v9088, %v9121
  %v9138 = vmul.f32 %v9091, %v9122
  %v9139 = vmul.f32 %v9093, %v9119
  %v9140 = vmul.f32 %v9095, %v9120
  %v9141 = vmul.f32 %v9097, %v9121
  %v9142 = vmul.f32 %v9099, %v9122
  %v9143 = vadd.f32 %v9012, %v9127
  %v9144 = vadd.f32 %v9013, %v9128
  %v9145 = vadd.f32 %v9014, %v9129
  %v9146 = vadd.f32 %v9015, %v9130
  %v9147 = vadd.f32 %v9016, %v9131
  %v9148 = vadd.f32 %v9017, %v9132
  %v9149 = vadd.f32 %v9018, %v9133
  %v9150 = vadd.f32 %v9019, %v9134
  %v9151 = vadd.f32 %v9020, %v9135
  %v9152 = vadd.f32 %v9021, %v9136
  %v9153 = vadd.f32 %v9022, %v9137
  %v9154 = vadd.f32 %v9023, %v9138
  %v9155 = vadd.f32 %v9024, %v9139
  %v9156 = vadd.f32 %v9025, %v9140
  %v9157 = vadd.f32 %v9026, %v9141
  %v9158 = vadd.f32 %v9027, %v9142
  %v9159 = vld [vmem:[#allocation2 + $0x20] sm:$0xf0]
  %v9160 = vld [vmem:[#allocation2 + $0x70] sm:$0xf]
  %v9161 = vld [vmem:[#allocation2 + $0x98] sm:$0xf0]
  %v9162 = vld [vmem:[#allocation2 + $0xe8] sm:$0xf]
  %v9167 = vrot.slane %v9159, 4
  %v9168 = vrot.slane %v6572, 4
  %v9169 = vsel %vm3908, %v9167, %v9168
  %v9170 = vrot.slane %v9160, 4
  %v9171 = vsel %vm3908, %v9168, %v9170
  %v9172 = vrot.slane %v9161, 4
  %v9173 = vrot.slane %v6574, 4
  %v9174 = vsel %vm3908, %v9172, %v9173
  %v9175 = vrot.slane %v9162, 4
  %v9176 = vsel %vm3908, %v9173, %v9175
  %s9181 = scalar_lea.vmem %s6528, 69
  %v9182 = vld [vmem:[%s9181] ss:$8 sm:$0xf]
  %v9184 = vperm.slane %v9182, 0
  %v9185 = vperm.slane %v9182, 1
  %v9186 = vperm.slane %v9182, 2
  %v9187 = vperm.slane %v9182, 3
  %9188 = vrot.lane.b32.xlu0 %v9184, 32
  %v9189 = vpop.permute.xlu0 %9188
  %9190 = vrot.lane.b32.xlu0 %v9185, 32
  %v9191 = vpop.permute.xlu0 %9190
  %9192 = vrot.lane.b32.xlu0 %v9186, 32
  %v9193 = vpop.permute.xlu0 %9192
  %9194 = vrot.lane.b32.xlu0 %v9187, 32
  %v9195 = vpop.permute.xlu0 %9194
  %v9196 = vsel %vm1433, %v9189, %v9191
  %v9197 = vsel %vm1433, %v9191, %v9193
  %v9198 = vsel %vm1433, %v9193, %v9195
  %v9204 = vmul.f32 %v9062, %v9189
  %v9205 = vmul.f32 %v9065, %v9196
  %v9206 = vmul.f32 %v9068, %v9197
  %v9207 = vmul.f32 %v9071, %v9198
  %v9208 = vmul.f32 %v9169, %v9195
  %v9209 = vmul.f32 %v9073, %v9189
  %v9210 = vmul.f32 %v9075, %v9196
  %v9211 = vmul.f32 %v9077, %v9197
  %v9212 = vmul.f32 %v9079, %v9198
  %v9213 = vmul.f32 %v9171, %v9195
  %v9214 = vmul.f32 %v9082, %v9189
  %v9215 = vmul.f32 %v9085, %v9196
  %v9216 = vmul.f32 %v9088, %v9197
  %v9217 = vmul.f32 %v9091, %v9198
  %v9218 = vmul.f32 %v9174, %v9195
  %v9219 = vmul.f32 %v9093, %v9189
  %v9220 = vmul.f32 %v9095, %v9196
  %v9221 = vmul.f32 %v9097, %v9197
  %v9222 = vmul.f32 %v9099, %v9198
  %v9223 = vmul.f32 %v9176, %v9195
  %9244 = vrot.lane.b32.xlu0 %v9204, 96
  %v9245 = vpop.permute.xlu0 %9244
  %9246 = vrot.lane.b32.xlu0 %v9205, 96
  %v9247 = vpop.permute.xlu0 %9246
  %9248 = vrot.lane.b32.xlu0 %v9206, 96
  %v9249 = vpop.permute.xlu0 %9248
  %9250 = vrot.lane.b32.xlu0 %v9207, 96
  %v9251 = vpop.permute.xlu0 %9250
  %9252 = vrot.lane.b32.xlu0 %v9208, 96
  %v9253 = vpop.permute.xlu0 %9252
  %9254 = vrot.lane.b32.xlu0 %v9209, 96
  %v9255 = vpop.permute.xlu0 %9254
  %9256 = vrot.lane.b32.xlu0 %v9210, 96
  %v9257 = vpop.permute.xlu0 %9256
  %9258 = vrot.lane.b32.xlu0 %v9211, 96
  %v9259 = vpop.permute.xlu0 %9258
  %9260 = vrot.lane.b32.xlu0 %v9212, 96
  %v9261 = vpop.permute.xlu0 %9260
  %9262 = vrot.lane.b32.xlu0 %v9213, 96
  %v9263 = vpop.permute.xlu0 %9262
  %9264 = vrot.lane.b32.xlu0 %v9214, 96
  %v9265 = vpop.permute.xlu0 %9264
  %9266 = vrot.lane.b32.xlu0 %v9215, 96
  %v9267 = vpop.permute.xlu0 %9266
  %9268 = vrot.lane.b32.xlu0 %v9216, 96
  %v9269 = vpop.permute.xlu0 %9268
  %9270 = vrot.lane.b32.xlu0 %v9217, 96
  %v9271 = vpop.permute.xlu0 %9270
  %9272 = vrot.lane.b32.xlu0 %v9218, 96
  %v9273 = vpop.permute.xlu0 %9272
  %9274 = vrot.lane.b32.xlu0 %v9219, 96
  %v9275 = vpop.permute.xlu0 %9274
  %9276 = vrot.lane.b32.xlu0 %v9220, 96
  %v9277 = vpop.permute.xlu0 %9276
  %9278 = vrot.lane.b32.xlu0 %v9221, 96
  %v9279 = vpop.permute.xlu0 %9278
  %9280 = vrot.lane.b32.xlu0 %v9222, 96
  %v9281 = vpop.permute.xlu0 %9280
  %9282 = vrot.lane.b32.xlu0 %v9223, 96
  %v9283 = vpop.permute.xlu0 %9282
  %v9284 = vsel %vm1522, %v9245, %v9247
  %v9285 = vsel %vm1522, %v9247, %v9249
  %v9286 = vsel %vm1522, %v9249, %v9251
  %v9287 = vsel %vm1522, %v9251, %v9253
  %v9288 = vsel %vm1522, %v9255, %v9257
  %v9289 = vsel %vm1522, %v9257, %v9259
  %v9290 = vsel %vm1522, %v9259, %v9261
  %v9291 = vsel %vm1522, %v9261, %v9263
  %v9292 = vsel %vm1522, %v9265, %v9267
  %v9293 = vsel %vm1522, %v9267, %v9269
  %v9294 = vsel %vm1522, %v9269, %v9271
  %v9295 = vsel %vm1522, %v9271, %v9273
  %v9296 = vsel %vm1522, %v9275, %v9277
  %v9297 = vsel %vm1522, %v9277, %v9279
  %v9298 = vsel %vm1522, %v9279, %v9281
  %v9299 = vsel %vm1522, %v9281, %v9283
  %v9316 = vadd.f32 %v9143, %v9284
  %v9317 = vadd.f32 %v9144, %v9285
  %v9318 = vadd.f32 %v9145, %v9286
  %v9319 = vadd.f32 %v9146, %v9287
  %v9320 = vadd.f32 %v9147, %v9288
  %v9321 = vadd.f32 %v9148, %v9289
  %v9322 = vadd.f32 %v9149, %v9290
  %v9323 = vadd.f32 %v9150, %v9291
  %v9324 = vadd.f32 %v9151, %v9292
  %v9325 = vadd.f32 %v9152, %v9293
  %v9326 = vadd.f32 %v9153, %v9294
  %v9327 = vadd.f32 %v9154, %v9295
  %v9328 = vadd.f32 %v9155, %v9296
  %v9329 = vadd.f32 %v9156, %v9297
  %v9330 = vadd.f32 %v9157, %v9298
  %v9331 = vadd.f32 %v9158, %v9299
  %s9332 = scalar_lea.vmem %s6528, 70
  %v9333 = vld [vmem:[%s9332] ss:$8 sm:$0xf]
  %v9335 = vperm.slane %v9333, 0
  %v9336 = vperm.slane %v9333, 1
  %v9337 = vperm.slane %v9333, 2
  %v9338 = vperm.slane %v9333, 3
  %9339 = vrot.lane.b32.xlu0 %v9335, 64
  %v9340 = vpop.permute.xlu0 %9339
  %9341 = vrot.lane.b32.xlu0 %v9336, 64
  %v9342 = vpop.permute.xlu0 %9341
  %9343 = vrot.lane.b32.xlu0 %v9337, 64
  %v9344 = vpop.permute.xlu0 %9343
  %9345 = vrot.lane.b32.xlu0 %v9338, 64
  %v9346 = vpop.permute.xlu0 %9345
  %v9347 = vsel %vm1258, %v9340, %v9342
  %v9348 = vsel %vm1258, %v9342, %v9344
  %v9349 = vsel %vm1258, %v9344, %v9346
  %v9355 = vmul.f32 %v9062, %v9340
  %v9356 = vmul.f32 %v9065, %v9347
  %v9357 = vmul.f32 %v9068, %v9348
  %v9358 = vmul.f32 %v9071, %v9349
  %v9359 = vmul.f32 %v9169, %v9346
  %v9360 = vmul.f32 %v9073, %v9340
  %v9361 = vmul.f32 %v9075, %v9347
  %v9362 = vmul.f32 %v9077, %v9348
  %v9363 = vmul.f32 %v9079, %v9349
  %v9364 = vmul.f32 %v9171, %v9346
  %v9365 = vmul.f32 %v9082, %v9340
  %v9366 = vmul.f32 %v9085, %v9347
  %v9367 = vmul.f32 %v9088, %v9348
  %v9368 = vmul.f32 %v9091, %v9349
  %v9369 = vmul.f32 %v9174, %v9346
  %v9370 = vmul.f32 %v9093, %v9340
  %v9371 = vmul.f32 %v9095, %v9347
  %v9372 = vmul.f32 %v9097, %v9348
  %v9373 = vmul.f32 %v9099, %v9349
  %v9374 = vmul.f32 %v9176, %v9346
  %9395 = vrot.lane.b32.xlu0 %v9355, 64
  %v9396 = vpop.permute.xlu0 %9395
  %9397 = vrot.lane.b32.xlu0 %v9356, 64
  %v9398 = vpop.permute.xlu0 %9397
  %9399 = vrot.lane.b32.xlu0 %v9357, 64
  %v9400 = vpop.permute.xlu0 %9399
  %9401 = vrot.lane.b32.xlu0 %v9358, 64
  %v9402 = vpop.permute.xlu0 %9401
  %9403 = vrot.lane.b32.xlu0 %v9359, 64
  %v9404 = vpop.permute.xlu0 %9403
  %9405 = vrot.lane.b32.xlu0 %v9360, 64
  %v9406 = vpop.permute.xlu0 %9405
  %9407 = vrot.lane.b32.xlu0 %v9361, 64
  %v9408 = vpop.permute.xlu0 %9407
  %9409 = vrot.lane.b32.xlu0 %v9362, 64
  %v9410 = vpop.permute.xlu0 %9409
  %9411 = vrot.lane.b32.xlu0 %v9363, 64
  %v9412 = vpop.permute.xlu0 %9411
  %9413 = vrot.lane.b32.xlu0 %v9364, 64
  %v9414 = vpop.permute.xlu0 %9413
  %9415 = vrot.lane.b32.xlu0 %v9365, 64
  %v9416 = vpop.permute.xlu0 %9415
  %9417 = vrot.lane.b32.xlu0 %v9366, 64
  %v9418 = vpop.permute.xlu0 %9417
  %9419 = vrot.lane.b32.xlu0 %v9367, 64
  %v9420 = vpop.permute.xlu0 %9419
  %9421 = vrot.lane.b32.xlu0 %v9368, 64
  %v9422 = vpop.permute.xlu0 %9421
  %9423 = vrot.lane.b32.xlu0 %v9369, 64
  %v9424 = vpop.permute.xlu0 %9423
  %9425 = vrot.lane.b32.xlu0 %v9370, 64
  %v9426 = vpop.permute.xlu0 %9425
  %9427 = vrot.lane.b32.xlu0 %v9371, 64
  %v9428 = vpop.permute.xlu0 %9427
  %9429 = vrot.lane.b32.xlu0 %v9372, 64
  %v9430 = vpop.permute.xlu0 %9429
  %9431 = vrot.lane.b32.xlu0 %v9373, 64
  %v9432 = vpop.permute.xlu0 %9431
  %9433 = vrot.lane.b32.xlu0 %v9374, 64
  %v9434 = vpop.permute.xlu0 %9433
  %v9435 = vsel %vm1258, %v9396, %v9398
  %v9436 = vsel %vm1258, %v9398, %v9400
  %v9437 = vsel %vm1258, %v9400, %v9402
  %v9438 = vsel %vm1258, %v9402, %v9404
  %v9439 = vsel %vm1258, %v9406, %v9408
  %v9440 = vsel %vm1258, %v9408, %v9410
  %v9441 = vsel %vm1258, %v9410, %v9412
  %v9442 = vsel %vm1258, %v9412, %v9414
  %v9443 = vsel %vm1258, %v9416, %v9418
  %v9444 = vsel %vm1258, %v9418, %v9420
  %v9445 = vsel %vm1258, %v9420, %v9422
  %v9446 = vsel %vm1258, %v9422, %v9424
  %v9447 = vsel %vm1258, %v9426, %v9428
  %v9448 = vsel %vm1258, %v9428, %v9430
  %v9449 = vsel %vm1258, %v9430, %v9432
  %v9450 = vsel %vm1258, %v9432, %v9434
  %v9467 = vadd.f32 %v9316, %v9435
  %v9468 = vadd.f32 %v9317, %v9436
  %v9469 = vadd.f32 %v9318, %v9437
  %v9470 = vadd.f32 %v9319, %v9438
  %v9471 = vadd.f32 %v9320, %v9439
  %v9472 = vadd.f32 %v9321, %v9440
  %v9473 = vadd.f32 %v9322, %v9441
  %v9474 = vadd.f32 %v9323, %v9442
  %v9475 = vadd.f32 %v9324, %v9443
  %v9476 = vadd.f32 %v9325, %v9444
  %v9477 = vadd.f32 %v9326, %v9445
  %v9478 = vadd.f32 %v9327, %v9446
  %v9479 = vadd.f32 %v9328, %v9447
  %v9480 = vadd.f32 %v9329, %v9448
  %v9481 = vadd.f32 %v9330, %v9449
  %v9482 = vadd.f32 %v9331, %v9450
  %s9483 = scalar_lea.vmem %s6528, 71
  %v9484 = vld [vmem:[%s9483] ss:$8 sm:$0xf]
  %v9486 = vperm.slane %v9484, 0
  %v9487 = vperm.slane %v9484, 1
  %v9488 = vperm.slane %v9484, 2
  %v9489 = vperm.slane %v9484, 3
  %9490 = vrot.lane.b32.xlu0 %v9486, 96
  %v9491 = vpop.permute.xlu0 %9490
  %9492 = vrot.lane.b32.xlu0 %v9487, 96
  %v9493 = vpop.permute.xlu0 %9492
  %9494 = vrot.lane.b32.xlu0 %v9488, 96
  %v9495 = vpop.permute.xlu0 %9494
  %9496 = vrot.lane.b32.xlu0 %v9489, 96
  %v9497 = vpop.permute.xlu0 %9496
  %v9498 = vsel %vm1522, %v9491, %v9493
  %v9499 = vsel %vm1522, %v9493, %v9495
  %v9500 = vsel %vm1522, %v9495, %v9497
  %v9506 = vmul.f32 %v9062, %v9491
  %v9507 = vmul.f32 %v9065, %v9498
  %v9508 = vmul.f32 %v9068, %v9499
  %v9509 = vmul.f32 %v9071, %v9500
  %v9510 = vmul.f32 %v9169, %v9497
  %v9511 = vmul.f32 %v9073, %v9491
  %v9512 = vmul.f32 %v9075, %v9498
  %v9513 = vmul.f32 %v9077, %v9499
  %v9514 = vmul.f32 %v9079, %v9500
  %v9515 = vmul.f32 %v9171, %v9497
  %v9516 = vmul.f32 %v9082, %v9491
  %v9517 = vmul.f32 %v9085, %v9498
  %v9518 = vmul.f32 %v9088, %v9499
  %v9519 = vmul.f32 %v9091, %v9500
  %v9520 = vmul.f32 %v9174, %v9497
  %v9521 = vmul.f32 %v9093, %v9491
  %v9522 = vmul.f32 %v9095, %v9498
  %v9523 = vmul.f32 %v9097, %v9499
  %v9524 = vmul.f32 %v9099, %v9500
  %v9525 = vmul.f32 %v9176, %v9497
  %9546 = vrot.lane.b32.xlu0 %v9506, 32
  %v9547 = vpop.permute.xlu0 %9546
  %9548 = vrot.lane.b32.xlu0 %v9507, 32
  %v9549 = vpop.permute.xlu0 %9548
  %9550 = vrot.lane.b32.xlu0 %v9508, 32
  %v9551 = vpop.permute.xlu0 %9550
  %9552 = vrot.lane.b32.xlu0 %v9509, 32
  %v9553 = vpop.permute.xlu0 %9552
  %9554 = vrot.lane.b32.xlu0 %v9510, 32
  %v9555 = vpop.permute.xlu0 %9554
  %9556 = vrot.lane.b32.xlu0 %v9511, 32
  %v9557 = vpop.permute.xlu0 %9556
  %9558 = vrot.lane.b32.xlu0 %v9512, 32
  %v9559 = vpop.permute.xlu0 %9558
  %9560 = vrot.lane.b32.xlu0 %v9513, 32
  %v9561 = vpop.permute.xlu0 %9560
  %9562 = vrot.lane.b32.xlu0 %v9514, 32
  %v9563 = vpop.permute.xlu0 %9562
  %9564 = vrot.lane.b32.xlu0 %v9515, 32
  %v9565 = vpop.permute.xlu0 %9564
  %9566 = vrot.lane.b32.xlu0 %v9516, 32
  %v9567 = vpop.permute.xlu0 %9566
  %9568 = vrot.lane.b32.xlu0 %v9517, 32
  %v9569 = vpop.permute.xlu0 %9568
  %9570 = vrot.lane.b32.xlu0 %v9518, 32
  %v9571 = vpop.permute.xlu0 %9570
  %9572 = vrot.lane.b32.xlu0 %v9519, 32
  %v9573 = vpop.permute.xlu0 %9572
  %9574 = vrot.lane.b32.xlu0 %v9520, 32
  %v9575 = vpop.permute.xlu0 %9574
  %9576 = vrot.lane.b32.xlu0 %v9521, 32
  %v9577 = vpop.permute.xlu0 %9576
  %9578 = vrot.lane.b32.xlu0 %v9522, 32
  %v9579 = vpop.permute.xlu0 %9578
  %9580 = vrot.lane.b32.xlu0 %v9523, 32
  %v9581 = vpop.permute.xlu0 %9580
  %9582 = vrot.lane.b32.xlu0 %v9524, 32
  %v9583 = vpop.permute.xlu0 %9582
  %9584 = vrot.lane.b32.xlu0 %v9525, 32
  %v9585 = vpop.permute.xlu0 %9584
  %v9586 = vsel %vm1433, %v9547, %v9549
  %v9587 = vsel %vm1433, %v9549, %v9551
  %v9588 = vsel %vm1433, %v9551, %v9553
  %v9589 = vsel %vm1433, %v9553, %v9555
  %v9590 = vsel %vm1433, %v9557, %v9559
  %v9591 = vsel %vm1433, %v9559, %v9561
  %v9592 = vsel %vm1433, %v9561, %v9563
  %v9593 = vsel %vm1433, %v9563, %v9565
  %v9594 = vsel %vm1433, %v9567, %v9569
  %v9595 = vsel %vm1433, %v9569, %v9571
  %v9596 = vsel %vm1433, %v9571, %v9573
  %v9597 = vsel %vm1433, %v9573, %v9575
  %v9598 = vsel %vm1433, %v9577, %v9579
  %v9599 = vsel %vm1433, %v9579, %v9581
  %v9600 = vsel %vm1433, %v9581, %v9583
  %v9601 = vsel %vm1433, %v9583, %v9585
  %v9618 = vadd.f32 %v9467, %v9586
  %v9619 = vadd.f32 %v9468, %v9587
  %v9620 = vadd.f32 %v9469, %v9588
  %v9621 = vadd.f32 %v9470, %v9589
  %v9622 = vadd.f32 %v9471, %v9590
  %v9623 = vadd.f32 %v9472, %v9591
  %v9624 = vadd.f32 %v9473, %v9592
  %v9625 = vadd.f32 %v9474, %v9593
  %v9626 = vadd.f32 %v9475, %v9594
  %v9627 = vadd.f32 %v9476, %v9595
  %v9628 = vadd.f32 %v9477, %v9596
  %v9629 = vadd.f32 %v9478, %v9597
  %v9630 = vadd.f32 %v9479, %v9598
  %v9631 = vadd.f32 %v9480, %v9599
  %v9632 = vadd.f32 %v9481, %v9600
  %v9633 = vadd.f32 %v9482, %v9601
  %s9634 = scalar_lea.vmem %s6528, 96
  %v9635 = vld [vmem:[%s9634] ss:$8 sm:$0xf]
  %v9637 = vperm.slane %v9635, 0
  %v9638 = vperm.slane %v9635, 1
  %v9639 = vperm.slane %v9635, 2
  %v9640 = vperm.slane %v9635, 3
  %v9645 = vmul.f32 %v9065, %v9637
  %v9646 = vmul.f32 %v9068, %v9638
  %v9647 = vmul.f32 %v9071, %v9639
  %v9648 = vmul.f32 %v9169, %v9640
  %v9649 = vmul.f32 %v9075, %v9637
  %v9650 = vmul.f32 %v9077, %v9638
  %v9651 = vmul.f32 %v9079, %v9639
  %v9652 = vmul.f32 %v9171, %v9640
  %v9653 = vmul.f32 %v9085, %v9637
  %v9654 = vmul.f32 %v9088, %v9638
  %v9655 = vmul.f32 %v9091, %v9639
  %v9656 = vmul.f32 %v9174, %v9640
  %v9657 = vmul.f32 %v9095, %v9637
  %v9658 = vmul.f32 %v9097, %v9638
  %v9659 = vmul.f32 %v9099, %v9639
  %v9660 = vmul.f32 %v9176, %v9640
  %v9661 = vadd.f32 %v9618, %v9645
  %v9662 = vadd.f32 %v9619, %v9646
  %v9663 = vadd.f32 %v9620, %v9647
  %v9664 = vadd.f32 %v9621, %v9648
  %v9665 = vadd.f32 %v9622, %v9649
  %v9666 = vadd.f32 %v9623, %v9650
  %v9667 = vadd.f32 %v9624, %v9651
  %v9668 = vadd.f32 %v9625, %v9652
  %v9669 = vadd.f32 %v9626, %v9653
  %v9670 = vadd.f32 %v9627, %v9654
  %v9671 = vadd.f32 %v9628, %v9655
  %v9672 = vadd.f32 %v9629, %v9656
  %v9673 = vadd.f32 %v9630, %v9657
  %v9674 = vadd.f32 %v9631, %v9658
  %v9675 = vadd.f32 %v9632, %v9659
  %v9676 = vadd.f32 %v9633, %v9660
  %v9677 = vmul.f32 %v9661, 0.5
  %v9678 = vmul.f32 %v9662, 0.5
  %v9679 = vmul.f32 %v9663, 0.5
  %v9680 = vmul.f32 %v9664, 0.5
  %v9681 = vmul.f32 %v9665, 0.5
  %v9682 = vmul.f32 %v9666, 0.5
  %v9683 = vmul.f32 %v9667, 0.5
  %v9684 = vmul.f32 %v9668, 0.5
  %v9685 = vmul.f32 %v9669, 0.5
  %v9686 = vmul.f32 %v9670, 0.5
  %v9687 = vmul.f32 %v9671, 0.5
  %v9688 = vmul.f32 %v9672, 0.5
  %v9689 = vmul.f32 %v9673, 0.5
  %v9690 = vmul.f32 %v9674, 0.5
  %v9691 = vmul.f32 %v9675, 0.5
  %v9692 = vmul.f32 %v9676, 0.5
  %v9693 = vmul.f32 %v9661, 0.044715
  %v9694 = vmul.f32 %v9662, 0.044715
  %v9695 = vmul.f32 %v9663, 0.044715
  %v9696 = vmul.f32 %v9664, 0.044715
  %v9697 = vmul.f32 %v9665, 0.044715
  %v9698 = vmul.f32 %v9666, 0.044715
  %v9699 = vmul.f32 %v9667, 0.044715
  %v9700 = vmul.f32 %v9668, 0.044715
  %v9701 = vmul.f32 %v9669, 0.044715
  %v9702 = vmul.f32 %v9670, 0.044715
  %v9703 = vmul.f32 %v9671, 0.044715
  %v9704 = vmul.f32 %v9672, 0.044715
  %v9705 = vmul.f32 %v9673, 0.044715
  %v9706 = vmul.f32 %v9674, 0.044715
  %v9707 = vmul.f32 %v9675, 0.044715
  %v9708 = vmul.f32 %v9676, 0.044715
  %v9709 = vmul.f32 %v9693, %v9661
  %v9710 = vmul.f32 %v9694, %v9662
  %v9711 = vmul.f32 %v9695, %v9663
  %v9712 = vmul.f32 %v9696, %v9664
  %v9713 = vmul.f32 %v9697, %v9665
  %v9714 = vmul.f32 %v9698, %v9666
  %v9715 = vmul.f32 %v9699, %v9667
  %v9716 = vmul.f32 %v9700, %v9668
  %v9717 = vmul.f32 %v9701, %v9669
  %v9718 = vmul.f32 %v9702, %v9670
  %v9719 = vmul.f32 %v9703, %v9671
  %v9720 = vmul.f32 %v9704, %v9672
  %v9721 = vmul.f32 %v9705, %v9673
  %v9722 = vmul.f32 %v9706, %v9674
  %v9723 = vmul.f32 %v9707, %v9675
  %v9724 = vmul.f32 %v9708, %v9676
  %v9725 = vmul.f32 %v9709, %v9661
  %v9726 = vmul.f32 %v9710, %v9662
  %v9727 = vmul.f32 %v9711, %v9663
  %v9728 = vmul.f32 %v9712, %v9664
  %v9729 = vmul.f32 %v9713, %v9665
  %v9730 = vmul.f32 %v9714, %v9666
  %v9731 = vmul.f32 %v9715, %v9667
  %v9732 = vmul.f32 %v9716, %v9668
  %v9733 = vmul.f32 %v9717, %v9669
  %v9734 = vmul.f32 %v9718, %v9670
  %v9735 = vmul.f32 %v9719, %v9671
  %v9736 = vmul.f32 %v9720, %v9672
  %v9737 = vmul.f32 %v9721, %v9673
  %v9738 = vmul.f32 %v9722, %v9674
  %v9739 = vmul.f32 %v9723, %v9675
  %v9740 = vmul.f32 %v9724, %v9676
  %v9741 = vadd.f32 %v9661, %v9725
  %v9742 = vadd.f32 %v9662, %v9726
  %v9743 = vadd.f32 %v9663, %v9727
  %v9744 = vadd.f32 %v9664, %v9728
  %v9745 = vadd.f32 %v9665, %v9729
  %v9746 = vadd.f32 %v9666, %v9730
  %v9747 = vadd.f32 %v9667, %v9731
  %v9748 = vadd.f32 %v9668, %v9732
  %v9749 = vadd.f32 %v9669, %v9733
  %v9750 = vadd.f32 %v9670, %v9734
  %v9751 = vadd.f32 %v9671, %v9735
  %v9752 = vadd.f32 %v9672, %v9736
  %v9753 = vadd.f32 %v9673, %v9737
  %v9754 = vadd.f32 %v9674, %v9738
  %v9755 = vadd.f32 %v9675, %v9739
  %v9756 = vadd.f32 %v9676, %v9740
  %v9757 = vmul.f32 %v9741, 0.7978846
  %v9758 = vmul.f32 %v9742, 0.7978846
  %v9759 = vmul.f32 %v9743, 0.7978846
  %v9760 = vmul.f32 %v9744, 0.7978846
  %v9761 = vmul.f32 %v9745, 0.7978846
  %v9762 = vmul.f32 %v9746, 0.7978846
  %v9763 = vmul.f32 %v9747, 0.7978846
  %v9764 = vmul.f32 %v9748, 0.7978846
  %v9765 = vmul.f32 %v9749, 0.7978846
  %v9766 = vmul.f32 %v9750, 0.7978846
  %v9767 = vmul.f32 %v9751, 0.7978846
  %v9768 = vmul.f32 %v9752, 0.7978846
  %v9769 = vmul.f32 %v9753, 0.7978846
  %v9770 = vmul.f32 %v9754, 0.7978846
  %v9771 = vmul.f32 %v9755, 0.7978846
  %v9772 = vmul.f32 %v9756, 0.7978846
  %v9773 = vtanh.pop %v9757
  %v9774 = vtanh.pop %v9758
  %v9775 = vtanh.pop %v9759
  %v9776 = vtanh.pop %v9760
  %v9777 = vtanh.pop %v9761
  %v9778 = vtanh.pop %v9762
  %v9779 = vtanh.pop %v9763
  %v9780 = vtanh.pop %v9764
  %v9781 = vtanh.pop %v9765
  %v9782 = vtanh.pop %v9766
  %v9783 = vtanh.pop %v9767
  %v9784 = vtanh.pop %v9768
  %v9785 = vtanh.pop %v9769
  %v9786 = vtanh.pop %v9770
  %v9787 = vtanh.pop %v9771
  %v9788 = vtanh.pop %v9772
  %v9789 = vadd.f32 %v9773, 1.0
  %v9790 = vadd.f32 %v9774, 1.0
  %v9791 = vadd.f32 %v9775, 1.0
  %v9792 = vadd.f32 %v9776, 1.0
  %v9793 = vadd.f32 %v9777, 1.0
  %v9794 = vadd.f32 %v9778, 1.0
  %v9795 = vadd.f32 %v9779, 1.0
  %v9796 = vadd.f32 %v9780, 1.0
  %v9797 = vadd.f32 %v9781, 1.0
  %v9798 = vadd.f32 %v9782, 1.0
  %v9799 = vadd.f32 %v9783, 1.0
  %v9800 = vadd.f32 %v9784, 1.0
  %v9801 = vadd.f32 %v9785, 1.0
  %v9802 = vadd.f32 %v9786, 1.0
  %v9803 = vadd.f32 %v9787, 1.0
  %v9804 = vadd.f32 %v9788, 1.0
  %v9805 = vmul.f32 %v9677, %v9789
  %v9806 = vmul.f32 %v9678, %v9790
  %v9807 = vmul.f32 %v9679, %v9791
  %v9808 = vmul.f32 %v9680, %v9792
  %v9809 = vmul.f32 %v9681, %v9793
  %v9810 = vmul.f32 %v9682, %v9794
  %v9811 = vmul.f32 %v9683, %v9795
  %v9812 = vmul.f32 %v9684, %v9796
  %v9813 = vmul.f32 %v9685, %v9797
  %v9814 = vmul.f32 %v9686, %v9798
  %v9815 = vmul.f32 %v9687, %v9799
  %v9816 = vmul.f32 %v9688, %v9800
  %v9817 = vmul.f32 %v9689, %v9801
  %v9818 = vmul.f32 %v9690, %v9802
  %v9819 = vmul.f32 %v9691, %v9803
  %v9820 = vmul.f32 %v9692, %v9804
  %s9821 = scalar_lea.vmem %s4, 4
  %v9822 = vld [vmem:[%s9821] sm:$0xf]
  %s9823 = scalar_lea.vmem %s5, 4
  %v9824 = vld [vmem:[%s9823] sm:$0xf]
  %v9825 = vadd.f32 %v9805, %v9809
  %v9826 = vadd.f32 %v9825, %v9813
  %v9827 = vadd.f32 %v9826, %v9817
  %v9828 = vrot.slane %v9827, 4
  %v9829 = vadd.f32 %v9827, %v9828
  %v9830 = vrot.slane %v9829, 2
  %v9831 = vadd.f32 %v9829, %v9830
  %v9832 = vrot.slane %v9831, 1
  %v9833 = vadd.f32 %v9831, %v9832
  %v9834 = vadd.f32 %v9806, %v9810
  %v9835 = vadd.f32 %v9834, %v9814
  %v9836 = vadd.f32 %v9835, %v9818
  %v9837 = vrot.slane %v9836, 4
  %v9838 = vadd.f32 %v9836, %v9837
  %v9839 = vrot.slane %v9838, 2
  %v9840 = vadd.f32 %v9838, %v9839
  %v9841 = vrot.slane %v9840, 1
  %v9842 = vadd.f32 %v9840, %v9841
  %v9843 = vadd.f32 %v9807, %v9811
  %v9844 = vadd.f32 %v9843, %v9815
  %v9845 = vadd.f32 %v9844, %v9819
  %v9846 = vrot.slane %v9845, 4
  %v9847 = vadd.f32 %v9845, %v9846
  %v9848 = vrot.slane %v9847, 2
  %v9849 = vadd.f32 %v9847, %v9848
  %v9850 = vrot.slane %v9849, 1
  %v9851 = vadd.f32 %v9849, %v9850
  %v9852 = vadd.f32 %v9808, %v9812
  %v9853 = vadd.f32 %v9852, %v9816
  %v9854 = vadd.f32 %v9853, %v9820
  %v9855 = vrot.slane %v9854, 4
  %v9856 = vadd.f32 %v9854, %v9855
  %v9857 = vrot.slane %v9856, 2
  %v9858 = vadd.f32 %v9856, %v9857
  %v9859 = vrot.slane %v9858, 1
  %v9860 = vadd.f32 %v9858, %v9859
  %v9861 = vmul.f32 %v9805, %v9805
  %v9862 = vmul.f32 %v9806, %v9806
  %v9863 = vmul.f32 %v9807, %v9807
  %v9864 = vmul.f32 %v9808, %v9808
  %v9865 = vmul.f32 %v9809, %v9809
  %v9866 = vmul.f32 %v9810, %v9810
  %v9867 = vmul.f32 %v9811, %v9811
  %v9868 = vmul.f32 %v9812, %v9812
  %v9869 = vmul.f32 %v9813, %v9813
  %v9870 = vmul.f32 %v9814, %v9814
  %v9871 = vmul.f32 %v9815, %v9815
  %v9872 = vmul.f32 %v9816, %v9816
  %v9873 = vmul.f32 %v9817, %v9817
  %v9874 = vmul.f32 %v9818, %v9818
  %v9875 = vmul.f32 %v9819, %v9819
  %v9876 = vmul.f32 %v9820, %v9820
  %v9877 = vadd.f32 %v9861, %v9865
  %v9878 = vadd.f32 %v9877, %v9869
  %v9879 = vadd.f32 %v9878, %v9873
  %v9880 = vrot.slane %v9879, 4
  %v9881 = vadd.f32 %v9879, %v9880
  %v9882 = vrot.slane %v9881, 2
  %v9883 = vadd.f32 %v9881, %v9882
  %v9884 = vrot.slane %v9883, 1
  %v9885 = vadd.f32 %v9883, %v9884
  %v9886 = vadd.f32 %v9862, %v9866
  %v9887 = vadd.f32 %v9886, %v9870
  %v9888 = vadd.f32 %v9887, %v9874
  %v9889 = vrot.slane %v9888, 4
  %v9890 = vadd.f32 %v9888, %v9889
  %v9891 = vrot.slane %v9890, 2
  %v9892 = vadd.f32 %v9890, %v9891
  %v9893 = vrot.slane %v9892, 1
  %v9894 = vadd.f32 %v9892, %v9893
  %v9895 = vadd.f32 %v9863, %v9867
  %v9896 = vadd.f32 %v9895, %v9871
  %v9897 = vadd.f32 %v9896, %v9875
  %v9898 = vrot.slane %v9897, 4
  %v9899 = vadd.f32 %v9897, %v9898
  %v9900 = vrot.slane %v9899, 2
  %v9901 = vadd.f32 %v9899, %v9900
  %v9902 = vrot.slane %v9901, 1
  %v9903 = vadd.f32 %v9901, %v9902
  %v9904 = vadd.f32 %v9864, %v9868
  %v9905 = vadd.f32 %v9904, %v9872
  %v9906 = vadd.f32 %v9905, %v9876
  %v9907 = vrot.slane %v9906, 4
  %v9908 = vadd.f32 %v9906, %v9907
  %v9909 = vrot.slane %v9908, 2
  %v9910 = vadd.f32 %v9908, %v9909
  %v9911 = vrot.slane %v9910, 1
  %v9912 = vadd.f32 %v9910, %v9911
  %v9913 = vsel %vm4760, %v9833, %v9885
  %v9914 = vsel %vm4760, %v9842, %v9894
  %v9915 = vsel %vm4760, %v9851, %v9903
  %v9916 = vsel %vm4760, %v9860, %v9912
  %v9917 = vadd.f32 %v9913, %v9915
  %v9918 = vadd.f32 %v9914, %v9916
  %v9919 = vadd.f32 %v9917, %v9918
  %9920 = vrot.lane.b32.xlu0 %v9919, 64
  %v9921 = vpop.permute.xlu0 %9920
  %v9922 = vadd.f32 %v9919, %v9921
  %9923 = vrot.lane.b32.xlu0 %v9922, 32
  %v9924 = vpop.permute.xlu0 %9923
  %v9925 = vadd.f32 %v9922, %v9924
  %v9926 = vmul.f32 %v9925, 0.001953125
  %v9927 = vmul.f32 %v9926, %v9926
  %v9929 = vrot.slane %v9927, 7
  %v9931 = vsub.f32 %v9926, %v9929
  %v9932 = vperm.slane %v9926, 0
  %v9933 = vsub.f32 %v9805, %v9932
  %v9934 = vsub.f32 %v9806, %v9932
  %v9935 = vsub.f32 %v9807, %v9932
  %v9936 = vsub.f32 %v9808, %v9932
  %v9937 = vsub.f32 %v9809, %v9932
  %v9938 = vsub.f32 %v9810, %v9932
  %v9939 = vsub.f32 %v9811, %v9932
  %v9940 = vsub.f32 %v9812, %v9932
  %v9941 = vsub.f32 %v9813, %v9932
  %v9942 = vsub.f32 %v9814, %v9932
  %v9943 = vsub.f32 %v9815, %v9932
  %v9944 = vsub.f32 %v9816, %v9932
  %v9945 = vsub.f32 %v9817, %v9932
  %v9946 = vsub.f32 %v9818, %v9932
  %v9947 = vsub.f32 %v9819, %v9932
  %v9948 = vsub.f32 %v9820, %v9932
  %v9949 = vadd.f32 %v9931, 1e-05
  %v9950 = vrsqrt.pop %v9949
  %v9951 = vmul.f32 %v9950, %v9949
  %v9952 = vmul.f32 %v9951, %v9950
  %v9953 = vmul.f32 0.5, %v9952
  %v9954 = vsub.f32 1.5, %v9953
  %v9955 = vmul.f32 %v9950, %v9954
  %vm9956 = vweird.f32 %v9949
  %vm9957 = vweird.f32 %v9950
  %vm9958 = vmor %vm9956, %vm9957
  %v9959 = vsel %vm9958, %v9950, %v9955
  %v9960 = vperm.slane %v9959, 1
  %v9961 = vmul.f32 %v9933, %v9960
  %v9962 = vmul.f32 %v9934, %v9960
  %v9963 = vmul.f32 %v9935, %v9960
  %v9964 = vmul.f32 %v9936, %v9960
  %v9965 = vmul.f32 %v9937, %v9960
  %v9966 = vmul.f32 %v9938, %v9960
  %v9967 = vmul.f32 %v9939, %v9960
  %v9968 = vmul.f32 %v9940, %v9960
  %v9969 = vmul.f32 %v9941, %v9960
  %v9970 = vmul.f32 %v9942, %v9960
  %v9971 = vmul.f32 %v9943, %v9960
  %v9972 = vmul.f32 %v9944, %v9960
  %v9973 = vmul.f32 %v9945, %v9960
  %v9974 = vmul.f32 %v9946, %v9960
  %v9975 = vmul.f32 %v9947, %v9960
  %v9976 = vmul.f32 %v9948, %v9960
  %v9978 = vperm.slane %v9822, 0
  %v9979 = vperm.slane %v9822, 1
  %v9980 = vperm.slane %v9822, 2
  %v9981 = vperm.slane %v9822, 3
  %v9986 = vmul.f32 %v9961, %v9978
  %v9987 = vmul.f32 %v9962, %v9979
  %v9988 = vmul.f32 %v9963, %v9980
  %v9989 = vmul.f32 %v9964, %v9981
  %v9990 = vmul.f32 %v9965, %v9978
  %v9991 = vmul.f32 %v9966, %v9979
  %v9992 = vmul.f32 %v9967, %v9980
  %v9993 = vmul.f32 %v9968, %v9981
  %v9994 = vmul.f32 %v9969, %v9978
  %v9995 = vmul.f32 %v9970, %v9979
  %v9996 = vmul.f32 %v9971, %v9980
  %v9997 = vmul.f32 %v9972, %v9981
  %v9998 = vmul.f32 %v9973, %v9978
  %v9999 = vmul.f32 %v9974, %v9979
  %v10000 = vmul.f32 %v9975, %v9980
  %v10001 = vmul.f32 %v9976, %v9981
  %v10003 = vperm.slane %v9824, 0
  %v10004 = vperm.slane %v9824, 1
  %v10005 = vperm.slane %v9824, 2
  %v10006 = vperm.slane %v9824, 3
  %v10011 = vadd.f32 %v9986, %v10003
  %v10012 = vadd.f32 %v9987, %v10004
  %v10013 = vadd.f32 %v9988, %v10005
  %v10014 = vadd.f32 %v9989, %v10006
  %v10015 = vadd.f32 %v9990, %v10003
  %v10016 = vadd.f32 %v9991, %v10004
  %v10017 = vadd.f32 %v9992, %v10005
  %v10018 = vadd.f32 %v9993, %v10006
  %v10019 = vadd.f32 %v9994, %v10003
  %v10020 = vadd.f32 %v9995, %v10004
  %v10021 = vadd.f32 %v9996, %v10005
  %v10022 = vadd.f32 %v9997, %v10006
  %v10023 = vadd.f32 %v9998, %v10003
  %v10024 = vadd.f32 %v9999, %v10004
  %v10025 = vadd.f32 %v10000, %v10005
  %v10026 = vadd.f32 %v10001, %v10006
  %v10027 = vadd.f32 %v10011, %v6315
  %v10028 = vadd.f32 %v10012, %v6316
  %v10029 = vadd.f32 %v10013, %v6317
  %v10030 = vadd.f32 %v10014, %v6318
  %v10031 = vadd.f32 %v10015, %v6319
  %v10032 = vadd.f32 %v10016, %v6320
  %v10033 = vadd.f32 %v10017, %v6321
  %v10034 = vadd.f32 %v10018, %v6322
  %v10035 = vadd.f32 %v10019, %v6323
  %v10036 = vadd.f32 %v10020, %v6324
  %v10037 = vadd.f32 %v10021, %v6325
  %v10038 = vadd.f32 %v10022, %v6326
  %v10039 = vadd.f32 %v10023, %v6327
  %v10040 = vadd.f32 %v10024, %v6328
  %v10041 = vadd.f32 %v10025, %v6329
  %v10042 = vadd.f32 %v10026, %v6330
  %v10043 = vpack.c.bf16 %v10031, %v10027
  %v10044 = vpack.c.bf16 %v10032, %v10028
  %v10045 = vpack.c.bf16 %v10033, %v10029
  %v10046 = vpack.c.bf16 %v10034, %v10030
  %v10047 = vpack.c.bf16 %v10039, %v10035
  %v10048 = vpack.c.bf16 %v10040, %v10036
  %v10049 = vpack.c.bf16 %v10041, %v10037
  %v10050 = vpack.c.bf16 %v10042, %v10038
  %s10051 = scalar_lea.vmem %s6, 1024
  %v10052 = vld [vmem:[%s10051] sm:$0xff]
  %v10053 = vld [vmem:[%s10051 + $0x8] sm:$0xff]
  %v10054 = vld [vmem:[%s10051 + $0x10] sm:$0xff]
  %v10055 = vld [vmem:[%s10051 + $0x18] sm:$0xff]
  %v10056 = vld [vmem:[%s10051 + $0x20] sm:$0xff]
  %v10057 = vld [vmem:[%s10051 + $0x28] sm:$0xff]
  %v10058 = vld [vmem:[%s10051 + $0x30] sm:$0xff]
  %v10059 = vld [vmem:[%s10051 + $0x38] sm:$0xff]
  %v10060 = vld [vmem:[%s10051 + $0x40] sm:$0xff]
  %v10061 = vld [vmem:[%s10051 + $0x48] sm:$0xff]
  %v10062 = vld [vmem:[%s10051 + $0x50] sm:$0xff]
  %v10063 = vld [vmem:[%s10051 + $0x58] sm:$0xff]
  %v10064 = vld [vmem:[%s10051 + $0x60] sm:$0xff]
  %v10065 = vld [vmem:[%s10051 + $0x68] sm:$0xff]
  %v10066 = vld [vmem:[%s10051 + $0x70] sm:$0xff]
  %v10067 = vld [vmem:[%s10051 + $0x78] sm:$0xff]
  %v10068 = vld [vmem:[%s10051 + $0x80] sm:$0xff]
  %v10069 = vld [vmem:[%s10051 + $0x88] sm:$0xff]
  %v10070 = vld [vmem:[%s10051 + $0x90] sm:$0xff]
  %v10071 = vld [vmem:[%s10051 + $0x98] sm:$0xff]
  %v10072 = vld [vmem:[%s10051 + $0xa0] sm:$0xff]
  %v10073 = vld [vmem:[%s10051 + $0xa8] sm:$0xff]
  %v10074 = vld [vmem:[%s10051 + $0xb0] sm:$0xff]
  %v10075 = vld [vmem:[%s10051 + $0xb8] sm:$0xff]
  %v10076 = vld [vmem:[%s10051 + $0xc0] sm:$0xff]
  %v10077 = vld [vmem:[%s10051 + $0xc8] sm:$0xff]
  %v10078 = vld [vmem:[%s10051 + $0xd0] sm:$0xff]
  %v10079 = vld [vmem:[%s10051 + $0xd8] sm:$0xff]
  %v10080 = vld [vmem:[%s10051 + $0xe0] sm:$0xff]
  %v10081 = vld [vmem:[%s10051 + $0xe8] sm:$0xff]
  %v10082 = vld [vmem:[%s10051 + $0xf0] sm:$0xff]
  %v10083 = vld [vmem:[%s10051 + $0xf8] sm:$0xff]
  %v10084 = vld [vmem:[%s10051 + $0x100] sm:$0xff]
  %v10085 = vld [vmem:[%s10051 + $0x108] sm:$0xff]
  %v10086 = vld [vmem:[%s10051 + $0x110] sm:$0xff]
  %v10087 = vld [vmem:[%s10051 + $0x118] sm:$0xff]
  %v10088 = vld [vmem:[%s10051 + $0x120] sm:$0xff]
  %v10089 = vld [vmem:[%s10051 + $0x128] sm:$0xff]
  %v10090 = vld [vmem:[%s10051 + $0x130] sm:$0xff]
  %v10091 = vld [vmem:[%s10051 + $0x138] sm:$0xff]
  %v10092 = vld [vmem:[%s10051 + $0x140] sm:$0xff]
  %v10093 = vld [vmem:[%s10051 + $0x148] sm:$0xff]
  %v10094 = vld [vmem:[%s10051 + $0x150] sm:$0xff]
  %v10095 = vld [vmem:[%s10051 + $0x158] sm:$0xff]
  %v10096 = vld [vmem:[%s10051 + $0x160] sm:$0xff]
  %v10097 = vld [vmem:[%s10051 + $0x168] sm:$0xff]
  %v10098 = vld [vmem:[%s10051 + $0x170] sm:$0xff]
  %v10099 = vld [vmem:[%s10051 + $0x178] sm:$0xff]
  %v10100 = vld [vmem:[%s10051 + $0x180] sm:$0xff]
  %v10101 = vld [vmem:[%s10051 + $0x188] sm:$0xff]
  %v10102 = vld [vmem:[%s10051 + $0x190] sm:$0xff]
  %v10103 = vld [vmem:[%s10051 + $0x198] sm:$0xff]
  %v10104 = vld [vmem:[%s10051 + $0x1a0] sm:$0xff]
  %v10105 = vld [vmem:[%s10051 + $0x1a8] sm:$0xff]
  %v10106 = vld [vmem:[%s10051 + $0x1b0] sm:$0xff]
  %v10107 = vld [vmem:[%s10051 + $0x1b8] sm:$0xff]
  %v10108 = vld [vmem:[%s10051 + $0x1c0] sm:$0xff]
  %v10109 = vld [vmem:[%s10051 + $0x1c8] sm:$0xff]
  %v10110 = vld [vmem:[%s10051 + $0x1d0] sm:$0xff]
  %v10111 = vld [vmem:[%s10051 + $0x1d8] sm:$0xff]
  %v10112 = vld [vmem:[%s10051 + $0x1e0] sm:$0xff]
  %v10113 = vld [vmem:[%s10051 + $0x1e8] sm:$0xff]
  %v10114 = vld [vmem:[%s10051 + $0x1f0] sm:$0xff]
  %v10115 = vld [vmem:[%s10051 + $0x1f8] sm:$0xff]
  %v10116 = vld [vmem:[%s10051 + $0x200] sm:$0xff]
  %v10117 = vld [vmem:[%s10051 + $0x208] sm:$0xff]
  %v10118 = vld [vmem:[%s10051 + $0x210] sm:$0xff]
  %v10119 = vld [vmem:[%s10051 + $0x218] sm:$0xff]
  %v10120 = vld [vmem:[%s10051 + $0x220] sm:$0xff]
  %v10121 = vld [vmem:[%s10051 + $0x228] sm:$0xff]
  %v10122 = vld [vmem:[%s10051 + $0x230] sm:$0xff]
  %v10123 = vld [vmem:[%s10051 + $0x238] sm:$0xff]
  %v10124 = vld [vmem:[%s10051 + $0x240] sm:$0xff]
  %v10125 = vld [vmem:[%s10051 + $0x248] sm:$0xff]
  %v10126 = vld [vmem:[%s10051 + $0x250] sm:$0xff]
  %v10127 = vld [vmem:[%s10051 + $0x258] sm:$0xff]
  %v10128 = vld [vmem:[%s10051 + $0x260] sm:$0xff]
  %v10129 = vld [vmem:[%s10051 + $0x268] sm:$0xff]
  %v10130 = vld [vmem:[%s10051 + $0x270] sm:$0xff]
  %v10131 = vld [vmem:[%s10051 + $0x278] sm:$0xff]
  %v10132 = vld [vmem:[%s10051 + $0x280] sm:$0xff]
  %v10133 = vld [vmem:[%s10051 + $0x288] sm:$0xff]
  %v10134 = vld [vmem:[%s10051 + $0x290] sm:$0xff]
  %v10135 = vld [vmem:[%s10051 + $0x298] sm:$0xff]
  %v10136 = vld [vmem:[%s10051 + $0x2a0] sm:$0xff]
  %v10137 = vld [vmem:[%s10051 + $0x2a8] sm:$0xff]
  %v10138 = vld [vmem:[%s10051 + $0x2b0] sm:$0xff]
  %v10139 = vld [vmem:[%s10051 + $0x2b8] sm:$0xff]
  %v10140 = vld [vmem:[%s10051 + $0x2c0] sm:$0xff]
  %v10141 = vld [vmem:[%s10051 + $0x2c8] sm:$0xff]
  %v10142 = vld [vmem:[%s10051 + $0x2d0] sm:$0xff]
  %v10143 = vld [vmem:[%s10051 + $0x2d8] sm:$0xff]
  %v10144 = vld [vmem:[%s10051 + $0x2e0] sm:$0xff]
  %v10145 = vld [vmem:[%s10051 + $0x2e8] sm:$0xff]
  %v10146 = vld [vmem:[%s10051 + $0x2f0] sm:$0xff]
  %v10147 = vld [vmem:[%s10051 + $0x2f8] sm:$0xff]
  %v10148 = vld [vmem:[%s10051 + $0x300] sm:$0xff]
  %v10149 = vld [vmem:[%s10051 + $0x308] sm:$0xff]
  %v10150 = vld [vmem:[%s10051 + $0x310] sm:$0xff]
  %v10151 = vld [vmem:[%s10051 + $0x318] sm:$0xff]
  %v10152 = vld [vmem:[%s10051 + $0x320] sm:$0xff]
  %v10153 = vld [vmem:[%s10051 + $0x328] sm:$0xff]
  %v10154 = vld [vmem:[%s10051 + $0x330] sm:$0xff]
  %v10155 = vld [vmem:[%s10051 + $0x338] sm:$0xff]
  %v10156 = vld [vmem:[%s10051 + $0x340] sm:$0xff]
  %v10157 = vld [vmem:[%s10051 + $0x348] sm:$0xff]
  %v10158 = vld [vmem:[%s10051 + $0x350] sm:$0xff]
  %v10159 = vld [vmem:[%s10051 + $0x358] sm:$0xff]
  %v10160 = vld [vmem:[%s10051 + $0x360] sm:$0xff]
  %v10161 = vld [vmem:[%s10051 + $0x368] sm:$0xff]
  %v10162 = vld [vmem:[%s10051 + $0x370] sm:$0xff]
  %v10163 = vld [vmem:[%s10051 + $0x378] sm:$0xff]
  %v10164 = vld [vmem:[%s10051 + $0x380] sm:$0xff]
  %v10165 = vld [vmem:[%s10051 + $0x388] sm:$0xff]
  %v10166 = vld [vmem:[%s10051 + $0x390] sm:$0xff]
  %v10167 = vld [vmem:[%s10051 + $0x398] sm:$0xff]
  %v10168 = vld [vmem:[%s10051 + $0x3a0] sm:$0xff]
  %v10169 = vld [vmem:[%s10051 + $0x3a8] sm:$0xff]
  %v10170 = vld [vmem:[%s10051 + $0x3b0] sm:$0xff]
  %v10171 = vld [vmem:[%s10051 + $0x3b8] sm:$0xff]
  %v10172 = vld [vmem:[%s10051 + $0x3c0] sm:$0xff]
  %v10173 = vld [vmem:[%s10051 + $0x3c8] sm:$0xff]
  %v10174 = vld [vmem:[%s10051 + $0x3d0] sm:$0xff]
  %v10175 = vld [vmem:[%s10051 + $0x3d8] sm:$0xff]
  %v10176 = vld [vmem:[%s10051 + $0x3e0] sm:$0xff]
  %v10177 = vld [vmem:[%s10051 + $0x3e8] sm:$0xff]
  %v10178 = vld [vmem:[%s10051 + $0x3f0] sm:$0xff]
  %v10179 = vld [vmem:[%s10051 + $0x3f8] sm:$0xff]
  %s10180 = scalar_lea.vmem %s7, 4
  %v10181 = vld [vmem:[%s10180] sm:$0xf]
  %v10183 = vperm.slane %v10181, 0
  %v10184 = vperm.slane %v10181, 1
  %v10185 = vperm.slane %v10181, 2
  %v10186 = vperm.slane %v10181, 3
  %v10319 = vunpack.c.l.b16 %v10052
  %v10320 = vunpack.c.h.b16 %v10052
  %v10321 = vunpack.c.l.b16 %v10053
  %v10322 = vunpack.c.h.b16 %v10053
  %v10323 = vunpack.c.l.b16 %v10054
  %v10324 = vunpack.c.h.b16 %v10054
  %v10325 = vunpack.c.l.b16 %v10055
  %v10326 = vunpack.c.h.b16 %v10055
  %v10327 = vunpack.c.l.b16 %v10056
  %v10328 = vunpack.c.h.b16 %v10056
  %v10329 = vunpack.c.l.b16 %v10057
  %v10330 = vunpack.c.h.b16 %v10057
  %v10331 = vunpack.c.l.b16 %v10058
  %v10332 = vunpack.c.h.b16 %v10058
  %v10333 = vunpack.c.l.b16 %v10059
  %v10334 = vunpack.c.h.b16 %v10059
  %v10335 = vunpack.c.l.b16 %v10060
  %v10336 = vunpack.c.h.b16 %v10060
  %v10337 = vunpack.c.l.b16 %v10061
  %v10338 = vunpack.c.h.b16 %v10061
  %v10339 = vunpack.c.l.b16 %v10062
  %v10340 = vunpack.c.h.b16 %v10062
  %v10341 = vunpack.c.l.b16 %v10063
  %v10342 = vunpack.c.h.b16 %v10063
  %v10343 = vunpack.c.l.b16 %v10064
  %v10344 = vunpack.c.h.b16 %v10064
  %v10345 = vunpack.c.l.b16 %v10065
  %v10346 = vunpack.c.h.b16 %v10065
  %v10347 = vunpack.c.l.b16 %v10066
  %v10348 = vunpack.c.h.b16 %v10066
  %v10349 = vunpack.c.l.b16 %v10067
  %v10350 = vunpack.c.h.b16 %v10067
  %v10351 = vunpack.c.l.b16 %v10068
  %v10352 = vunpack.c.h.b16 %v10068
  %v10353 = vunpack.c.l.b16 %v10069
  %v10354 = vunpack.c.h.b16 %v10069
  %v10355 = vunpack.c.l.b16 %v10070
  %v10356 = vunpack.c.h.b16 %v10070
  %v10357 = vunpack.c.l.b16 %v10071
  %v10358 = vunpack.c.h.b16 %v10071
  %v10359 = vunpack.c.l.b16 %v10072
  %v10360 = vunpack.c.h.b16 %v10072
  %v10361 = vunpack.c.l.b16 %v10073
  %v10362 = vunpack.c.h.b16 %v10073
  %v10363 = vunpack.c.l.b16 %v10074
  %v10364 = vunpack.c.h.b16 %v10074
  %v10365 = vunpack.c.l.b16 %v10075
  %v10366 = vunpack.c.h.b16 %v10075
  %v10367 = vunpack.c.l.b16 %v10076
  %v10368 = vunpack.c.h.b16 %v10076
  %v10369 = vunpack.c.l.b16 %v10077
  %v10370 = vunpack.c.h.b16 %v10077
  %v10371 = vunpack.c.l.b16 %v10078
  %v10372 = vunpack.c.h.b16 %v10078
  %v10373 = vunpack.c.l.b16 %v10079
  %v10374 = vunpack.c.h.b16 %v10079
  %v10375 = vunpack.c.l.b16 %v10080
  %v10376 = vunpack.c.h.b16 %v10080
  %v10377 = vunpack.c.l.b16 %v10081
  %v10378 = vunpack.c.h.b16 %v10081
  %v10379 = vunpack.c.l.b16 %v10082
  %v10380 = vunpack.c.h.b16 %v10082
  %v10381 = vunpack.c.l.b16 %v10083
  %v10382 = vunpack.c.h.b16 %v10083
  %v10383 = vunpack.c.l.b16 %v10084
  %v10384 = vunpack.c.h.b16 %v10084
  %v10385 = vunpack.c.l.b16 %v10085
  %v10386 = vunpack.c.h.b16 %v10085
  %v10387 = vunpack.c.l.b16 %v10086
  %v10388 = vunpack.c.h.b16 %v10086
  %v10389 = vunpack.c.l.b16 %v10087
  %v10390 = vunpack.c.h.b16 %v10087
  %v10391 = vunpack.c.l.b16 %v10088
  %v10392 = vunpack.c.h.b16 %v10088
  %v10393 = vunpack.c.l.b16 %v10089
  %v10394 = vunpack.c.h.b16 %v10089
  %v10395 = vunpack.c.l.b16 %v10090
  %v10396 = vunpack.c.h.b16 %v10090
  %v10397 = vunpack.c.l.b16 %v10091
  %v10398 = vunpack.c.h.b16 %v10091
  %v10399 = vunpack.c.l.b16 %v10092
  %v10400 = vunpack.c.h.b16 %v10092
  %v10401 = vunpack.c.l.b16 %v10093
  %v10402 = vunpack.c.h.b16 %v10093
  %v10403 = vunpack.c.l.b16 %v10094
  %v10404 = vunpack.c.h.b16 %v10094
  %v10405 = vunpack.c.l.b16 %v10095
  %v10406 = vunpack.c.h.b16 %v10095
  %v10407 = vunpack.c.l.b16 %v10096
  %v10408 = vunpack.c.h.b16 %v10096
  %v10409 = vunpack.c.l.b16 %v10097
  %v10410 = vunpack.c.h.b16 %v10097
  %v10411 = vunpack.c.l.b16 %v10098
  %v10412 = vunpack.c.h.b16 %v10098
  %v10413 = vunpack.c.l.b16 %v10099
  %v10414 = vunpack.c.h.b16 %v10099
  %v10415 = vunpack.c.l.b16 %v10100
  %v10416 = vunpack.c.h.b16 %v10100
  %v10417 = vunpack.c.l.b16 %v10101
  %v10418 = vunpack.c.h.b16 %v10101
  %v10419 = vunpack.c.l.b16 %v10102
  %v10420 = vunpack.c.h.b16 %v10102
  %v10421 = vunpack.c.l.b16 %v10103
  %v10422 = vunpack.c.h.b16 %v10103
  %v10423 = vunpack.c.l.b16 %v10104
  %v10424 = vunpack.c.h.b16 %v10104
  %v10425 = vunpack.c.l.b16 %v10105
  %v10426 = vunpack.c.h.b16 %v10105
  %v10427 = vunpack.c.l.b16 %v10106
  %v10428 = vunpack.c.h.b16 %v10106
  %v10429 = vunpack.c.l.b16 %v10107
  %v10430 = vunpack.c.h.b16 %v10107
  %v10431 = vunpack.c.l.b16 %v10108
  %v10432 = vunpack.c.h.b16 %v10108
  %v10433 = vunpack.c.l.b16 %v10109
  %v10434 = vunpack.c.h.b16 %v10109
  %v10435 = vunpack.c.l.b16 %v10110
  %v10436 = vunpack.c.h.b16 %v10110
  %v10437 = vunpack.c.l.b16 %v10111
  %v10438 = vunpack.c.h.b16 %v10111
  %v10439 = vunpack.c.l.b16 %v10112
  %v10440 = vunpack.c.h.b16 %v10112
  %v10441 = vunpack.c.l.b16 %v10113
  %v10442 = vunpack.c.h.b16 %v10113
  %v10443 = vunpack.c.l.b16 %v10114
  %v10444 = vunpack.c.h.b16 %v10114
  %v10445 = vunpack.c.l.b16 %v10115
  %v10446 = vunpack.c.h.b16 %v10115
  %v10447 = vunpack.c.l.b16 %v10116
  %v10448 = vunpack.c.h.b16 %v10116
  %v10449 = vunpack.c.l.b16 %v10117
  %v10450 = vunpack.c.h.b16 %v10117
  %v10451 = vunpack.c.l.b16 %v10118
  %v10452 = vunpack.c.h.b16 %v10118
  %v10453 = vunpack.c.l.b16 %v10119
  %v10454 = vunpack.c.h.b16 %v10119
  %v10455 = vunpack.c.l.b16 %v10120
  %v10456 = vunpack.c.h.b16 %v10120
  %v10457 = vunpack.c.l.b16 %v10121
  %v10458 = vunpack.c.h.b16 %v10121
  %v10459 = vunpack.c.l.b16 %v10122
  %v10460 = vunpack.c.h.b16 %v10122
  %v10461 = vunpack.c.l.b16 %v10123
  %v10462 = vunpack.c.h.b16 %v10123
  %v10463 = vunpack.c.l.b16 %v10124
  %v10464 = vunpack.c.h.b16 %v10124
  %v10465 = vunpack.c.l.b16 %v10125
  %v10466 = vunpack.c.h.b16 %v10125
  %v10467 = vunpack.c.l.b16 %v10126
  %v10468 = vunpack.c.h.b16 %v10126
  %v10469 = vunpack.c.l.b16 %v10127
  %v10470 = vunpack.c.h.b16 %v10127
  %v10471 = vunpack.c.l.b16 %v10128
  %v10472 = vunpack.c.h.b16 %v10128
  %v10473 = vunpack.c.l.b16 %v10129
  %v10474 = vunpack.c.h.b16 %v10129
  %v10475 = vunpack.c.l.b16 %v10130
  %v10476 = vunpack.c.h.b16 %v10130
  %v10477 = vunpack.c.l.b16 %v10131
  %v10478 = vunpack.c.h.b16 %v10131
  %v10479 = vunpack.c.l.b16 %v10132
  %v10480 = vunpack.c.h.b16 %v10132
  %v10481 = vunpack.c.l.b16 %v10133
  %v10482 = vunpack.c.h.b16 %v10133
  %v10483 = vunpack.c.l.b16 %v10134
  %v10484 = vunpack.c.h.b16 %v10134
  %v10485 = vunpack.c.l.b16 %v10135
  %v10486 = vunpack.c.h.b16 %v10135
  %v10487 = vunpack.c.l.b16 %v10136
  %v10488 = vunpack.c.h.b16 %v10136
  %v10489 = vunpack.c.l.b16 %v10137
  %v10490 = vunpack.c.h.b16 %v10137
  %v10491 = vunpack.c.l.b16 %v10138
  %v10492 = vunpack.c.h.b16 %v10138
  %v10493 = vunpack.c.l.b16 %v10139
  %v10494 = vunpack.c.h.b16 %v10139
  %v10495 = vunpack.c.l.b16 %v10140
  %v10496 = vunpack.c.h.b16 %v10140
  %v10497 = vunpack.c.l.b16 %v10141
  %v10498 = vunpack.c.h.b16 %v10141
  %v10499 = vunpack.c.l.b16 %v10142
  %v10500 = vunpack.c.h.b16 %v10142
  %v10501 = vunpack.c.l.b16 %v10143
  %v10502 = vunpack.c.h.b16 %v10143
  %v10503 = vunpack.c.l.b16 %v10144
  %v10504 = vunpack.c.h.b16 %v10144
  %v10505 = vunpack.c.l.b16 %v10145
  %v10506 = vunpack.c.h.b16 %v10145
  %v10507 = vunpack.c.l.b16 %v10146
  %v10508 = vunpack.c.h.b16 %v10146
  %v10509 = vunpack.c.l.b16 %v10147
  %v10510 = vunpack.c.h.b16 %v10147
  %v10511 = vunpack.c.l.b16 %v10148
  %v10512 = vunpack.c.h.b16 %v10148
  %v10513 = vunpack.c.l.b16 %v10149
  %v10514 = vunpack.c.h.b16 %v10149
  %v10515 = vunpack.c.l.b16 %v10150
  %v10516 = vunpack.c.h.b16 %v10150
  %v10517 = vunpack.c.l.b16 %v10151
  %v10518 = vunpack.c.h.b16 %v10151
  %v10519 = vunpack.c.l.b16 %v10152
  %v10520 = vunpack.c.h.b16 %v10152
  %v10521 = vunpack.c.l.b16 %v10153
  %v10522 = vunpack.c.h.b16 %v10153
  %v10523 = vunpack.c.l.b16 %v10154
  %v10524 = vunpack.c.h.b16 %v10154
  %v10525 = vunpack.c.l.b16 %v10155
  %v10526 = vunpack.c.h.b16 %v10155
  %v10527 = vunpack.c.l.b16 %v10156
  %v10528 = vunpack.c.h.b16 %v10156
  %v10529 = vunpack.c.l.b16 %v10157
  %v10530 = vunpack.c.h.b16 %v10157
  %v10531 = vunpack.c.l.b16 %v10158
  %v10532 = vunpack.c.h.b16 %v10158
  %v10533 = vunpack.c.l.b16 %v10159
  %v10534 = vunpack.c.h.b16 %v10159
  %v10535 = vunpack.c.l.b16 %v10160
  %v10536 = vunpack.c.h.b16 %v10160
  %v10537 = vunpack.c.l.b16 %v10161
  %v10538 = vunpack.c.h.b16 %v10161
  %v10539 = vunpack.c.l.b16 %v10162
  %v10540 = vunpack.c.h.b16 %v10162
  %v10541 = vunpack.c.l.b16 %v10163
  %v10542 = vunpack.c.h.b16 %v10163
  %v10543 = vunpack.c.l.b16 %v10164
  %v10544 = vunpack.c.h.b16 %v10164
  %v10545 = vunpack.c.l.b16 %v10165
  %v10546 = vunpack.c.h.b16 %v10165
  %v10547 = vunpack.c.l.b16 %v10166
  %v10548 = vunpack.c.h.b16 %v10166
  %v10549 = vunpack.c.l.b16 %v10167
  %v10550 = vunpack.c.h.b16 %v10167
  %v10551 = vunpack.c.l.b16 %v10168
  %v10552 = vunpack.c.h.b16 %v10168
  %v10553 = vunpack.c.l.b16 %v10169
  %v10554 = vunpack.c.h.b16 %v10169
  %v10555 = vunpack.c.l.b16 %v10170
  %v10556 = vunpack.c.h.b16 %v10170
  %v10557 = vunpack.c.l.b16 %v10171
  %v10558 = vunpack.c.h.b16 %v10171
  %v10559 = vunpack.c.l.b16 %v10172
  %v10560 = vunpack.c.h.b16 %v10172
  %v10561 = vunpack.c.l.b16 %v10173
  %v10562 = vunpack.c.h.b16 %v10173
  %v10563 = vunpack.c.l.b16 %v10174
  %v10564 = vunpack.c.h.b16 %v10174
  %v10565 = vunpack.c.l.b16 %v10175
  %v10566 = vunpack.c.h.b16 %v10175
  %v10567 = vunpack.c.l.b16 %v10176
  %v10568 = vunpack.c.h.b16 %v10176
  %v10569 = vunpack.c.l.b16 %v10177
  %v10570 = vunpack.c.h.b16 %v10177
  %v10571 = vunpack.c.l.b16 %v10178
  %v10572 = vunpack.c.h.b16 %v10178
  %v10573 = vunpack.c.l.b16 %v10179
  %v10574 = vunpack.c.h.b16 %v10179
  %v10575 = vpack.c.b16 %v10323, %v10319
  %v10576 = vpack.c.b16 %v10324, %v10320
  %v10577 = vpack.c.b16 %v10325, %v10321
  %v10578 = vpack.c.b16 %v10326, %v10322
  %v10579 = vpack.c.b16 %v10331, %v10327
  %v10580 = vpack.c.b16 %v10332, %v10328
  %v10581 = vpack.c.b16 %v10333, %v10329
  %v10582 = vpack.c.b16 %v10334, %v10330
  %v10583 = vpack.c.b16 %v10339, %v10335
  %v10584 = vpack.c.b16 %v10340, %v10336
  %v10585 = vpack.c.b16 %v10341, %v10337
  %v10586 = vpack.c.b16 %v10342, %v10338
  %v10587 = vpack.c.b16 %v10347, %v10343
  %v10588 = vpack.c.b16 %v10348, %v10344
  %v10589 = vpack.c.b16 %v10349, %v10345
  %v10590 = vpack.c.b16 %v10350, %v10346
  %v10591 = vpack.c.b16 %v10355, %v10351
  %v10592 = vpack.c.b16 %v10356, %v10352
  %v10593 = vpack.c.b16 %v10357, %v10353
  %v10594 = vpack.c.b16 %v10358, %v10354
  %v10595 = vpack.c.b16 %v10363, %v10359
  %v10596 = vpack.c.b16 %v10364, %v10360
  %v10597 = vpack.c.b16 %v10365, %v10361
  %v10598 = vpack.c.b16 %v10366, %v10362
  %v10599 = vpack.c.b16 %v10371, %v10367
  %v10600 = vpack.c.b16 %v10372, %v10368
  %v10601 = vpack.c.b16 %v10373, %v10369
  %v10602 = vpack.c.b16 %v10374, %v10370
  %v10603 = vpack.c.b16 %v10379, %v10375
  %v10604 = vpack.c.b16 %v10380, %v10376
  %v10605 = vpack.c.b16 %v10381, %v10377
  %v10606 = vpack.c.b16 %v10382, %v10378
  %v10607 = vpack.c.b16 %v10387, %v10383
  %v10608 = vpack.c.b16 %v10388, %v10384
  %v10609 = vpack.c.b16 %v10389, %v10385
  %v10610 = vpack.c.b16 %v10390, %v10386
  %v10611 = vpack.c.b16 %v10395, %v10391
  %v10612 = vpack.c.b16 %v10396, %v10392
  %v10613 = vpack.c.b16 %v10397, %v10393
  %v10614 = vpack.c.b16 %v10398, %v10394
  %v10615 = vpack.c.b16 %v10403, %v10399
  %v10616 = vpack.c.b16 %v10404, %v10400
  %v10617 = vpack.c.b16 %v10405, %v10401
  %v10618 = vpack.c.b16 %v10406, %v10402
  %v10619 = vpack.c.b16 %v10411, %v10407
  %v10620 = vpack.c.b16 %v10412, %v10408
  %v10621 = vpack.c.b16 %v10413, %v10409
  %v10622 = vpack.c.b16 %v10414, %v10410
  %v10623 = vpack.c.b16 %v10419, %v10415
  %v10624 = vpack.c.b16 %v10420, %v10416
  %v10625 = vpack.c.b16 %v10421, %v10417
  %v10626 = vpack.c.b16 %v10422, %v10418
  %v10627 = vpack.c.b16 %v10427, %v10423
  %v10628 = vpack.c.b16 %v10428, %v10424
  %v10629 = vpack.c.b16 %v10429, %v10425
  %v10630 = vpack.c.b16 %v10430, %v10426
  %v10631 = vpack.c.b16 %v10435, %v10431
  %v10632 = vpack.c.b16 %v10436, %v10432
  %v10633 = vpack.c.b16 %v10437, %v10433
  %v10634 = vpack.c.b16 %v10438, %v10434
  %v10635 = vpack.c.b16 %v10443, %v10439
  %v10636 = vpack.c.b16 %v10444, %v10440
  %v10637 = vpack.c.b16 %v10445, %v10441
  %v10638 = vpack.c.b16 %v10446, %v10442
  %v10639 = vpack.c.b16 %v10451, %v10447
  %v10640 = vpack.c.b16 %v10452, %v10448
  %v10641 = vpack.c.b16 %v10453, %v10449
  %v10642 = vpack.c.b16 %v10454, %v10450
  %v10643 = vpack.c.b16 %v10459, %v10455
  %v10644 = vpack.c.b16 %v10460, %v10456
  %v10645 = vpack.c.b16 %v10461, %v10457
  %v10646 = vpack.c.b16 %v10462, %v10458
  %v10647 = vpack.c.b16 %v10467, %v10463
  %v10648 = vpack.c.b16 %v10468, %v10464
  %v10649 = vpack.c.b16 %v10469, %v10465
  %v10650 = vpack.c.b16 %v10470, %v10466
  %v10651 = vpack.c.b16 %v10475, %v10471
  %v10652 = vpack.c.b16 %v10476, %v10472
  %v10653 = vpack.c.b16 %v10477, %v10473
  %v10654 = vpack.c.b16 %v10478, %v10474
  %v10655 = vpack.c.b16 %v10483, %v10479
  %v10656 = vpack.c.b16 %v10484, %v10480
  %v10657 = vpack.c.b16 %v10485, %v10481
  %v10658 = vpack.c.b16 %v10486, %v10482
  %v10659 = vpack.c.b16 %v10491, %v10487
  %v10660 = vpack.c.b16 %v10492, %v10488
  %v10661 = vpack.c.b16 %v10493, %v10489
  %v10662 = vpack.c.b16 %v10494, %v10490
  %v10663 = vpack.c.b16 %v10499, %v10495
  %v10664 = vpack.c.b16 %v10500, %v10496
  %v10665 = vpack.c.b16 %v10501, %v10497
  %v10666 = vpack.c.b16 %v10502, %v10498
  %v10667 = vpack.c.b16 %v10507, %v10503
  %v10668 = vpack.c.b16 %v10508, %v10504
  %v10669 = vpack.c.b16 %v10509, %v10505
  %v10670 = vpack.c.b16 %v10510, %v10506
  %v10671 = vpack.c.b16 %v10515, %v10511
  %v10672 = vpack.c.b16 %v10516, %v10512
  %v10673 = vpack.c.b16 %v10517, %v10513
  %v10674 = vpack.c.b16 %v10518, %v10514
  %v10675 = vpack.c.b16 %v10523, %v10519
  %v10676 = vpack.c.b16 %v10524, %v10520
  %v10677 = vpack.c.b16 %v10525, %v10521
  %v10678 = vpack.c.b16 %v10526, %v10522
  %v10679 = vpack.c.b16 %v10531, %v10527
  %v10680 = vpack.c.b16 %v10532, %v10528
  %v10681 = vpack.c.b16 %v10533, %v10529
  %v10682 = vpack.c.b16 %v10534, %v10530
  %v10683 = vpack.c.b16 %v10539, %v10535
  %v10684 = vpack.c.b16 %v10540, %v10536
  %v10685 = vpack.c.b16 %v10541, %v10537
  %v10686 = vpack.c.b16 %v10542, %v10538
  %v10687 = vpack.c.b16 %v10547, %v10543
  %v10688 = vpack.c.b16 %v10548, %v10544
  %v10689 = vpack.c.b16 %v10549, %v10545
  %v10690 = vpack.c.b16 %v10550, %v10546
  %v10691 = vpack.c.b16 %v10555, %v10551
  %v10692 = vpack.c.b16 %v10556, %v10552
  %v10693 = vpack.c.b16 %v10557, %v10553
  %v10694 = vpack.c.b16 %v10558, %v10554
  %v10695 = vpack.c.b16 %v10563, %v10559
  %v10696 = vpack.c.b16 %v10564, %v10560
  %v10697 = vpack.c.b16 %v10565, %v10561
  %v10698 = vpack.c.b16 %v10566, %v10562
  %v10699 = vpack.c.b16 %v10571, %v10567
  %v10700 = vpack.c.b16 %v10572, %v10568
  %v10701 = vpack.c.b16 %v10573, %v10569
  %v10702 = vpack.c.b16 %v10574, %v10570
  %10831 = vmatpush.bf16.msra.mxu0 %v10603
  %10832 = vmatpush.bf16.msra.mxu0 %v10599
  %10833 = vmatpush.bf16.msra.mxu0 %v10595
  %10834 = vmatpush.bf16.msra.mxu0 %v10591
  %10835 = vmatpush.bf16.msra.mxu0 %v10587
  %10836 = vmatpush.bf16.msra.mxu0 %v10583
  %10837 = vmatpush.bf16.msra.mxu0 %v10579
  %10838 = vmatpush.bf16.msra.mxu0 %v10575
  %10839 = vmatmul.bf16.gmra.mxu0 %v10043
  %v10840 = vpop.f32.mrf.mxu0
  %v10841 = vadd.f32 %v10183, %v10840
  %v10842 = vpop.f32.mrf.mxu0
  %v10843 = vadd.f32 %v10183, %v10842
  %10844 = vmatmul.bf16.gmra.mxu0 %v10047
  %v10845 = vpop.f32.mrf.mxu0
  %v10846 = vadd.f32 %v10183, %v10845
  %v10847 = vpop.f32.mrf.mxu0
  %v10848 = vadd.f32 %v10183, %v10847
  %10849 = vdwg.mxu0
  %10850 = vmatpush.bf16.msra.mxu0 %v10635
  %10851 = vmatpush.bf16.msra.mxu0 %v10631
  %10852 = vmatpush.bf16.msra.mxu0 %v10627
  %10853 = vmatpush.bf16.msra.mxu0 %v10623
  %10854 = vmatpush.bf16.msra.mxu0 %v10619
  %10855 = vmatpush.bf16.msra.mxu0 %v10615
  %10856 = vmatpush.bf16.msra.mxu0 %v10611
  %10857 = vmatpush.bf16.msra.mxu0 %v10607
  %10858 = vmatmul.bf16.gmra.mxu0 %v10044
  %v10859 = vpop.f32.mrf.mxu0
  %v10860 = vadd.f32 %v10841, %v10859
  %v10861 = vpop.f32.mrf.mxu0
  %v10862 = vadd.f32 %v10843, %v10861
  %10863 = vmatmul.bf16.gmra.mxu0 %v10048
  %v10864 = vpop.f32.mrf.mxu0
  %v10865 = vadd.f32 %v10846, %v10864
  %v10866 = vpop.f32.mrf.mxu0
  %v10867 = vadd.f32 %v10848, %v10866
  %10868 = vdwg.mxu0
  %10869 = vmatpush.bf16.msra.mxu0 %v10667
  %10870 = vmatpush.bf16.msra.mxu0 %v10663
  %10871 = vmatpush.bf16.msra.mxu0 %v10659
  %10872 = vmatpush.bf16.msra.mxu0 %v10655
  %10873 = vmatpush.bf16.msra.mxu0 %v10651
  %10874 = vmatpush.bf16.msra.mxu0 %v10647
  %10875 = vmatpush.bf16.msra.mxu0 %v10643
  %10876 = vmatpush.bf16.msra.mxu0 %v10639
  %10877 = vmatmul.bf16.gmra.mxu0 %v10045
  %v10878 = vpop.f32.mrf.mxu0
  %v10879 = vadd.f32 %v10860, %v10878
  %v10880 = vpop.f32.mrf.mxu0
  %v10881 = vadd.f32 %v10862, %v10880
  %10882 = vmatmul.bf16.gmra.mxu0 %v10049
  %v10883 = vpop.f32.mrf.mxu0
  %v10884 = vadd.f32 %v10865, %v10883
  %v10885 = vpop.f32.mrf.mxu0
  %v10886 = vadd.f32 %v10867, %v10885
  %10887 = vdwg.mxu0
  %10888 = vmatpush.bf16.msra.mxu0 %v10699
  %10889 = vmatpush.bf16.msra.mxu0 %v10695
  %10890 = vmatpush.bf16.msra.mxu0 %v10691
  %10891 = vmatpush.bf16.msra.mxu0 %v10687
  %10892 = vmatpush.bf16.msra.mxu0 %v10683
  %10893 = vmatpush.bf16.msra.mxu0 %v10679
  %10894 = vmatpush.bf16.msra.mxu0 %v10675
  %10895 = vmatpush.bf16.msra.mxu0 %v10671
  %10896 = vmatmul.bf16.gmra.mxu0 %v10046
  %v10897 = vpop.f32.mrf.mxu0
  %v10898 = vadd.f32 %v10879, %v10897
  %v10899 = vpop.f32.mrf.mxu0
  %v10900 = vadd.f32 %v10881, %v10899
  %10901 = vmatmul.bf16.gmra.mxu0 %v10050
  %v10902 = vpop.f32.mrf.mxu0
  %v10903 = vadd.f32 %v10884, %v10902
  %v10904 = vpop.f32.mrf.mxu0
  %v10905 = vadd.f32 %v10886, %v10904
  %10906 = vdwg.mxu0
  %10907 = vmatpush.bf16.msra.mxu0 %v10604
  %10908 = vmatpush.bf16.msra.mxu0 %v10600
  %10909 = vmatpush.bf16.msra.mxu0 %v10596
  %10910 = vmatpush.bf16.msra.mxu0 %v10592
  %10911 = vmatpush.bf16.msra.mxu0 %v10588
  %10912 = vmatpush.bf16.msra.mxu0 %v10584
  %10913 = vmatpush.bf16.msra.mxu0 %v10580
  %10914 = vmatpush.bf16.msra.mxu0 %v10576
  %10915 = vmatmul.bf16.gmra.mxu0 %v10043
  %v10916 = vpop.f32.mrf.mxu0
  %v10917 = vadd.f32 %v10184, %v10916
  %v10918 = vpop.f32.mrf.mxu0
  %v10919 = vadd.f32 %v10184, %v10918
  %10920 = vmatmul.bf16.gmra.mxu0 %v10047
  %v10921 = vpop.f32.mrf.mxu0
  %v10922 = vadd.f32 %v10184, %v10921
  %v10923 = vpop.f32.mrf.mxu0
  %v10924 = vadd.f32 %v10184, %v10923
  %10925 = vdwg.mxu0
  %10926 = vmatpush.bf16.msra.mxu0 %v10636
  %10927 = vmatpush.bf16.msra.mxu0 %v10632
  %10928 = vmatpush.bf16.msra.mxu0 %v10628
  %10929 = vmatpush.bf16.msra.mxu0 %v10624
  %10930 = vmatpush.bf16.msra.mxu0 %v10620
  %10931 = vmatpush.bf16.msra.mxu0 %v10616
  %10932 = vmatpush.bf16.msra.mxu0 %v10612
  %10933 = vmatpush.bf16.msra.mxu0 %v10608
  %10934 = vmatmul.bf16.gmra.mxu0 %v10044
  %v10935 = vpop.f32.mrf.mxu0
  %v10936 = vadd.f32 %v10917, %v10935
  %v10937 = vpop.f32.mrf.mxu0
  %v10938 = vadd.f32 %v10919, %v10937
  %10939 = vmatmul.bf16.gmra.mxu0 %v10048
  %v10940 = vpop.f32.mrf.mxu0
  %v10941 = vadd.f32 %v10922, %v10940
  %v10942 = vpop.f32.mrf.mxu0
  %v10943 = vadd.f32 %v10924, %v10942
  %10944 = vdwg.mxu0
  %10945 = vmatpush.bf16.msra.mxu0 %v10668
  %10946 = vmatpush.bf16.msra.mxu0 %v10664
  %10947 = vmatpush.bf16.msra.mxu0 %v10660
  %10948 = vmatpush.bf16.msra.mxu0 %v10656
  %10949 = vmatpush.bf16.msra.mxu0 %v10652
  %10950 = vmatpush.bf16.msra.mxu0 %v10648
  %10951 = vmatpush.bf16.msra.mxu0 %v10644
  %10952 = vmatpush.bf16.msra.mxu0 %v10640
  %10953 = vmatmul.bf16.gmra.mxu0 %v10045
  %v10954 = vpop.f32.mrf.mxu0
  %v10955 = vadd.f32 %v10936, %v10954
  %v10956 = vpop.f32.mrf.mxu0
  %v10957 = vadd.f32 %v10938, %v10956
  %10958 = vmatmul.bf16.gmra.mxu0 %v10049
  %v10959 = vpop.f32.mrf.mxu0
  %v10960 = vadd.f32 %v10941, %v10959
  %v10961 = vpop.f32.mrf.mxu0
  %v10962 = vadd.f32 %v10943, %v10961
  %10963 = vdwg.mxu0
  %10964 = vmatpush.bf16.msra.mxu0 %v10700
  %10965 = vmatpush.bf16.msra.mxu0 %v10696
  %10966 = vmatpush.bf16.msra.mxu0 %v10692
  %10967 = vmatpush.bf16.msra.mxu0 %v10688
  %10968 = vmatpush.bf16.msra.mxu0 %v10684
  %10969 = vmatpush.bf16.msra.mxu0 %v10680
  %10970 = vmatpush.bf16.msra.mxu0 %v10676
  %10971 = vmatpush.bf16.msra.mxu0 %v10672
  %10972 = vmatmul.bf16.gmra.mxu0 %v10046
  %v10973 = vpop.f32.mrf.mxu0
  %v10974 = vadd.f32 %v10955, %v10973
  %v10975 = vpop.f32.mrf.mxu0
  %v10976 = vadd.f32 %v10957, %v10975
  %10977 = vmatmul.bf16.gmra.mxu0 %v10050
  %v10978 = vpop.f32.mrf.mxu0
  %v10979 = vadd.f32 %v10960, %v10978
  %v10980 = vpop.f32.mrf.mxu0
  %v10981 = vadd.f32 %v10962, %v10980
  %10982 = vdwg.mxu0
  %10983 = vmatpush.bf16.msra.mxu0 %v10605
  %10984 = vmatpush.bf16.msra.mxu0 %v10601
  %10985 = vmatpush.bf16.msra.mxu0 %v10597
  %10986 = vmatpush.bf16.msra.mxu0 %v10593
  %10987 = vmatpush.bf16.msra.mxu0 %v10589
  %10988 = vmatpush.bf16.msra.mxu0 %v10585
  %10989 = vmatpush.bf16.msra.mxu0 %v10581
  %10990 = vmatpush.bf16.msra.mxu0 %v10577
  %10991 = vmatmul.bf16.gmra.mxu0 %v10043
  %v10992 = vpop.f32.mrf.mxu0
  %v10993 = vadd.f32 %v10185, %v10992
  %v10994 = vpop.f32.mrf.mxu0
  %v10995 = vadd.f32 %v10185, %v10994
  %10996 = vmatmul.bf16.gmra.mxu0 %v10047
  %v10997 = vpop.f32.mrf.mxu0
  %v10998 = vadd.f32 %v10185, %v10997
  %v10999 = vpop.f32.mrf.mxu0
  %v11000 = vadd.f32 %v10185, %v10999
  %11001 = vdwg.mxu0
  %11002 = vmatpush.bf16.msra.mxu0 %v10637
  %11003 = vmatpush.bf16.msra.mxu0 %v10633
  %11004 = vmatpush.bf16.msra.mxu0 %v10629
  %11005 = vmatpush.bf16.msra.mxu0 %v10625
  %11006 = vmatpush.bf16.msra.mxu0 %v10621
  %11007 = vmatpush.bf16.msra.mxu0 %v10617
  %11008 = vmatpush.bf16.msra.mxu0 %v10613
  %11009 = vmatpush.bf16.msra.mxu0 %v10609
  %11010 = vmatmul.bf16.gmra.mxu0 %v10044
  %v11011 = vpop.f32.mrf.mxu0
  %v11012 = vadd.f32 %v10993, %v11011
  %v11013 = vpop.f32.mrf.mxu0
  %v11014 = vadd.f32 %v10995, %v11013
  %11015 = vmatmul.bf16.gmra.mxu0 %v10048
  %v11016 = vpop.f32.mrf.mxu0
  %v11017 = vadd.f32 %v10998, %v11016
  %v11018 = vpop.f32.mrf.mxu0
  %v11019 = vadd.f32 %v11000, %v11018
  %11020 = vdwg.mxu0
  %11021 = vmatpush.bf16.msra.mxu0 %v10669
  %11022 = vmatpush.bf16.msra.mxu0 %v10665
  %11023 = vmatpush.bf16.msra.mxu0 %v10661
  %11024 = vmatpush.bf16.msra.mxu0 %v10657
  %11025 = vmatpush.bf16.msra.mxu0 %v10653
  %11026 = vmatpush.bf16.msra.mxu0 %v10649
  %11027 = vmatpush.bf16.msra.mxu0 %v10645
  %11028 = vmatpush.bf16.msra.mxu0 %v10641
  %11029 = vmatmul.bf16.gmra.mxu0 %v10045
  %v11030 = vpop.f32.mrf.mxu0
  %v11031 = vadd.f32 %v11012, %v11030
  %v11032 = vpop.f32.mrf.mxu0
  %v11033 = vadd.f32 %v11014, %v11032
  %11034 = vmatmul.bf16.gmra.mxu0 %v10049
  %v11035 = vpop.f32.mrf.mxu0
  %v11036 = vadd.f32 %v11017, %v11035
  %v11037 = vpop.f32.mrf.mxu0
  %v11038 = vadd.f32 %v11019, %v11037
  %11039 = vdwg.mxu0
  %11040 = vmatpush.bf16.msra.mxu0 %v10701
  %11041 = vmatpush.bf16.msra.mxu0 %v10697
  %11042 = vmatpush.bf16.msra.mxu0 %v10693
  %11043 = vmatpush.bf16.msra.mxu0 %v10689
  %11044 = vmatpush.bf16.msra.mxu0 %v10685
  %11045 = vmatpush.bf16.msra.mxu0 %v10681
  %11046 = vmatpush.bf16.msra.mxu0 %v10677
  %11047 = vmatpush.bf16.msra.mxu0 %v10673
  %11048 = vmatmul.bf16.gmra.mxu0 %v10046
  %v11049 = vpop.f32.mrf.mxu0
  %v11050 = vadd.f32 %v11031, %v11049
  %v11051 = vpop.f32.mrf.mxu0
  %v11052 = vadd.f32 %v11033, %v11051
  %11053 = vmatmul.bf16.gmra.mxu0 %v10050
  %v11054 = vpop.f32.mrf.mxu0
  %v11055 = vadd.f32 %v11036, %v11054
  %v11056 = vpop.f32.mrf.mxu0
  %v11057 = vadd.f32 %v11038, %v11056
  %11058 = vdwg.mxu0
  %11059 = vmatpush.bf16.msra.mxu0 %v10606
  %11060 = vmatpush.bf16.msra.mxu0 %v10602
  %11061 = vmatpush.bf16.msra.mxu0 %v10598
  %11062 = vmatpush.bf16.msra.mxu0 %v10594
  %11063 = vmatpush.bf16.msra.mxu0 %v10590
  %11064 = vmatpush.bf16.msra.mxu0 %v10586
  %11065 = vmatpush.bf16.msra.mxu0 %v10582
  %11066 = vmatpush.bf16.msra.mxu0 %v10578
  %11067 = vmatmul.bf16.gmra.mxu0 %v10043
  %v11068 = vpop.f32.mrf.mxu0
  %v11069 = vadd.f32 %v10186, %v11068
  %v11070 = vpop.f32.mrf.mxu0
  %v11071 = vadd.f32 %v10186, %v11070
  %11072 = vmatmul.bf16.gmra.mxu0 %v10047
  %v11073 = vpop.f32.mrf.mxu0
  %v11074 = vadd.f32 %v10186, %v11073
  %v11075 = vpop.f32.mrf.mxu0
  %v11076 = vadd.f32 %v10186, %v11075
  %11077 = vdwg.mxu0
  %11078 = vmatpush.bf16.msra.mxu0 %v10638
  %11079 = vmatpush.bf16.msra.mxu0 %v10634
  %11080 = vmatpush.bf16.msra.mxu0 %v10630
  %11081 = vmatpush.bf16.msra.mxu0 %v10626
  %11082 = vmatpush.bf16.msra.mxu0 %v10622
  %11083 = vmatpush.bf16.msra.mxu0 %v10618
  %11084 = vmatpush.bf16.msra.mxu0 %v10614
  %11085 = vmatpush.bf16.msra.mxu0 %v10610
  %11086 = vmatmul.bf16.gmra.mxu0 %v10044
  %v11087 = vpop.f32.mrf.mxu0
  %v11088 = vadd.f32 %v11069, %v11087
  %v11089 = vpop.f32.mrf.mxu0
  %v11090 = vadd.f32 %v11071, %v11089
  %11091 = vmatmul.bf16.gmra.mxu0 %v10048
  %v11092 = vpop.f32.mrf.mxu0
  %v11093 = vadd.f32 %v11074, %v11092
  %v11094 = vpop.f32.mrf.mxu0
  %v11095 = vadd.f32 %v11076, %v11094
  %11096 = vdwg.mxu0
  %11097 = vmatpush.bf16.msra.mxu0 %v10670
  %11098 = vmatpush.bf16.msra.mxu0 %v10666
  %11099 = vmatpush.bf16.msra.mxu0 %v10662
  %11100 = vmatpush.bf16.msra.mxu0 %v10658
  %11101 = vmatpush.bf16.msra.mxu0 %v10654
  %11102 = vmatpush.bf16.msra.mxu0 %v10650
  %11103 = vmatpush.bf16.msra.mxu0 %v10646
  %11104 = vmatpush.bf16.msra.mxu0 %v10642
  %11105 = vmatmul.bf16.gmra.mxu0 %v10045
  %v11106 = vpop.f32.mrf.mxu0
  %v11107 = vadd.f32 %v11088, %v11106
  %v11108 = vpop.f32.mrf.mxu0
  %v11109 = vadd.f32 %v11090, %v11108
  %11110 = vmatmul.bf16.gmra.mxu0 %v10049
  %v11111 = vpop.f32.mrf.mxu0
  %v11112 = vadd.f32 %v11093, %v11111
  %v11113 = vpop.f32.mrf.mxu0
  %v11114 = vadd.f32 %v11095, %v11113
  %11115 = vdwg.mxu0
  %11116 = vmatpush.bf16.msra.mxu0 %v10702
  %11117 = vmatpush.bf16.msra.mxu0 %v10698
  %11118 = vmatpush.bf16.msra.mxu0 %v10694
  %11119 = vmatpush.bf16.msra.mxu0 %v10690
  %11120 = vmatpush.bf16.msra.mxu0 %v10686
  %11121 = vmatpush.bf16.msra.mxu0 %v10682
  %11122 = vmatpush.bf16.msra.mxu0 %v10678
  %11123 = vmatpush.bf16.msra.mxu0 %v10674
  %11124 = vmatmul.bf16.gmra.mxu0 %v10046
  %v11125 = vpop.f32.mrf.mxu0
  %v11126 = vadd.f32 %v11107, %v11125
  %v11127 = vpop.f32.mrf.mxu0
  %v11128 = vadd.f32 %v11109, %v11127
  %11129 = vmatmul.bf16.gmra.mxu0 %v10050
  %v11130 = vpop.f32.mrf.mxu0
  %v11131 = vadd.f32 %v11112, %v11130
  %v11132 = vpop.f32.mrf.mxu0
  %v11133 = vadd.f32 %v11114, %v11132
  %11134 = vdwg.mxu0
  %v11135 = vmul.f32 %v10898, 0.5
  %v11136 = vmul.f32 %v10974, 0.5
  %v11137 = vmul.f32 %v11050, 0.5
  %v11138 = vmul.f32 %v11126, 0.5
  %v11139 = vmul.f32 %v10900, 0.5
  %v11140 = vmul.f32 %v10976, 0.5
  %v11141 = vmul.f32 %v11052, 0.5
  %v11142 = vmul.f32 %v11128, 0.5
  %v11143 = vmul.f32 %v10903, 0.5
  %v11144 = vmul.f32 %v10979, 0.5
  %v11145 = vmul.f32 %v11055, 0.5
  %v11146 = vmul.f32 %v11131, 0.5
  %v11147 = vmul.f32 %v10905, 0.5
  %v11148 = vmul.f32 %v10981, 0.5
  %v11149 = vmul.f32 %v11057, 0.5
  %v11150 = vmul.f32 %v11133, 0.5
  %v11151 = vmul.f32 %v10898, 0.044715
  %v11152 = vmul.f32 %v10974, 0.044715
  %v11153 = vmul.f32 %v11050, 0.044715
  %v11154 = vmul.f32 %v11126, 0.044715
  %v11155 = vmul.f32 %v10900, 0.044715
  %v11156 = vmul.f32 %v10976, 0.044715
  %v11157 = vmul.f32 %v11052, 0.044715
  %v11158 = vmul.f32 %v11128, 0.044715
  %v11159 = vmul.f32 %v10903, 0.044715
  %v11160 = vmul.f32 %v10979, 0.044715
  %v11161 = vmul.f32 %v11055, 0.044715
  %v11162 = vmul.f32 %v11131, 0.044715
  %v11163 = vmul.f32 %v10905, 0.044715
  %v11164 = vmul.f32 %v10981, 0.044715
  %v11165 = vmul.f32 %v11057, 0.044715
  %v11166 = vmul.f32 %v11133, 0.044715
  %v11167 = vmul.f32 %v11151, %v10898
  %v11168 = vmul.f32 %v11152, %v10974
  %v11169 = vmul.f32 %v11153, %v11050
  %v11170 = vmul.f32 %v11154, %v11126
  %v11171 = vmul.f32 %v11155, %v10900
  %v11172 = vmul.f32 %v11156, %v10976
  %v11173 = vmul.f32 %v11157, %v11052
  %v11174 = vmul.f32 %v11158, %v11128
  %v11175 = vmul.f32 %v11159, %v10903
  %v11176 = vmul.f32 %v11160, %v10979
  %v11177 = vmul.f32 %v11161, %v11055
  %v11178 = vmul.f32 %v11162, %v11131
  %v11179 = vmul.f32 %v11163, %v10905
  %v11180 = vmul.f32 %v11164, %v10981
  %v11181 = vmul.f32 %v11165, %v11057
  %v11182 = vmul.f32 %v11166, %v11133
  %v11183 = vmul.f32 %v11167, %v10898
  %v11184 = vmul.f32 %v11168, %v10974
  %v11185 = vmul.f32 %v11169, %v11050
  %v11186 = vmul.f32 %v11170, %v11126
  %v11187 = vmul.f32 %v11171, %v10900
  %v11188 = vmul.f32 %v11172, %v10976
  %v11189 = vmul.f32 %v11173, %v11052
  %v11190 = vmul.f32 %v11174, %v11128
  %v11191 = vmul.f32 %v11175, %v10903
  %v11192 = vmul.f32 %v11176, %v10979
  %v11193 = vmul.f32 %v11177, %v11055
  %v11194 = vmul.f32 %v11178, %v11131
  %v11195 = vmul.f32 %v11179, %v10905
  %v11196 = vmul.f32 %v11180, %v10981
  %v11197 = vmul.f32 %v11181, %v11057
  %v11198 = vmul.f32 %v11182, %v11133
  %v11199 = vadd.f32 %v10898, %v11183
  %v11200 = vadd.f32 %v10974, %v11184
  %v11201 = vadd.f32 %v11050, %v11185
  %v11202 = vadd.f32 %v11126, %v11186
  %v11203 = vadd.f32 %v10900, %v11187
  %v11204 = vadd.f32 %v10976, %v11188
  %v11205 = vadd.f32 %v11052, %v11189
  %v11206 = vadd.f32 %v11128, %v11190
  %v11207 = vadd.f32 %v10903, %v11191
  %v11208 = vadd.f32 %v10979, %v11192
  %v11209 = vadd.f32 %v11055, %v11193
  %v11210 = vadd.f32 %v11131, %v11194
  %v11211 = vadd.f32 %v10905, %v11195
  %v11212 = vadd.f32 %v10981, %v11196
  %v11213 = vadd.f32 %v11057, %v11197
  %v11214 = vadd.f32 %v11133, %v11198
  %v11215 = vmul.f32 %v11199, 0.7978846
  %v11216 = vmul.f32 %v11200, 0.7978846
  %v11217 = vmul.f32 %v11201, 0.7978846
  %v11218 = vmul.f32 %v11202, 0.7978846
  %v11219 = vmul.f32 %v11203, 0.7978846
  %v11220 = vmul.f32 %v11204, 0.7978846
  %v11221 = vmul.f32 %v11205, 0.7978846
  %v11222 = vmul.f32 %v11206, 0.7978846
  %v11223 = vmul.f32 %v11207, 0.7978846
  %v11224 = vmul.f32 %v11208, 0.7978846
  %v11225 = vmul.f32 %v11209, 0.7978846
  %v11226 = vmul.f32 %v11210, 0.7978846
  %v11227 = vmul.f32 %v11211, 0.7978846
  %v11228 = vmul.f32 %v11212, 0.7978846
  %v11229 = vmul.f32 %v11213, 0.7978846
  %v11230 = vmul.f32 %v11214, 0.7978846
  %v11231 = vtanh.pop %v11215
  %v11232 = vtanh.pop %v11216
  %v11233 = vtanh.pop %v11217
  %v11234 = vtanh.pop %v11218
  %v11235 = vtanh.pop %v11219
  %v11236 = vtanh.pop %v11220
  %v11237 = vtanh.pop %v11221
  %v11238 = vtanh.pop %v11222
  %v11239 = vtanh.pop %v11223
  %v11240 = vtanh.pop %v11224
  %v11241 = vtanh.pop %v11225
  %v11242 = vtanh.pop %v11226
  %v11243 = vtanh.pop %v11227
  %v11244 = vtanh.pop %v11228
  %v11245 = vtanh.pop %v11229
  %v11246 = vtanh.pop %v11230
  %v11247 = vadd.f32 %v11231, 1.0
  %v11248 = vadd.f32 %v11232, 1.0
  %v11249 = vadd.f32 %v11233, 1.0
  %v11250 = vadd.f32 %v11234, 1.0
  %v11251 = vadd.f32 %v11235, 1.0
  %v11252 = vadd.f32 %v11236, 1.0
  %v11253 = vadd.f32 %v11237, 1.0
  %v11254 = vadd.f32 %v11238, 1.0
  %v11255 = vadd.f32 %v11239, 1.0
  %v11256 = vadd.f32 %v11240, 1.0
  %v11257 = vadd.f32 %v11241, 1.0
  %v11258 = vadd.f32 %v11242, 1.0
  %v11259 = vadd.f32 %v11243, 1.0
  %v11260 = vadd.f32 %v11244, 1.0
  %v11261 = vadd.f32 %v11245, 1.0
  %v11262 = vadd.f32 %v11246, 1.0
  %v11263 = vmul.f32 %v11135, %v11247
  %v11264 = vmul.f32 %v11136, %v11248
  %v11265 = vmul.f32 %v11137, %v11249
  %v11266 = vmul.f32 %v11138, %v11250
  %v11267 = vmul.f32 %v11139, %v11251
  %v11268 = vmul.f32 %v11140, %v11252
  %v11269 = vmul.f32 %v11141, %v11253
  %v11270 = vmul.f32 %v11142, %v11254
  %v11271 = vmul.f32 %v11143, %v11255
  %v11272 = vmul.f32 %v11144, %v11256
  %v11273 = vmul.f32 %v11145, %v11257
  %v11274 = vmul.f32 %v11146, %v11258
  %v11275 = vmul.f32 %v11147, %v11259
  %v11276 = vmul.f32 %v11148, %v11260
  %v11277 = vmul.f32 %v11149, %v11261
  %v11278 = vmul.f32 %v11150, %v11262
  %s11279 = scalar_lea.vmem %s8, 4
  %v11280 = vld [vmem:[%s11279] sm:$0xf]
  %s11281 = scalar_lea.vmem %s9, 4
  %v11282 = vld [vmem:[%s11281] sm:$0xf]
  %v11283 = vadd.f32 %v11263, %v11267
  %v11284 = vadd.f32 %v11283, %v11271
  %v11285 = vadd.f32 %v11284, %v11275
  %v11286 = vrot.slane %v11285, 4
  %v11287 = vadd.f32 %v11285, %v11286
  %v11288 = vrot.slane %v11287, 2
  %v11289 = vadd.f32 %v11287, %v11288
  %v11290 = vrot.slane %v11289, 1
  %v11291 = vadd.f32 %v11289, %v11290
  %v11292 = vadd.f32 %v11264, %v11268
  %v11293 = vadd.f32 %v11292, %v11272
  %v11294 = vadd.f32 %v11293, %v11276
  %v11295 = vrot.slane %v11294, 4
  %v11296 = vadd.f32 %v11294, %v11295
  %v11297 = vrot.slane %v11296, 2
  %v11298 = vadd.f32 %v11296, %v11297
  %v11299 = vrot.slane %v11298, 1
  %v11300 = vadd.f32 %v11298, %v11299
  %v11301 = vadd.f32 %v11265, %v11269
  %v11302 = vadd.f32 %v11301, %v11273
  %v11303 = vadd.f32 %v11302, %v11277
  %v11304 = vrot.slane %v11303, 4
  %v11305 = vadd.f32 %v11303, %v11304
  %v11306 = vrot.slane %v11305, 2
  %v11307 = vadd.f32 %v11305, %v11306
  %v11308 = vrot.slane %v11307, 1
  %v11309 = vadd.f32 %v11307, %v11308
  %v11310 = vadd.f32 %v11266, %v11270
  %v11311 = vadd.f32 %v11310, %v11274
  %v11312 = vadd.f32 %v11311, %v11278
  %v11313 = vrot.slane %v11312, 4
  %v11314 = vadd.f32 %v11312, %v11313
  %v11315 = vrot.slane %v11314, 2
  %v11316 = vadd.f32 %v11314, %v11315
  %v11317 = vrot.slane %v11316, 1
  %v11318 = vadd.f32 %v11316, %v11317
  %v11319 = vmul.f32 %v11263, %v11263
  %v11320 = vmul.f32 %v11264, %v11264
  %v11321 = vmul.f32 %v11265, %v11265
  %v11322 = vmul.f32 %v11266, %v11266
  %v11323 = vmul.f32 %v11267, %v11267
  %v11324 = vmul.f32 %v11268, %v11268
  %v11325 = vmul.f32 %v11269, %v11269
  %v11326 = vmul.f32 %v11270, %v11270
  %v11327 = vmul.f32 %v11271, %v11271
  %v11328 = vmul.f32 %v11272, %v11272
  %v11329 = vmul.f32 %v11273, %v11273
  %v11330 = vmul.f32 %v11274, %v11274
  %v11331 = vmul.f32 %v11275, %v11275
  %v11332 = vmul.f32 %v11276, %v11276
  %v11333 = vmul.f32 %v11277, %v11277
  %v11334 = vmul.f32 %v11278, %v11278
  %v11335 = vadd.f32 %v11319, %v11323
  %v11336 = vadd.f32 %v11335, %v11327
  %v11337 = vadd.f32 %v11336, %v11331
  %v11338 = vrot.slane %v11337, 4
  %v11339 = vadd.f32 %v11337, %v11338
  %v11340 = vrot.slane %v11339, 2
  %v11341 = vadd.f32 %v11339, %v11340
  %v11342 = vrot.slane %v11341, 1
  %v11343 = vadd.f32 %v11341, %v11342
  %v11344 = vadd.f32 %v11320, %v11324
  %v11345 = vadd.f32 %v11344, %v11328
  %v11346 = vadd.f32 %v11345, %v11332
  %v11347 = vrot.slane %v11346, 4
  %v11348 = vadd.f32 %v11346, %v11347
  %v11349 = vrot.slane %v11348, 2
  %v11350 = vadd.f32 %v11348, %v11349
  %v11351 = vrot.slane %v11350, 1
  %v11352 = vadd.f32 %v11350, %v11351
  %v11353 = vadd.f32 %v11321, %v11325
  %v11354 = vadd.f32 %v11353, %v11329
  %v11355 = vadd.f32 %v11354, %v11333
  %v11356 = vrot.slane %v11355, 4
  %v11357 = vadd.f32 %v11355, %v11356
  %v11358 = vrot.slane %v11357, 2
  %v11359 = vadd.f32 %v11357, %v11358
  %v11360 = vrot.slane %v11359, 1
  %v11361 = vadd.f32 %v11359, %v11360
  %v11362 = vadd.f32 %v11322, %v11326
  %v11363 = vadd.f32 %v11362, %v11330
  %v11364 = vadd.f32 %v11363, %v11334
  %v11365 = vrot.slane %v11364, 4
  %v11366 = vadd.f32 %v11364, %v11365
  %v11367 = vrot.slane %v11366, 2
  %v11368 = vadd.f32 %v11366, %v11367
  %v11369 = vrot.slane %v11368, 1
  %v11370 = vadd.f32 %v11368, %v11369
  %v11371 = vsel %vm4760, %v11291, %v11343
  %v11372 = vsel %vm4760, %v11300, %v11352
  %v11373 = vsel %vm4760, %v11309, %v11361
  %v11374 = vsel %vm4760, %v11318, %v11370
  %v11375 = vadd.f32 %v11371, %v11373
  %v11376 = vadd.f32 %v11372, %v11374
  %v11377 = vadd.f32 %v11375, %v11376
  %11378 = vrot.lane.b32.xlu0 %v11377, 64
  %v11379 = vpop.permute.xlu0 %11378
  %v11380 = vadd.f32 %v11377, %v11379
  %11381 = vrot.lane.b32.xlu0 %v11380, 32
  %v11382 = vpop.permute.xlu0 %11381
  %v11383 = vadd.f32 %v11380, %v11382
  %v11384 = vmul.f32 %v11383, 0.001953125
  %v11385 = vmul.f32 %v11384, %v11384
  %v11387 = vrot.slane %v11385, 7
  %v11389 = vsub.f32 %v11384, %v11387
  %v11390 = vperm.slane %v11384, 0
  %v11391 = vsub.f32 %v11263, %v11390
  %v11392 = vsub.f32 %v11264, %v11390
  %v11393 = vsub.f32 %v11265, %v11390
  %v11394 = vsub.f32 %v11266, %v11390
  %v11395 = vsub.f32 %v11267, %v11390
  %v11396 = vsub.f32 %v11268, %v11390
  %v11397 = vsub.f32 %v11269, %v11390
  %v11398 = vsub.f32 %v11270, %v11390
  %v11399 = vsub.f32 %v11271, %v11390
  %v11400 = vsub.f32 %v11272, %v11390
  %v11401 = vsub.f32 %v11273, %v11390
  %v11402 = vsub.f32 %v11274, %v11390
  %v11403 = vsub.f32 %v11275, %v11390
  %v11404 = vsub.f32 %v11276, %v11390
  %v11405 = vsub.f32 %v11277, %v11390
  %v11406 = vsub.f32 %v11278, %v11390
  %v11407 = vadd.f32 %v11389, 1e-05
  %v11408 = vrsqrt.pop %v11407
  %v11409 = vmul.f32 %v11408, %v11407
  %v11410 = vmul.f32 %v11409, %v11408
  %v11411 = vmul.f32 0.5, %v11410
  %v11412 = vsub.f32 1.5, %v11411
  %v11413 = vmul.f32 %v11408, %v11412
  %vm11414 = vweird.f32 %v11407
  %vm11415 = vweird.f32 %v11408
  %vm11416 = vmor %vm11414, %vm11415
  %v11417 = vsel %vm11416, %v11408, %v11413
  %v11418 = vperm.slane %v11417, 1
  %v11419 = vmul.f32 %v11391, %v11418
  %v11420 = vmul.f32 %v11392, %v11418
  %v11421 = vmul.f32 %v11393, %v11418
  %v11422 = vmul.f32 %v11394, %v11418
  %v11423 = vmul.f32 %v11395, %v11418
  %v11424 = vmul.f32 %v11396, %v11418
  %v11425 = vmul.f32 %v11397, %v11418
  %v11426 = vmul.f32 %v11398, %v11418
  %v11427 = vmul.f32 %v11399, %v11418
  %v11428 = vmul.f32 %v11400, %v11418
  %v11429 = vmul.f32 %v11401, %v11418
  %v11430 = vmul.f32 %v11402, %v11418
  %v11431 = vmul.f32 %v11403, %v11418
  %v11432 = vmul.f32 %v11404, %v11418
  %v11433 = vmul.f32 %v11405, %v11418
  %v11434 = vmul.f32 %v11406, %v11418
  %v11436 = vperm.slane %v11280, 0
  %v11437 = vperm.slane %v11280, 1
  %v11438 = vperm.slane %v11280, 2
  %v11439 = vperm.slane %v11280, 3
  %v11444 = vmul.f32 %v11419, %v11436
  %v11445 = vmul.f32 %v11420, %v11437
  %v11446 = vmul.f32 %v11421, %v11438
  %v11447 = vmul.f32 %v11422, %v11439
  %v11448 = vmul.f32 %v11423, %v11436
  %v11449 = vmul.f32 %v11424, %v11437
  %v11450 = vmul.f32 %v11425, %v11438
  %v11451 = vmul.f32 %v11426, %v11439
  %v11452 = vmul.f32 %v11427, %v11436
  %v11453 = vmul.f32 %v11428, %v11437
  %v11454 = vmul.f32 %v11429, %v11438
  %v11455 = vmul.f32 %v11430, %v11439
  %v11456 = vmul.f32 %v11431, %v11436
  %v11457 = vmul.f32 %v11432, %v11437
  %v11458 = vmul.f32 %v11433, %v11438
  %v11459 = vmul.f32 %v11434, %v11439
  %v11461 = vperm.slane %v11282, 0
  %v11462 = vperm.slane %v11282, 1
  %v11463 = vperm.slane %v11282, 2
  %v11464 = vperm.slane %v11282, 3
  %v11469 = vadd.f32 %v11444, %v11461
  %v11470 = vadd.f32 %v11445, %v11462
  %v11471 = vadd.f32 %v11446, %v11463
  %v11472 = vadd.f32 %v11447, %v11464
  %v11473 = vadd.f32 %v11448, %v11461
  %v11474 = vadd.f32 %v11449, %v11462
  %v11475 = vadd.f32 %v11450, %v11463
  %v11476 = vadd.f32 %v11451, %v11464
  %v11477 = vadd.f32 %v11452, %v11461
  %v11478 = vadd.f32 %v11453, %v11462
  %v11479 = vadd.f32 %v11454, %v11463
  %v11480 = vadd.f32 %v11455, %v11464
  %v11481 = vadd.f32 %v11456, %v11461
  %v11482 = vadd.f32 %v11457, %v11462
  %v11483 = vadd.f32 %v11458, %v11463
  %v11484 = vadd.f32 %v11459, %v11464
  %11485 = vst [vmem:[%s10] sm:$0xff] %v11469
  %11486 = vst [vmem:[%s10 + $0x8] sm:$0xff] %v11470
  %11487 = vst [vmem:[%s10 + $0x10] sm:$0xff] %v11471
  %11488 = vst [vmem:[%s10 + $0x18] sm:$0xff] %v11472
  %11489 = vst [vmem:[%s10 + $0x20] sm:$0xff] %v11473
  %11490 = vst [vmem:[%s10 + $0x28] sm:$0xff] %v11474
  %11491 = vst [vmem:[%s10 + $0x30] sm:$0xff] %v11475
  %11492 = vst [vmem:[%s10 + $0x38] sm:$0xff] %v11476
  %11493 = vst [vmem:[%s10 + $0x40] sm:$0xff] %v11477
  %11494 = vst [vmem:[%s10 + $0x48] sm:$0xff] %v11478
  %11495 = vst [vmem:[%s10 + $0x50] sm:$0xff] %v11479
  %11496 = vst [vmem:[%s10 + $0x58] sm:$0xff] %v11480
  %11497 = vst [vmem:[%s10 + $0x60] sm:$0xff] %v11481
  %11498 = vst [vmem:[%s10 + $0x68] sm:$0xff] %v11482
  %11499 = vst [vmem:[%s10 + $0x70] sm:$0xff] %v11483
  %11500 = vst [vmem:[%s10 + $0x78] sm:$0xff] %v11484
  // Predicated region
  $region42: #{freak_model_forward.1} parent=0 // pred_check
    _
  $region43: #{freak_model_forward.1} parent=0 // pred_check_branch
    %11502 = sbr.rel (0) target = $region45
  $region44: #{freak_model_forward.1} parent=0 // pred_region
    _
  $region45: #{freak_model_forward.1} parent=0 // pred_fallthru
    _
  // Predicated region
  $region46: #{freak_model_forward.1} parent=0 // pred_check
    _
  $region47: #{freak_model_forward.1} parent=0 // pred_check_branch
    %11504 = sbr.rel (0) target = $region49
  $region48: #{freak_model_forward.1} parent=0 // pred_region
    _
  $region49: #{freak_model_forward.1} parent=0 // pred_fallthru
    _

</llo_original>
